<compile_context>
chip_gen: v7x
topology: tpu7x:2x2x1
jax: 0.10.0
libtpu: 0.0.40
codegen_flags: <defaults>
</compile_context>

<pallas_src>
import functools

import jax
import jax.numpy as jnp
from jax.experimental import pallas as pl
from jax.experimental.pallas import tpu as pltpu


# ---------------------------------------------------------------------------
# ResBlock kernel (stride=1, which is all DownBlock uses)
# ---------------------------------------------------------------------------
def _resblock_kernel(x_ref, w1_ref, b1_ref, w2_ref, b2_ref, ws_ref, bs_ref,
                     out_ref, xpad_ref, midp_ref, *, H, W, Cin, Cout):
    # Zero only the 1-pixel halo border (cheap thin strips); the interiors are
    # fully rewritten every step, so no stale data can leak into the taps.
    xpad_ref[0:1, :, :] = jnp.zeros((1, W + 2, Cin), jnp.float32)
    xpad_ref[H + 1:H + 2, :, :] = jnp.zeros((1, W + 2, Cin), jnp.float32)
    xpad_ref[:, 0:1, :] = jnp.zeros((H + 2, 1, Cin), jnp.float32)
    xpad_ref[:, W + 1:W + 2, :] = jnp.zeros((H + 2, 1, Cin), jnp.float32)
    midp_ref[0:1, :, :] = jnp.zeros((1, W + 2, Cout), jnp.float32)
    midp_ref[H + 1:H + 2, :, :] = jnp.zeros((1, W + 2, Cout), jnp.float32)
    midp_ref[:, 0:1, :] = jnp.zeros((H + 2, 1, Cout), jnp.float32)
    midp_ref[:, W + 1:W + 2, :] = jnp.zeros((H + 2, 1, Cout), jnp.float32)

    x = x_ref[0]                                        # (H, W, Cin) raw input
    # main-branch input: ReLU(x), zero-padded by 1 (ReLU(0) == 0, so halo stays 0)
    xpad_ref[1:H + 1, 1:W + 1, :] = jnp.maximum(x, 0.0)

    # ---- conv1: 3x3, stride 1, pad 1 -> 9 im2col-tap MXU dots, f32 accumulate
    acc1 = jnp.zeros((H * W, Cout), jnp.float32)
    for dy in range(3):
        for dx in range(3):
            tap = xpad_ref[dy:dy + H, dx:dx + W, :].reshape(H * W, Cin)
            w_tap = w1_ref[(dy * 3 + dx) * Cin:(dy * 3 + dx + 1) * Cin, :]
            acc1 = acc1 + jnp.dot(tap, w_tap, preferred_element_type=jnp.float32)
    mid = jnp.maximum(acc1 + b1_ref[...], 0.0)          # bias + ReLU, (H*W, Cout)
    midp_ref[1:H + 1, 1:W + 1, :] = mid.reshape(H, W, Cout)

    # ---- conv2: 3x3, stride 1, pad 1
    acc2 = jnp.zeros((H * W, Cout), jnp.float32)
    for dy in range(3):
        for dx in range(3):
            tap = midp_ref[dy:dy + H, dx:dx + W, :].reshape(H * W, Cout)
            w_tap = w2_ref[(dy * 3 + dx) * Cout:(dy * 3 + dx + 1) * Cout, :]
            acc2 = acc2 + jnp.dot(tap, w_tap, preferred_element_type=jnp.float32)
    acc2 = acc2 + b2_ref[...]

    # ---- skip: 1x1 conv on the raw x block already in VMEM
    #      (identity weights / zero bias encode nn.Identity).
    skip = jnp.dot(x.reshape(H * W, Cin), ws_ref[...],
                   preferred_element_type=jnp.float32) + bs_ref[...]

    out_ref[0] = (skip + acc2).astype(out_ref.dtype)


def _resblock_nhwc(x_nhwc, params):
    """One stride-1 ResBlock on an NHWC activation; returns NHWC."""
    w1, b1, w2, b2, ws, bs = params
    N, H, W, Cin = x_nhwc.shape
    Cout = w1.shape[0]
    # W multiple of 8 keeps the (H, W, C) <-> (H*W, C) im2col reshapes layout-free.
    assert W % 8 == 0, "W must be a multiple of 8 for the free im2col reshape"

    # repack weights (glue): OIHW -> (kh*kw*Cin, Cout) tap-major; biases -> (1, Cout)
    w1_k = jnp.transpose(w1, (2, 3, 1, 0)).reshape(9 * Cin, Cout)
    w2_k = jnp.transpose(w2, (2, 3, 1, 0)).reshape(9 * Cout, Cout)
    ws_k = jnp.transpose(ws[:, :, 0, 0], (1, 0))                    # (Cin, Cout)
    b1_k = b1.reshape(1, Cout)
    b2_k = b2.reshape(1, Cout)
    bs_k = bs.reshape(1, Cout)

    kernel = functools.partial(_resblock_kernel, H=H, W=W, Cin=Cin, Cout=Cout)

    def full(shape):
        return pl.BlockSpec(shape, lambda n: (0,) * len(shape))

    out = pl.pallas_call(
        kernel,
        out_shape=jax.ShapeDtypeStruct((N, H * W, Cout), jnp.float32),
        grid_spec=pltpu.PrefetchScalarGridSpec(
            num_scalar_prefetch=0,
            grid=(N,),                                   # one image per step
            in_specs=[
                pl.BlockSpec((1, H, W, Cin), lambda n: (n, 0, 0, 0)),
                full((9 * Cin, Cout)),
                full((1, Cout)),
                full((9 * Cout, Cout)),
                full((1, Cout)),
                full((Cin, Cout)),
                full((1, Cout)),
            ],
            out_specs=pl.BlockSpec((1, H * W, Cout), lambda n: (n, 0, 0)),
            scratch_shapes=[
                pltpu.VMEM((H + 2, W + 2, Cin), jnp.float32),   # padded ReLU(x)
                pltpu.VMEM((H + 2, W + 2, Cout), jnp.float32),  # padded ReLU(conv1)
            ],
        ),
        compiler_params=pltpu.CompilerParams(
            dimension_semantics=("parallel",),
            vmem_limit_bytes=32 * 1024 * 1024,
        ),
    )(x_nhwc.astype(jnp.float32), w1_k, b1_k, w2_k, b2_k, ws_k, bs_k)

    return out.reshape(N, H, W, Cout)


# ---------------------------------------------------------------------------
# AvgPool2d(2, 2) kernel
# ---------------------------------------------------------------------------
def _avgpool_kernel(x_ref, pw_ref, o_ref, *, rows_per_step):
    # x_ref: (1, 2*rows_per_step, W, C); pw_ref: (Wo, W) width-pooling matrix.
    for r in range(rows_per_step):
        s = x_ref[0, 2 * r] + x_ref[0, 2 * r + 1]               # (W, C) row-pair sum
        o_ref[0, r] = 0.25 * jnp.dot(pw_ref[...], s,
                                     preferred_element_type=jnp.float32)


def _avgpool2x2_nhwc(x_nhwc):
    N, H, W, C = x_nhwc.shape
    assert H % 2 == 0 and W % 2 == 0
    Ho, Wo = H // 2, W // 2
    rows_per_step = Ho if Ho <= 8 else 8
    while Ho % rows_per_step:
        rows_per_step -= 1
    # pw[j, 2j] = pw[j, 2j+1] = 1  -> width pooling as a single MXU dot
    pw = jnp.repeat(jnp.eye(Wo, dtype=jnp.float32), 2, axis=1)   # (Wo, W)

    kernel = functools.partial(_avgpool_kernel, rows_per_step=rows_per_step)
    return pl.pallas_call(
        kernel,
        out_shape=jax.ShapeDtypeStruct((N, Ho, Wo, C), jnp.float32),
        grid_spec=pltpu.PrefetchScalarGridSpec(
            num_scalar_prefetch=0,
            grid=(N, Ho // rows_per_step),
            in_specs=[
                pl.BlockSpec((1, 2 * rows_per_step, W, C), lambda n, t: (n, t, 0, 0)),
                pl.BlockSpec((Wo, W), lambda n, t: (0, 0)),
            ],
            out_specs=pl.BlockSpec((1, rows_per_step, Wo, C), lambda n, t: (n, t, 0, 0)),
        ),
        compiler_params=pltpu.CompilerParams(
            dimension_semantics=("parallel", "parallel"),
            vmem_limit_bytes=32 * 1024 * 1024,
        ),
    )(x_nhwc.astype(jnp.float32), pw)


# ---------------------------------------------------------------------------
# DownBlock wrapper (PyTorch-style NCHW in / out)
# ---------------------------------------------------------------------------
def downblock_pallas(x_nchw, blocks_params):
    """DownBlock.forward: returns (avg-pooled x, [per-ResBlock outputs]) in NCHW."""
    x = jnp.transpose(x_nchw, (0, 2, 3, 1)).astype(jnp.float32)   # NCHW -> NHWC once
    res_nhwc = []
    for params in blocks_params:
        x = _resblock_nhwc(x, params)
        res_nhwc.append(x)
    pooled = _avgpool2x2_nhwc(x)
    to_nchw = lambda t: jnp.transpose(t, (0, 3, 1, 2))
    return to_nchw(pooled), [to_nchw(r) for r in res_nhwc]


# ---------------------------------------------------------------------------
# Parameter init (PyTorch layouts: OIHW weights, 1-D biases)
# ---------------------------------------------------------------------------
def init_resblock_params(key, in_channel, out_channel):
    k1, k2, k3, k4, k5, k6 = jax.random.split(key, 6)
    w1 = jax.random.normal(k1, (out_channel, in_channel, 3, 3), jnp.float32) * 0.1
    b1 = jax.random.normal(k2, (out_channel,), jnp.float32) * 0.1
    w2 = jax.random.normal(k3, (out_channel, out_channel, 3, 3), jnp.float32) * 0.1
    b2 = jax.random.normal(k4, (out_channel,), jnp.float32) * 0.1
    if in_channel != out_channel:
        ws = jax.random.normal(k5, (out_channel, in_channel, 1, 1), jnp.float32) * 0.1
        bs = jax.random.normal(k6, (out_channel,), jnp.float32) * 0.1
    else:
        # nn.Identity() == 1x1 conv with identity weights and zero bias (stride 1)
        ws = jnp.eye(out_channel, dtype=jnp.float32)[:, :, None, None]
        bs = jnp.zeros((out_channel,), jnp.float32)
    return (w1, b1, w2, b2, ws, bs)


def init_downblock_params(key, in_channel, out_channel, n_resblocks):
    keys = jax.random.split(key, n_resblocks)
    params, cin = [], in_channel
    for i in range(n_resblocks):
        params.append(init_resblock_params(keys[i], cin, out_channel))
        cin = out_channel
    return params


# ---------------------------------------------------------------------------
# Pure-JAX reference of the PyTorch forward, for verification
# ---------------------------------------------------------------------------
def _conv_ref(x, w, b, stride, pad):
    y = jax.lax.conv_general_dilated(
        x, w, (stride, stride), ((pad, pad), (pad, pad)),
        dimension_numbers=('NCHW', 'OIHW', 'NCHW'),
        precision=jax.lax.Precision.HIGHEST)
    return y + b[None, :, None, None]


def resblock_ref(x, params):
    w1, b1, w2, b2, ws, bs = params
    x1 = _conv_ref(x, ws, bs, 1, 0)        # skip (identity == identity-weight conv)
    h = jax.nn.relu(x)
    h = _conv_ref(h, w1, b1, 1, 1)
    h = jax.nn.relu(h)
    h = _conv_ref(h, w2, b2, 1, 1)
    return x1 + h


def downblock_ref(x, blocks_params):
    res = []
    for p in blocks_params:
        x = resblock_ref(x, p)
        res.append(x)
    N, C, H, W = x.shape
    pooled = x.reshape(N, C, H // 2, 2, W // 2, 2).mean(axis=(3, 5))
    return pooled, res


if __name__ == "__main__":
    key = jax.random.PRNGKey(0)
    kx, kp = jax.random.split(key)

    batch, in_channel, out_channel, hw, n_resblocks = 2, 4, 8, 16, 2
    x = jax.random.normal(kx, (batch, in_channel, hw, hw), jnp.float32)
    params = init_downblock_params(kp, in_channel, out_channel, n_resblocks)

    pooled, res_results = downblock_pallas(x, params)
    pooled = jax.block_until_ready(pooled)
    res_results = [jax.block_until_ready(r) for r in res_results]

    pooled_ref, res_ref = downblock_ref(x, params)
    assert pooled.shape == pooled_ref.shape == (batch, out_channel, hw // 2, hw // 2)
    assert len(res_results) == n_resblocks
    # 2e-3 tolerance: the in-kernel MXU f32 pass scheme may differ slightly from
    # the XLA reference convolution across TPU generations.
    for got, want in list(zip(res_results, res_ref)) + [(pooled, pooled_ref)]:
        assert got.shape == want.shape
        assert jnp.allclose(got, want, rtol=2e-3, atol=2e-3), \
            float(jnp.max(jnp.abs(got - want)))
    print("KERNEL_OK")
</pallas_src>

<mosaic_0001>
module attributes {stable_mosaic.version = 11 : i64} {
  func.func @_resblock_kernel(%arg0: i32, %arg1: memref<1x16x16x4xf32, #tpu.memory_space<vmem>>, %arg2: memref<36x8xf32, #tpu.memory_space<vmem>>, %arg3: memref<1x8xf32, #tpu.memory_space<vmem>>, %arg4: memref<72x8xf32, #tpu.memory_space<vmem>>, %arg5: memref<1x8xf32, #tpu.memory_space<vmem>>, %arg6: memref<4x8xf32, #tpu.memory_space<vmem>>, %arg7: memref<1x8xf32, #tpu.memory_space<vmem>>, %arg8: memref<1x256x8xf32, #tpu.memory_space<vmem>>, %arg9: memref<18x18x4xf32, #tpu.memory_space<vmem>>, %arg10: memref<18x18x8xf32, #tpu.memory_space<vmem>>) attributes {dimension_semantics = [#tpu.dimension_semantics<parallel>], iteration_bounds = array<i64: 2>, scalar_prefetch = 0 : i64, scratch_operands = 2 : i64, tpu.core_type = #tpu.core_type<tc>, window_params = [{transform_indices = @transform_0, window_bounds = array<i64: 1, 16, 16, 4>}, {pipeline_mode = #tpu.pipeline_mode<synchronous>, transform_indices = @transform_1, window_bounds = array<i64: 36, 8>}, {pipeline_mode = #tpu.pipeline_mode<synchronous>, transform_indices = @transform_2, window_bounds = array<i64: 1, 8>}, {pipeline_mode = #tpu.pipeline_mode<synchronous>, transform_indices = @transform_3, window_bounds = array<i64: 72, 8>}, {pipeline_mode = #tpu.pipeline_mode<synchronous>, transform_indices = @transform_4, window_bounds = array<i64: 1, 8>}, {pipeline_mode = #tpu.pipeline_mode<synchronous>, transform_indices = @transform_5, window_bounds = array<i64: 4, 8>}, {pipeline_mode = #tpu.pipeline_mode<synchronous>, transform_indices = @transform_6, window_bounds = array<i64: 1, 8>}, {transform_indices = @transform_7, window_bounds = array<i64: 1, 256, 8>}]} {
    %cst = arith.constant 0.000000e+00 : f32
    %0 = vector.broadcast %cst : f32 to vector<1x18x4xf32>
    %c0 = arith.constant 0 : index
    %c0_0 = arith.constant 0 : index
    %c0_1 = arith.constant 0 : index
    %1 = vector.load %arg9[%c0, %c0_0, %c0_1] : memref<18x18x4xf32, #tpu.memory_space<vmem>>, vector<1x18x4xf32>
    tpu.vector_store %arg9[%c0, %c0_0, %c0_1], %0 {strides = array<i32>} : memref<18x18x4xf32, #tpu.memory_space<vmem>>, vector<1x18x4xf32>,
    %cst_2 = arith.constant 0.000000e+00 : f32
    %2 = vector.broadcast %cst_2 : f32 to vector<1x18x4xf32>
    %c17 = arith.constant 17 : index
    %c0_3 = arith.constant 0 : index
    %c0_4 = arith.constant 0 : index
    %3 = vector.load %arg9[%c17, %c0_3, %c0_4] : memref<18x18x4xf32, #tpu.memory_space<vmem>>, vector<1x18x4xf32>
    tpu.vector_store %arg9[%c17, %c0_3, %c0_4], %2 {strides = array<i32>} : memref<18x18x4xf32, #tpu.memory_space<vmem>>, vector<1x18x4xf32>,
    %cst_5 = arith.constant 0.000000e+00 : f32
    %4 = vector.broadcast %cst_5 : f32 to vector<18x1x4xf32>
    %c0_6 = arith.constant 0 : index
    %c0_7 = arith.constant 0 : index
    %c0_8 = arith.constant 0 : index
    %5 = vector.load %arg9[%c0_6, %c0_7, %c0_8] : memref<18x18x4xf32, #tpu.memory_space<vmem>>, vector<18x1x4xf32>
    tpu.vector_store %arg9[%c0_6, %c0_7, %c0_8], %4 {strides = array<i32>} : memref<18x18x4xf32, #tpu.memory_space<vmem>>, vector<18x1x4xf32>,
    %cst_9 = arith.constant 0.000000e+00 : f32
    %6 = vector.broadcast %cst_9 : f32 to vector<18x1x4xf32>
    %c0_10 = arith.constant 0 : index
    %c17_11 = arith.constant 17 : index
    %c0_12 = arith.constant 0 : index
    %7 = vector.load %arg9[%c0_10, %c17_11, %c0_12] : memref<18x18x4xf32, #tpu.memory_space<vmem>>, vector<18x1x4xf32>
    tpu.vector_store %arg9[%c0_10, %c17_11, %c0_12], %6 {strides = array<i32>} : memref<18x18x4xf32, #tpu.memory_space<vmem>>, vector<18x1x4xf32>,
    %cst_13 = arith.constant 0.000000e+00 : f32
    %8 = vector.broadcast %cst_13 : f32 to vector<1x18x8xf32>
    %c0_14 = arith.constant 0 : index
    %c0_15 = arith.constant 0 : index
    %c0_16 = arith.constant 0 : index
    %9 = vector.load %arg10[%c0_14, %c0_15, %c0_16] : memref<18x18x8xf32, #tpu.memory_space<vmem>>, vector<1x18x8xf32>
    tpu.vector_store %arg10[%c0_14, %c0_15, %c0_16], %8 {strides = array<i32>} : memref<18x18x8xf32, #tpu.memory_space<vmem>>, vector<1x18x8xf32>,
    %cst_17 = arith.constant 0.000000e+00 : f32
    %10 = vector.broadcast %cst_17 : f32 to vector<1x18x8xf32>
    %c17_18 = arith.constant 17 : index
    %c0_19 = arith.constant 0 : index
    %c0_20 = arith.constant 0 : index
    %11 = vector.load %arg10[%c17_18, %c0_19, %c0_20] : memref<18x18x8xf32, #tpu.memory_space<vmem>>, vector<1x18x8xf32>
    tpu.vector_store %arg10[%c17_18, %c0_19, %c0_20], %10 {strides = array<i32>} : memref<18x18x8xf32, #tpu.memory_space<vmem>>, vector<1x18x8xf32>,
    %cst_21 = arith.constant 0.000000e+00 : f32
    %12 = vector.broadcast %cst_21 : f32 to vector<18x1x8xf32>
    %c0_22 = arith.constant 0 : index
    %c0_23 = arith.constant 0 : index
    %c0_24 = arith.constant 0 : index
    %13 = vector.load %arg10[%c0_22, %c0_23, %c0_24] : memref<18x18x8xf32, #tpu.memory_space<vmem>>, vector<18x1x8xf32>
    tpu.vector_store %arg10[%c0_22, %c0_23, %c0_24], %12 {strides = array<i32>} : memref<18x18x8xf32, #tpu.memory_space<vmem>>, vector<18x1x8xf32>,
    %cst_25 = arith.constant 0.000000e+00 : f32
    %14 = vector.broadcast %cst_25 : f32 to vector<18x1x8xf32>
    %c0_26 = arith.constant 0 : index
    %c17_27 = arith.constant 17 : index
    %c0_28 = arith.constant 0 : index
    %15 = vector.load %arg10[%c0_26, %c17_27, %c0_28] : memref<18x18x8xf32, #tpu.memory_space<vmem>>, vector<18x1x8xf32>
    tpu.vector_store %arg10[%c0_26, %c17_27, %c0_28], %14 {strides = array<i32>} : memref<18x18x8xf32, #tpu.memory_space<vmem>>, vector<18x1x8xf32>,
    %c0_29 = arith.constant 0 : index
    %c0_30 = arith.constant 0 : index
    %c0_31 = arith.constant 0 : index
    %c0_32 = arith.constant 0 : index
    %16 = vector.load %arg1[%c0_29, %c0_30, %c0_31, %c0_32] : memref<1x16x16x4xf32, #tpu.memory_space<vmem>>, vector<1x16x16x4xf32>
    %17 = vector.shape_cast %16 : vector<1x16x16x4xf32> to vector<16x16x4xf32>
    %cst_33 = arith.constant 0.000000e+00 : f32
    %18 = vector.broadcast %cst_33 : f32 to vector<16x16x4xf32>
    %19 = arith.maximumf %17, %18 : vector<16x16x4xf32>
    %c1 = arith.constant 1 : index
    %c1_34 = arith.constant 1 : index
    %c0_35 = arith.constant 0 : index
    %20 = vector.load %arg9[%c1, %c1_34, %c0_35] : memref<18x18x4xf32, #tpu.memory_space<vmem>>, vector<16x16x4xf32>
    tpu.vector_store %arg9[%c1, %c1_34, %c0_35], %19 {strides = array<i32>} : memref<18x18x4xf32, #tpu.memory_space<vmem>>, vector<16x16x4xf32>,
    %cst_36 = arith.constant 0.000000e+00 : f32
    %21 = vector.broadcast %cst_36 : f32 to vector<256x8xf32>
    %c0_37 = arith.constant 0 : index
    %c0_38 = arith.constant 0 : index
    %c0_39 = arith.constant 0 : index
    %22 = vector.load %arg9[%c0_37, %c0_38, %c0_39] : memref<18x18x4xf32, #tpu.memory_space<vmem>>, vector<16x16x4xf32>
    %23 = vector.shape_cast %22 : vector<16x16x4xf32> to vector<256x4xf32>
    %c0_40 = arith.constant 0 : index
    %c0_41 = arith.constant 0 : index
    %24 = vector.load %arg2[%c0_40, %c0_41] : memref<36x8xf32, #tpu.memory_space<vmem>>, vector<4x8xf32>
    %cst_42 = arith.constant dense<0.000000e+00> : vector<256x8xf32>
    %25 = tpu.matmul %23, %24, %cst_42 {dimension_numbers = #tpu.dot_dimension_numbers<[1], [0], [0], [1], [0, 0, 1, 1], [], []>} : vector<256x4xf32>, vector<4x8xf32>, vector<256x8xf32> -> vector<256x8xf32>
    %26 = arith.addf %21, %25 : vector<256x8xf32>
    %c0_43 = arith.constant 0 : index
    %c1_44 = arith.constant 1 : index
    %c0_45 = arith.constant 0 : index
    %27 = vector.load %arg9[%c0_43, %c1_44, %c0_45] : memref<18x18x4xf32, #tpu.memory_space<vmem>>, vector<16x16x4xf32>
    %28 = vector.shape_cast %27 : vector<16x16x4xf32> to vector<256x4xf32>
    %c4 = arith.constant 4 : index
    %c0_46 = arith.constant 0 : index
    %29 = vector.load %arg2[%c4, %c0_46] : memref<36x8xf32, #tpu.memory_space<vmem>>, vector<4x8xf32>
    %cst_47 = arith.constant dense<0.000000e+00> : vector<256x8xf32>
    %30 = tpu.matmul %28, %29, %cst_47 {dimension_numbers = #tpu.dot_dimension_numbers<[1], [0], [0], [1], [0, 0, 1, 1], [], []>} : vector<256x4xf32>, vector<4x8xf32>, vector<256x8xf32> -> vector<256x8xf32>
    %31 = arith.addf %26, %30 : vector<256x8xf32>
    %c0_48 = arith.constant 0 : index
    %c2 = arith.constant 2 : index
    %c0_49 = arith.constant 0 : index
    %32 = vector.load %arg9[%c0_48, %c2, %c0_49] : memref<18x18x4xf32, #tpu.memory_space<vmem>>, vector<16x16x4xf32>
    %33 = vector.shape_cast %32 : vector<16x16x4xf32> to vector<256x4xf32>
    %c8 = arith.constant 8 : index
    %c0_50 = arith.constant 0 : index
    %34 = vector.load %arg2[%c8, %c0_50] : memref<36x8xf32, #tpu.memory_space<vmem>>, vector<4x8xf32>
    %cst_51 = arith.constant dense<0.000000e+00> : vector<256x8xf32>
    %35 = tpu.matmul %33, %34, %cst_51 {dimension_numbers = #tpu.dot_dimension_numbers<[1], [0], [0], [1], [0, 0, 1, 1], [], []>} : vector<256x4xf32>, vector<4x8xf32>, vector<256x8xf32> -> vector<256x8xf32>
    %36 = arith.addf %31, %35 : vector<256x8xf32>
    %c1_52 = arith.constant 1 : index
    %c0_53 = arith.constant 0 : index
    %c0_54 = arith.constant 0 : index
    %37 = vector.load %arg9[%c1_52, %c0_53, %c0_54] : memref<18x18x4xf32, #tpu.memory_space<vmem>>, vector<16x16x4xf32>
    %38 = vector.shape_cast %37 : vector<16x16x4xf32> to vector<256x4xf32>
    %c12 = arith.constant 12 : index
    %c0_55 = arith.constant 0 : index
    %39 = vector.load %arg2[%c12, %c0_55] : memref<36x8xf32, #tpu.memory_space<vmem>>, vector<4x8xf32>
    %cst_56 = arith.constant dense<0.000000e+00> : vector<256x8xf32>
    %40 = tpu.matmul %38, %39, %cst_56 {dimension_numbers = #tpu.dot_dimension_numbers<[1], [0], [0], [1], [0, 0, 1, 1], [], []>} : vector<256x4xf32>, vector<4x8xf32>, vector<256x8xf32> -> vector<256x8xf32>
    %41 = arith.addf %36, %40 : vector<256x8xf32>
    %c1_57 = arith.constant 1 : index
    %c1_58 = arith.constant 1 : index
    %c0_59 = arith.constant 0 : index
    %42 = vector.load %arg9[%c1_57, %c1_58, %c0_59] : memref<18x18x4xf32, #tpu.memory_space<vmem>>, vector<16x16x4xf32>
    %43 = vector.shape_cast %42 : vector<16x16x4xf32> to vector<256x4xf32>
    %c16 = arith.constant 16 : index
    %c0_60 = arith.constant 0 : index
    %44 = vector.load %arg2[%c16, %c0_60] : memref<36x8xf32, #tpu.memory_space<vmem>>, vector<4x8xf32>
    %cst_61 = arith.constant dense<0.000000e+00> : vector<256x8xf32>
    %45 = tpu.matmul %43, %44, %cst_61 {dimension_numbers = #tpu.dot_dimension_numbers<[1], [0], [0], [1], [0, 0, 1, 1], [], []>} : vector<256x4xf32>, vector<4x8xf32>, vector<256x8xf32> -> vector<256x8xf32>
    %46 = arith.addf %41, %45 : vector<256x8xf32>
    %c1_62 = arith.constant 1 : index
    %c2_63 = arith.constant 2 : index
    %c0_64 = arith.constant 0 : index
    %47 = vector.load %arg9[%c1_62, %c2_63, %c0_64] : memref<18x18x4xf32, #tpu.memory_space<vmem>>, vector<16x16x4xf32>
    %48 = vector.shape_cast %47 : vector<16x16x4xf32> to vector<256x4xf32>
    %c20 = arith.constant 20 : index
    %c0_65 = arith.constant 0 : index
    %49 = vector.load %arg2[%c20, %c0_65] : memref<36x8xf32, #tpu.memory_space<vmem>>, vector<4x8xf32>
    %cst_66 = arith.constant dense<0.000000e+00> : vector<256x8xf32>
    %50 = tpu.matmul %48, %49, %cst_66 {dimension_numbers = #tpu.dot_dimension_numbers<[1], [0], [0], [1], [0, 0, 1, 1], [], []>} : vector<256x4xf32>, vector<4x8xf32>, vector<256x8xf32> -> vector<256x8xf32>
    %51 = arith.addf %46, %50 : vector<256x8xf32>
    %c2_67 = arith.constant 2 : index
    %c0_68 = arith.constant 0 : index
    %c0_69 = arith.constant 0 : index
    %52 = vector.load %arg9[%c2_67, %c0_68, %c0_69] : memref<18x18x4xf32, #tpu.memory_space<vmem>>, vector<16x16x4xf32>
    %53 = vector.shape_cast %52 : vector<16x16x4xf32> to vector<256x4xf32>
    %c24 = arith.constant 24 : index
    %c0_70 = arith.constant 0 : index
    %54 = vector.load %arg2[%c24, %c0_70] : memref<36x8xf32, #tpu.memory_space<vmem>>, vector<4x8xf32>
    %cst_71 = arith.constant dense<0.000000e+00> : vector<256x8xf32>
    %55 = tpu.matmul %53, %54, %cst_71 {dimension_numbers = #tpu.dot_dimension_numbers<[1], [0], [0], [1], [0, 0, 1, 1], [], []>} : vector<256x4xf32>, vector<4x8xf32>, vector<256x8xf32> -> vector<256x8xf32>
    %56 = arith.addf %51, %55 : vector<256x8xf32>
    %c2_72 = arith.constant 2 : index
    %c1_73 = arith.constant 1 : index
    %c0_74 = arith.constant 0 : index
    %57 = vector.load %arg9[%c2_72, %c1_73, %c0_74] : memref<18x18x4xf32, #tpu.memory_space<vmem>>, vector<16x16x4xf32>
    %58 = vector.shape_cast %57 : vector<16x16x4xf32> to vector<256x4xf32>
    %c28 = arith.constant 28 : index
    %c0_75 = arith.constant 0 : index
    %59 = vector.load %arg2[%c28, %c0_75] : memref<36x8xf32, #tpu.memory_space<vmem>>, vector<4x8xf32>
    %cst_76 = arith.constant dense<0.000000e+00> : vector<256x8xf32>
    %60 = tpu.matmul %58, %59, %cst_76 {dimension_numbers = #tpu.dot_dimension_numbers<[1], [0], [0], [1], [0, 0, 1, 1], [], []>} : vector<256x4xf32>, vector<4x8xf32>, vector<256x8xf32> -> vector<256x8xf32>
    %61 = arith.addf %56, %60 : vector<256x8xf32>
    %c2_77 = arith.constant 2 : index
    %c2_78 = arith.constant 2 : index
    %c0_79 = arith.constant 0 : index
    %62 = vector.load %arg9[%c2_77, %c2_78, %c0_79] : memref<18x18x4xf32, #tpu.memory_space<vmem>>, vector<16x16x4xf32>
    %63 = vector.shape_cast %62 : vector<16x16x4xf32> to vector<256x4xf32>
    %c32 = arith.constant 32 : index
    %c0_80 = arith.constant 0 : index
    %64 = vector.load %arg2[%c32, %c0_80] : memref<36x8xf32, #tpu.memory_space<vmem>>, vector<4x8xf32>
    %cst_81 = arith.constant dense<0.000000e+00> : vector<256x8xf32>
    %65 = tpu.matmul %63, %64, %cst_81 {dimension_numbers = #tpu.dot_dimension_numbers<[1], [0], [0], [1], [0, 0, 1, 1], [], []>} : vector<256x4xf32>, vector<4x8xf32>, vector<256x8xf32> -> vector<256x8xf32>
    %66 = arith.addf %61, %65 : vector<256x8xf32>
    %c0_82 = arith.constant 0 : index
    %c0_83 = arith.constant 0 : index
    %67 = vector.load %arg3[%c0_82, %c0_83] : memref<1x8xf32, #tpu.memory_space<vmem>>, vector<1x8xf32>
    %68 = vector.broadcast %67 : vector<1x8xf32> to vector<256x8xf32>
    %69 = arith.addf %66, %68 : vector<256x8xf32>
    %cst_84 = arith.constant 0.000000e+00 : f32
    %70 = vector.broadcast %cst_84 : f32 to vector<256x8xf32>
    %71 = arith.maximumf %69, %70 : vector<256x8xf32>
    %72 = vector.shape_cast %71 : vector<256x8xf32> to vector<16x16x8xf32>
    %c1_85 = arith.constant 1 : index
    %c1_86 = arith.constant 1 : index
    %c0_87 = arith.constant 0 : index
    %73 = vector.load %arg10[%c1_85, %c1_86, %c0_87] : memref<18x18x8xf32, #tpu.memory_space<vmem>>, vector<16x16x8xf32>
    tpu.vector_store %arg10[%c1_85, %c1_86, %c0_87], %72 {strides = array<i32>} : memref<18x18x8xf32, #tpu.memory_space<vmem>>, vector<16x16x8xf32>,
    %cst_88 = arith.constant 0.000000e+00 : f32
    %74 = vector.broadcast %cst_88 : f32 to vector<256x8xf32>
    %c0_89 = arith.constant 0 : index
    %c0_90 = arith.constant 0 : index
    %c0_91 = arith.constant 0 : index
    %75 = vector.load %arg10[%c0_89, %c0_90, %c0_91] : memref<18x18x8xf32, #tpu.memory_space<vmem>>, vector<16x16x8xf32>
    %76 = vector.shape_cast %75 : vector<16x16x8xf32> to vector<256x8xf32>
    %c0_92 = arith.constant 0 : index
    %c0_93 = arith.constant 0 : index
    %77 = vector.load %arg4[%c0_92, %c0_93] : memref<72x8xf32, #tpu.memory_space<vmem>>, vector<8x8xf32>
    %cst_94 = arith.constant dense<0.000000e+00> : vector<256x8xf32>
    %78 = tpu.matmul %76, %77, %cst_94 {dimension_numbers = #tpu.dot_dimension_numbers<[1], [0], [0], [1], [0, 0, 1, 1], [], []>} : vector<256x8xf32>, vector<8x8xf32>, vector<256x8xf32> -> vector<256x8xf32>
    %79 = arith.addf %74, %78 : vector<256x8xf32>
    %c0_95 = arith.constant 0 : index
    %c1_96 = arith.constant 1 : index
    %c0_97 = arith.constant 0 : index
    %80 = vector.load %arg10[%c0_95, %c1_96, %c0_97] : memref<18x18x8xf32, #tpu.memory_space<vmem>>, vector<16x16x8xf32>
    %81 = vector.shape_cast %80 : vector<16x16x8xf32> to vector<256x8xf32>
    %c8_98 = arith.constant 8 : index
    %c0_99 = arith.constant 0 : index
    %82 = vector.load %arg4[%c8_98, %c0_99] : memref<72x8xf32, #tpu.memory_space<vmem>>, vector<8x8xf32>
    %cst_100 = arith.constant dense<0.000000e+00> : vector<256x8xf32>
    %83 = tpu.matmul %81, %82, %cst_100 {dimension_numbers = #tpu.dot_dimension_numbers<[1], [0], [0], [1], [0, 0, 1, 1], [], []>} : vector<256x8xf32>, vector<8x8xf32>, vector<256x8xf32> -> vector<256x8xf32>
    %84 = arith.addf %79, %83 : vector<256x8xf32>
    %c0_101 = arith.constant 0 : index
    %c2_102 = arith.constant 2 : index
    %c0_103 = arith.constant 0 : index
    %85 = vector.load %arg10[%c0_101, %c2_102, %c0_103] : memref<18x18x8xf32, #tpu.memory_space<vmem>>, vector<16x16x8xf32>
    %86 = vector.shape_cast %85 : vector<16x16x8xf32> to vector<256x8xf32>
    %c16_104 = arith.constant 16 : index
    %c0_105 = arith.constant 0 : index
    %87 = vector.load %arg4[%c16_104, %c0_105] : memref<72x8xf32, #tpu.memory_space<vmem>>, vector<8x8xf32>
    %cst_106 = arith.constant dense<0.000000e+00> : vector<256x8xf32>
    %88 = tpu.matmul %86, %87, %cst_106 {dimension_numbers = #tpu.dot_dimension_numbers<[1], [0], [0], [1], [0, 0, 1, 1], [], []>} : vector<256x8xf32>, vector<8x8xf32>, vector<256x8xf32> -> vector<256x8xf32>
    %89 = arith.addf %84, %88 : vector<256x8xf32>
    %c1_107 = arith.constant 1 : index
    %c0_108 = arith.constant 0 : index
    %c0_109 = arith.constant 0 : index
    %90 = vector.load %arg10[%c1_107, %c0_108, %c0_109] : memref<18x18x8xf32, #tpu.memory_space<vmem>>, vector<16x16x8xf32>
    %91 = vector.shape_cast %90 : vector<16x16x8xf32> to vector<256x8xf32>
    %c24_110 = arith.constant 24 : index
    %c0_111 = arith.constant 0 : index
    %92 = vector.load %arg4[%c24_110, %c0_111] : memref<72x8xf32, #tpu.memory_space<vmem>>, vector<8x8xf32>
    %cst_112 = arith.constant dense<0.000000e+00> : vector<256x8xf32>
    %93 = tpu.matmul %91, %92, %cst_112 {dimension_numbers = #tpu.dot_dimension_numbers<[1], [0], [0], [1], [0, 0, 1, 1], [], []>} : vector<256x8xf32>, vector<8x8xf32>, vector<256x8xf32> -> vector<256x8xf32>
    %94 = arith.addf %89, %93 : vector<256x8xf32>
    %c1_113 = arith.constant 1 : index
    %c1_114 = arith.constant 1 : index
    %c0_115 = arith.constant 0 : index
    %95 = vector.load %arg10[%c1_113, %c1_114, %c0_115] : memref<18x18x8xf32, #tpu.memory_space<vmem>>, vector<16x16x8xf32>
    %96 = vector.shape_cast %95 : vector<16x16x8xf32> to vector<256x8xf32>
    %c32_116 = arith.constant 32 : index
    %c0_117 = arith.constant 0 : index
    %97 = vector.load %arg4[%c32_116, %c0_117] : memref<72x8xf32, #tpu.memory_space<vmem>>, vector<8x8xf32>
    %cst_118 = arith.constant dense<0.000000e+00> : vector<256x8xf32>
    %98 = tpu.matmul %96, %97, %cst_118 {dimension_numbers = #tpu.dot_dimension_numbers<[1], [0], [0], [1], [0, 0, 1, 1], [], []>} : vector<256x8xf32>, vector<8x8xf32>, vector<256x8xf32> -> vector<256x8xf32>
    %99 = arith.addf %94, %98 : vector<256x8xf32>
    %c1_119 = arith.constant 1 : index
    %c2_120 = arith.constant 2 : index
    %c0_121 = arith.constant 0 : index
    %100 = vector.load %arg10[%c1_119, %c2_120, %c0_121] : memref<18x18x8xf32, #tpu.memory_space<vmem>>, vector<16x16x8xf32>
    %101 = vector.shape_cast %100 : vector<16x16x8xf32> to vector<256x8xf32>
    %c40 = arith.constant 40 : index
    %c0_122 = arith.constant 0 : index
    %102 = vector.load %arg4[%c40, %c0_122] : memref<72x8xf32, #tpu.memory_space<vmem>>, vector<8x8xf32>
    %cst_123 = arith.constant dense<0.000000e+00> : vector<256x8xf32>
    %103 = tpu.matmul %101, %102, %cst_123 {dimension_numbers = #tpu.dot_dimension_numbers<[1], [0], [0], [1], [0, 0, 1, 1], [], []>} : vector<256x8xf32>, vector<8x8xf32>, vector<256x8xf32> -> vector<256x8xf32>
    %104 = arith.addf %99, %103 : vector<256x8xf32>
    %c2_124 = arith.constant 2 : index
    %c0_125 = arith.constant 0 : index
    %c0_126 = arith.constant 0 : index
    %105 = vector.load %arg10[%c2_124, %c0_125, %c0_126] : memref<18x18x8xf32, #tpu.memory_space<vmem>>, vector<16x16x8xf32>
    %106 = vector.shape_cast %105 : vector<16x16x8xf32> to vector<256x8xf32>
    %c48 = arith.constant 48 : index
    %c0_127 = arith.constant 0 : index
    %107 = vector.load %arg4[%c48, %c0_127] : memref<72x8xf32, #tpu.memory_space<vmem>>, vector<8x8xf32>
    %cst_128 = arith.constant dense<0.000000e+00> : vector<256x8xf32>
    %108 = tpu.matmul %106, %107, %cst_128 {dimension_numbers = #tpu.dot_dimension_numbers<[1], [0], [0], [1], [0, 0, 1, 1], [], []>} : vector<256x8xf32>, vector<8x8xf32>, vector<256x8xf32> -> vector<256x8xf32>
    %109 = arith.addf %104, %108 : vector<256x8xf32>
    %c2_129 = arith.constant 2 : index
    %c1_130 = arith.constant 1 : index
    %c0_131 = arith.constant 0 : index
    %110 = vector.load %arg10[%c2_129, %c1_130, %c0_131] : memref<18x18x8xf32, #tpu.memory_space<vmem>>, vector<16x16x8xf32>
    %111 = vector.shape_cast %110 : vector<16x16x8xf32> to vector<256x8xf32>
    %c56 = arith.constant 56 : index
    %c0_132 = arith.constant 0 : index
    %112 = vector.load %arg4[%c56, %c0_132] : memref<72x8xf32, #tpu.memory_space<vmem>>, vector<8x8xf32>
    %cst_133 = arith.constant dense<0.000000e+00> : vector<256x8xf32>
    %113 = tpu.matmul %111, %112, %cst_133 {dimension_numbers = #tpu.dot_dimension_numbers<[1], [0], [0], [1], [0, 0, 1, 1], [], []>} : vector<256x8xf32>, vector<8x8xf32>, vector<256x8xf32> -> vector<256x8xf32>
    %114 = arith.addf %109, %113 : vector<256x8xf32>
    %c2_134 = arith.constant 2 : index
    %c2_135 = arith.constant 2 : index
    %c0_136 = arith.constant 0 : index
    %115 = vector.load %arg10[%c2_134, %c2_135, %c0_136] : memref<18x18x8xf32, #tpu.memory_space<vmem>>, vector<16x16x8xf32>
    %116 = vector.shape_cast %115 : vector<16x16x8xf32> to vector<256x8xf32>
    %c64 = arith.constant 64 : index
    %c0_137 = arith.constant 0 : index
    %117 = vector.load %arg4[%c64, %c0_137] : memref<72x8xf32, #tpu.memory_space<vmem>>, vector<8x8xf32>
    %cst_138 = arith.constant dense<0.000000e+00> : vector<256x8xf32>
    %118 = tpu.matmul %116, %117, %cst_138 {dimension_numbers = #tpu.dot_dimension_numbers<[1], [0], [0], [1], [0, 0, 1, 1], [], []>} : vector<256x8xf32>, vector<8x8xf32>, vector<256x8xf32> -> vector<256x8xf32>
    %119 = arith.addf %114, %118 : vector<256x8xf32>
    %c0_139 = arith.constant 0 : index
    %c0_140 = arith.constant 0 : index
    %120 = vector.load %arg5[%c0_139, %c0_140] : memref<1x8xf32, #tpu.memory_space<vmem>>, vector<1x8xf32>
    %121 = vector.broadcast %120 : vector<1x8xf32> to vector<256x8xf32>
    %122 = arith.addf %119, %121 : vector<256x8xf32>
    %123 = vector.shape_cast %17 : vector<16x16x4xf32> to vector<256x4xf32>
    %c0_141 = arith.constant 0 : index
    %c0_142 = arith.constant 0 : index
    %124 = vector.load %arg6[%c0_141, %c0_142] : memref<4x8xf32, #tpu.memory_space<vmem>>, vector<4x8xf32>
    %cst_143 = arith.constant dense<0.000000e+00> : vector<256x8xf32>
    %125 = tpu.matmul %123, %124, %cst_143 {dimension_numbers = #tpu.dot_dimension_numbers<[1], [0], [0], [1], [0, 0, 1, 1], [], []>} : vector<256x4xf32>, vector<4x8xf32>, vector<256x8xf32> -> vector<256x8xf32>
    %c0_144 = arith.constant 0 : index
    %c0_145 = arith.constant 0 : index
    %126 = vector.load %arg7[%c0_144, %c0_145] : memref<1x8xf32, #tpu.memory_space<vmem>>, vector<1x8xf32>
    %127 = vector.broadcast %126 : vector<1x8xf32> to vector<256x8xf32>
    %128 = arith.addf %125, %127 : vector<256x8xf32>
    %129 = arith.addf %128, %122 : vector<256x8xf32>
    %c0_146 = arith.constant 0 : index
    %c0_147 = arith.constant 0 : index
    %c0_148 = arith.constant 0 : index
    %130 = vector.load %arg8[%c0_146, %c0_147, %c0_148] : memref<1x256x8xf32, #tpu.memory_space<vmem>>, vector<1x256x8xf32>
    %131 = vector.shape_cast %130 : vector<1x256x8xf32> to vector<256x8xf32>
    %132 = vector.shape_cast %129 : vector<256x8xf32> to vector<1x256x8xf32>
    tpu.vector_store %arg8[%c0_146, %c0_147, %c0_148], %132 {strides = array<i32>} : memref<1x256x8xf32, #tpu.memory_space<vmem>>, vector<1x256x8xf32>,
    return
  }
  func.func @transform_0(%arg0: i32) -> (i32, i32, i32, i32) {
    %c0_i32 = arith.constant 0 : i32
    %c0_i32_0 = arith.constant 0 : i32
    %c0_i32_1 = arith.constant 0 : i32
    %c0_i32_2 = arith.constant 0 : i32
    return %arg0, %c0_i32, %c0_i32_0, %c0_i32_1 : i32, i32, i32, i32
  }
  func.func @transform_1(%arg0: i32) -> (i32, i32) {
    %c0_i32 = arith.constant 0 : i32
    %c0_i32_0 = arith.constant 0 : i32
    %c0_i32_1 = arith.constant 0 : i32
    return %c0_i32, %c0_i32_0 : i32, i32
  }
  func.func @transform_2(%arg0: i32) -> (i32, i32) {
    %c0_i32 = arith.constant 0 : i32
    %c0_i32_0 = arith.constant 0 : i32
    %c0_i32_1 = arith.constant 0 : i32
    return %c0_i32, %c0_i32_0 : i32, i32
  }
  func.func @transform_3(%arg0: i32) -> (i32, i32) {
    %c0_i32 = arith.constant 0 : i32
    %c0_i32_0 = arith.constant 0 : i32
    %c0_i32_1 = arith.constant 0 : i32
    return %c0_i32, %c0_i32_0 : i32, i32
  }
  func.func @transform_4(%arg0: i32) -> (i32, i32) {
    %c0_i32 = arith.constant 0 : i32
    %c0_i32_0 = arith.constant 0 : i32
    %c0_i32_1 = arith.constant 0 : i32
    return %c0_i32, %c0_i32_0 : i32, i32
  }
  func.func @transform_5(%arg0: i32) -> (i32, i32) {
    %c0_i32 = arith.constant 0 : i32
    %c0_i32_0 = arith.constant 0 : i32
    %c0_i32_1 = arith.constant 0 : i32
    return %c0_i32, %c0_i32_0 : i32, i32
  }
  func.func @transform_6(%arg0: i32) -> (i32, i32) {
    %c0_i32 = arith.constant 0 : i32
    %c0_i32_0 = arith.constant 0 : i32
    %c0_i32_1 = arith.constant 0 : i32
    return %c0_i32, %c0_i32_0 : i32, i32
  }
  func.func @transform_7(%arg0: i32) -> (i32, i32, i32) {
    %c0_i32 = arith.constant 0 : i32
    %c0_i32_0 = arith.constant 0 : i32
    %c0_i32_1 = arith.constant 0 : i32
    return %arg0, %c0_i32, %c0_i32_0 : i32, i32, i32
  }
}

</mosaic_0001>

<llo_original>
// kernel: tpu_custom_call.1
$region0: #{tpu_custom_call.1}
  #allocation0 [shape = 'u32[]', space=smem, size = 0x4, offset = 0x4, fixed_abs, tag = 'smem constant byte address 0x4 - core index']
  #allocation1 [shape = 'u32[144,128]{1,0:T(1,128)}', space=vmem, size = 0x12000, scoped, tag = 'internal scratch']
  #allocation2 [shape = 'f32[18,18,4]{2,1,0:T(8,128)}', space=vmem, size = 0x36000, scoped, tag = 'scratch operand']
  #allocation3 [shape = 'f32[18,18,8]{2,1,0:T(8,128)}', space=vmem, size = 0x36000, scoped, tag = 'scratch operand']
  %s0 = inlined_call_operand.vmem [shape: f32[2,16,16,4], index: 0, kind: input, shape index: {}]
  %s1 = inlined_call_operand.vmem [shape: f32[36,8], index: 1, kind: input, shape index: {}]
  %s2 = inlined_call_operand.vmem [shape: f32[1,8], index: 2, kind: input, shape index: {}]
  %s3 = inlined_call_operand.vmem [shape: f32[72,8], index: 3, kind: input, shape index: {}]
  %s4 = inlined_call_operand.vmem [shape: f32[1,8], index: 4, kind: input, shape index: {}]
  %s5 = inlined_call_operand.vmem [shape: f32[4,8], index: 5, kind: input, shape index: {}]
  %s6 = inlined_call_operand.vmem [shape: f32[1,8], index: 6, kind: input, shape index: {}]
  %s7 = inlined_call_operand.vmem [shape: f32[2,256,8], index: 7, kind: output, shape index: {}]
  %s8 = sld [smem:[#allocation0]]
  $region61: #{tpu_custom_call.1} parent=0
    _
  %s10 = ssub.s32 1, %s8
  %s11 = scalar_select 0, %s10, %s8
  loop: start=0, step=1, limit=4
  $region2: #{tpu_custom_call.1} parent=0 // loop_pre_header
    _
  $region3: #{tpu_custom_call.1} parent=0 // loop_header
    %s13 = sphi 0, %s17
    %p14 = scmp.ge.s32.totalorder %s13, 4
    %s23 = sphi 0, %s25
    %s26 = sphi 0, %s23
    %s27 = sphi 0, %s26
    %s43 = sphi 0, %s27
    %s47 = sphi 0, %s47
    %s49 = sphi 0, %s47
    %s50 = sphi 0, %s49
    %s64 = sphi 0, %s50
    %s68 = sphi 0, %s68
    %s70 = sphi 0, %s68
    %s71 = sphi 0, %s70
    %s85 = sphi 0, %s71
    %s89 = sphi 0, %s89
    %s91 = sphi 0, %s89
    %s92 = sphi 0, %s91
    %s106 = sphi 0, %s92
    %s110 = sphi 0, %s110
    %s112 = sphi 0, %s110
    %s113 = sphi 0, %s112
    %s127 = sphi 0, %s113
    %s131 = sphi 0, %s131
    %s133 = sphi 0, %s131
    %s134 = sphi 0, %s133
    %s148 = sphi 0, %s134
    %s152 = sphi 0, %s152
    %s154 = sphi 0, %s152
    %s155 = sphi 0, %s154
    %s169 = sphi 0, %s155
    %s175 = sphi 0, %s177
    %s178 = sphi 0, %s175
    %s179 = sphi 0, %s178
    %s195 = sphi 0, %s179
  $region4: #{tpu_custom_call.1} parent=0 // loop_header_branch
    %16 = sbr.rel (%p14) target = $region8
  $region5: #{tpu_custom_call.1} parent=0 // loop_body
    %s18 = ssub.s32 %s13, 1
    %s19 = ssub.s32 %s13, 2
    %s20 = sadd.s32 %s13, 1
    %s21 = ssub.s32 %s13, %s20
    %p22 = scmp.eq.s32.totalorder %s21, 0
    %s24 = sadd.s32 %s23, 1
    %s25 = scalar_select %p22, %s23, %s24
    %p28 = pneg %p22
    %p29 = scmp.eq.s32.totalorder %s13, 1
    %p30 = por %p28, %p29
    %p31 = scmp.ne.s32.totalorder %s23, %s26
    %p32 = scmp.eq.s32.totalorder %s13, 0
    %p33 = por %p31, %p32
    %p34 = scmp.ne.s32.totalorder %s23, %s26
    %p35 = scmp.eq.s32.totalorder %s18, 1
    %p36 = por %p34, %p35
    %p37 = scmp.ne.s32.totalorder %s26, %s27
    %p38 = scmp.eq.s32.totalorder %s18, 0
    %p39 = por %p37, %p38
    %p40 = scmp.ne.s32.totalorder %s26, %s27
    %p41 = scmp.eq.s32.totalorder %s19, 1
    %p42 = por %p40, %p41
    %p44 = scmp.ne.s32.totalorder %s27, %s43
    %p45 = scmp.eq.s32.totalorder %s19, 0
    %p46 = por %p44, %p45
    %s48 = sadd.s32 %s47, 1
    %p51 = scmp.eq.s32.totalorder %s13, 1
    %p52 = scmp.ne.s32.totalorder %s47, %s49
    %p53 = scmp.eq.s32.totalorder %s13, 0
    %p54 = por %p52, %p53
    %p55 = scmp.ne.s32.totalorder %s47, %s49
    %p56 = scmp.eq.s32.totalorder %s18, 1
    %p57 = por %p55, %p56
    %p58 = scmp.ne.s32.totalorder %s49, %s50
    %p59 = scmp.eq.s32.totalorder %s18, 0
    %p60 = por %p58, %p59
    %p61 = scmp.ne.s32.totalorder %s49, %s50
    %p62 = scmp.eq.s32.totalorder %s19, 1
    %p63 = por %p61, %p62
    %p65 = scmp.ne.s32.totalorder %s50, %s64
    %p66 = scmp.eq.s32.totalorder %s19, 0
    %p67 = por %p65, %p66
    %s69 = sadd.s32 %s68, 1
    %p72 = scmp.eq.s32.totalorder %s13, 1
    %p73 = scmp.ne.s32.totalorder %s68, %s70
    %p74 = scmp.eq.s32.totalorder %s13, 0
    %p75 = por %p73, %p74
    %p76 = scmp.ne.s32.totalorder %s68, %s70
    %p77 = scmp.eq.s32.totalorder %s18, 1
    %p78 = por %p76, %p77
    %p79 = scmp.ne.s32.totalorder %s70, %s71
    %p80 = scmp.eq.s32.totalorder %s18, 0
    %p81 = por %p79, %p80
    %p82 = scmp.ne.s32.totalorder %s70, %s71
    %p83 = scmp.eq.s32.totalorder %s19, 1
    %p84 = por %p82, %p83
    %p86 = scmp.ne.s32.totalorder %s71, %s85
    %p87 = scmp.eq.s32.totalorder %s19, 0
    %p88 = por %p86, %p87
    %s90 = sadd.s32 %s89, 1
    %p93 = scmp.eq.s32.totalorder %s13, 1
    %p94 = scmp.ne.s32.totalorder %s89, %s91
    %p95 = scmp.eq.s32.totalorder %s13, 0
    %p96 = por %p94, %p95
    %p97 = scmp.ne.s32.totalorder %s89, %s91
    %p98 = scmp.eq.s32.totalorder %s18, 1
    %p99 = por %p97, %p98
    %p100 = scmp.ne.s32.totalorder %s91, %s92
    %p101 = scmp.eq.s32.totalorder %s18, 0
    %p102 = por %p100, %p101
    %p103 = scmp.ne.s32.totalorder %s91, %s92
    %p104 = scmp.eq.s32.totalorder %s19, 1
    %p105 = por %p103, %p104
    %p107 = scmp.ne.s32.totalorder %s92, %s106
    %p108 = scmp.eq.s32.totalorder %s19, 0
    %p109 = por %p107, %p108
    %s111 = sadd.s32 %s110, 1
    %p114 = scmp.eq.s32.totalorder %s13, 1
    %p115 = scmp.ne.s32.totalorder %s110, %s112
    %p116 = scmp.eq.s32.totalorder %s13, 0
    %p117 = por %p115, %p116
    %p118 = scmp.ne.s32.totalorder %s110, %s112
    %p119 = scmp.eq.s32.totalorder %s18, 1
    %p120 = por %p118, %p119
    %p121 = scmp.ne.s32.totalorder %s112, %s113
    %p122 = scmp.eq.s32.totalorder %s18, 0
    %p123 = por %p121, %p122
    %p124 = scmp.ne.s32.totalorder %s112, %s113
    %p125 = scmp.eq.s32.totalorder %s19, 1
    %p126 = por %p124, %p125
    %p128 = scmp.ne.s32.totalorder %s113, %s127
    %p129 = scmp.eq.s32.totalorder %s19, 0
    %p130 = por %p128, %p129
    %s132 = sadd.s32 %s131, 1
    %p135 = scmp.eq.s32.totalorder %s13, 1
    %p136 = scmp.ne.s32.totalorder %s131, %s133
    %p137 = scmp.eq.s32.totalorder %s13, 0
    %p138 = por %p136, %p137
    %p139 = scmp.ne.s32.totalorder %s131, %s133
    %p140 = scmp.eq.s32.totalorder %s18, 1
    %p141 = por %p139, %p140
    %p142 = scmp.ne.s32.totalorder %s133, %s134
    %p143 = scmp.eq.s32.totalorder %s18, 0
    %p144 = por %p142, %p143
    %p145 = scmp.ne.s32.totalorder %s133, %s134
    %p146 = scmp.eq.s32.totalorder %s19, 1
    %p147 = por %p145, %p146
    %p149 = scmp.ne.s32.totalorder %s134, %s148
    %p150 = scmp.eq.s32.totalorder %s19, 0
    %p151 = por %p149, %p150
    %s153 = sadd.s32 %s152, 1
    %p156 = scmp.eq.s32.totalorder %s13, 1
    %p157 = scmp.ne.s32.totalorder %s152, %s154
    %p158 = scmp.eq.s32.totalorder %s13, 0
    %p159 = por %p157, %p158
    %p160 = scmp.ne.s32.totalorder %s152, %s154
    %p161 = scmp.eq.s32.totalorder %s18, 1
    %p162 = por %p160, %p161
    %p163 = scmp.ne.s32.totalorder %s154, %s155
    %p164 = scmp.eq.s32.totalorder %s18, 0
    %p165 = por %p163, %p164
    %p166 = scmp.ne.s32.totalorder %s154, %s155
    %p167 = scmp.eq.s32.totalorder %s19, 1
    %p168 = por %p166, %p167
    %p170 = scmp.ne.s32.totalorder %s155, %s169
    %p171 = scmp.eq.s32.totalorder %s19, 0
    %p172 = por %p170, %p171
    %s173 = ssub.s32 %s13, %s20
    %p174 = scmp.eq.s32.totalorder %s173, 0
    %s176 = sadd.s32 %s175, 1
    %s177 = scalar_select %p174, %s175, %s176
    %p180 = pneg %p174
    %p181 = scmp.eq.s32.totalorder %s13, 1
    %p182 = por %p180, %p181
    %p183 = scmp.ne.s32.totalorder %s175, %s178
    %p184 = scmp.eq.s32.totalorder %s13, 0
    %p185 = por %p183, %p184
    %p186 = scmp.ne.s32.totalorder %s175, %s178
    %p187 = scmp.eq.s32.totalorder %s18, 1
    %p188 = por %p186, %p187
    %p189 = scmp.ne.s32.totalorder %s178, %s179
    %p190 = scmp.eq.s32.totalorder %s18, 0
    %p191 = por %p189, %p190
    %p192 = scmp.ne.s32.totalorder %s178, %s179
    %p193 = scmp.eq.s32.totalorder %s19, 1
    %p194 = por %p192, %p193
    %p196 = scmp.ne.s32.totalorder %s179, %s195
    %p197 = scmp.eq.s32.totalorder %s19, 0
    %p198 = por %p196, %p197
    %p199 = scmp.le.s32.totalorder 1, %s13
    %p200 = scmp.lt.s32.totalorder %s13, 3
    %p201 = pnand %p199, %p200
    %p202 = pneg %p201
    // Predicated region
    $region9: #{tpu_custom_call.1} parent=5 // pred_check
      _
    $region10: #{tpu_custom_call.1} parent=5 // pred_check_branch
      %204 = sbr.rel (%p201) target = $region12
    $region11: #{tpu_custom_call.1} parent=5 // pred_region
      %s205 = ssub.s32 %s13, 1
      // Predicated region
      $region13: #{tpu_custom_call.1} parent=11 // pred_check
        %p206 = pneg %p60
      $region14: #{tpu_custom_call.1} parent=11 // pred_check_branch
        %208 = sbr.rel (%p206) target = $region16
      $region15: #{tpu_custom_call.1} parent=11 // pred_region
        _
      $region16: #{tpu_custom_call.1} parent=11 // pred_fallthru
        _
      // Predicated region
      $region17: #{tpu_custom_call.1} parent=11 // pred_check
        %p209 = pneg %p81
      $region18: #{tpu_custom_call.1} parent=11 // pred_check_branch
        %211 = sbr.rel (%p209) target = $region20
      $region19: #{tpu_custom_call.1} parent=11 // pred_region
        _
      $region20: #{tpu_custom_call.1} parent=11 // pred_fallthru
        _
      // Predicated region
      $region21: #{tpu_custom_call.1} parent=11 // pred_check
        %p212 = pneg %p102
      $region22: #{tpu_custom_call.1} parent=11 // pred_check_branch
        %214 = sbr.rel (%p212) target = $region24
      $region23: #{tpu_custom_call.1} parent=11 // pred_region
        _
      $region24: #{tpu_custom_call.1} parent=11 // pred_fallthru
        _
      // Predicated region
      $region25: #{tpu_custom_call.1} parent=11 // pred_check
        %p215 = pneg %p123
      $region26: #{tpu_custom_call.1} parent=11 // pred_check_branch
        %217 = sbr.rel (%p215) target = $region28
      $region27: #{tpu_custom_call.1} parent=11 // pred_region
        _
      $region28: #{tpu_custom_call.1} parent=11 // pred_fallthru
        _
      // Predicated region
      $region29: #{tpu_custom_call.1} parent=11 // pred_check
        %p218 = pneg %p144
      $region30: #{tpu_custom_call.1} parent=11 // pred_check_branch
        %220 = sbr.rel (%p218) target = $region32
      $region31: #{tpu_custom_call.1} parent=11 // pred_region
        _
      $region32: #{tpu_custom_call.1} parent=11 // pred_fallthru
        _
      // Predicated region
      $region33: #{tpu_custom_call.1} parent=11 // pred_check
        %p221 = pneg %p165
      $region34: #{tpu_custom_call.1} parent=11 // pred_check_branch
        %223 = sbr.rel (%p221) target = $region36
      $region35: #{tpu_custom_call.1} parent=11 // pred_region
        _
      $region36: #{tpu_custom_call.1} parent=11 // pred_fallthru
        _
    $region12: #{tpu_custom_call.1} parent=5 // pred_fallthru
      _
    %p224 = scmp.lt.s32.totalorder %s13, 2
    // Predicated region
    $region37: #{tpu_custom_call.1} parent=5 // pred_check
      %p225 = pneg %p224
    $region38: #{tpu_custom_call.1} parent=5 // pred_check_branch
      %227 = sbr.rel (%p225) target = $region40
    $region39: #{tpu_custom_call.1} parent=5 // pred_region
      // Predicated region
      $region41: #{tpu_custom_call.1} parent=39 // pred_check
        %p228 = pneg %p33
      $region42: #{tpu_custom_call.1} parent=39 // pred_check_branch
        %230 = sbr.rel (%p228) target = $region44
      $region43: #{tpu_custom_call.1} parent=39 // pred_region
        %p231 = scmp.lt.s32.totalorder %s13, 1
        %s232 = scalar_select %p231, %s13, 1
        %s233 = smul.addr %s232, 32
        %s234 = smul.addr %s233, 8
        %s235 = scalar_lea.vmem %s0, %s234
      $region44: #{tpu_custom_call.1} parent=39 // pred_fallthru
        _
    $region40: #{tpu_custom_call.1} parent=5 // pred_fallthru
      _
    %p236 = scmp.le.s32.totalorder 1, %s13
    %p237 = scmp.lt.s32.totalorder %s13, 3
    %p238 = pnand %p236, %p237
    %p239 = pneg %p238
    // Predicated region
    $region45: #{tpu_custom_call.1} parent=5 // pred_check
      _
    $region46: #{tpu_custom_call.1} parent=5 // pred_check_branch
      %241 = sbr.rel (%p238) target = $region48
    $region47: #{tpu_custom_call.1} parent=5 // pred_region
      %s242 = ssub.s32 %s13, 1
      %p243 = scmp.lt.s32.totalorder %s18, 1
      %s244 = scalar_select %p243, %s18, 1
      %s245 = smul.addr %s244, 32
      %s246 = smul.addr %s245, 8
      %s247 = scalar_lea.vmem %s0, %s246
      %p248 = pneg %p39
      %p249 = pneg %p36
      %p250 = pneg %p60
      %p251 = pneg %p57
      %p252 = pneg %p81
      %p253 = pneg %p78
      %p254 = pneg %p102
      %p255 = pneg %p99
      %p256 = pneg %p123
      %p257 = pneg %p120
      %p258 = pneg %p144
      %p259 = pneg %p141
      %p260 = pneg %p165
      %p261 = pneg %p162
      %p262 = pneg %p191
      %p263 = pneg %p188
      %p264 = scmp.lt.s32.totalorder %s18, 1
      %s265 = scalar_select %p264, %s18, 1
      %s266 = smul.addr %s265, 32
      %s267 = smul.addr %s266, 8
      %s268 = scalar_lea.vmem %s7, %s267
      %p269 = scmp.lt.s32.totalorder %s18, 1
      %s270 = scalar_select %p269, %s18, 1
      %s271 = smul.addr %s270, 32
      %s272 = smul.addr %s271, 8
      %s273 = scalar_lea.vmem %s0, %s272
      %p274 = scmp.lt.s32.totalorder %s18, 1
      %s275 = scalar_select %p274, %s18, 1
      %s276 = smul.addr %s275, 32
      %s277 = smul.addr %s276, 8
      %s278 = scalar_lea.vmem %s7, %s277
      %vm279 = vcmask 31744
      %280 = vst.msk [vmem:[#allocation2] sm:$0xff] %vm279, 0.0
      %281 = vst.msk [vmem:[#allocation2 + $0x8] sm:$0xff] %vm279, 0.0
      %vm282 = vcmask 25600
      %283 = vst.msk [vmem:[#allocation2 + $0x10] sm:$0x3] %vm282, 0.0
      %s284 = scalar_lea.vmem [#allocation2], 408
      %285 = vst.msk [vmem:[%s284] sm:$0xff] %vm279, 0.0
      %286 = vst.msk [vmem:[%s284 + $0x8] sm:$0xff] %vm279, 0.0
      %287 = vst.msk [vmem:[%s284 + $0x10] sm:$0x3] %vm282, 0.0
      %vm288 = vcmask 24576
      %289 = vst.msk [vmem:[#allocation2] sm:$0x1] %vm288, 0.0
      %290 = vst.msk [vmem:[#allocation2 + $0x18] sm:$0x1] %vm288, 0.0
      %291 = vst.msk [vmem:[#allocation2 + $0x30] sm:$0x1] %vm288, 0.0
      %292 = vst.msk [vmem:[#allocation2 + $0x48] sm:$0x1] %vm288, 0.0
      %293 = vst.msk [vmem:[#allocation2 + $0x60] sm:$0x1] %vm288, 0.0
      %294 = vst.msk [vmem:[#allocation2 + $0x78] sm:$0x1] %vm288, 0.0
      %295 = vst.msk [vmem:[#allocation2 + $0x90] sm:$0x1] %vm288, 0.0
      %296 = vst.msk [vmem:[#allocation2 + $0xa8] sm:$0x1] %vm288, 0.0
      %297 = vst.msk [vmem:[#allocation2 + $0xc0] sm:$0x1] %vm288, 0.0
      %298 = vst.msk [vmem:[#allocation2 + $0xd8] sm:$0x1] %vm288, 0.0
      %299 = vst.msk [vmem:[#allocation2 + $0xf0] sm:$0x1] %vm288, 0.0
      %300 = vst.msk [vmem:[#allocation2 + $0x108] sm:$0x1] %vm288, 0.0
      %301 = vst.msk [vmem:[#allocation2 + $0x120] sm:$0x1] %vm288, 0.0
      %302 = vst.msk [vmem:[#allocation2 + $0x138] sm:$0x1] %vm288, 0.0
      %303 = vst.msk [vmem:[#allocation2 + $0x150] sm:$0x1] %vm288, 0.0
      %304 = vst.msk [vmem:[#allocation2 + $0x168] sm:$0x1] %vm288, 0.0
      %305 = vst.msk [vmem:[#allocation2 + $0x180] sm:$0x1] %vm288, 0.0
      %306 = vst.msk [vmem:[#allocation2 + $0x198] sm:$0x1] %vm288, 0.0
      %307 = vst.msk [vmem:[#allocation2 + $0x11] sm:$0x1] %vm288, 0.0
      %308 = vst.msk [vmem:[#allocation2 + $0x29] sm:$0x1] %vm288, 0.0
      %309 = vst.msk [vmem:[#allocation2 + $0x41] sm:$0x1] %vm288, 0.0
      %310 = vst.msk [vmem:[#allocation2 + $0x59] sm:$0x1] %vm288, 0.0
      %311 = vst.msk [vmem:[#allocation2 + $0x71] sm:$0x1] %vm288, 0.0
      %312 = vst.msk [vmem:[#allocation2 + $0x89] sm:$0x1] %vm288, 0.0
      %313 = vst.msk [vmem:[#allocation2 + $0xa1] sm:$0x1] %vm288, 0.0
      %314 = vst.msk [vmem:[#allocation2 + $0xb9] sm:$0x1] %vm288, 0.0
      %315 = vst.msk [vmem:[#allocation2 + $0xd1] sm:$0x1] %vm288, 0.0
      %316 = vst.msk [vmem:[#allocation2 + $0xe9] sm:$0x1] %vm288, 0.0
      %317 = vst.msk [vmem:[#allocation2 + $0x101] sm:$0x1] %vm288, 0.0
      %318 = vst.msk [vmem:[#allocation2 + $0x119] sm:$0x1] %vm288, 0.0
      %319 = vst.msk [vmem:[#allocation2 + $0x131] sm:$0x1] %vm288, 0.0
      %320 = vst.msk [vmem:[#allocation2 + $0x149] sm:$0x1] %vm288, 0.0
      %321 = vst.msk [vmem:[#allocation2 + $0x161] sm:$0x1] %vm288, 0.0
      %322 = vst.msk [vmem:[#allocation2 + $0x179] sm:$0x1] %vm288, 0.0
      %323 = vst.msk [vmem:[#allocation2 + $0x191] sm:$0x1] %vm288, 0.0
      %324 = vst.msk [vmem:[#allocation2 + $0x1a9] sm:$0x1] %vm288, 0.0
      %vm325 = vcmask 64512
      %326 = vst.msk [vmem:[#allocation3] sm:$0xff] %vm325, 0.0
      %327 = vst.msk [vmem:[#allocation3 + $0x8] sm:$0xff] %vm325, 0.0
      %vm328 = vcmask 58368
      %329 = vst.msk [vmem:[#allocation3 + $0x10] sm:$0x3] %vm328, 0.0
      %s330 = scalar_lea.vmem [#allocation3], 408
      %331 = vst.msk [vmem:[%s330] sm:$0xff] %vm325, 0.0
      %332 = vst.msk [vmem:[%s330 + $0x8] sm:$0xff] %vm325, 0.0
      %333 = vst.msk [vmem:[%s330 + $0x10] sm:$0x3] %vm328, 0.0
      %vm334 = vcmask 57344
      %335 = vst.msk [vmem:[#allocation3] sm:$0x1] %vm334, 0.0
      %336 = vst.msk [vmem:[#allocation3 + $0x18] sm:$0x1] %vm334, 0.0
      %337 = vst.msk [vmem:[#allocation3 + $0x30] sm:$0x1] %vm334, 0.0
      %338 = vst.msk [vmem:[#allocation3 + $0x48] sm:$0x1] %vm334, 0.0
      %339 = vst.msk [vmem:[#allocation3 + $0x60] sm:$0x1] %vm334, 0.0
      %340 = vst.msk [vmem:[#allocation3 + $0x78] sm:$0x1] %vm334, 0.0
      %341 = vst.msk [vmem:[#allocation3 + $0x90] sm:$0x1] %vm334, 0.0
      %342 = vst.msk [vmem:[#allocation3 + $0xa8] sm:$0x1] %vm334, 0.0
      %343 = vst.msk [vmem:[#allocation3 + $0xc0] sm:$0x1] %vm334, 0.0
      %344 = vst.msk [vmem:[#allocation3 + $0xd8] sm:$0x1] %vm334, 0.0
      %345 = vst.msk [vmem:[#allocation3 + $0xf0] sm:$0x1] %vm334, 0.0
      %346 = vst.msk [vmem:[#allocation3 + $0x108] sm:$0x1] %vm334, 0.0
      %347 = vst.msk [vmem:[#allocation3 + $0x120] sm:$0x1] %vm334, 0.0
      %348 = vst.msk [vmem:[#allocation3 + $0x138] sm:$0x1] %vm334, 0.0
      %349 = vst.msk [vmem:[#allocation3 + $0x150] sm:$0x1] %vm334, 0.0
      %350 = vst.msk [vmem:[#allocation3 + $0x168] sm:$0x1] %vm334, 0.0
      %351 = vst.msk [vmem:[#allocation3 + $0x180] sm:$0x1] %vm334, 0.0
      %352 = vst.msk [vmem:[#allocation3 + $0x198] sm:$0x1] %vm334, 0.0
      %353 = vst.msk [vmem:[#allocation3 + $0x11] sm:$0x1] %vm334, 0.0
      %354 = vst.msk [vmem:[#allocation3 + $0x29] sm:$0x1] %vm334, 0.0
      %355 = vst.msk [vmem:[#allocation3 + $0x41] sm:$0x1] %vm334, 0.0
      %356 = vst.msk [vmem:[#allocation3 + $0x59] sm:$0x1] %vm334, 0.0
      %357 = vst.msk [vmem:[#allocation3 + $0x71] sm:$0x1] %vm334, 0.0
      %358 = vst.msk [vmem:[#allocation3 + $0x89] sm:$0x1] %vm334, 0.0
      %359 = vst.msk [vmem:[#allocation3 + $0xa1] sm:$0x1] %vm334, 0.0
      %360 = vst.msk [vmem:[#allocation3 + $0xb9] sm:$0x1] %vm334, 0.0
      %361 = vst.msk [vmem:[#allocation3 + $0xd1] sm:$0x1] %vm334, 0.0
      %362 = vst.msk [vmem:[#allocation3 + $0xe9] sm:$0x1] %vm334, 0.0
      %363 = vst.msk [vmem:[#allocation3 + $0x101] sm:$0x1] %vm334, 0.0
      %364 = vst.msk [vmem:[#allocation3 + $0x119] sm:$0x1] %vm334, 0.0
      %365 = vst.msk [vmem:[#allocation3 + $0x131] sm:$0x1] %vm334, 0.0
      %366 = vst.msk [vmem:[#allocation3 + $0x149] sm:$0x1] %vm334, 0.0
      %367 = vst.msk [vmem:[#allocation3 + $0x161] sm:$0x1] %vm334, 0.0
      %368 = vst.msk [vmem:[#allocation3 + $0x179] sm:$0x1] %vm334, 0.0
      %369 = vst.msk [vmem:[#allocation3 + $0x191] sm:$0x1] %vm334, 0.0
      %370 = vst.msk [vmem:[#allocation3 + $0x1a9] sm:$0x1] %vm334, 0.0
      %v371 = vld [vmem:[%s273] sm:$0xff]
      %v372 = vld [vmem:[%s273 + $0x8] sm:$0xff]
      %v373 = vld [vmem:[%s273 + $0x10] sm:$0xff]
      %v374 = vld [vmem:[%s273 + $0x18] sm:$0xff]
      %v375 = vld [vmem:[%s273 + $0x20] sm:$0xff]
      %v376 = vld [vmem:[%s273 + $0x28] sm:$0xff]
      %v377 = vld [vmem:[%s273 + $0x30] sm:$0xff]
      %v378 = vld [vmem:[%s273 + $0x38] sm:$0xff]
      %v379 = vld [vmem:[%s273 + $0x40] sm:$0xff]
      %v380 = vld [vmem:[%s273 + $0x48] sm:$0xff]
      %v381 = vld [vmem:[%s273 + $0x50] sm:$0xff]
      %v382 = vld [vmem:[%s273 + $0x58] sm:$0xff]
      %v383 = vld [vmem:[%s273 + $0x60] sm:$0xff]
      %v384 = vld [vmem:[%s273 + $0x68] sm:$0xff]
      %v385 = vld [vmem:[%s273 + $0x70] sm:$0xff]
      %v386 = vld [vmem:[%s273 + $0x78] sm:$0xff]
      %v387 = vld [vmem:[%s273 + $0x80] sm:$0xff]
      %v388 = vld [vmem:[%s273 + $0x88] sm:$0xff]
      %v389 = vld [vmem:[%s273 + $0x90] sm:$0xff]
      %v390 = vld [vmem:[%s273 + $0x98] sm:$0xff]
      %v391 = vld [vmem:[%s273 + $0xa0] sm:$0xff]
      %v392 = vld [vmem:[%s273 + $0xa8] sm:$0xff]
      %v393 = vld [vmem:[%s273 + $0xb0] sm:$0xff]
      %v394 = vld [vmem:[%s273 + $0xb8] sm:$0xff]
      %v395 = vld [vmem:[%s273 + $0xc0] sm:$0xff]
      %v396 = vld [vmem:[%s273 + $0xc8] sm:$0xff]
      %v397 = vld [vmem:[%s273 + $0xd0] sm:$0xff]
      %v398 = vld [vmem:[%s273 + $0xd8] sm:$0xff]
      %v399 = vld [vmem:[%s273 + $0xe0] sm:$0xff]
      %v400 = vld [vmem:[%s273 + $0xe8] sm:$0xff]
      %v401 = vld [vmem:[%s273 + $0xf0] sm:$0xff]
      %v402 = vld [vmem:[%s273 + $0xf8] sm:$0xff]
      %v403 = vmax.f32 %v371, 0.0
      %v404 = vmax.f32 %v372, 0.0
      %v405 = vmax.f32 %v373, 0.0
      %v406 = vmax.f32 %v374, 0.0
      %v407 = vmax.f32 %v375, 0.0
      %v408 = vmax.f32 %v376, 0.0
      %v409 = vmax.f32 %v377, 0.0
      %v410 = vmax.f32 %v378, 0.0
      %v411 = vmax.f32 %v379, 0.0
      %v412 = vmax.f32 %v380, 0.0
      %v413 = vmax.f32 %v381, 0.0
      %v414 = vmax.f32 %v382, 0.0
      %v415 = vmax.f32 %v383, 0.0
      %v416 = vmax.f32 %v384, 0.0
      %v417 = vmax.f32 %v385, 0.0
      %v418 = vmax.f32 %v386, 0.0
      %v419 = vmax.f32 %v387, 0.0
      %v420 = vmax.f32 %v388, 0.0
      %v421 = vmax.f32 %v389, 0.0
      %v422 = vmax.f32 %v390, 0.0
      %v423 = vmax.f32 %v391, 0.0
      %v424 = vmax.f32 %v392, 0.0
      %v425 = vmax.f32 %v393, 0.0
      %v426 = vmax.f32 %v394, 0.0
      %v427 = vmax.f32 %v395, 0.0
      %v428 = vmax.f32 %v396, 0.0
      %v429 = vmax.f32 %v397, 0.0
      %v430 = vmax.f32 %v398, 0.0
      %v431 = vmax.f32 %v399, 0.0
      %v432 = vmax.f32 %v400, 0.0
      %v433 = vmax.f32 %v401, 0.0
      %v434 = vmax.f32 %v402, 0.0
      %s435 = scalar_lea.vmem [#allocation2], 24
      %436 = vst.msk [vmem:[%s435 + $0x1] sm:$0xff] %vm279, %v403
      %437 = vst.msk [vmem:[%s435 + $0x9] sm:$0xff] %vm279, %v404
      %438 = vst.msk [vmem:[%s435 + $0x19] sm:$0xff] %vm279, %v405
      %439 = vst.msk [vmem:[%s435 + $0x21] sm:$0xff] %vm279, %v406
      %440 = vst.msk [vmem:[%s435 + $0x31] sm:$0xff] %vm279, %v407
      %441 = vst.msk [vmem:[%s435 + $0x39] sm:$0xff] %vm279, %v408
      %442 = vst.msk [vmem:[%s435 + $0x49] sm:$0xff] %vm279, %v409
      %443 = vst.msk [vmem:[%s435 + $0x51] sm:$0xff] %vm279, %v410
      %444 = vst.msk [vmem:[%s435 + $0x61] sm:$0xff] %vm279, %v411
      %445 = vst.msk [vmem:[%s435 + $0x69] sm:$0xff] %vm279, %v412
      %446 = vst.msk [vmem:[%s435 + $0x79] sm:$0xff] %vm279, %v413
      %447 = vst.msk [vmem:[%s435 + $0x81] sm:$0xff] %vm279, %v414
      %448 = vst.msk [vmem:[%s435 + $0x91] sm:$0xff] %vm279, %v415
      %449 = vst.msk [vmem:[%s435 + $0x99] sm:$0xff] %vm279, %v416
      %450 = vst.msk [vmem:[%s435 + $0xa9] sm:$0xff] %vm279, %v417
      %451 = vst.msk [vmem:[%s435 + $0xb1] sm:$0xff] %vm279, %v418
      %452 = vst.msk [vmem:[%s435 + $0xc1] sm:$0xff] %vm279, %v419
      %453 = vst.msk [vmem:[%s435 + $0xc9] sm:$0xff] %vm279, %v420
      %454 = vst.msk [vmem:[%s435 + $0xd9] sm:$0xff] %vm279, %v421
      %455 = vst.msk [vmem:[%s435 + $0xe1] sm:$0xff] %vm279, %v422
      %456 = vst.msk [vmem:[%s435 + $0xf1] sm:$0xff] %vm279, %v423
      %457 = vst.msk [vmem:[%s435 + $0xf9] sm:$0xff] %vm279, %v424
      %458 = vst.msk [vmem:[%s435 + $0x109] sm:$0xff] %vm279, %v425
      %459 = vst.msk [vmem:[%s435 + $0x111] sm:$0xff] %vm279, %v426
      %460 = vst.msk [vmem:[%s435 + $0x121] sm:$0xff] %vm279, %v427
      %461 = vst.msk [vmem:[%s435 + $0x129] sm:$0xff] %vm279, %v428
      %462 = vst.msk [vmem:[%s435 + $0x139] sm:$0xff] %vm279, %v429
      %463 = vst.msk [vmem:[%s435 + $0x141] sm:$0xff] %vm279, %v430
      %464 = vst.msk [vmem:[%s435 + $0x151] sm:$0xff] %vm279, %v431
      %465 = vst.msk [vmem:[%s435 + $0x159] sm:$0xff] %vm279, %v432
      %466 = vst.msk [vmem:[%s435 + $0x169] sm:$0xff] %vm279, %v433
      %467 = vst.msk [vmem:[%s435 + $0x171] sm:$0xff] %vm279, %v434
      %v468 = vld [vmem:[#allocation2] sm:$0xff]
      %v469 = vld [vmem:[#allocation2 + $0x8] sm:$0xff]
      %v470 = vld [vmem:[#allocation2 + $0x18] sm:$0xff]
      %v471 = vld [vmem:[#allocation2 + $0x20] sm:$0xff]
      %v472 = vld [vmem:[#allocation2 + $0x30] sm:$0xff]
      %v473 = vld [vmem:[#allocation2 + $0x38] sm:$0xff]
      %v474 = vld [vmem:[#allocation2 + $0x48] sm:$0xff]
      %v475 = vld [vmem:[#allocation2 + $0x50] sm:$0xff]
      %v476 = vld [vmem:[#allocation2 + $0x60] sm:$0xff]
      %v477 = vld [vmem:[#allocation2 + $0x68] sm:$0xff]
      %v478 = vld [vmem:[#allocation2 + $0x78] sm:$0xff]
      %v479 = vld [vmem:[#allocation2 + $0x80] sm:$0xff]
      %v480 = vld [vmem:[#allocation2 + $0x90] sm:$0xff]
      %v481 = vld [vmem:[#allocation2 + $0x98] sm:$0xff]
      %v482 = vld [vmem:[#allocation2 + $0xa8] sm:$0xff]
      %v483 = vld [vmem:[#allocation2 + $0xb0] sm:$0xff]
      %v484 = vld [vmem:[#allocation2 + $0xc0] sm:$0xff]
      %v485 = vld [vmem:[#allocation2 + $0xc8] sm:$0xff]
      %v486 = vld [vmem:[#allocation2 + $0xd8] sm:$0xff]
      %v487 = vld [vmem:[#allocation2 + $0xe0] sm:$0xff]
      %v488 = vld [vmem:[#allocation2 + $0xf0] sm:$0xff]
      %v489 = vld [vmem:[#allocation2 + $0xf8] sm:$0xff]
      %v490 = vld [vmem:[#allocation2 + $0x108] sm:$0xff]
      %v491 = vld [vmem:[#allocation2 + $0x110] sm:$0xff]
      %v492 = vld [vmem:[#allocation2 + $0x120] sm:$0xff]
      %v493 = vld [vmem:[#allocation2 + $0x128] sm:$0xff]
      %v494 = vld [vmem:[#allocation2 + $0x138] sm:$0xff]
      %v495 = vld [vmem:[#allocation2 + $0x140] sm:$0xff]
      %v496 = vld [vmem:[#allocation2 + $0x150] sm:$0xff]
      %v497 = vld [vmem:[#allocation2 + $0x158] sm:$0xff]
      %v498 = vld [vmem:[#allocation2 + $0x168] sm:$0xff]
      %v499 = vld [vmem:[#allocation2 + $0x170] sm:$0xff]
      %v500 = vld [vmem:[%s1] sm:$0xf]
      %v501 = vld [vmem:[#allocation2 + $0x1] sm:$0xff]
      %v502 = vld [vmem:[#allocation2 + $0x9] sm:$0xff]
      %v503 = vld [vmem:[#allocation2 + $0x19] sm:$0xff]
      %v504 = vld [vmem:[#allocation2 + $0x21] sm:$0xff]
      %v505 = vld [vmem:[#allocation2 + $0x31] sm:$0xff]
      %v506 = vld [vmem:[#allocation2 + $0x39] sm:$0xff]
      %v507 = vld [vmem:[#allocation2 + $0x49] sm:$0xff]
      %v508 = vld [vmem:[#allocation2 + $0x51] sm:$0xff]
      %v509 = vld [vmem:[#allocation2 + $0x61] sm:$0xff]
      %v510 = vld [vmem:[#allocation2 + $0x69] sm:$0xff]
      %v511 = vld [vmem:[#allocation2 + $0x79] sm:$0xff]
      %v512 = vld [vmem:[#allocation2 + $0x81] sm:$0xff]
      %v513 = vld [vmem:[#allocation2 + $0x91] sm:$0xff]
      %v514 = vld [vmem:[#allocation2 + $0x99] sm:$0xff]
      %v515 = vld [vmem:[#allocation2 + $0xa9] sm:$0xff]
      %v516 = vld [vmem:[#allocation2 + $0xb1] sm:$0xff]
      %v517 = vld [vmem:[#allocation2 + $0xc1] sm:$0xff]
      %v518 = vld [vmem:[#allocation2 + $0xc9] sm:$0xff]
      %v519 = vld [vmem:[#allocation2 + $0xd9] sm:$0xff]
      %v520 = vld [vmem:[#allocation2 + $0xe1] sm:$0xff]
      %v521 = vld [vmem:[#allocation2 + $0xf1] sm:$0xff]
      %v522 = vld [vmem:[#allocation2 + $0xf9] sm:$0xff]
      %v523 = vld [vmem:[#allocation2 + $0x109] sm:$0xff]
      %v524 = vld [vmem:[#allocation2 + $0x111] sm:$0xff]
      %v525 = vld [vmem:[#allocation2 + $0x121] sm:$0xff]
      %v526 = vld [vmem:[#allocation2 + $0x129] sm:$0xff]
      %v527 = vld [vmem:[#allocation2 + $0x139] sm:$0xff]
      %v528 = vld [vmem:[#allocation2 + $0x141] sm:$0xff]
      %v529 = vld [vmem:[#allocation2 + $0x151] sm:$0xff]
      %v530 = vld [vmem:[#allocation2 + $0x159] sm:$0xff]
      %v531 = vld [vmem:[#allocation2 + $0x169] sm:$0xff]
      %v532 = vld [vmem:[#allocation2 + $0x171] sm:$0xff]
      %v533 = vld [vmem:[%s1 + $0x4] sm:$0xf]
      %v535 = vsel %vm279, %v501, 0
      %v538 = vsel %vm279, %v502, 0
      %v541 = vsel %vm279, %v503, 0
      %v544 = vsel %vm279, %v504, 0
      %v547 = vsel %vm279, %v505, 0
      %v550 = vsel %vm279, %v506, 0
      %v553 = vsel %vm279, %v507, 0
      %v556 = vsel %vm279, %v508, 0
      %v559 = vsel %vm279, %v509, 0
      %v562 = vsel %vm279, %v510, 0
      %v565 = vsel %vm279, %v511, 0
      %v568 = vsel %vm279, %v512, 0
      %v571 = vsel %vm279, %v513, 0
      %v574 = vsel %vm279, %v514, 0
      %v577 = vsel %vm279, %v515, 0
      %v580 = vsel %vm279, %v516, 0
      %v583 = vsel %vm279, %v517, 0
      %v586 = vsel %vm279, %v518, 0
      %v589 = vsel %vm279, %v519, 0
      %v592 = vsel %vm279, %v520, 0
      %v595 = vsel %vm279, %v521, 0
      %v598 = vsel %vm279, %v522, 0
      %v601 = vsel %vm279, %v523, 0
      %v604 = vsel %vm279, %v524, 0
      %v607 = vsel %vm279, %v525, 0
      %v610 = vsel %vm279, %v526, 0
      %v613 = vsel %vm279, %v527, 0
      %v616 = vsel %vm279, %v528, 0
      %v619 = vsel %vm279, %v529, 0
      %v622 = vsel %vm279, %v530, 0
      %v625 = vsel %vm279, %v531, 0
      %v628 = vsel %vm279, %v532, 0
      %vm630 = vcmask 1043456
      %v632 = vsel %vm630, %v533, 0
      %634 = vmatprep.subr.mxu0 0.0
      %635 = vmatpush1.msra.mxu0 %v632
      %636 = vmatprep.subr.mxu0 0.0
      %637 = vmatpush1.msra.mxu0 0.0
      %638 = vmatprep.subr.mxu0 0.0
      %639 = vmatpush1.msra.mxu0 0.0
      %640 = vmatprep.subr.mxu0 0.0
      %641 = vmatpush1.msra.mxu0 0.0
      %642 = vmatprep.subr.mxu0 0.0
      %643 = vmatpush1.msra.mxu0 0.0
      %644 = vmatprep.subr.mxu0 0.0
      %645 = vmatpush1.msra.mxu0 0.0
      %646 = vmatprep.subr.mxu0 0.0
      %647 = vmatpush1.msra.mxu0 0.0
      %648 = vmatprep.subr.mxu0 0.0
      %649 = vmatpush1.msra.mxu0 0.0
      %650 = vmatprep.subr.mxu0 0.0
      %651 = vmatpush1.msra.mxu0 0.0
      %652 = vmatprep.subr.mxu0 0.0
      %653 = vmatpush1.msra.mxu0 0.0
      %654 = vmatprep.subr.mxu0 0.0
      %655 = vmatpush1.msra.mxu0 0.0
      %656 = vmatprep.subr.mxu0 0.0
      %657 = vmatpush1.msra.mxu0 0.0
      %658 = vmatprep.subr.mxu0 0.0
      %659 = vmatpush1.msra.mxu0 0.0
      %660 = vmatprep.subr.mxu0 0.0
      %661 = vmatpush1.msra.mxu0 0.0
      %662 = vmatprep.subr.mxu0 0.0
      %663 = vmatpush1.msra.mxu0 0.0
      %664 = vmatprep.subr.mxu0 0.0
      %665 = vmatpush1.msra.mxu0 0.0
      %666 = vmatprep.subr.mxu0 0.0
      %667 = vmatpush1.msra.mxu0 0.0
      %668 = vmatprep.subr.mxu0 0.0
      %669 = vmatpush1.msra.mxu0 0.0
      %670 = vmatprep.subr.mxu0 0.0
      %671 = vmatpush1.msra.mxu0 0.0
      %672 = vmatprep.subr.mxu0 0.0
      %673 = vmatpush1.msra.mxu0 0.0
      %674 = vmatprep.subr.mxu0 0.0
      %675 = vmatpush1.msra.mxu0 0.0
      %676 = vmatprep.subr.mxu0 0.0
      %677 = vmatpush1.msra.mxu0 0.0
      %678 = vmatprep.subr.mxu0 0.0
      %679 = vmatpush1.msra.mxu0 0.0
      %680 = vmatprep.subr.mxu0 0.0
      %681 = vmatpush1.msra.mxu0 0.0
      %682 = vmatprep.subr.mxu0 0.0
      %683 = vmatpush1.msra.mxu0 0.0
      %684 = vmatprep.subr.mxu0 0.0
      %685 = vmatpush1.msra.mxu0 0.0
      %686 = vmatprep.subr.mxu0 0.0
      %687 = vmatpush1.msra.mxu0 0.0
      %688 = vmatprep.subr.mxu0 0.0
      %689 = vmatpush1.msra.mxu0 0.0
      %690 = vmatprep.subr.mxu0 0.0
      %691 = vmatpush1.msra.mxu0 0.0
      %692 = vmatprep.subr.mxu0 0.0
      %693 = vmatpush1.msra.mxu0 0.0
      %694 = vmatprep.subr.mxu0 0.0
      %695 = vmatpush1.msra.mxu0 0.0
      %696 = vmatprep.subr.mxu0 0.0
      %697 = vmatpush1.msra.mxu0 0.0
      %698 = vmatprep.mubr.f32.mxu0 0.0
      %699 = vmatmul.mubr.f32.gmra.mrb[0].mxu0 %v535
      %v700 = vpop.f32.mrb[0].mxu0
      %v701 = vadd.f32 0.0, %v700
      %v702 = vpop.f32.mrb[0].mxu0
      %703 = vmatprep.mubr.f32.mxu0 0.0
      %704 = vmatmul.mubr.f32.gmra.mrb[0].mxu0 %v538
      %v705 = vpop.f32.mrb[0].mxu0
      %v706 = vadd.f32 0.0, %v705
      %v707 = vpop.f32.mrb[0].mxu0
      %708 = vmatprep.mubr.f32.mxu0 0.0
      %709 = vmatmul.mubr.f32.gmra.mrb[0].mxu0 %v541
      %v710 = vpop.f32.mrb[0].mxu0
      %v711 = vadd.f32 0.0, %v710
      %v712 = vpop.f32.mrb[0].mxu0
      %713 = vmatprep.mubr.f32.mxu0 0.0
      %714 = vmatmul.mubr.f32.gmra.mrb[0].mxu0 %v544
      %v715 = vpop.f32.mrb[0].mxu0
      %v716 = vadd.f32 0.0, %v715
      %v717 = vpop.f32.mrb[0].mxu0
      %718 = vmatprep.mubr.f32.mxu0 0.0
      %719 = vmatmul.mubr.f32.gmra.mrb[0].mxu0 %v547
      %v720 = vpop.f32.mrb[0].mxu0
      %v721 = vadd.f32 0.0, %v720
      %v722 = vpop.f32.mrb[0].mxu0
      %723 = vmatprep.mubr.f32.mxu0 0.0
      %724 = vmatmul.mubr.f32.gmra.mrb[0].mxu0 %v550
      %v725 = vpop.f32.mrb[0].mxu0
      %v726 = vadd.f32 0.0, %v725
      %v727 = vpop.f32.mrb[0].mxu0
      %728 = vmatprep.mubr.f32.mxu0 0.0
      %729 = vmatmul.mubr.f32.gmra.mrb[0].mxu0 %v553
      %v730 = vpop.f32.mrb[0].mxu0
      %v731 = vadd.f32 0.0, %v730
      %v732 = vpop.f32.mrb[0].mxu0
      %733 = vmatprep.mubr.f32.mxu0 0.0
      %734 = vmatmul.mubr.f32.gmra.mrb[0].mxu0 %v556
      %v735 = vpop.f32.mrb[0].mxu0
      %v736 = vadd.f32 0.0, %v735
      %v737 = vpop.f32.mrb[0].mxu0
      %738 = vmatprep.mubr.f32.mxu0 0.0
      %739 = vmatmul.mubr.f32.gmra.mrb[0].mxu0 %v559
      %v740 = vpop.f32.mrb[0].mxu0
      %v741 = vadd.f32 0.0, %v740
      %v742 = vpop.f32.mrb[0].mxu0
      %743 = vmatprep.mubr.f32.mxu0 0.0
      %744 = vmatmul.mubr.f32.gmra.mrb[0].mxu0 %v562
      %v745 = vpop.f32.mrb[0].mxu0
      %v746 = vadd.f32 0.0, %v745
      %v747 = vpop.f32.mrb[0].mxu0
      %748 = vmatprep.mubr.f32.mxu0 0.0
      %749 = vmatmul.mubr.f32.gmra.mrb[0].mxu0 %v565
      %v750 = vpop.f32.mrb[0].mxu0
      %v751 = vadd.f32 0.0, %v750
      %v752 = vpop.f32.mrb[0].mxu0
      %753 = vmatprep.mubr.f32.mxu0 0.0
      %754 = vmatmul.mubr.f32.gmra.mrb[0].mxu0 %v568
      %v755 = vpop.f32.mrb[0].mxu0
      %v756 = vadd.f32 0.0, %v755
      %v757 = vpop.f32.mrb[0].mxu0
      %758 = vmatprep.mubr.f32.mxu0 0.0
      %759 = vmatmul.mubr.f32.gmra.mrb[0].mxu0 %v571
      %v760 = vpop.f32.mrb[0].mxu0
      %v761 = vadd.f32 0.0, %v760
      %v762 = vpop.f32.mrb[0].mxu0
      %763 = vmatprep.mubr.f32.mxu0 0.0
      %764 = vmatmul.mubr.f32.gmra.mrb[0].mxu0 %v574
      %v765 = vpop.f32.mrb[0].mxu0
      %v766 = vadd.f32 0.0, %v765
      %v767 = vpop.f32.mrb[0].mxu0
      %768 = vmatprep.mubr.f32.mxu0 0.0
      %769 = vmatmul.mubr.f32.gmra.mrb[0].mxu0 %v577
      %v770 = vpop.f32.mrb[0].mxu0
      %v771 = vadd.f32 0.0, %v770
      %v772 = vpop.f32.mrb[0].mxu0
      %773 = vmatprep.mubr.f32.mxu0 0.0
      %774 = vmatmul.mubr.f32.gmra.mrb[0].mxu0 %v580
      %v775 = vpop.f32.mrb[0].mxu0
      %v776 = vadd.f32 0.0, %v775
      %v777 = vpop.f32.mrb[0].mxu0
      %778 = vmatprep.mubr.f32.mxu0 0.0
      %779 = vmatmul.mubr.f32.gmra.mrb[0].mxu0 %v583
      %v780 = vpop.f32.mrb[0].mxu0
      %v781 = vadd.f32 0.0, %v780
      %v782 = vpop.f32.mrb[0].mxu0
      %783 = vmatprep.mubr.f32.mxu0 0.0
      %784 = vmatmul.mubr.f32.gmra.mrb[0].mxu0 %v586
      %v785 = vpop.f32.mrb[0].mxu0
      %v786 = vadd.f32 0.0, %v785
      %v787 = vpop.f32.mrb[0].mxu0
      %788 = vmatprep.mubr.f32.mxu0 0.0
      %789 = vmatmul.mubr.f32.gmra.mrb[0].mxu0 %v589
      %v790 = vpop.f32.mrb[0].mxu0
      %v791 = vadd.f32 0.0, %v790
      %v792 = vpop.f32.mrb[0].mxu0
      %793 = vmatprep.mubr.f32.mxu0 0.0
      %794 = vmatmul.mubr.f32.gmra.mrb[0].mxu0 %v592
      %v795 = vpop.f32.mrb[0].mxu0
      %v796 = vadd.f32 0.0, %v795
      %v797 = vpop.f32.mrb[0].mxu0
      %798 = vmatprep.mubr.f32.mxu0 0.0
      %799 = vmatmul.mubr.f32.gmra.mrb[0].mxu0 %v595
      %v800 = vpop.f32.mrb[0].mxu0
      %v801 = vadd.f32 0.0, %v800
      %v802 = vpop.f32.mrb[0].mxu0
      %803 = vmatprep.mubr.f32.mxu0 0.0
      %804 = vmatmul.mubr.f32.gmra.mrb[0].mxu0 %v598
      %v805 = vpop.f32.mrb[0].mxu0
      %v806 = vadd.f32 0.0, %v805
      %v807 = vpop.f32.mrb[0].mxu0
      %808 = vmatprep.mubr.f32.mxu0 0.0
      %809 = vmatmul.mubr.f32.gmra.mrb[0].mxu0 %v601
      %v810 = vpop.f32.mrb[0].mxu0
      %v811 = vadd.f32 0.0, %v810
      %v812 = vpop.f32.mrb[0].mxu0
      %813 = vmatprep.mubr.f32.mxu0 0.0
      %814 = vmatmul.mubr.f32.gmra.mrb[0].mxu0 %v604
      %v815 = vpop.f32.mrb[0].mxu0
      %v816 = vadd.f32 0.0, %v815
      %v817 = vpop.f32.mrb[0].mxu0
      %818 = vmatprep.mubr.f32.mxu0 0.0
      %819 = vmatmul.mubr.f32.gmra.mrb[0].mxu0 %v607
      %v820 = vpop.f32.mrb[0].mxu0
      %v821 = vadd.f32 0.0, %v820
      %v822 = vpop.f32.mrb[0].mxu0
      %823 = vmatprep.mubr.f32.mxu0 0.0
      %824 = vmatmul.mubr.f32.gmra.mrb[0].mxu0 %v610
      %v825 = vpop.f32.mrb[0].mxu0
      %v826 = vadd.f32 0.0, %v825
      %v827 = vpop.f32.mrb[0].mxu0
      %828 = vmatprep.mubr.f32.mxu0 0.0
      %829 = vmatmul.mubr.f32.gmra.mrb[0].mxu0 %v613
      %v830 = vpop.f32.mrb[0].mxu0
      %v831 = vadd.f32 0.0, %v830
      %v832 = vpop.f32.mrb[0].mxu0
      %833 = vmatprep.mubr.f32.mxu0 0.0
      %834 = vmatmul.mubr.f32.gmra.mrb[0].mxu0 %v616
      %v835 = vpop.f32.mrb[0].mxu0
      %v836 = vadd.f32 0.0, %v835
      %v837 = vpop.f32.mrb[0].mxu0
      %838 = vmatprep.mubr.f32.mxu0 0.0
      %839 = vmatmul.mubr.f32.gmra.mrb[0].mxu0 %v619
      %v840 = vpop.f32.mrb[0].mxu0
      %v841 = vadd.f32 0.0, %v840
      %v842 = vpop.f32.mrb[0].mxu0
      %843 = vmatprep.mubr.f32.mxu0 0.0
      %844 = vmatmul.mubr.f32.gmra.mrb[0].mxu0 %v622
      %v845 = vpop.f32.mrb[0].mxu0
      %v846 = vadd.f32 0.0, %v845
      %v847 = vpop.f32.mrb[0].mxu0
      %848 = vmatprep.mubr.f32.mxu0 0.0
      %849 = vmatmul.mubr.f32.gmra.mrb[0].mxu0 %v625
      %v850 = vpop.f32.mrb[0].mxu0
      %v851 = vadd.f32 0.0, %v850
      %v852 = vpop.f32.mrb[0].mxu0
      %853 = vmatprep.mubr.f32.mxu0 0.0
      %854 = vmatmul.mubr.f32.gmra.mrb[0].mxu0 %v628
      %v855 = vpop.f32.mrb[0].mxu0
      %v856 = vadd.f32 0.0, %v855
      %v857 = vpop.f32.mrb[0].mxu0
      %858 = vdwg.mxu0
      %v860 = vsel %vm279, %v468, 0
      %v863 = vsel %vm279, %v469, 0
      %v866 = vsel %vm279, %v470, 0
      %v869 = vsel %vm279, %v471, 0
      %v872 = vsel %vm279, %v472, 0
      %v875 = vsel %vm279, %v473, 0
      %v878 = vsel %vm279, %v474, 0
      %v881 = vsel %vm279, %v475, 0
      %v884 = vsel %vm279, %v476, 0
      %v887 = vsel %vm279, %v477, 0
      %v890 = vsel %vm279, %v478, 0
      %v893 = vsel %vm279, %v479, 0
      %v896 = vsel %vm279, %v480, 0
      %v899 = vsel %vm279, %v481, 0
      %v902 = vsel %vm279, %v482, 0
      %v905 = vsel %vm279, %v483, 0
      %v908 = vsel %vm279, %v484, 0
      %v911 = vsel %vm279, %v485, 0
      %v914 = vsel %vm279, %v486, 0
      %v917 = vsel %vm279, %v487, 0
      %v920 = vsel %vm279, %v488, 0
      %v923 = vsel %vm279, %v489, 0
      %v926 = vsel %vm279, %v490, 0
      %v929 = vsel %vm279, %v491, 0
      %v932 = vsel %vm279, %v492, 0
      %v935 = vsel %vm279, %v493, 0
      %v938 = vsel %vm279, %v494, 0
      %v941 = vsel %vm279, %v495, 0
      %v944 = vsel %vm279, %v496, 0
      %v947 = vsel %vm279, %v497, 0
      %v950 = vsel %vm279, %v498, 0
      %v953 = vsel %vm279, %v499, 0
      %v956 = vsel %vm630, %v500, 0
      %958 = vmatprep.subr.mxu0 0.0
      %959 = vmatpush1.msra.mxu0 %v956
      %960 = vmatprep.subr.mxu0 0.0
      %961 = vmatpush1.msra.mxu0 0.0
      %962 = vmatprep.subr.mxu0 0.0
      %963 = vmatpush1.msra.mxu0 0.0
      %964 = vmatprep.subr.mxu0 0.0
      %965 = vmatpush1.msra.mxu0 0.0
      %966 = vmatprep.subr.mxu0 0.0
      %967 = vmatpush1.msra.mxu0 0.0
      %968 = vmatprep.subr.mxu0 0.0
      %969 = vmatpush1.msra.mxu0 0.0
      %970 = vmatprep.subr.mxu0 0.0
      %971 = vmatpush1.msra.mxu0 0.0
      %972 = vmatprep.subr.mxu0 0.0
      %973 = vmatpush1.msra.mxu0 0.0
      %974 = vmatprep.subr.mxu0 0.0
      %975 = vmatpush1.msra.mxu0 0.0
      %976 = vmatprep.subr.mxu0 0.0
      %977 = vmatpush1.msra.mxu0 0.0
      %978 = vmatprep.subr.mxu0 0.0
      %979 = vmatpush1.msra.mxu0 0.0
      %980 = vmatprep.subr.mxu0 0.0
      %981 = vmatpush1.msra.mxu0 0.0
      %982 = vmatprep.subr.mxu0 0.0
      %983 = vmatpush1.msra.mxu0 0.0
      %984 = vmatprep.subr.mxu0 0.0
      %985 = vmatpush1.msra.mxu0 0.0
      %986 = vmatprep.subr.mxu0 0.0
      %987 = vmatpush1.msra.mxu0 0.0
      %988 = vmatprep.subr.mxu0 0.0
      %989 = vmatpush1.msra.mxu0 0.0
      %990 = vmatprep.subr.mxu0 0.0
      %991 = vmatpush1.msra.mxu0 0.0
      %992 = vmatprep.subr.mxu0 0.0
      %993 = vmatpush1.msra.mxu0 0.0
      %994 = vmatprep.subr.mxu0 0.0
      %995 = vmatpush1.msra.mxu0 0.0
      %996 = vmatprep.subr.mxu0 0.0
      %997 = vmatpush1.msra.mxu0 0.0
      %998 = vmatprep.subr.mxu0 0.0
      %999 = vmatpush1.msra.mxu0 0.0
      %1000 = vmatprep.subr.mxu0 0.0
      %1001 = vmatpush1.msra.mxu0 0.0
      %1002 = vmatprep.subr.mxu0 0.0
      %1003 = vmatpush1.msra.mxu0 0.0
      %1004 = vmatprep.subr.mxu0 0.0
      %1005 = vmatpush1.msra.mxu0 0.0
      %1006 = vmatprep.subr.mxu0 0.0
      %1007 = vmatpush1.msra.mxu0 0.0
      %1008 = vmatprep.subr.mxu0 0.0
      %1009 = vmatpush1.msra.mxu0 0.0
      %1010 = vmatprep.subr.mxu0 0.0
      %1011 = vmatpush1.msra.mxu0 0.0
      %1012 = vmatprep.subr.mxu0 0.0
      %1013 = vmatpush1.msra.mxu0 0.0
      %1014 = vmatprep.subr.mxu0 0.0
      %1015 = vmatpush1.msra.mxu0 0.0
      %1016 = vmatprep.subr.mxu0 0.0
      %1017 = vmatpush1.msra.mxu0 0.0
      %1018 = vmatprep.subr.mxu0 0.0
      %1019 = vmatpush1.msra.mxu0 0.0
      %1020 = vmatprep.subr.mxu0 0.0
      %1021 = vmatpush1.msra.mxu0 0.0
      %1022 = vmatprep.mubr.f32.mxu0 0.0
      %1023 = vmatmul.mubr.f32.gmra.mrb[0].mxu0 %v860
      %v1024 = vpop.f32.mrb[0].mxu0
      %v1025 = vadd.f32 %v701, %v1024
      %v1026 = vpop.f32.mrb[0].mxu0
      %1027 = vmatprep.mubr.f32.mxu0 0.0
      %1028 = vmatmul.mubr.f32.gmra.mrb[0].mxu0 %v863
      %v1029 = vpop.f32.mrb[0].mxu0
      %v1030 = vadd.f32 %v706, %v1029
      %v1031 = vpop.f32.mrb[0].mxu0
      %1032 = vmatprep.mubr.f32.mxu0 0.0
      %1033 = vmatmul.mubr.f32.gmra.mrb[0].mxu0 %v866
      %v1034 = vpop.f32.mrb[0].mxu0
      %v1035 = vadd.f32 %v711, %v1034
      %v1036 = vpop.f32.mrb[0].mxu0
      %1037 = vmatprep.mubr.f32.mxu0 0.0
      %1038 = vmatmul.mubr.f32.gmra.mrb[0].mxu0 %v869
      %v1039 = vpop.f32.mrb[0].mxu0
      %v1040 = vadd.f32 %v716, %v1039
      %v1041 = vpop.f32.mrb[0].mxu0
      %1042 = vmatprep.mubr.f32.mxu0 0.0
      %1043 = vmatmul.mubr.f32.gmra.mrb[0].mxu0 %v872
      %v1044 = vpop.f32.mrb[0].mxu0
      %v1045 = vadd.f32 %v721, %v1044
      %v1046 = vpop.f32.mrb[0].mxu0
      %1047 = vmatprep.mubr.f32.mxu0 0.0
      %1048 = vmatmul.mubr.f32.gmra.mrb[0].mxu0 %v875
      %v1049 = vpop.f32.mrb[0].mxu0
      %v1050 = vadd.f32 %v726, %v1049
      %v1051 = vpop.f32.mrb[0].mxu0
      %1052 = vmatprep.mubr.f32.mxu0 0.0
      %1053 = vmatmul.mubr.f32.gmra.mrb[0].mxu0 %v878
      %v1054 = vpop.f32.mrb[0].mxu0
      %v1055 = vadd.f32 %v731, %v1054
      %v1056 = vpop.f32.mrb[0].mxu0
      %1057 = vmatprep.mubr.f32.mxu0 0.0
      %1058 = vmatmul.mubr.f32.gmra.mrb[0].mxu0 %v881
      %v1059 = vpop.f32.mrb[0].mxu0
      %v1060 = vadd.f32 %v736, %v1059
      %v1061 = vpop.f32.mrb[0].mxu0
      %1062 = vmatprep.mubr.f32.mxu0 0.0
      %1063 = vmatmul.mubr.f32.gmra.mrb[0].mxu0 %v884
      %v1064 = vpop.f32.mrb[0].mxu0
      %v1065 = vadd.f32 %v741, %v1064
      %v1066 = vpop.f32.mrb[0].mxu0
      %1067 = vmatprep.mubr.f32.mxu0 0.0
      %1068 = vmatmul.mubr.f32.gmra.mrb[0].mxu0 %v887
      %v1069 = vpop.f32.mrb[0].mxu0
      %v1070 = vadd.f32 %v746, %v1069
      %v1071 = vpop.f32.mrb[0].mxu0
      %1072 = vmatprep.mubr.f32.mxu0 0.0
      %1073 = vmatmul.mubr.f32.gmra.mrb[0].mxu0 %v890
      %v1074 = vpop.f32.mrb[0].mxu0
      %v1075 = vadd.f32 %v751, %v1074
      %v1076 = vpop.f32.mrb[0].mxu0
      %1077 = vmatprep.mubr.f32.mxu0 0.0
      %1078 = vmatmul.mubr.f32.gmra.mrb[0].mxu0 %v893
      %v1079 = vpop.f32.mrb[0].mxu0
      %v1080 = vadd.f32 %v756, %v1079
      %v1081 = vpop.f32.mrb[0].mxu0
      %1082 = vmatprep.mubr.f32.mxu0 0.0
      %1083 = vmatmul.mubr.f32.gmra.mrb[0].mxu0 %v896
      %v1084 = vpop.f32.mrb[0].mxu0
      %v1085 = vadd.f32 %v761, %v1084
      %v1086 = vpop.f32.mrb[0].mxu0
      %1087 = vmatprep.mubr.f32.mxu0 0.0
      %1088 = vmatmul.mubr.f32.gmra.mrb[0].mxu0 %v899
      %v1089 = vpop.f32.mrb[0].mxu0
      %v1090 = vadd.f32 %v766, %v1089
      %v1091 = vpop.f32.mrb[0].mxu0
      %1092 = vmatprep.mubr.f32.mxu0 0.0
      %1093 = vmatmul.mubr.f32.gmra.mrb[0].mxu0 %v902
      %v1094 = vpop.f32.mrb[0].mxu0
      %v1095 = vadd.f32 %v771, %v1094
      %v1096 = vpop.f32.mrb[0].mxu0
      %1097 = vmatprep.mubr.f32.mxu0 0.0
      %1098 = vmatmul.mubr.f32.gmra.mrb[0].mxu0 %v905
      %v1099 = vpop.f32.mrb[0].mxu0
      %v1100 = vadd.f32 %v776, %v1099
      %v1101 = vpop.f32.mrb[0].mxu0
      %1102 = vmatprep.mubr.f32.mxu0 0.0
      %1103 = vmatmul.mubr.f32.gmra.mrb[0].mxu0 %v908
      %v1104 = vpop.f32.mrb[0].mxu0
      %v1105 = vadd.f32 %v781, %v1104
      %v1106 = vpop.f32.mrb[0].mxu0
      %1107 = vmatprep.mubr.f32.mxu0 0.0
      %1108 = vmatmul.mubr.f32.gmra.mrb[0].mxu0 %v911
      %v1109 = vpop.f32.mrb[0].mxu0
      %v1110 = vadd.f32 %v786, %v1109
      %v1111 = vpop.f32.mrb[0].mxu0
      %1112 = vmatprep.mubr.f32.mxu0 0.0
      %1113 = vmatmul.mubr.f32.gmra.mrb[0].mxu0 %v914
      %v1114 = vpop.f32.mrb[0].mxu0
      %v1115 = vadd.f32 %v791, %v1114
      %v1116 = vpop.f32.mrb[0].mxu0
      %1117 = vmatprep.mubr.f32.mxu0 0.0
      %1118 = vmatmul.mubr.f32.gmra.mrb[0].mxu0 %v917
      %v1119 = vpop.f32.mrb[0].mxu0
      %v1120 = vadd.f32 %v796, %v1119
      %v1121 = vpop.f32.mrb[0].mxu0
      %1122 = vmatprep.mubr.f32.mxu0 0.0
      %1123 = vmatmul.mubr.f32.gmra.mrb[0].mxu0 %v920
      %v1124 = vpop.f32.mrb[0].mxu0
      %v1125 = vadd.f32 %v801, %v1124
      %v1126 = vpop.f32.mrb[0].mxu0
      %1127 = vmatprep.mubr.f32.mxu0 0.0
      %1128 = vmatmul.mubr.f32.gmra.mrb[0].mxu0 %v923
      %v1129 = vpop.f32.mrb[0].mxu0
      %v1130 = vadd.f32 %v806, %v1129
      %v1131 = vpop.f32.mrb[0].mxu0
      %1132 = vmatprep.mubr.f32.mxu0 0.0
      %1133 = vmatmul.mubr.f32.gmra.mrb[0].mxu0 %v926
      %v1134 = vpop.f32.mrb[0].mxu0
      %v1135 = vadd.f32 %v811, %v1134
      %v1136 = vpop.f32.mrb[0].mxu0
      %1137 = vmatprep.mubr.f32.mxu0 0.0
      %1138 = vmatmul.mubr.f32.gmra.mrb[0].mxu0 %v929
      %v1139 = vpop.f32.mrb[0].mxu0
      %v1140 = vadd.f32 %v816, %v1139
      %v1141 = vpop.f32.mrb[0].mxu0
      %1142 = vmatprep.mubr.f32.mxu0 0.0
      %1143 = vmatmul.mubr.f32.gmra.mrb[0].mxu0 %v932
      %v1144 = vpop.f32.mrb[0].mxu0
      %v1145 = vadd.f32 %v821, %v1144
      %v1146 = vpop.f32.mrb[0].mxu0
      %1147 = vmatprep.mubr.f32.mxu0 0.0
      %1148 = vmatmul.mubr.f32.gmra.mrb[0].mxu0 %v935
      %v1149 = vpop.f32.mrb[0].mxu0
      %v1150 = vadd.f32 %v826, %v1149
      %v1151 = vpop.f32.mrb[0].mxu0
      %1152 = vmatprep.mubr.f32.mxu0 0.0
      %1153 = vmatmul.mubr.f32.gmra.mrb[0].mxu0 %v938
      %v1154 = vpop.f32.mrb[0].mxu0
      %v1155 = vadd.f32 %v831, %v1154
      %v1156 = vpop.f32.mrb[0].mxu0
      %1157 = vmatprep.mubr.f32.mxu0 0.0
      %1158 = vmatmul.mubr.f32.gmra.mrb[0].mxu0 %v941
      %v1159 = vpop.f32.mrb[0].mxu0
      %v1160 = vadd.f32 %v836, %v1159
      %v1161 = vpop.f32.mrb[0].mxu0
      %1162 = vmatprep.mubr.f32.mxu0 0.0
      %1163 = vmatmul.mubr.f32.gmra.mrb[0].mxu0 %v944
      %v1164 = vpop.f32.mrb[0].mxu0
      %v1165 = vadd.f32 %v841, %v1164
      %v1166 = vpop.f32.mrb[0].mxu0
      %1167 = vmatprep.mubr.f32.mxu0 0.0
      %1168 = vmatmul.mubr.f32.gmra.mrb[0].mxu0 %v947
      %v1169 = vpop.f32.mrb[0].mxu0
      %v1170 = vadd.f32 %v846, %v1169
      %v1171 = vpop.f32.mrb[0].mxu0
      %1172 = vmatprep.mubr.f32.mxu0 0.0
      %1173 = vmatmul.mubr.f32.gmra.mrb[0].mxu0 %v950
      %v1174 = vpop.f32.mrb[0].mxu0
      %v1175 = vadd.f32 %v851, %v1174
      %v1176 = vpop.f32.mrb[0].mxu0
      %1177 = vmatprep.mubr.f32.mxu0 0.0
      %1178 = vmatmul.mubr.f32.gmra.mrb[0].mxu0 %v953
      %v1179 = vpop.f32.mrb[0].mxu0
      %v1180 = vadd.f32 %v856, %v1179
      %v1181 = vpop.f32.mrb[0].mxu0
      %1182 = vdwg.mxu0
      %v1183 = vld [vmem:[#allocation2 + $0x2] sm:$0xff]
      %v1184 = vld [vmem:[#allocation2 + $0xa] sm:$0xff]
      %v1185 = vld [vmem:[#allocation2 + $0x1a] sm:$0xff]
      %v1186 = vld [vmem:[#allocation2 + $0x22] sm:$0xff]
      %v1187 = vld [vmem:[#allocation2 + $0x32] sm:$0xff]
      %v1188 = vld [vmem:[#allocation2 + $0x3a] sm:$0xff]
      %v1189 = vld [vmem:[#allocation2 + $0x4a] sm:$0xff]
      %v1190 = vld [vmem:[#allocation2 + $0x52] sm:$0xff]
      %v1191 = vld [vmem:[#allocation2 + $0x62] sm:$0xff]
      %v1192 = vld [vmem:[#allocation2 + $0x6a] sm:$0xff]
      %v1193 = vld [vmem:[#allocation2 + $0x7a] sm:$0xff]
      %v1194 = vld [vmem:[#allocation2 + $0x82] sm:$0xff]
      %v1195 = vld [vmem:[#allocation2 + $0x92] sm:$0xff]
      %v1196 = vld [vmem:[#allocation2 + $0x9a] sm:$0xff]
      %v1197 = vld [vmem:[#allocation2 + $0xaa] sm:$0xff]
      %v1198 = vld [vmem:[#allocation2 + $0xb2] sm:$0xff]
      %v1199 = vld [vmem:[#allocation2 + $0xc2] sm:$0xff]
      %v1200 = vld [vmem:[#allocation2 + $0xca] sm:$0xff]
      %v1201 = vld [vmem:[#allocation2 + $0xda] sm:$0xff]
      %v1202 = vld [vmem:[#allocation2 + $0xe2] sm:$0xff]
      %v1203 = vld [vmem:[#allocation2 + $0xf2] sm:$0xff]
      %v1204 = vld [vmem:[#allocation2 + $0xfa] sm:$0xff]
      %v1205 = vld [vmem:[#allocation2 + $0x10a] sm:$0xff]
      %v1206 = vld [vmem:[#allocation2 + $0x112] sm:$0xff]
      %v1207 = vld [vmem:[#allocation2 + $0x122] sm:$0xff]
      %v1208 = vld [vmem:[#allocation2 + $0x12a] sm:$0xff]
      %v1209 = vld [vmem:[#allocation2 + $0x13a] sm:$0xff]
      %v1210 = vld [vmem:[#allocation2 + $0x142] sm:$0xff]
      %v1211 = vld [vmem:[#allocation2 + $0x152] sm:$0xff]
      %v1212 = vld [vmem:[#allocation2 + $0x15a] sm:$0xff]
      %v1213 = vld [vmem:[#allocation2 + $0x16a] sm:$0xff]
      %v1214 = vld [vmem:[#allocation2 + $0x172] sm:$0xff]
      %v1215 = vld [vmem:[%s1 + $0x8] sm:$0xf]
      %v1217 = vsel %vm279, %v1183, 0
      %v1220 = vsel %vm279, %v1184, 0
      %v1223 = vsel %vm279, %v1185, 0
      %v1226 = vsel %vm279, %v1186, 0
      %v1229 = vsel %vm279, %v1187, 0
      %v1232 = vsel %vm279, %v1188, 0
      %v1235 = vsel %vm279, %v1189, 0
      %v1238 = vsel %vm279, %v1190, 0
      %v1241 = vsel %vm279, %v1191, 0
      %v1244 = vsel %vm279, %v1192, 0
      %v1247 = vsel %vm279, %v1193, 0
      %v1250 = vsel %vm279, %v1194, 0
      %v1253 = vsel %vm279, %v1195, 0
      %v1256 = vsel %vm279, %v1196, 0
      %v1259 = vsel %vm279, %v1197, 0
      %v1262 = vsel %vm279, %v1198, 0
      %v1265 = vsel %vm279, %v1199, 0
      %v1268 = vsel %vm279, %v1200, 0
      %v1271 = vsel %vm279, %v1201, 0
      %v1274 = vsel %vm279, %v1202, 0
      %v1277 = vsel %vm279, %v1203, 0
      %v1280 = vsel %vm279, %v1204, 0
      %v1283 = vsel %vm279, %v1205, 0
      %v1286 = vsel %vm279, %v1206, 0
      %v1289 = vsel %vm279, %v1207, 0
      %v1292 = vsel %vm279, %v1208, 0
      %v1295 = vsel %vm279, %v1209, 0
      %v1298 = vsel %vm279, %v1210, 0
      %v1301 = vsel %vm279, %v1211, 0
      %v1304 = vsel %vm279, %v1212, 0
      %v1307 = vsel %vm279, %v1213, 0
      %v1310 = vsel %vm279, %v1214, 0
      %v1313 = vsel %vm630, %v1215, 0
      %1315 = vmatprep.subr.mxu0 0.0
      %1316 = vmatpush1.msra.mxu0 %v1313
      %1317 = vmatprep.subr.mxu0 0.0
      %1318 = vmatpush1.msra.mxu0 0.0
      %1319 = vmatprep.subr.mxu0 0.0
      %1320 = vmatpush1.msra.mxu0 0.0
      %1321 = vmatprep.subr.mxu0 0.0
      %1322 = vmatpush1.msra.mxu0 0.0
      %1323 = vmatprep.subr.mxu0 0.0
      %1324 = vmatpush1.msra.mxu0 0.0
      %1325 = vmatprep.subr.mxu0 0.0
      %1326 = vmatpush1.msra.mxu0 0.0
      %1327 = vmatprep.subr.mxu0 0.0
      %1328 = vmatpush1.msra.mxu0 0.0
      %1329 = vmatprep.subr.mxu0 0.0
      %1330 = vmatpush1.msra.mxu0 0.0
      %1331 = vmatprep.subr.mxu0 0.0
      %1332 = vmatpush1.msra.mxu0 0.0
      %1333 = vmatprep.subr.mxu0 0.0
      %1334 = vmatpush1.msra.mxu0 0.0
      %1335 = vmatprep.subr.mxu0 0.0
      %1336 = vmatpush1.msra.mxu0 0.0
      %1337 = vmatprep.subr.mxu0 0.0
      %1338 = vmatpush1.msra.mxu0 0.0
      %1339 = vmatprep.subr.mxu0 0.0
      %1340 = vmatpush1.msra.mxu0 0.0
      %1341 = vmatprep.subr.mxu0 0.0
      %1342 = vmatpush1.msra.mxu0 0.0
      %1343 = vmatprep.subr.mxu0 0.0
      %1344 = vmatpush1.msra.mxu0 0.0
      %1345 = vmatprep.subr.mxu0 0.0
      %1346 = vmatpush1.msra.mxu0 0.0
      %1347 = vmatprep.subr.mxu0 0.0
      %1348 = vmatpush1.msra.mxu0 0.0
      %1349 = vmatprep.subr.mxu0 0.0
      %1350 = vmatpush1.msra.mxu0 0.0
      %1351 = vmatprep.subr.mxu0 0.0
      %1352 = vmatpush1.msra.mxu0 0.0
      %1353 = vmatprep.subr.mxu0 0.0
      %1354 = vmatpush1.msra.mxu0 0.0
      %1355 = vmatprep.subr.mxu0 0.0
      %1356 = vmatpush1.msra.mxu0 0.0
      %1357 = vmatprep.subr.mxu0 0.0
      %1358 = vmatpush1.msra.mxu0 0.0
      %1359 = vmatprep.subr.mxu0 0.0
      %1360 = vmatpush1.msra.mxu0 0.0
      %1361 = vmatprep.subr.mxu0 0.0
      %1362 = vmatpush1.msra.mxu0 0.0
      %1363 = vmatprep.subr.mxu0 0.0
      %1364 = vmatpush1.msra.mxu0 0.0
      %1365 = vmatprep.subr.mxu0 0.0
      %1366 = vmatpush1.msra.mxu0 0.0
      %1367 = vmatprep.subr.mxu0 0.0
      %1368 = vmatpush1.msra.mxu0 0.0
      %1369 = vmatprep.subr.mxu0 0.0
      %1370 = vmatpush1.msra.mxu0 0.0
      %1371 = vmatprep.subr.mxu0 0.0
      %1372 = vmatpush1.msra.mxu0 0.0
      %1373 = vmatprep.subr.mxu0 0.0
      %1374 = vmatpush1.msra.mxu0 0.0
      %1375 = vmatprep.subr.mxu0 0.0
      %1376 = vmatpush1.msra.mxu0 0.0
      %1377 = vmatprep.subr.mxu0 0.0
      %1378 = vmatpush1.msra.mxu0 0.0
      %1379 = vmatprep.mubr.f32.mxu0 0.0
      %1380 = vmatmul.mubr.f32.gmra.mrb[0].mxu0 %v1217
      %v1381 = vpop.f32.mrb[0].mxu0
      %v1382 = vadd.f32 0.0, %v1381
      %v1383 = vpop.f32.mrb[0].mxu0
      %1384 = vmatprep.mubr.f32.mxu0 0.0
      %1385 = vmatmul.mubr.f32.gmra.mrb[0].mxu0 %v1220
      %v1386 = vpop.f32.mrb[0].mxu0
      %v1387 = vadd.f32 0.0, %v1386
      %v1388 = vpop.f32.mrb[0].mxu0
      %1389 = vmatprep.mubr.f32.mxu0 0.0
      %1390 = vmatmul.mubr.f32.gmra.mrb[0].mxu0 %v1223
      %v1391 = vpop.f32.mrb[0].mxu0
      %v1392 = vadd.f32 0.0, %v1391
      %v1393 = vpop.f32.mrb[0].mxu0
      %1394 = vmatprep.mubr.f32.mxu0 0.0
      %1395 = vmatmul.mubr.f32.gmra.mrb[0].mxu0 %v1226
      %v1396 = vpop.f32.mrb[0].mxu0
      %v1397 = vadd.f32 0.0, %v1396
      %v1398 = vpop.f32.mrb[0].mxu0
      %1399 = vmatprep.mubr.f32.mxu0 0.0
      %1400 = vmatmul.mubr.f32.gmra.mrb[0].mxu0 %v1229
      %v1401 = vpop.f32.mrb[0].mxu0
      %v1402 = vadd.f32 0.0, %v1401
      %v1403 = vpop.f32.mrb[0].mxu0
      %1404 = vmatprep.mubr.f32.mxu0 0.0
      %1405 = vmatmul.mubr.f32.gmra.mrb[0].mxu0 %v1232
      %v1406 = vpop.f32.mrb[0].mxu0
      %v1407 = vadd.f32 0.0, %v1406
      %v1408 = vpop.f32.mrb[0].mxu0
      %1409 = vmatprep.mubr.f32.mxu0 0.0
      %1410 = vmatmul.mubr.f32.gmra.mrb[0].mxu0 %v1235
      %v1411 = vpop.f32.mrb[0].mxu0
      %v1412 = vadd.f32 0.0, %v1411
      %v1413 = vpop.f32.mrb[0].mxu0
      %1414 = vmatprep.mubr.f32.mxu0 0.0
      %1415 = vmatmul.mubr.f32.gmra.mrb[0].mxu0 %v1238
      %v1416 = vpop.f32.mrb[0].mxu0
      %v1417 = vadd.f32 0.0, %v1416
      %v1418 = vpop.f32.mrb[0].mxu0
      %1419 = vmatprep.mubr.f32.mxu0 0.0
      %1420 = vmatmul.mubr.f32.gmra.mrb[0].mxu0 %v1241
      %v1421 = vpop.f32.mrb[0].mxu0
      %v1422 = vadd.f32 0.0, %v1421
      %v1423 = vpop.f32.mrb[0].mxu0
      %1424 = vmatprep.mubr.f32.mxu0 0.0
      %1425 = vmatmul.mubr.f32.gmra.mrb[0].mxu0 %v1244
      %v1426 = vpop.f32.mrb[0].mxu0
      %v1427 = vadd.f32 0.0, %v1426
      %v1428 = vpop.f32.mrb[0].mxu0
      %1429 = vmatprep.mubr.f32.mxu0 0.0
      %1430 = vmatmul.mubr.f32.gmra.mrb[0].mxu0 %v1247
      %v1431 = vpop.f32.mrb[0].mxu0
      %v1432 = vadd.f32 0.0, %v1431
      %v1433 = vpop.f32.mrb[0].mxu0
      %1434 = vmatprep.mubr.f32.mxu0 0.0
      %1435 = vmatmul.mubr.f32.gmra.mrb[0].mxu0 %v1250
      %v1436 = vpop.f32.mrb[0].mxu0
      %v1437 = vadd.f32 0.0, %v1436
      %v1438 = vpop.f32.mrb[0].mxu0
      %1439 = vmatprep.mubr.f32.mxu0 0.0
      %1440 = vmatmul.mubr.f32.gmra.mrb[0].mxu0 %v1253
      %v1441 = vpop.f32.mrb[0].mxu0
      %v1442 = vadd.f32 0.0, %v1441
      %v1443 = vpop.f32.mrb[0].mxu0
      %1444 = vmatprep.mubr.f32.mxu0 0.0
      %1445 = vmatmul.mubr.f32.gmra.mrb[0].mxu0 %v1256
      %v1446 = vpop.f32.mrb[0].mxu0
      %v1447 = vadd.f32 0.0, %v1446
      %v1448 = vpop.f32.mrb[0].mxu0
      %1449 = vmatprep.mubr.f32.mxu0 0.0
      %1450 = vmatmul.mubr.f32.gmra.mrb[0].mxu0 %v1259
      %v1451 = vpop.f32.mrb[0].mxu0
      %v1452 = vadd.f32 0.0, %v1451
      %v1453 = vpop.f32.mrb[0].mxu0
      %1454 = vmatprep.mubr.f32.mxu0 0.0
      %1455 = vmatmul.mubr.f32.gmra.mrb[0].mxu0 %v1262
      %v1456 = vpop.f32.mrb[0].mxu0
      %v1457 = vadd.f32 0.0, %v1456
      %v1458 = vpop.f32.mrb[0].mxu0
      %1459 = vmatprep.mubr.f32.mxu0 0.0
      %1460 = vmatmul.mubr.f32.gmra.mrb[0].mxu0 %v1265
      %v1461 = vpop.f32.mrb[0].mxu0
      %v1462 = vadd.f32 0.0, %v1461
      %v1463 = vpop.f32.mrb[0].mxu0
      %1464 = vmatprep.mubr.f32.mxu0 0.0
      %1465 = vmatmul.mubr.f32.gmra.mrb[0].mxu0 %v1268
      %v1466 = vpop.f32.mrb[0].mxu0
      %v1467 = vadd.f32 0.0, %v1466
      %v1468 = vpop.f32.mrb[0].mxu0
      %1469 = vmatprep.mubr.f32.mxu0 0.0
      %1470 = vmatmul.mubr.f32.gmra.mrb[0].mxu0 %v1271
      %v1471 = vpop.f32.mrb[0].mxu0
      %v1472 = vadd.f32 0.0, %v1471
      %v1473 = vpop.f32.mrb[0].mxu0
      %1474 = vmatprep.mubr.f32.mxu0 0.0
      %1475 = vmatmul.mubr.f32.gmra.mrb[0].mxu0 %v1274
      %v1476 = vpop.f32.mrb[0].mxu0
      %v1477 = vadd.f32 0.0, %v1476
      %v1478 = vpop.f32.mrb[0].mxu0
      %1479 = vmatprep.mubr.f32.mxu0 0.0
      %1480 = vmatmul.mubr.f32.gmra.mrb[0].mxu0 %v1277
      %v1481 = vpop.f32.mrb[0].mxu0
      %v1482 = vadd.f32 0.0, %v1481
      %v1483 = vpop.f32.mrb[0].mxu0
      %1484 = vmatprep.mubr.f32.mxu0 0.0
      %1485 = vmatmul.mubr.f32.gmra.mrb[0].mxu0 %v1280
      %v1486 = vpop.f32.mrb[0].mxu0
      %v1487 = vadd.f32 0.0, %v1486
      %v1488 = vpop.f32.mrb[0].mxu0
      %1489 = vmatprep.mubr.f32.mxu0 0.0
      %1490 = vmatmul.mubr.f32.gmra.mrb[0].mxu0 %v1283
      %v1491 = vpop.f32.mrb[0].mxu0
      %v1492 = vadd.f32 0.0, %v1491
      %v1493 = vpop.f32.mrb[0].mxu0
      %1494 = vmatprep.mubr.f32.mxu0 0.0
      %1495 = vmatmul.mubr.f32.gmra.mrb[0].mxu0 %v1286
      %v1496 = vpop.f32.mrb[0].mxu0
      %v1497 = vadd.f32 0.0, %v1496
      %v1498 = vpop.f32.mrb[0].mxu0
      %1499 = vmatprep.mubr.f32.mxu0 0.0
      %1500 = vmatmul.mubr.f32.gmra.mrb[0].mxu0 %v1289
      %v1501 = vpop.f32.mrb[0].mxu0
      %v1502 = vadd.f32 0.0, %v1501
      %v1503 = vpop.f32.mrb[0].mxu0
      %1504 = vmatprep.mubr.f32.mxu0 0.0
      %1505 = vmatmul.mubr.f32.gmra.mrb[0].mxu0 %v1292
      %v1506 = vpop.f32.mrb[0].mxu0
      %v1507 = vadd.f32 0.0, %v1506
      %v1508 = vpop.f32.mrb[0].mxu0
      %1509 = vmatprep.mubr.f32.mxu0 0.0
      %1510 = vmatmul.mubr.f32.gmra.mrb[0].mxu0 %v1295
      %v1511 = vpop.f32.mrb[0].mxu0
      %v1512 = vadd.f32 0.0, %v1511
      %v1513 = vpop.f32.mrb[0].mxu0
      %1514 = vmatprep.mubr.f32.mxu0 0.0
      %1515 = vmatmul.mubr.f32.gmra.mrb[0].mxu0 %v1298
      %v1516 = vpop.f32.mrb[0].mxu0
      %v1517 = vadd.f32 0.0, %v1516
      %v1518 = vpop.f32.mrb[0].mxu0
      %1519 = vmatprep.mubr.f32.mxu0 0.0
      %1520 = vmatmul.mubr.f32.gmra.mrb[0].mxu0 %v1301
      %v1521 = vpop.f32.mrb[0].mxu0
      %v1522 = vadd.f32 0.0, %v1521
      %v1523 = vpop.f32.mrb[0].mxu0
      %1524 = vmatprep.mubr.f32.mxu0 0.0
      %1525 = vmatmul.mubr.f32.gmra.mrb[0].mxu0 %v1304
      %v1526 = vpop.f32.mrb[0].mxu0
      %v1527 = vadd.f32 0.0, %v1526
      %v1528 = vpop.f32.mrb[0].mxu0
      %1529 = vmatprep.mubr.f32.mxu0 0.0
      %1530 = vmatmul.mubr.f32.gmra.mrb[0].mxu0 %v1307
      %v1531 = vpop.f32.mrb[0].mxu0
      %v1532 = vadd.f32 0.0, %v1531
      %v1533 = vpop.f32.mrb[0].mxu0
      %1534 = vmatprep.mubr.f32.mxu0 0.0
      %1535 = vmatmul.mubr.f32.gmra.mrb[0].mxu0 %v1310
      %v1536 = vpop.f32.mrb[0].mxu0
      %v1537 = vadd.f32 0.0, %v1536
      %v1538 = vpop.f32.mrb[0].mxu0
      %1539 = vdwg.mxu0
      %v1540 = vadd.f32 %v1025, %v1382
      %v1541 = vadd.f32 %v1030, %v1387
      %v1542 = vadd.f32 %v1035, %v1392
      %v1543 = vadd.f32 %v1040, %v1397
      %v1544 = vadd.f32 %v1045, %v1402
      %v1545 = vadd.f32 %v1050, %v1407
      %v1546 = vadd.f32 %v1055, %v1412
      %v1547 = vadd.f32 %v1060, %v1417
      %v1548 = vadd.f32 %v1065, %v1422
      %v1549 = vadd.f32 %v1070, %v1427
      %v1550 = vadd.f32 %v1075, %v1432
      %v1551 = vadd.f32 %v1080, %v1437
      %v1552 = vadd.f32 %v1085, %v1442
      %v1553 = vadd.f32 %v1090, %v1447
      %v1554 = vadd.f32 %v1095, %v1452
      %v1555 = vadd.f32 %v1100, %v1457
      %v1556 = vadd.f32 %v1105, %v1462
      %v1557 = vadd.f32 %v1110, %v1467
      %v1558 = vadd.f32 %v1115, %v1472
      %v1559 = vadd.f32 %v1120, %v1477
      %v1560 = vadd.f32 %v1125, %v1482
      %v1561 = vadd.f32 %v1130, %v1487
      %v1562 = vadd.f32 %v1135, %v1492
      %v1563 = vadd.f32 %v1140, %v1497
      %v1564 = vadd.f32 %v1145, %v1502
      %v1565 = vadd.f32 %v1150, %v1507
      %v1566 = vadd.f32 %v1155, %v1512
      %v1567 = vadd.f32 %v1160, %v1517
      %v1568 = vadd.f32 %v1165, %v1522
      %v1569 = vadd.f32 %v1170, %v1527
      %v1570 = vadd.f32 %v1175, %v1532
      %v1571 = vadd.f32 %v1180, %v1537
      %v1572 = vld [vmem:[%s435] sm:$0xff]
      %v1573 = vld [vmem:[%s435 + $0x8] sm:$0xff]
      %v1574 = vld [vmem:[%s435 + $0x18] sm:$0xff]
      %v1575 = vld [vmem:[%s435 + $0x20] sm:$0xff]
      %v1576 = vld [vmem:[%s435 + $0x30] sm:$0xff]
      %v1577 = vld [vmem:[%s435 + $0x38] sm:$0xff]
      %v1578 = vld [vmem:[%s435 + $0x48] sm:$0xff]
      %v1579 = vld [vmem:[%s435 + $0x50] sm:$0xff]
      %v1580 = vld [vmem:[%s435 + $0x60] sm:$0xff]
      %v1581 = vld [vmem:[%s435 + $0x68] sm:$0xff]
      %v1582 = vld [vmem:[%s435 + $0x78] sm:$0xff]
      %v1583 = vld [vmem:[%s435 + $0x80] sm:$0xff]
      %v1584 = vld [vmem:[%s435 + $0x90] sm:$0xff]
      %v1585 = vld [vmem:[%s435 + $0x98] sm:$0xff]
      %v1586 = vld [vmem:[%s435 + $0xa8] sm:$0xff]
      %v1587 = vld [vmem:[%s435 + $0xb0] sm:$0xff]
      %v1588 = vld [vmem:[%s435 + $0xc0] sm:$0xff]
      %v1589 = vld [vmem:[%s435 + $0xc8] sm:$0xff]
      %v1590 = vld [vmem:[%s435 + $0xd8] sm:$0xff]
      %v1591 = vld [vmem:[%s435 + $0xe0] sm:$0xff]
      %v1592 = vld [vmem:[%s435 + $0xf0] sm:$0xff]
      %v1593 = vld [vmem:[%s435 + $0xf8] sm:$0xff]
      %v1594 = vld [vmem:[%s435 + $0x108] sm:$0xff]
      %v1595 = vld [vmem:[%s435 + $0x110] sm:$0xff]
      %v1596 = vld [vmem:[%s435 + $0x120] sm:$0xff]
      %v1597 = vld [vmem:[%s435 + $0x128] sm:$0xff]
      %v1598 = vld [vmem:[%s435 + $0x138] sm:$0xff]
      %v1599 = vld [vmem:[%s435 + $0x140] sm:$0xff]
      %v1600 = vld [vmem:[%s435 + $0x150] sm:$0xff]
      %v1601 = vld [vmem:[%s435 + $0x158] sm:$0xff]
      %v1602 = vld [vmem:[%s435 + $0x168] sm:$0xff]
      %v1603 = vld [vmem:[%s435 + $0x170] sm:$0xff]
      %v1604 = vld [vmem:[%s1 + $0xc] sm:$0xf]
      %v1606 = vsel %vm279, %v1572, 0
      %v1609 = vsel %vm279, %v1573, 0
      %v1612 = vsel %vm279, %v1574, 0
      %v1615 = vsel %vm279, %v1575, 0
      %v1618 = vsel %vm279, %v1576, 0
      %v1621 = vsel %vm279, %v1577, 0
      %v1624 = vsel %vm279, %v1578, 0
      %v1627 = vsel %vm279, %v1579, 0
      %v1630 = vsel %vm279, %v1580, 0
      %v1633 = vsel %vm279, %v1581, 0
      %v1636 = vsel %vm279, %v1582, 0
      %v1639 = vsel %vm279, %v1583, 0
      %v1642 = vsel %vm279, %v1584, 0
      %v1645 = vsel %vm279, %v1585, 0
      %v1648 = vsel %vm279, %v1586, 0
      %v1651 = vsel %vm279, %v1587, 0
      %v1654 = vsel %vm279, %v1588, 0
      %v1657 = vsel %vm279, %v1589, 0
      %v1660 = vsel %vm279, %v1590, 0
      %v1663 = vsel %vm279, %v1591, 0
      %v1666 = vsel %vm279, %v1592, 0
      %v1669 = vsel %vm279, %v1593, 0
      %v1672 = vsel %vm279, %v1594, 0
      %v1675 = vsel %vm279, %v1595, 0
      %v1678 = vsel %vm279, %v1596, 0
      %v1681 = vsel %vm279, %v1597, 0
      %v1684 = vsel %vm279, %v1598, 0
      %v1687 = vsel %vm279, %v1599, 0
      %v1690 = vsel %vm279, %v1600, 0
      %v1693 = vsel %vm279, %v1601, 0
      %v1696 = vsel %vm279, %v1602, 0
      %v1699 = vsel %vm279, %v1603, 0
      %v1702 = vsel %vm630, %v1604, 0
      %1704 = vmatprep.subr.mxu0 0.0
      %1705 = vmatpush1.msra.mxu0 %v1702
      %1706 = vmatprep.subr.mxu0 0.0
      %1707 = vmatpush1.msra.mxu0 0.0
      %1708 = vmatprep.subr.mxu0 0.0
      %1709 = vmatpush1.msra.mxu0 0.0
      %1710 = vmatprep.subr.mxu0 0.0
      %1711 = vmatpush1.msra.mxu0 0.0
      %1712 = vmatprep.subr.mxu0 0.0
      %1713 = vmatpush1.msra.mxu0 0.0
      %1714 = vmatprep.subr.mxu0 0.0
      %1715 = vmatpush1.msra.mxu0 0.0
      %1716 = vmatprep.subr.mxu0 0.0
      %1717 = vmatpush1.msra.mxu0 0.0
      %1718 = vmatprep.subr.mxu0 0.0
      %1719 = vmatpush1.msra.mxu0 0.0
      %1720 = vmatprep.subr.mxu0 0.0
      %1721 = vmatpush1.msra.mxu0 0.0
      %1722 = vmatprep.subr.mxu0 0.0
      %1723 = vmatpush1.msra.mxu0 0.0
      %1724 = vmatprep.subr.mxu0 0.0
      %1725 = vmatpush1.msra.mxu0 0.0
      %1726 = vmatprep.subr.mxu0 0.0
      %1727 = vmatpush1.msra.mxu0 0.0
      %1728 = vmatprep.subr.mxu0 0.0
      %1729 = vmatpush1.msra.mxu0 0.0
      %1730 = vmatprep.subr.mxu0 0.0
      %1731 = vmatpush1.msra.mxu0 0.0
      %1732 = vmatprep.subr.mxu0 0.0
      %1733 = vmatpush1.msra.mxu0 0.0
      %1734 = vmatprep.subr.mxu0 0.0
      %1735 = vmatpush1.msra.mxu0 0.0
      %1736 = vmatprep.subr.mxu0 0.0
      %1737 = vmatpush1.msra.mxu0 0.0
      %1738 = vmatprep.subr.mxu0 0.0
      %1739 = vmatpush1.msra.mxu0 0.0
      %1740 = vmatprep.subr.mxu0 0.0
      %1741 = vmatpush1.msra.mxu0 0.0
      %1742 = vmatprep.subr.mxu0 0.0
      %1743 = vmatpush1.msra.mxu0 0.0
      %1744 = vmatprep.subr.mxu0 0.0
      %1745 = vmatpush1.msra.mxu0 0.0
      %1746 = vmatprep.subr.mxu0 0.0
      %1747 = vmatpush1.msra.mxu0 0.0
      %1748 = vmatprep.subr.mxu0 0.0
      %1749 = vmatpush1.msra.mxu0 0.0
      %1750 = vmatprep.subr.mxu0 0.0
      %1751 = vmatpush1.msra.mxu0 0.0
      %1752 = vmatprep.subr.mxu0 0.0
      %1753 = vmatpush1.msra.mxu0 0.0
      %1754 = vmatprep.subr.mxu0 0.0
      %1755 = vmatpush1.msra.mxu0 0.0
      %1756 = vmatprep.subr.mxu0 0.0
      %1757 = vmatpush1.msra.mxu0 0.0
      %1758 = vmatprep.subr.mxu0 0.0
      %1759 = vmatpush1.msra.mxu0 0.0
      %1760 = vmatprep.subr.mxu0 0.0
      %1761 = vmatpush1.msra.mxu0 0.0
      %1762 = vmatprep.subr.mxu0 0.0
      %1763 = vmatpush1.msra.mxu0 0.0
      %1764 = vmatprep.subr.mxu0 0.0
      %1765 = vmatpush1.msra.mxu0 0.0
      %1766 = vmatprep.subr.mxu0 0.0
      %1767 = vmatpush1.msra.mxu0 0.0
      %1768 = vmatprep.mubr.f32.mxu0 0.0
      %1769 = vmatmul.mubr.f32.gmra.mrb[0].mxu0 %v1606
      %v1770 = vpop.f32.mrb[0].mxu0
      %v1771 = vadd.f32 0.0, %v1770
      %v1772 = vpop.f32.mrb[0].mxu0
      %1773 = vmatprep.mubr.f32.mxu0 0.0
      %1774 = vmatmul.mubr.f32.gmra.mrb[0].mxu0 %v1609
      %v1775 = vpop.f32.mrb[0].mxu0
      %v1776 = vadd.f32 0.0, %v1775
      %v1777 = vpop.f32.mrb[0].mxu0
      %1778 = vmatprep.mubr.f32.mxu0 0.0
      %1779 = vmatmul.mubr.f32.gmra.mrb[0].mxu0 %v1612
      %v1780 = vpop.f32.mrb[0].mxu0
      %v1781 = vadd.f32 0.0, %v1780
      %v1782 = vpop.f32.mrb[0].mxu0
      %1783 = vmatprep.mubr.f32.mxu0 0.0
      %1784 = vmatmul.mubr.f32.gmra.mrb[0].mxu0 %v1615
      %v1785 = vpop.f32.mrb[0].mxu0
      %v1786 = vadd.f32 0.0, %v1785
      %v1787 = vpop.f32.mrb[0].mxu0
      %1788 = vmatprep.mubr.f32.mxu0 0.0
      %1789 = vmatmul.mubr.f32.gmra.mrb[0].mxu0 %v1618
      %v1790 = vpop.f32.mrb[0].mxu0
      %v1791 = vadd.f32 0.0, %v1790
      %v1792 = vpop.f32.mrb[0].mxu0
      %1793 = vmatprep.mubr.f32.mxu0 0.0
      %1794 = vmatmul.mubr.f32.gmra.mrb[0].mxu0 %v1621
      %v1795 = vpop.f32.mrb[0].mxu0
      %v1796 = vadd.f32 0.0, %v1795
      %v1797 = vpop.f32.mrb[0].mxu0
      %1798 = vmatprep.mubr.f32.mxu0 0.0
      %1799 = vmatmul.mubr.f32.gmra.mrb[0].mxu0 %v1624
      %v1800 = vpop.f32.mrb[0].mxu0
      %v1801 = vadd.f32 0.0, %v1800
      %v1802 = vpop.f32.mrb[0].mxu0
      %1803 = vmatprep.mubr.f32.mxu0 0.0
      %1804 = vmatmul.mubr.f32.gmra.mrb[0].mxu0 %v1627
      %v1805 = vpop.f32.mrb[0].mxu0
      %v1806 = vadd.f32 0.0, %v1805
      %v1807 = vpop.f32.mrb[0].mxu0
      %1808 = vmatprep.mubr.f32.mxu0 0.0
      %1809 = vmatmul.mubr.f32.gmra.mrb[0].mxu0 %v1630
      %v1810 = vpop.f32.mrb[0].mxu0
      %v1811 = vadd.f32 0.0, %v1810
      %v1812 = vpop.f32.mrb[0].mxu0
      %1813 = vmatprep.mubr.f32.mxu0 0.0
      %1814 = vmatmul.mubr.f32.gmra.mrb[0].mxu0 %v1633
      %v1815 = vpop.f32.mrb[0].mxu0
      %v1816 = vadd.f32 0.0, %v1815
      %v1817 = vpop.f32.mrb[0].mxu0
      %1818 = vmatprep.mubr.f32.mxu0 0.0
      %1819 = vmatmul.mubr.f32.gmra.mrb[0].mxu0 %v1636
      %v1820 = vpop.f32.mrb[0].mxu0
      %v1821 = vadd.f32 0.0, %v1820
      %v1822 = vpop.f32.mrb[0].mxu0
      %1823 = vmatprep.mubr.f32.mxu0 0.0
      %1824 = vmatmul.mubr.f32.gmra.mrb[0].mxu0 %v1639
      %v1825 = vpop.f32.mrb[0].mxu0
      %v1826 = vadd.f32 0.0, %v1825
      %v1827 = vpop.f32.mrb[0].mxu0
      %1828 = vmatprep.mubr.f32.mxu0 0.0
      %1829 = vmatmul.mubr.f32.gmra.mrb[0].mxu0 %v1642
      %v1830 = vpop.f32.mrb[0].mxu0
      %v1831 = vadd.f32 0.0, %v1830
      %v1832 = vpop.f32.mrb[0].mxu0
      %1833 = vmatprep.mubr.f32.mxu0 0.0
      %1834 = vmatmul.mubr.f32.gmra.mrb[0].mxu0 %v1645
      %v1835 = vpop.f32.mrb[0].mxu0
      %v1836 = vadd.f32 0.0, %v1835
      %v1837 = vpop.f32.mrb[0].mxu0
      %1838 = vmatprep.mubr.f32.mxu0 0.0
      %1839 = vmatmul.mubr.f32.gmra.mrb[0].mxu0 %v1648
      %v1840 = vpop.f32.mrb[0].mxu0
      %v1841 = vadd.f32 0.0, %v1840
      %v1842 = vpop.f32.mrb[0].mxu0
      %1843 = vmatprep.mubr.f32.mxu0 0.0
      %1844 = vmatmul.mubr.f32.gmra.mrb[0].mxu0 %v1651
      %v1845 = vpop.f32.mrb[0].mxu0
      %v1846 = vadd.f32 0.0, %v1845
      %v1847 = vpop.f32.mrb[0].mxu0
      %1848 = vmatprep.mubr.f32.mxu0 0.0
      %1849 = vmatmul.mubr.f32.gmra.mrb[0].mxu0 %v1654
      %v1850 = vpop.f32.mrb[0].mxu0
      %v1851 = vadd.f32 0.0, %v1850
      %v1852 = vpop.f32.mrb[0].mxu0
      %1853 = vmatprep.mubr.f32.mxu0 0.0
      %1854 = vmatmul.mubr.f32.gmra.mrb[0].mxu0 %v1657
      %v1855 = vpop.f32.mrb[0].mxu0
      %v1856 = vadd.f32 0.0, %v1855
      %v1857 = vpop.f32.mrb[0].mxu0
      %1858 = vmatprep.mubr.f32.mxu0 0.0
      %1859 = vmatmul.mubr.f32.gmra.mrb[0].mxu0 %v1660
      %v1860 = vpop.f32.mrb[0].mxu0
      %v1861 = vadd.f32 0.0, %v1860
      %v1862 = vpop.f32.mrb[0].mxu0
      %1863 = vmatprep.mubr.f32.mxu0 0.0
      %1864 = vmatmul.mubr.f32.gmra.mrb[0].mxu0 %v1663
      %v1865 = vpop.f32.mrb[0].mxu0
      %v1866 = vadd.f32 0.0, %v1865
      %v1867 = vpop.f32.mrb[0].mxu0
      %1868 = vmatprep.mubr.f32.mxu0 0.0
      %1869 = vmatmul.mubr.f32.gmra.mrb[0].mxu0 %v1666
      %v1870 = vpop.f32.mrb[0].mxu0
      %v1871 = vadd.f32 0.0, %v1870
      %v1872 = vpop.f32.mrb[0].mxu0
      %1873 = vmatprep.mubr.f32.mxu0 0.0
      %1874 = vmatmul.mubr.f32.gmra.mrb[0].mxu0 %v1669
      %v1875 = vpop.f32.mrb[0].mxu0
      %v1876 = vadd.f32 0.0, %v1875
      %v1877 = vpop.f32.mrb[0].mxu0
      %1878 = vmatprep.mubr.f32.mxu0 0.0
      %1879 = vmatmul.mubr.f32.gmra.mrb[0].mxu0 %v1672
      %v1880 = vpop.f32.mrb[0].mxu0
      %v1881 = vadd.f32 0.0, %v1880
      %v1882 = vpop.f32.mrb[0].mxu0
      %1883 = vmatprep.mubr.f32.mxu0 0.0
      %1884 = vmatmul.mubr.f32.gmra.mrb[0].mxu0 %v1675
      %v1885 = vpop.f32.mrb[0].mxu0
      %v1886 = vadd.f32 0.0, %v1885
      %v1887 = vpop.f32.mrb[0].mxu0
      %1888 = vmatprep.mubr.f32.mxu0 0.0
      %1889 = vmatmul.mubr.f32.gmra.mrb[0].mxu0 %v1678
      %v1890 = vpop.f32.mrb[0].mxu0
      %v1891 = vadd.f32 0.0, %v1890
      %v1892 = vpop.f32.mrb[0].mxu0
      %1893 = vmatprep.mubr.f32.mxu0 0.0
      %1894 = vmatmul.mubr.f32.gmra.mrb[0].mxu0 %v1681
      %v1895 = vpop.f32.mrb[0].mxu0
      %v1896 = vadd.f32 0.0, %v1895
      %v1897 = vpop.f32.mrb[0].mxu0
      %1898 = vmatprep.mubr.f32.mxu0 0.0
      %1899 = vmatmul.mubr.f32.gmra.mrb[0].mxu0 %v1684
      %v1900 = vpop.f32.mrb[0].mxu0
      %v1901 = vadd.f32 0.0, %v1900
      %v1902 = vpop.f32.mrb[0].mxu0
      %1903 = vmatprep.mubr.f32.mxu0 0.0
      %1904 = vmatmul.mubr.f32.gmra.mrb[0].mxu0 %v1687
      %v1905 = vpop.f32.mrb[0].mxu0
      %v1906 = vadd.f32 0.0, %v1905
      %v1907 = vpop.f32.mrb[0].mxu0
      %1908 = vmatprep.mubr.f32.mxu0 0.0
      %1909 = vmatmul.mubr.f32.gmra.mrb[0].mxu0 %v1690
      %v1910 = vpop.f32.mrb[0].mxu0
      %v1911 = vadd.f32 0.0, %v1910
      %v1912 = vpop.f32.mrb[0].mxu0
      %1913 = vmatprep.mubr.f32.mxu0 0.0
      %1914 = vmatmul.mubr.f32.gmra.mrb[0].mxu0 %v1693
      %v1915 = vpop.f32.mrb[0].mxu0
      %v1916 = vadd.f32 0.0, %v1915
      %v1917 = vpop.f32.mrb[0].mxu0
      %1918 = vmatprep.mubr.f32.mxu0 0.0
      %1919 = vmatmul.mubr.f32.gmra.mrb[0].mxu0 %v1696
      %v1920 = vpop.f32.mrb[0].mxu0
      %v1921 = vadd.f32 0.0, %v1920
      %v1922 = vpop.f32.mrb[0].mxu0
      %1923 = vmatprep.mubr.f32.mxu0 0.0
      %1924 = vmatmul.mubr.f32.gmra.mrb[0].mxu0 %v1699
      %v1925 = vpop.f32.mrb[0].mxu0
      %v1926 = vadd.f32 0.0, %v1925
      %v1927 = vpop.f32.mrb[0].mxu0
      %1928 = vdwg.mxu0
      %v1929 = vadd.f32 %v1540, %v1771
      %v1930 = vadd.f32 %v1541, %v1776
      %v1931 = vadd.f32 %v1542, %v1781
      %v1932 = vadd.f32 %v1543, %v1786
      %v1933 = vadd.f32 %v1544, %v1791
      %v1934 = vadd.f32 %v1545, %v1796
      %v1935 = vadd.f32 %v1546, %v1801
      %v1936 = vadd.f32 %v1547, %v1806
      %v1937 = vadd.f32 %v1548, %v1811
      %v1938 = vadd.f32 %v1549, %v1816
      %v1939 = vadd.f32 %v1550, %v1821
      %v1940 = vadd.f32 %v1551, %v1826
      %v1941 = vadd.f32 %v1552, %v1831
      %v1942 = vadd.f32 %v1553, %v1836
      %v1943 = vadd.f32 %v1554, %v1841
      %v1944 = vadd.f32 %v1555, %v1846
      %v1945 = vadd.f32 %v1556, %v1851
      %v1946 = vadd.f32 %v1557, %v1856
      %v1947 = vadd.f32 %v1558, %v1861
      %v1948 = vadd.f32 %v1559, %v1866
      %v1949 = vadd.f32 %v1560, %v1871
      %v1950 = vadd.f32 %v1561, %v1876
      %v1951 = vadd.f32 %v1562, %v1881
      %v1952 = vadd.f32 %v1563, %v1886
      %v1953 = vadd.f32 %v1564, %v1891
      %v1954 = vadd.f32 %v1565, %v1896
      %v1955 = vadd.f32 %v1566, %v1901
      %v1956 = vadd.f32 %v1567, %v1906
      %v1957 = vadd.f32 %v1568, %v1911
      %v1958 = vadd.f32 %v1569, %v1916
      %v1959 = vadd.f32 %v1570, %v1921
      %v1960 = vadd.f32 %v1571, %v1926
      %v1961 = vld [vmem:[%s435 + $0x1] sm:$0xff]
      %v1962 = vld [vmem:[%s435 + $0x9] sm:$0xff]
      %v1963 = vld [vmem:[%s435 + $0x19] sm:$0xff]
      %v1964 = vld [vmem:[%s435 + $0x21] sm:$0xff]
      %v1965 = vld [vmem:[%s435 + $0x31] sm:$0xff]
      %v1966 = vld [vmem:[%s435 + $0x39] sm:$0xff]
      %v1967 = vld [vmem:[%s435 + $0x49] sm:$0xff]
      %v1968 = vld [vmem:[%s435 + $0x51] sm:$0xff]
      %v1969 = vld [vmem:[%s435 + $0x61] sm:$0xff]
      %v1970 = vld [vmem:[%s435 + $0x69] sm:$0xff]
      %v1971 = vld [vmem:[%s435 + $0x79] sm:$0xff]
      %v1972 = vld [vmem:[%s435 + $0x81] sm:$0xff]
      %v1973 = vld [vmem:[%s435 + $0x91] sm:$0xff]
      %v1974 = vld [vmem:[%s435 + $0x99] sm:$0xff]
      %v1975 = vld [vmem:[%s435 + $0xa9] sm:$0xff]
      %v1976 = vld [vmem:[%s435 + $0xb1] sm:$0xff]
      %v1977 = vld [vmem:[%s435 + $0xc1] sm:$0xff]
      %v1978 = vld [vmem:[%s435 + $0xc9] sm:$0xff]
      %v1979 = vld [vmem:[%s435 + $0xd9] sm:$0xff]
      %v1980 = vld [vmem:[%s435 + $0xe1] sm:$0xff]
      %v1981 = vld [vmem:[%s435 + $0xf1] sm:$0xff]
      %v1982 = vld [vmem:[%s435 + $0xf9] sm:$0xff]
      %v1983 = vld [vmem:[%s435 + $0x109] sm:$0xff]
      %v1984 = vld [vmem:[%s435 + $0x111] sm:$0xff]
      %v1985 = vld [vmem:[%s435 + $0x121] sm:$0xff]
      %v1986 = vld [vmem:[%s435 + $0x129] sm:$0xff]
      %v1987 = vld [vmem:[%s435 + $0x139] sm:$0xff]
      %v1988 = vld [vmem:[%s435 + $0x141] sm:$0xff]
      %v1989 = vld [vmem:[%s435 + $0x151] sm:$0xff]
      %v1990 = vld [vmem:[%s435 + $0x159] sm:$0xff]
      %v1991 = vld [vmem:[%s435 + $0x169] sm:$0xff]
      %v1992 = vld [vmem:[%s435 + $0x171] sm:$0xff]
      %v1993 = vld [vmem:[%s1 + $0x10] sm:$0xf]
      %v1995 = vsel %vm279, %v1961, 0
      %v1998 = vsel %vm279, %v1962, 0
      %v2001 = vsel %vm279, %v1963, 0
      %v2004 = vsel %vm279, %v1964, 0
      %v2007 = vsel %vm279, %v1965, 0
      %v2010 = vsel %vm279, %v1966, 0
      %v2013 = vsel %vm279, %v1967, 0
      %v2016 = vsel %vm279, %v1968, 0
      %v2019 = vsel %vm279, %v1969, 0
      %v2022 = vsel %vm279, %v1970, 0
      %v2025 = vsel %vm279, %v1971, 0
      %v2028 = vsel %vm279, %v1972, 0
      %v2031 = vsel %vm279, %v1973, 0
      %v2034 = vsel %vm279, %v1974, 0
      %v2037 = vsel %vm279, %v1975, 0
      %v2040 = vsel %vm279, %v1976, 0
      %v2043 = vsel %vm279, %v1977, 0
      %v2046 = vsel %vm279, %v1978, 0
      %v2049 = vsel %vm279, %v1979, 0
      %v2052 = vsel %vm279, %v1980, 0
      %v2055 = vsel %vm279, %v1981, 0
      %v2058 = vsel %vm279, %v1982, 0
      %v2061 = vsel %vm279, %v1983, 0
      %v2064 = vsel %vm279, %v1984, 0
      %v2067 = vsel %vm279, %v1985, 0
      %v2070 = vsel %vm279, %v1986, 0
      %v2073 = vsel %vm279, %v1987, 0
      %v2076 = vsel %vm279, %v1988, 0
      %v2079 = vsel %vm279, %v1989, 0
      %v2082 = vsel %vm279, %v1990, 0
      %v2085 = vsel %vm279, %v1991, 0
      %v2088 = vsel %vm279, %v1992, 0
      %v2091 = vsel %vm630, %v1993, 0
      %2093 = vmatprep.subr.mxu0 0.0
      %2094 = vmatpush1.msra.mxu0 %v2091
      %2095 = vmatprep.subr.mxu0 0.0
      %2096 = vmatpush1.msra.mxu0 0.0
      %2097 = vmatprep.subr.mxu0 0.0
      %2098 = vmatpush1.msra.mxu0 0.0
      %2099 = vmatprep.subr.mxu0 0.0
      %2100 = vmatpush1.msra.mxu0 0.0
      %2101 = vmatprep.subr.mxu0 0.0
      %2102 = vmatpush1.msra.mxu0 0.0
      %2103 = vmatprep.subr.mxu0 0.0
      %2104 = vmatpush1.msra.mxu0 0.0
      %2105 = vmatprep.subr.mxu0 0.0
      %2106 = vmatpush1.msra.mxu0 0.0
      %2107 = vmatprep.subr.mxu0 0.0
      %2108 = vmatpush1.msra.mxu0 0.0
      %2109 = vmatprep.subr.mxu0 0.0
      %2110 = vmatpush1.msra.mxu0 0.0
      %2111 = vmatprep.subr.mxu0 0.0
      %2112 = vmatpush1.msra.mxu0 0.0
      %2113 = vmatprep.subr.mxu0 0.0
      %2114 = vmatpush1.msra.mxu0 0.0
      %2115 = vmatprep.subr.mxu0 0.0
      %2116 = vmatpush1.msra.mxu0 0.0
      %2117 = vmatprep.subr.mxu0 0.0
      %2118 = vmatpush1.msra.mxu0 0.0
      %2119 = vmatprep.subr.mxu0 0.0
      %2120 = vmatpush1.msra.mxu0 0.0
      %2121 = vmatprep.subr.mxu0 0.0
      %2122 = vmatpush1.msra.mxu0 0.0
      %2123 = vmatprep.subr.mxu0 0.0
      %2124 = vmatpush1.msra.mxu0 0.0
      %2125 = vmatprep.subr.mxu0 0.0
      %2126 = vmatpush1.msra.mxu0 0.0
      %2127 = vmatprep.subr.mxu0 0.0
      %2128 = vmatpush1.msra.mxu0 0.0
      %2129 = vmatprep.subr.mxu0 0.0
      %2130 = vmatpush1.msra.mxu0 0.0
      %2131 = vmatprep.subr.mxu0 0.0
      %2132 = vmatpush1.msra.mxu0 0.0
      %2133 = vmatprep.subr.mxu0 0.0
      %2134 = vmatpush1.msra.mxu0 0.0
      %2135 = vmatprep.subr.mxu0 0.0
      %2136 = vmatpush1.msra.mxu0 0.0
      %2137 = vmatprep.subr.mxu0 0.0
      %2138 = vmatpush1.msra.mxu0 0.0
      %2139 = vmatprep.subr.mxu0 0.0
      %2140 = vmatpush1.msra.mxu0 0.0
      %2141 = vmatprep.subr.mxu0 0.0
      %2142 = vmatpush1.msra.mxu0 0.0
      %2143 = vmatprep.subr.mxu0 0.0
      %2144 = vmatpush1.msra.mxu0 0.0
      %2145 = vmatprep.subr.mxu0 0.0
      %2146 = vmatpush1.msra.mxu0 0.0
      %2147 = vmatprep.subr.mxu0 0.0
      %2148 = vmatpush1.msra.mxu0 0.0
      %2149 = vmatprep.subr.mxu0 0.0
      %2150 = vmatpush1.msra.mxu0 0.0
      %2151 = vmatprep.subr.mxu0 0.0
      %2152 = vmatpush1.msra.mxu0 0.0
      %2153 = vmatprep.subr.mxu0 0.0
      %2154 = vmatpush1.msra.mxu0 0.0
      %2155 = vmatprep.subr.mxu0 0.0
      %2156 = vmatpush1.msra.mxu0 0.0
      %2157 = vmatprep.mubr.f32.mxu0 0.0
      %2158 = vmatmul.mubr.f32.gmra.mrb[0].mxu0 %v1995
      %v2159 = vpop.f32.mrb[0].mxu0
      %v2160 = vadd.f32 0.0, %v2159
      %v2161 = vpop.f32.mrb[0].mxu0
      %2162 = vmatprep.mubr.f32.mxu0 0.0
      %2163 = vmatmul.mubr.f32.gmra.mrb[0].mxu0 %v1998
      %v2164 = vpop.f32.mrb[0].mxu0
      %v2165 = vadd.f32 0.0, %v2164
      %v2166 = vpop.f32.mrb[0].mxu0
      %2167 = vmatprep.mubr.f32.mxu0 0.0
      %2168 = vmatmul.mubr.f32.gmra.mrb[0].mxu0 %v2001
      %v2169 = vpop.f32.mrb[0].mxu0
      %v2170 = vadd.f32 0.0, %v2169
      %v2171 = vpop.f32.mrb[0].mxu0
      %2172 = vmatprep.mubr.f32.mxu0 0.0
      %2173 = vmatmul.mubr.f32.gmra.mrb[0].mxu0 %v2004
      %v2174 = vpop.f32.mrb[0].mxu0
      %v2175 = vadd.f32 0.0, %v2174
      %v2176 = vpop.f32.mrb[0].mxu0
      %2177 = vmatprep.mubr.f32.mxu0 0.0
      %2178 = vmatmul.mubr.f32.gmra.mrb[0].mxu0 %v2007
      %v2179 = vpop.f32.mrb[0].mxu0
      %v2180 = vadd.f32 0.0, %v2179
      %v2181 = vpop.f32.mrb[0].mxu0
      %2182 = vmatprep.mubr.f32.mxu0 0.0
      %2183 = vmatmul.mubr.f32.gmra.mrb[0].mxu0 %v2010
      %v2184 = vpop.f32.mrb[0].mxu0
      %v2185 = vadd.f32 0.0, %v2184
      %v2186 = vpop.f32.mrb[0].mxu0
      %2187 = vmatprep.mubr.f32.mxu0 0.0
      %2188 = vmatmul.mubr.f32.gmra.mrb[0].mxu0 %v2013
      %v2189 = vpop.f32.mrb[0].mxu0
      %v2190 = vadd.f32 0.0, %v2189
      %v2191 = vpop.f32.mrb[0].mxu0
      %2192 = vmatprep.mubr.f32.mxu0 0.0
      %2193 = vmatmul.mubr.f32.gmra.mrb[0].mxu0 %v2016
      %v2194 = vpop.f32.mrb[0].mxu0
      %v2195 = vadd.f32 0.0, %v2194
      %v2196 = vpop.f32.mrb[0].mxu0
      %2197 = vmatprep.mubr.f32.mxu0 0.0
      %2198 = vmatmul.mubr.f32.gmra.mrb[0].mxu0 %v2019
      %v2199 = vpop.f32.mrb[0].mxu0
      %v2200 = vadd.f32 0.0, %v2199
      %v2201 = vpop.f32.mrb[0].mxu0
      %2202 = vmatprep.mubr.f32.mxu0 0.0
      %2203 = vmatmul.mubr.f32.gmra.mrb[0].mxu0 %v2022
      %v2204 = vpop.f32.mrb[0].mxu0
      %v2205 = vadd.f32 0.0, %v2204
      %v2206 = vpop.f32.mrb[0].mxu0
      %2207 = vmatprep.mubr.f32.mxu0 0.0
      %2208 = vmatmul.mubr.f32.gmra.mrb[0].mxu0 %v2025
      %v2209 = vpop.f32.mrb[0].mxu0
      %v2210 = vadd.f32 0.0, %v2209
      %v2211 = vpop.f32.mrb[0].mxu0
      %2212 = vmatprep.mubr.f32.mxu0 0.0
      %2213 = vmatmul.mubr.f32.gmra.mrb[0].mxu0 %v2028
      %v2214 = vpop.f32.mrb[0].mxu0
      %v2215 = vadd.f32 0.0, %v2214
      %v2216 = vpop.f32.mrb[0].mxu0
      %2217 = vmatprep.mubr.f32.mxu0 0.0
      %2218 = vmatmul.mubr.f32.gmra.mrb[0].mxu0 %v2031
      %v2219 = vpop.f32.mrb[0].mxu0
      %v2220 = vadd.f32 0.0, %v2219
      %v2221 = vpop.f32.mrb[0].mxu0
      %2222 = vmatprep.mubr.f32.mxu0 0.0
      %2223 = vmatmul.mubr.f32.gmra.mrb[0].mxu0 %v2034
      %v2224 = vpop.f32.mrb[0].mxu0
      %v2225 = vadd.f32 0.0, %v2224
      %v2226 = vpop.f32.mrb[0].mxu0
      %2227 = vmatprep.mubr.f32.mxu0 0.0
      %2228 = vmatmul.mubr.f32.gmra.mrb[0].mxu0 %v2037
      %v2229 = vpop.f32.mrb[0].mxu0
      %v2230 = vadd.f32 0.0, %v2229
      %v2231 = vpop.f32.mrb[0].mxu0
      %2232 = vmatprep.mubr.f32.mxu0 0.0
      %2233 = vmatmul.mubr.f32.gmra.mrb[0].mxu0 %v2040
      %v2234 = vpop.f32.mrb[0].mxu0
      %v2235 = vadd.f32 0.0, %v2234
      %v2236 = vpop.f32.mrb[0].mxu0
      %2237 = vmatprep.mubr.f32.mxu0 0.0
      %2238 = vmatmul.mubr.f32.gmra.mrb[0].mxu0 %v2043
      %v2239 = vpop.f32.mrb[0].mxu0
      %v2240 = vadd.f32 0.0, %v2239
      %v2241 = vpop.f32.mrb[0].mxu0
      %2242 = vmatprep.mubr.f32.mxu0 0.0
      %2243 = vmatmul.mubr.f32.gmra.mrb[0].mxu0 %v2046
      %v2244 = vpop.f32.mrb[0].mxu0
      %v2245 = vadd.f32 0.0, %v2244
      %v2246 = vpop.f32.mrb[0].mxu0
      %2247 = vmatprep.mubr.f32.mxu0 0.0
      %2248 = vmatmul.mubr.f32.gmra.mrb[0].mxu0 %v2049
      %v2249 = vpop.f32.mrb[0].mxu0
      %v2250 = vadd.f32 0.0, %v2249
      %v2251 = vpop.f32.mrb[0].mxu0
      %2252 = vmatprep.mubr.f32.mxu0 0.0
      %2253 = vmatmul.mubr.f32.gmra.mrb[0].mxu0 %v2052
      %v2254 = vpop.f32.mrb[0].mxu0
      %v2255 = vadd.f32 0.0, %v2254
      %v2256 = vpop.f32.mrb[0].mxu0
      %2257 = vmatprep.mubr.f32.mxu0 0.0
      %2258 = vmatmul.mubr.f32.gmra.mrb[0].mxu0 %v2055
      %v2259 = vpop.f32.mrb[0].mxu0
      %v2260 = vadd.f32 0.0, %v2259
      %v2261 = vpop.f32.mrb[0].mxu0
      %2262 = vmatprep.mubr.f32.mxu0 0.0
      %2263 = vmatmul.mubr.f32.gmra.mrb[0].mxu0 %v2058
      %v2264 = vpop.f32.mrb[0].mxu0
      %v2265 = vadd.f32 0.0, %v2264
      %v2266 = vpop.f32.mrb[0].mxu0
      %2267 = vmatprep.mubr.f32.mxu0 0.0
      %2268 = vmatmul.mubr.f32.gmra.mrb[0].mxu0 %v2061
      %v2269 = vpop.f32.mrb[0].mxu0
      %v2270 = vadd.f32 0.0, %v2269
      %v2271 = vpop.f32.mrb[0].mxu0
      %2272 = vmatprep.mubr.f32.mxu0 0.0
      %2273 = vmatmul.mubr.f32.gmra.mrb[0].mxu0 %v2064
      %v2274 = vpop.f32.mrb[0].mxu0
      %v2275 = vadd.f32 0.0, %v2274
      %v2276 = vpop.f32.mrb[0].mxu0
      %2277 = vmatprep.mubr.f32.mxu0 0.0
      %2278 = vmatmul.mubr.f32.gmra.mrb[0].mxu0 %v2067
      %v2279 = vpop.f32.mrb[0].mxu0
      %v2280 = vadd.f32 0.0, %v2279
      %v2281 = vpop.f32.mrb[0].mxu0
      %2282 = vmatprep.mubr.f32.mxu0 0.0
      %2283 = vmatmul.mubr.f32.gmra.mrb[0].mxu0 %v2070
      %v2284 = vpop.f32.mrb[0].mxu0
      %v2285 = vadd.f32 0.0, %v2284
      %v2286 = vpop.f32.mrb[0].mxu0
      %2287 = vmatprep.mubr.f32.mxu0 0.0
      %2288 = vmatmul.mubr.f32.gmra.mrb[0].mxu0 %v2073
      %v2289 = vpop.f32.mrb[0].mxu0
      %v2290 = vadd.f32 0.0, %v2289
      %v2291 = vpop.f32.mrb[0].mxu0
      %2292 = vmatprep.mubr.f32.mxu0 0.0
      %2293 = vmatmul.mubr.f32.gmra.mrb[0].mxu0 %v2076
      %v2294 = vpop.f32.mrb[0].mxu0
      %v2295 = vadd.f32 0.0, %v2294
      %v2296 = vpop.f32.mrb[0].mxu0
      %2297 = vmatprep.mubr.f32.mxu0 0.0
      %2298 = vmatmul.mubr.f32.gmra.mrb[0].mxu0 %v2079
      %v2299 = vpop.f32.mrb[0].mxu0
      %v2300 = vadd.f32 0.0, %v2299
      %v2301 = vpop.f32.mrb[0].mxu0
      %2302 = vmatprep.mubr.f32.mxu0 0.0
      %2303 = vmatmul.mubr.f32.gmra.mrb[0].mxu0 %v2082
      %v2304 = vpop.f32.mrb[0].mxu0
      %v2305 = vadd.f32 0.0, %v2304
      %v2306 = vpop.f32.mrb[0].mxu0
      %2307 = vmatprep.mubr.f32.mxu0 0.0
      %2308 = vmatmul.mubr.f32.gmra.mrb[0].mxu0 %v2085
      %v2309 = vpop.f32.mrb[0].mxu0
      %v2310 = vadd.f32 0.0, %v2309
      %v2311 = vpop.f32.mrb[0].mxu0
      %2312 = vmatprep.mubr.f32.mxu0 0.0
      %2313 = vmatmul.mubr.f32.gmra.mrb[0].mxu0 %v2088
      %v2314 = vpop.f32.mrb[0].mxu0
      %v2315 = vadd.f32 0.0, %v2314
      %v2316 = vpop.f32.mrb[0].mxu0
      %2317 = vdwg.mxu0
      %v2318 = vadd.f32 %v1929, %v2160
      %v2319 = vadd.f32 %v1930, %v2165
      %v2320 = vadd.f32 %v1931, %v2170
      %v2321 = vadd.f32 %v1932, %v2175
      %v2322 = vadd.f32 %v1933, %v2180
      %v2323 = vadd.f32 %v1934, %v2185
      %v2324 = vadd.f32 %v1935, %v2190
      %v2325 = vadd.f32 %v1936, %v2195
      %v2326 = vadd.f32 %v1937, %v2200
      %v2327 = vadd.f32 %v1938, %v2205
      %v2328 = vadd.f32 %v1939, %v2210
      %v2329 = vadd.f32 %v1940, %v2215
      %v2330 = vadd.f32 %v1941, %v2220
      %v2331 = vadd.f32 %v1942, %v2225
      %v2332 = vadd.f32 %v1943, %v2230
      %v2333 = vadd.f32 %v1944, %v2235
      %v2334 = vadd.f32 %v1945, %v2240
      %v2335 = vadd.f32 %v1946, %v2245
      %v2336 = vadd.f32 %v1947, %v2250
      %v2337 = vadd.f32 %v1948, %v2255
      %v2338 = vadd.f32 %v1949, %v2260
      %v2339 = vadd.f32 %v1950, %v2265
      %v2340 = vadd.f32 %v1951, %v2270
      %v2341 = vadd.f32 %v1952, %v2275
      %v2342 = vadd.f32 %v1953, %v2280
      %v2343 = vadd.f32 %v1954, %v2285
      %v2344 = vadd.f32 %v1955, %v2290
      %v2345 = vadd.f32 %v1956, %v2295
      %v2346 = vadd.f32 %v1957, %v2300
      %v2347 = vadd.f32 %v1958, %v2305
      %v2348 = vadd.f32 %v1959, %v2310
      %v2349 = vadd.f32 %v1960, %v2315
      %v2350 = vld [vmem:[%s435 + $0x2] sm:$0xff]
      %v2351 = vld [vmem:[%s435 + $0xa] sm:$0xff]
      %v2352 = vld [vmem:[%s435 + $0x1a] sm:$0xff]
      %v2353 = vld [vmem:[%s435 + $0x22] sm:$0xff]
      %v2354 = vld [vmem:[%s435 + $0x32] sm:$0xff]
      %v2355 = vld [vmem:[%s435 + $0x3a] sm:$0xff]
      %v2356 = vld [vmem:[%s435 + $0x4a] sm:$0xff]
      %v2357 = vld [vmem:[%s435 + $0x52] sm:$0xff]
      %v2358 = vld [vmem:[%s435 + $0x62] sm:$0xff]
      %v2359 = vld [vmem:[%s435 + $0x6a] sm:$0xff]
      %v2360 = vld [vmem:[%s435 + $0x7a] sm:$0xff]
      %v2361 = vld [vmem:[%s435 + $0x82] sm:$0xff]
      %v2362 = vld [vmem:[%s435 + $0x92] sm:$0xff]
      %v2363 = vld [vmem:[%s435 + $0x9a] sm:$0xff]
      %v2364 = vld [vmem:[%s435 + $0xaa] sm:$0xff]
      %v2365 = vld [vmem:[%s435 + $0xb2] sm:$0xff]
      %v2366 = vld [vmem:[%s435 + $0xc2] sm:$0xff]
      %v2367 = vld [vmem:[%s435 + $0xca] sm:$0xff]
      %v2368 = vld [vmem:[%s435 + $0xda] sm:$0xff]
      %v2369 = vld [vmem:[%s435 + $0xe2] sm:$0xff]
      %v2370 = vld [vmem:[%s435 + $0xf2] sm:$0xff]
      %v2371 = vld [vmem:[%s435 + $0xfa] sm:$0xff]
      %v2372 = vld [vmem:[%s435 + $0x10a] sm:$0xff]
      %v2373 = vld [vmem:[%s435 + $0x112] sm:$0xff]
      %v2374 = vld [vmem:[%s435 + $0x122] sm:$0xff]
      %v2375 = vld [vmem:[%s435 + $0x12a] sm:$0xff]
      %v2376 = vld [vmem:[%s435 + $0x13a] sm:$0xff]
      %v2377 = vld [vmem:[%s435 + $0x142] sm:$0xff]
      %v2378 = vld [vmem:[%s435 + $0x152] sm:$0xff]
      %v2379 = vld [vmem:[%s435 + $0x15a] sm:$0xff]
      %v2380 = vld [vmem:[%s435 + $0x16a] sm:$0xff]
      %v2381 = vld [vmem:[%s435 + $0x172] sm:$0xff]
      %v2382 = vld [vmem:[%s1 + $0x14] sm:$0xf]
      %v2384 = vsel %vm279, %v2350, 0
      %v2387 = vsel %vm279, %v2351, 0
      %v2390 = vsel %vm279, %v2352, 0
      %v2393 = vsel %vm279, %v2353, 0
      %v2396 = vsel %vm279, %v2354, 0
      %v2399 = vsel %vm279, %v2355, 0
      %v2402 = vsel %vm279, %v2356, 0
      %v2405 = vsel %vm279, %v2357, 0
      %v2408 = vsel %vm279, %v2358, 0
      %v2411 = vsel %vm279, %v2359, 0
      %v2414 = vsel %vm279, %v2360, 0
      %v2417 = vsel %vm279, %v2361, 0
      %v2420 = vsel %vm279, %v2362, 0
      %v2423 = vsel %vm279, %v2363, 0
      %v2426 = vsel %vm279, %v2364, 0
      %v2429 = vsel %vm279, %v2365, 0
      %v2432 = vsel %vm279, %v2366, 0
      %v2435 = vsel %vm279, %v2367, 0
      %v2438 = vsel %vm279, %v2368, 0
      %v2441 = vsel %vm279, %v2369, 0
      %v2444 = vsel %vm279, %v2370, 0
      %v2447 = vsel %vm279, %v2371, 0
      %v2450 = vsel %vm279, %v2372, 0
      %v2453 = vsel %vm279, %v2373, 0
      %v2456 = vsel %vm279, %v2374, 0
      %v2459 = vsel %vm279, %v2375, 0
      %v2462 = vsel %vm279, %v2376, 0
      %v2465 = vsel %vm279, %v2377, 0
      %v2468 = vsel %vm279, %v2378, 0
      %v2471 = vsel %vm279, %v2379, 0
      %v2474 = vsel %vm279, %v2380, 0
      %v2477 = vsel %vm279, %v2381, 0
      %v2480 = vsel %vm630, %v2382, 0
      %2482 = vmatprep.subr.mxu0 0.0
      %2483 = vmatpush1.msra.mxu0 %v2480
      %2484 = vmatprep.subr.mxu0 0.0
      %2485 = vmatpush1.msra.mxu0 0.0
      %2486 = vmatprep.subr.mxu0 0.0
      %2487 = vmatpush1.msra.mxu0 0.0
      %2488 = vmatprep.subr.mxu0 0.0
      %2489 = vmatpush1.msra.mxu0 0.0
      %2490 = vmatprep.subr.mxu0 0.0
      %2491 = vmatpush1.msra.mxu0 0.0
      %2492 = vmatprep.subr.mxu0 0.0
      %2493 = vmatpush1.msra.mxu0 0.0
      %2494 = vmatprep.subr.mxu0 0.0
      %2495 = vmatpush1.msra.mxu0 0.0
      %2496 = vmatprep.subr.mxu0 0.0
      %2497 = vmatpush1.msra.mxu0 0.0
      %2498 = vmatprep.subr.mxu0 0.0
      %2499 = vmatpush1.msra.mxu0 0.0
      %2500 = vmatprep.subr.mxu0 0.0
      %2501 = vmatpush1.msra.mxu0 0.0
      %2502 = vmatprep.subr.mxu0 0.0
      %2503 = vmatpush1.msra.mxu0 0.0
      %2504 = vmatprep.subr.mxu0 0.0
      %2505 = vmatpush1.msra.mxu0 0.0
      %2506 = vmatprep.subr.mxu0 0.0
      %2507 = vmatpush1.msra.mxu0 0.0
      %2508 = vmatprep.subr.mxu0 0.0
      %2509 = vmatpush1.msra.mxu0 0.0
      %2510 = vmatprep.subr.mxu0 0.0
      %2511 = vmatpush1.msra.mxu0 0.0
      %2512 = vmatprep.subr.mxu0 0.0
      %2513 = vmatpush1.msra.mxu0 0.0
      %2514 = vmatprep.subr.mxu0 0.0
      %2515 = vmatpush1.msra.mxu0 0.0
      %2516 = vmatprep.subr.mxu0 0.0
      %2517 = vmatpush1.msra.mxu0 0.0
      %2518 = vmatprep.subr.mxu0 0.0
      %2519 = vmatpush1.msra.mxu0 0.0
      %2520 = vmatprep.subr.mxu0 0.0
      %2521 = vmatpush1.msra.mxu0 0.0
      %2522 = vmatprep.subr.mxu0 0.0
      %2523 = vmatpush1.msra.mxu0 0.0
      %2524 = vmatprep.subr.mxu0 0.0
      %2525 = vmatpush1.msra.mxu0 0.0
      %2526 = vmatprep.subr.mxu0 0.0
      %2527 = vmatpush1.msra.mxu0 0.0
      %2528 = vmatprep.subr.mxu0 0.0
      %2529 = vmatpush1.msra.mxu0 0.0
      %2530 = vmatprep.subr.mxu0 0.0
      %2531 = vmatpush1.msra.mxu0 0.0
      %2532 = vmatprep.subr.mxu0 0.0
      %2533 = vmatpush1.msra.mxu0 0.0
      %2534 = vmatprep.subr.mxu0 0.0
      %2535 = vmatpush1.msra.mxu0 0.0
      %2536 = vmatprep.subr.mxu0 0.0
      %2537 = vmatpush1.msra.mxu0 0.0
      %2538 = vmatprep.subr.mxu0 0.0
      %2539 = vmatpush1.msra.mxu0 0.0
      %2540 = vmatprep.subr.mxu0 0.0
      %2541 = vmatpush1.msra.mxu0 0.0
      %2542 = vmatprep.subr.mxu0 0.0
      %2543 = vmatpush1.msra.mxu0 0.0
      %2544 = vmatprep.subr.mxu0 0.0
      %2545 = vmatpush1.msra.mxu0 0.0
      %2546 = vmatprep.mubr.f32.mxu0 0.0
      %2547 = vmatmul.mubr.f32.gmra.mrb[0].mxu0 %v2384
      %v2548 = vpop.f32.mrb[0].mxu0
      %v2549 = vadd.f32 0.0, %v2548
      %v2550 = vpop.f32.mrb[0].mxu0
      %2551 = vmatprep.mubr.f32.mxu0 0.0
      %2552 = vmatmul.mubr.f32.gmra.mrb[0].mxu0 %v2387
      %v2553 = vpop.f32.mrb[0].mxu0
      %v2554 = vadd.f32 0.0, %v2553
      %v2555 = vpop.f32.mrb[0].mxu0
      %2556 = vmatprep.mubr.f32.mxu0 0.0
      %2557 = vmatmul.mubr.f32.gmra.mrb[0].mxu0 %v2390
      %v2558 = vpop.f32.mrb[0].mxu0
      %v2559 = vadd.f32 0.0, %v2558
      %v2560 = vpop.f32.mrb[0].mxu0
      %2561 = vmatprep.mubr.f32.mxu0 0.0
      %2562 = vmatmul.mubr.f32.gmra.mrb[0].mxu0 %v2393
      %v2563 = vpop.f32.mrb[0].mxu0
      %v2564 = vadd.f32 0.0, %v2563
      %v2565 = vpop.f32.mrb[0].mxu0
      %2566 = vmatprep.mubr.f32.mxu0 0.0
      %2567 = vmatmul.mubr.f32.gmra.mrb[0].mxu0 %v2396
      %v2568 = vpop.f32.mrb[0].mxu0
      %v2569 = vadd.f32 0.0, %v2568
      %v2570 = vpop.f32.mrb[0].mxu0
      %2571 = vmatprep.mubr.f32.mxu0 0.0
      %2572 = vmatmul.mubr.f32.gmra.mrb[0].mxu0 %v2399
      %v2573 = vpop.f32.mrb[0].mxu0
      %v2574 = vadd.f32 0.0, %v2573
      %v2575 = vpop.f32.mrb[0].mxu0
      %2576 = vmatprep.mubr.f32.mxu0 0.0
      %2577 = vmatmul.mubr.f32.gmra.mrb[0].mxu0 %v2402
      %v2578 = vpop.f32.mrb[0].mxu0
      %v2579 = vadd.f32 0.0, %v2578
      %v2580 = vpop.f32.mrb[0].mxu0
      %2581 = vmatprep.mubr.f32.mxu0 0.0
      %2582 = vmatmul.mubr.f32.gmra.mrb[0].mxu0 %v2405
      %v2583 = vpop.f32.mrb[0].mxu0
      %v2584 = vadd.f32 0.0, %v2583
      %v2585 = vpop.f32.mrb[0].mxu0
      %2586 = vmatprep.mubr.f32.mxu0 0.0
      %2587 = vmatmul.mubr.f32.gmra.mrb[0].mxu0 %v2408
      %v2588 = vpop.f32.mrb[0].mxu0
      %v2589 = vadd.f32 0.0, %v2588
      %v2590 = vpop.f32.mrb[0].mxu0
      %2591 = vmatprep.mubr.f32.mxu0 0.0
      %2592 = vmatmul.mubr.f32.gmra.mrb[0].mxu0 %v2411
      %v2593 = vpop.f32.mrb[0].mxu0
      %v2594 = vadd.f32 0.0, %v2593
      %v2595 = vpop.f32.mrb[0].mxu0
      %2596 = vmatprep.mubr.f32.mxu0 0.0
      %2597 = vmatmul.mubr.f32.gmra.mrb[0].mxu0 %v2414
      %v2598 = vpop.f32.mrb[0].mxu0
      %v2599 = vadd.f32 0.0, %v2598
      %v2600 = vpop.f32.mrb[0].mxu0
      %2601 = vmatprep.mubr.f32.mxu0 0.0
      %2602 = vmatmul.mubr.f32.gmra.mrb[0].mxu0 %v2417
      %v2603 = vpop.f32.mrb[0].mxu0
      %v2604 = vadd.f32 0.0, %v2603
      %v2605 = vpop.f32.mrb[0].mxu0
      %2606 = vmatprep.mubr.f32.mxu0 0.0
      %2607 = vmatmul.mubr.f32.gmra.mrb[0].mxu0 %v2420
      %v2608 = vpop.f32.mrb[0].mxu0
      %v2609 = vadd.f32 0.0, %v2608
      %v2610 = vpop.f32.mrb[0].mxu0
      %2611 = vmatprep.mubr.f32.mxu0 0.0
      %2612 = vmatmul.mubr.f32.gmra.mrb[0].mxu0 %v2423
      %v2613 = vpop.f32.mrb[0].mxu0
      %v2614 = vadd.f32 0.0, %v2613
      %v2615 = vpop.f32.mrb[0].mxu0
      %2616 = vmatprep.mubr.f32.mxu0 0.0
      %2617 = vmatmul.mubr.f32.gmra.mrb[0].mxu0 %v2426
      %v2618 = vpop.f32.mrb[0].mxu0
      %v2619 = vadd.f32 0.0, %v2618
      %v2620 = vpop.f32.mrb[0].mxu0
      %2621 = vmatprep.mubr.f32.mxu0 0.0
      %2622 = vmatmul.mubr.f32.gmra.mrb[0].mxu0 %v2429
      %v2623 = vpop.f32.mrb[0].mxu0
      %v2624 = vadd.f32 0.0, %v2623
      %v2625 = vpop.f32.mrb[0].mxu0
      %2626 = vmatprep.mubr.f32.mxu0 0.0
      %2627 = vmatmul.mubr.f32.gmra.mrb[0].mxu0 %v2432
      %v2628 = vpop.f32.mrb[0].mxu0
      %v2629 = vadd.f32 0.0, %v2628
      %v2630 = vpop.f32.mrb[0].mxu0
      %2631 = vmatprep.mubr.f32.mxu0 0.0
      %2632 = vmatmul.mubr.f32.gmra.mrb[0].mxu0 %v2435
      %v2633 = vpop.f32.mrb[0].mxu0
      %v2634 = vadd.f32 0.0, %v2633
      %v2635 = vpop.f32.mrb[0].mxu0
      %2636 = vmatprep.mubr.f32.mxu0 0.0
      %2637 = vmatmul.mubr.f32.gmra.mrb[0].mxu0 %v2438
      %v2638 = vpop.f32.mrb[0].mxu0
      %v2639 = vadd.f32 0.0, %v2638
      %v2640 = vpop.f32.mrb[0].mxu0
      %2641 = vmatprep.mubr.f32.mxu0 0.0
      %2642 = vmatmul.mubr.f32.gmra.mrb[0].mxu0 %v2441
      %v2643 = vpop.f32.mrb[0].mxu0
      %v2644 = vadd.f32 0.0, %v2643
      %v2645 = vpop.f32.mrb[0].mxu0
      %2646 = vmatprep.mubr.f32.mxu0 0.0
      %2647 = vmatmul.mubr.f32.gmra.mrb[0].mxu0 %v2444
      %v2648 = vpop.f32.mrb[0].mxu0
      %v2649 = vadd.f32 0.0, %v2648
      %v2650 = vpop.f32.mrb[0].mxu0
      %2651 = vmatprep.mubr.f32.mxu0 0.0
      %2652 = vmatmul.mubr.f32.gmra.mrb[0].mxu0 %v2447
      %v2653 = vpop.f32.mrb[0].mxu0
      %v2654 = vadd.f32 0.0, %v2653
      %v2655 = vpop.f32.mrb[0].mxu0
      %2656 = vmatprep.mubr.f32.mxu0 0.0
      %2657 = vmatmul.mubr.f32.gmra.mrb[0].mxu0 %v2450
      %v2658 = vpop.f32.mrb[0].mxu0
      %v2659 = vadd.f32 0.0, %v2658
      %v2660 = vpop.f32.mrb[0].mxu0
      %2661 = vmatprep.mubr.f32.mxu0 0.0
      %2662 = vmatmul.mubr.f32.gmra.mrb[0].mxu0 %v2453
      %v2663 = vpop.f32.mrb[0].mxu0
      %v2664 = vadd.f32 0.0, %v2663
      %v2665 = vpop.f32.mrb[0].mxu0
      %2666 = vmatprep.mubr.f32.mxu0 0.0
      %2667 = vmatmul.mubr.f32.gmra.mrb[0].mxu0 %v2456
      %v2668 = vpop.f32.mrb[0].mxu0
      %v2669 = vadd.f32 0.0, %v2668
      %v2670 = vpop.f32.mrb[0].mxu0
      %2671 = vmatprep.mubr.f32.mxu0 0.0
      %2672 = vmatmul.mubr.f32.gmra.mrb[0].mxu0 %v2459
      %v2673 = vpop.f32.mrb[0].mxu0
      %v2674 = vadd.f32 0.0, %v2673
      %v2675 = vpop.f32.mrb[0].mxu0
      %2676 = vmatprep.mubr.f32.mxu0 0.0
      %2677 = vmatmul.mubr.f32.gmra.mrb[0].mxu0 %v2462
      %v2678 = vpop.f32.mrb[0].mxu0
      %v2679 = vadd.f32 0.0, %v2678
      %v2680 = vpop.f32.mrb[0].mxu0
      %2681 = vmatprep.mubr.f32.mxu0 0.0
      %2682 = vmatmul.mubr.f32.gmra.mrb[0].mxu0 %v2465
      %v2683 = vpop.f32.mrb[0].mxu0
      %v2684 = vadd.f32 0.0, %v2683
      %v2685 = vpop.f32.mrb[0].mxu0
      %2686 = vmatprep.mubr.f32.mxu0 0.0
      %2687 = vmatmul.mubr.f32.gmra.mrb[0].mxu0 %v2468
      %v2688 = vpop.f32.mrb[0].mxu0
      %v2689 = vadd.f32 0.0, %v2688
      %v2690 = vpop.f32.mrb[0].mxu0
      %2691 = vmatprep.mubr.f32.mxu0 0.0
      %2692 = vmatmul.mubr.f32.gmra.mrb[0].mxu0 %v2471
      %v2693 = vpop.f32.mrb[0].mxu0
      %v2694 = vadd.f32 0.0, %v2693
      %v2695 = vpop.f32.mrb[0].mxu0
      %2696 = vmatprep.mubr.f32.mxu0 0.0
      %2697 = vmatmul.mubr.f32.gmra.mrb[0].mxu0 %v2474
      %v2698 = vpop.f32.mrb[0].mxu0
      %v2699 = vadd.f32 0.0, %v2698
      %v2700 = vpop.f32.mrb[0].mxu0
      %2701 = vmatprep.mubr.f32.mxu0 0.0
      %2702 = vmatmul.mubr.f32.gmra.mrb[0].mxu0 %v2477
      %v2703 = vpop.f32.mrb[0].mxu0
      %v2704 = vadd.f32 0.0, %v2703
      %v2705 = vpop.f32.mrb[0].mxu0
      %2706 = vdwg.mxu0
      %v2707 = vadd.f32 %v2318, %v2549
      %v2708 = vadd.f32 %v2319, %v2554
      %v2709 = vadd.f32 %v2320, %v2559
      %v2710 = vadd.f32 %v2321, %v2564
      %v2711 = vadd.f32 %v2322, %v2569
      %v2712 = vadd.f32 %v2323, %v2574
      %v2713 = vadd.f32 %v2324, %v2579
      %v2714 = vadd.f32 %v2325, %v2584
      %v2715 = vadd.f32 %v2326, %v2589
      %v2716 = vadd.f32 %v2327, %v2594
      %v2717 = vadd.f32 %v2328, %v2599
      %v2718 = vadd.f32 %v2329, %v2604
      %v2719 = vadd.f32 %v2330, %v2609
      %v2720 = vadd.f32 %v2331, %v2614
      %v2721 = vadd.f32 %v2332, %v2619
      %v2722 = vadd.f32 %v2333, %v2624
      %v2723 = vadd.f32 %v2334, %v2629
      %v2724 = vadd.f32 %v2335, %v2634
      %v2725 = vadd.f32 %v2336, %v2639
      %v2726 = vadd.f32 %v2337, %v2644
      %v2727 = vadd.f32 %v2338, %v2649
      %v2728 = vadd.f32 %v2339, %v2654
      %v2729 = vadd.f32 %v2340, %v2659
      %v2730 = vadd.f32 %v2341, %v2664
      %v2731 = vadd.f32 %v2342, %v2669
      %v2732 = vadd.f32 %v2343, %v2674
      %v2733 = vadd.f32 %v2344, %v2679
      %v2734 = vadd.f32 %v2345, %v2684
      %v2735 = vadd.f32 %v2346, %v2689
      %v2736 = vadd.f32 %v2347, %v2694
      %v2737 = vadd.f32 %v2348, %v2699
      %v2738 = vadd.f32 %v2349, %v2704
      %s2739 = scalar_lea.vmem [#allocation2], 48
      %v2740 = vld [vmem:[%s2739] sm:$0xff]
      %v2741 = vld [vmem:[%s2739 + $0x8] sm:$0xff]
      %v2742 = vld [vmem:[%s2739 + $0x18] sm:$0xff]
      %v2743 = vld [vmem:[%s2739 + $0x20] sm:$0xff]
      %v2744 = vld [vmem:[%s2739 + $0x30] sm:$0xff]
      %v2745 = vld [vmem:[%s2739 + $0x38] sm:$0xff]
      %v2746 = vld [vmem:[%s2739 + $0x48] sm:$0xff]
      %v2747 = vld [vmem:[%s2739 + $0x50] sm:$0xff]
      %v2748 = vld [vmem:[%s2739 + $0x60] sm:$0xff]
      %v2749 = vld [vmem:[%s2739 + $0x68] sm:$0xff]
      %v2750 = vld [vmem:[%s2739 + $0x78] sm:$0xff]
      %v2751 = vld [vmem:[%s2739 + $0x80] sm:$0xff]
      %v2752 = vld [vmem:[%s2739 + $0x90] sm:$0xff]
      %v2753 = vld [vmem:[%s2739 + $0x98] sm:$0xff]
      %v2754 = vld [vmem:[%s2739 + $0xa8] sm:$0xff]
      %v2755 = vld [vmem:[%s2739 + $0xb0] sm:$0xff]
      %v2756 = vld [vmem:[%s2739 + $0xc0] sm:$0xff]
      %v2757 = vld [vmem:[%s2739 + $0xc8] sm:$0xff]
      %v2758 = vld [vmem:[%s2739 + $0xd8] sm:$0xff]
      %v2759 = vld [vmem:[%s2739 + $0xe0] sm:$0xff]
      %v2760 = vld [vmem:[%s2739 + $0xf0] sm:$0xff]
      %v2761 = vld [vmem:[%s2739 + $0xf8] sm:$0xff]
      %v2762 = vld [vmem:[%s2739 + $0x108] sm:$0xff]
      %v2763 = vld [vmem:[%s2739 + $0x110] sm:$0xff]
      %v2764 = vld [vmem:[%s2739 + $0x120] sm:$0xff]
      %v2765 = vld [vmem:[%s2739 + $0x128] sm:$0xff]
      %v2766 = vld [vmem:[%s2739 + $0x138] sm:$0xff]
      %v2767 = vld [vmem:[%s2739 + $0x140] sm:$0xff]
      %v2768 = vld [vmem:[%s2739 + $0x150] sm:$0xff]
      %v2769 = vld [vmem:[%s2739 + $0x158] sm:$0xff]
      %v2770 = vld [vmem:[%s2739 + $0x168] sm:$0xff]
      %v2771 = vld [vmem:[%s2739 + $0x170] sm:$0xff]
      %v2772 = vld [vmem:[%s1 + $0x18] sm:$0xf]
      %v2774 = vsel %vm279, %v2740, 0
      %v2777 = vsel %vm279, %v2741, 0
      %v2780 = vsel %vm279, %v2742, 0
      %v2783 = vsel %vm279, %v2743, 0
      %v2786 = vsel %vm279, %v2744, 0
      %v2789 = vsel %vm279, %v2745, 0
      %v2792 = vsel %vm279, %v2746, 0
      %v2795 = vsel %vm279, %v2747, 0
      %v2798 = vsel %vm279, %v2748, 0
      %v2801 = vsel %vm279, %v2749, 0
      %v2804 = vsel %vm279, %v2750, 0
      %v2807 = vsel %vm279, %v2751, 0
      %v2810 = vsel %vm279, %v2752, 0
      %v2813 = vsel %vm279, %v2753, 0
      %v2816 = vsel %vm279, %v2754, 0
      %v2819 = vsel %vm279, %v2755, 0
      %v2822 = vsel %vm279, %v2756, 0
      %v2825 = vsel %vm279, %v2757, 0
      %v2828 = vsel %vm279, %v2758, 0
      %v2831 = vsel %vm279, %v2759, 0
      %v2834 = vsel %vm279, %v2760, 0
      %v2837 = vsel %vm279, %v2761, 0
      %v2840 = vsel %vm279, %v2762, 0
      %v2843 = vsel %vm279, %v2763, 0
      %v2846 = vsel %vm279, %v2764, 0
      %v2849 = vsel %vm279, %v2765, 0
      %v2852 = vsel %vm279, %v2766, 0
      %v2855 = vsel %vm279, %v2767, 0
      %v2858 = vsel %vm279, %v2768, 0
      %v2861 = vsel %vm279, %v2769, 0
      %v2864 = vsel %vm279, %v2770, 0
      %v2867 = vsel %vm279, %v2771, 0
      %v2870 = vsel %vm630, %v2772, 0
      %2872 = vmatprep.subr.mxu0 0.0
      %2873 = vmatpush1.msra.mxu0 %v2870
      %2874 = vmatprep.subr.mxu0 0.0
      %2875 = vmatpush1.msra.mxu0 0.0
      %2876 = vmatprep.subr.mxu0 0.0
      %2877 = vmatpush1.msra.mxu0 0.0
      %2878 = vmatprep.subr.mxu0 0.0
      %2879 = vmatpush1.msra.mxu0 0.0
      %2880 = vmatprep.subr.mxu0 0.0
      %2881 = vmatpush1.msra.mxu0 0.0
      %2882 = vmatprep.subr.mxu0 0.0
      %2883 = vmatpush1.msra.mxu0 0.0
      %2884 = vmatprep.subr.mxu0 0.0
      %2885 = vmatpush1.msra.mxu0 0.0
      %2886 = vmatprep.subr.mxu0 0.0
      %2887 = vmatpush1.msra.mxu0 0.0
      %2888 = vmatprep.subr.mxu0 0.0
      %2889 = vmatpush1.msra.mxu0 0.0
      %2890 = vmatprep.subr.mxu0 0.0
      %2891 = vmatpush1.msra.mxu0 0.0
      %2892 = vmatprep.subr.mxu0 0.0
      %2893 = vmatpush1.msra.mxu0 0.0
      %2894 = vmatprep.subr.mxu0 0.0
      %2895 = vmatpush1.msra.mxu0 0.0
      %2896 = vmatprep.subr.mxu0 0.0
      %2897 = vmatpush1.msra.mxu0 0.0
      %2898 = vmatprep.subr.mxu0 0.0
      %2899 = vmatpush1.msra.mxu0 0.0
      %2900 = vmatprep.subr.mxu0 0.0
      %2901 = vmatpush1.msra.mxu0 0.0
      %2902 = vmatprep.subr.mxu0 0.0
      %2903 = vmatpush1.msra.mxu0 0.0
      %2904 = vmatprep.subr.mxu0 0.0
      %2905 = vmatpush1.msra.mxu0 0.0
      %2906 = vmatprep.subr.mxu0 0.0
      %2907 = vmatpush1.msra.mxu0 0.0
      %2908 = vmatprep.subr.mxu0 0.0
      %2909 = vmatpush1.msra.mxu0 0.0
      %2910 = vmatprep.subr.mxu0 0.0
      %2911 = vmatpush1.msra.mxu0 0.0
      %2912 = vmatprep.subr.mxu0 0.0
      %2913 = vmatpush1.msra.mxu0 0.0
      %2914 = vmatprep.subr.mxu0 0.0
      %2915 = vmatpush1.msra.mxu0 0.0
      %2916 = vmatprep.subr.mxu0 0.0
      %2917 = vmatpush1.msra.mxu0 0.0
      %2918 = vmatprep.subr.mxu0 0.0
      %2919 = vmatpush1.msra.mxu0 0.0
      %2920 = vmatprep.subr.mxu0 0.0
      %2921 = vmatpush1.msra.mxu0 0.0
      %2922 = vmatprep.subr.mxu0 0.0
      %2923 = vmatpush1.msra.mxu0 0.0
      %2924 = vmatprep.subr.mxu0 0.0
      %2925 = vmatpush1.msra.mxu0 0.0
      %2926 = vmatprep.subr.mxu0 0.0
      %2927 = vmatpush1.msra.mxu0 0.0
      %2928 = vmatprep.subr.mxu0 0.0
      %2929 = vmatpush1.msra.mxu0 0.0
      %2930 = vmatprep.subr.mxu0 0.0
      %2931 = vmatpush1.msra.mxu0 0.0
      %2932 = vmatprep.subr.mxu0 0.0
      %2933 = vmatpush1.msra.mxu0 0.0
      %2934 = vmatprep.subr.mxu0 0.0
      %2935 = vmatpush1.msra.mxu0 0.0
      %2936 = vmatprep.mubr.f32.mxu0 0.0
      %2937 = vmatmul.mubr.f32.gmra.mrb[0].mxu0 %v2774
      %v2938 = vpop.f32.mrb[0].mxu0
      %v2939 = vadd.f32 0.0, %v2938
      %v2940 = vpop.f32.mrb[0].mxu0
      %2941 = vmatprep.mubr.f32.mxu0 0.0
      %2942 = vmatmul.mubr.f32.gmra.mrb[0].mxu0 %v2777
      %v2943 = vpop.f32.mrb[0].mxu0
      %v2944 = vadd.f32 0.0, %v2943
      %v2945 = vpop.f32.mrb[0].mxu0
      %2946 = vmatprep.mubr.f32.mxu0 0.0
      %2947 = vmatmul.mubr.f32.gmra.mrb[0].mxu0 %v2780
      %v2948 = vpop.f32.mrb[0].mxu0
      %v2949 = vadd.f32 0.0, %v2948
      %v2950 = vpop.f32.mrb[0].mxu0
      %2951 = vmatprep.mubr.f32.mxu0 0.0
      %2952 = vmatmul.mubr.f32.gmra.mrb[0].mxu0 %v2783
      %v2953 = vpop.f32.mrb[0].mxu0
      %v2954 = vadd.f32 0.0, %v2953
      %v2955 = vpop.f32.mrb[0].mxu0
      %2956 = vmatprep.mubr.f32.mxu0 0.0
      %2957 = vmatmul.mubr.f32.gmra.mrb[0].mxu0 %v2786
      %v2958 = vpop.f32.mrb[0].mxu0
      %v2959 = vadd.f32 0.0, %v2958
      %v2960 = vpop.f32.mrb[0].mxu0
      %2961 = vmatprep.mubr.f32.mxu0 0.0
      %2962 = vmatmul.mubr.f32.gmra.mrb[0].mxu0 %v2789
      %v2963 = vpop.f32.mrb[0].mxu0
      %v2964 = vadd.f32 0.0, %v2963
      %v2965 = vpop.f32.mrb[0].mxu0
      %2966 = vmatprep.mubr.f32.mxu0 0.0
      %2967 = vmatmul.mubr.f32.gmra.mrb[0].mxu0 %v2792
      %v2968 = vpop.f32.mrb[0].mxu0
      %v2969 = vadd.f32 0.0, %v2968
      %v2970 = vpop.f32.mrb[0].mxu0
      %2971 = vmatprep.mubr.f32.mxu0 0.0
      %2972 = vmatmul.mubr.f32.gmra.mrb[0].mxu0 %v2795
      %v2973 = vpop.f32.mrb[0].mxu0
      %v2974 = vadd.f32 0.0, %v2973
      %v2975 = vpop.f32.mrb[0].mxu0
      %2976 = vmatprep.mubr.f32.mxu0 0.0
      %2977 = vmatmul.mubr.f32.gmra.mrb[0].mxu0 %v2798
      %v2978 = vpop.f32.mrb[0].mxu0
      %v2979 = vadd.f32 0.0, %v2978
      %v2980 = vpop.f32.mrb[0].mxu0
      %2981 = vmatprep.mubr.f32.mxu0 0.0
      %2982 = vmatmul.mubr.f32.gmra.mrb[0].mxu0 %v2801
      %v2983 = vpop.f32.mrb[0].mxu0
      %v2984 = vadd.f32 0.0, %v2983
      %v2985 = vpop.f32.mrb[0].mxu0
      %2986 = vmatprep.mubr.f32.mxu0 0.0
      %2987 = vmatmul.mubr.f32.gmra.mrb[0].mxu0 %v2804
      %v2988 = vpop.f32.mrb[0].mxu0
      %v2989 = vadd.f32 0.0, %v2988
      %v2990 = vpop.f32.mrb[0].mxu0
      %2991 = vmatprep.mubr.f32.mxu0 0.0
      %2992 = vmatmul.mubr.f32.gmra.mrb[0].mxu0 %v2807
      %v2993 = vpop.f32.mrb[0].mxu0
      %v2994 = vadd.f32 0.0, %v2993
      %v2995 = vpop.f32.mrb[0].mxu0
      %2996 = vmatprep.mubr.f32.mxu0 0.0
      %2997 = vmatmul.mubr.f32.gmra.mrb[0].mxu0 %v2810
      %v2998 = vpop.f32.mrb[0].mxu0
      %v2999 = vadd.f32 0.0, %v2998
      %v3000 = vpop.f32.mrb[0].mxu0
      %3001 = vmatprep.mubr.f32.mxu0 0.0
      %3002 = vmatmul.mubr.f32.gmra.mrb[0].mxu0 %v2813
      %v3003 = vpop.f32.mrb[0].mxu0
      %v3004 = vadd.f32 0.0, %v3003
      %v3005 = vpop.f32.mrb[0].mxu0
      %3006 = vmatprep.mubr.f32.mxu0 0.0
      %3007 = vmatmul.mubr.f32.gmra.mrb[0].mxu0 %v2816
      %v3008 = vpop.f32.mrb[0].mxu0
      %v3009 = vadd.f32 0.0, %v3008
      %v3010 = vpop.f32.mrb[0].mxu0
      %3011 = vmatprep.mubr.f32.mxu0 0.0
      %3012 = vmatmul.mubr.f32.gmra.mrb[0].mxu0 %v2819
      %v3013 = vpop.f32.mrb[0].mxu0
      %v3014 = vadd.f32 0.0, %v3013
      %v3015 = vpop.f32.mrb[0].mxu0
      %3016 = vmatprep.mubr.f32.mxu0 0.0
      %3017 = vmatmul.mubr.f32.gmra.mrb[0].mxu0 %v2822
      %v3018 = vpop.f32.mrb[0].mxu0
      %v3019 = vadd.f32 0.0, %v3018
      %v3020 = vpop.f32.mrb[0].mxu0
      %3021 = vmatprep.mubr.f32.mxu0 0.0
      %3022 = vmatmul.mubr.f32.gmra.mrb[0].mxu0 %v2825
      %v3023 = vpop.f32.mrb[0].mxu0
      %v3024 = vadd.f32 0.0, %v3023
      %v3025 = vpop.f32.mrb[0].mxu0
      %3026 = vmatprep.mubr.f32.mxu0 0.0
      %3027 = vmatmul.mubr.f32.gmra.mrb[0].mxu0 %v2828
      %v3028 = vpop.f32.mrb[0].mxu0
      %v3029 = vadd.f32 0.0, %v3028
      %v3030 = vpop.f32.mrb[0].mxu0
      %3031 = vmatprep.mubr.f32.mxu0 0.0
      %3032 = vmatmul.mubr.f32.gmra.mrb[0].mxu0 %v2831
      %v3033 = vpop.f32.mrb[0].mxu0
      %v3034 = vadd.f32 0.0, %v3033
      %v3035 = vpop.f32.mrb[0].mxu0
      %3036 = vmatprep.mubr.f32.mxu0 0.0
      %3037 = vmatmul.mubr.f32.gmra.mrb[0].mxu0 %v2834
      %v3038 = vpop.f32.mrb[0].mxu0
      %v3039 = vadd.f32 0.0, %v3038
      %v3040 = vpop.f32.mrb[0].mxu0
      %3041 = vmatprep.mubr.f32.mxu0 0.0
      %3042 = vmatmul.mubr.f32.gmra.mrb[0].mxu0 %v2837
      %v3043 = vpop.f32.mrb[0].mxu0
      %v3044 = vadd.f32 0.0, %v3043
      %v3045 = vpop.f32.mrb[0].mxu0
      %3046 = vmatprep.mubr.f32.mxu0 0.0
      %3047 = vmatmul.mubr.f32.gmra.mrb[0].mxu0 %v2840
      %v3048 = vpop.f32.mrb[0].mxu0
      %v3049 = vadd.f32 0.0, %v3048
      %v3050 = vpop.f32.mrb[0].mxu0
      %3051 = vmatprep.mubr.f32.mxu0 0.0
      %3052 = vmatmul.mubr.f32.gmra.mrb[0].mxu0 %v2843
      %v3053 = vpop.f32.mrb[0].mxu0
      %v3054 = vadd.f32 0.0, %v3053
      %v3055 = vpop.f32.mrb[0].mxu0
      %3056 = vmatprep.mubr.f32.mxu0 0.0
      %3057 = vmatmul.mubr.f32.gmra.mrb[0].mxu0 %v2846
      %v3058 = vpop.f32.mrb[0].mxu0
      %v3059 = vadd.f32 0.0, %v3058
      %v3060 = vpop.f32.mrb[0].mxu0
      %3061 = vmatprep.mubr.f32.mxu0 0.0
      %3062 = vmatmul.mubr.f32.gmra.mrb[0].mxu0 %v2849
      %v3063 = vpop.f32.mrb[0].mxu0
      %v3064 = vadd.f32 0.0, %v3063
      %v3065 = vpop.f32.mrb[0].mxu0
      %3066 = vmatprep.mubr.f32.mxu0 0.0
      %3067 = vmatmul.mubr.f32.gmra.mrb[0].mxu0 %v2852
      %v3068 = vpop.f32.mrb[0].mxu0
      %v3069 = vadd.f32 0.0, %v3068
      %v3070 = vpop.f32.mrb[0].mxu0
      %3071 = vmatprep.mubr.f32.mxu0 0.0
      %3072 = vmatmul.mubr.f32.gmra.mrb[0].mxu0 %v2855
      %v3073 = vpop.f32.mrb[0].mxu0
      %v3074 = vadd.f32 0.0, %v3073
      %v3075 = vpop.f32.mrb[0].mxu0
      %3076 = vmatprep.mubr.f32.mxu0 0.0
      %3077 = vmatmul.mubr.f32.gmra.mrb[0].mxu0 %v2858
      %v3078 = vpop.f32.mrb[0].mxu0
      %v3079 = vadd.f32 0.0, %v3078
      %v3080 = vpop.f32.mrb[0].mxu0
      %3081 = vmatprep.mubr.f32.mxu0 0.0
      %3082 = vmatmul.mubr.f32.gmra.mrb[0].mxu0 %v2861
      %v3083 = vpop.f32.mrb[0].mxu0
      %v3084 = vadd.f32 0.0, %v3083
      %v3085 = vpop.f32.mrb[0].mxu0
      %3086 = vmatprep.mubr.f32.mxu0 0.0
      %3087 = vmatmul.mubr.f32.gmra.mrb[0].mxu0 %v2864
      %v3088 = vpop.f32.mrb[0].mxu0
      %v3089 = vadd.f32 0.0, %v3088
      %v3090 = vpop.f32.mrb[0].mxu0
      %3091 = vmatprep.mubr.f32.mxu0 0.0
      %3092 = vmatmul.mubr.f32.gmra.mrb[0].mxu0 %v2867
      %v3093 = vpop.f32.mrb[0].mxu0
      %v3094 = vadd.f32 0.0, %v3093
      %v3095 = vpop.f32.mrb[0].mxu0
      %3096 = vdwg.mxu0
      %v3097 = vadd.f32 %v2707, %v2939
      %v3098 = vadd.f32 %v2708, %v2944
      %v3099 = vadd.f32 %v2709, %v2949
      %v3100 = vadd.f32 %v2710, %v2954
      %v3101 = vadd.f32 %v2711, %v2959
      %v3102 = vadd.f32 %v2712, %v2964
      %v3103 = vadd.f32 %v2713, %v2969
      %v3104 = vadd.f32 %v2714, %v2974
      %v3105 = vadd.f32 %v2715, %v2979
      %v3106 = vadd.f32 %v2716, %v2984
      %v3107 = vadd.f32 %v2717, %v2989
      %v3108 = vadd.f32 %v2718, %v2994
      %v3109 = vadd.f32 %v2719, %v2999
      %v3110 = vadd.f32 %v2720, %v3004
      %v3111 = vadd.f32 %v2721, %v3009
      %v3112 = vadd.f32 %v2722, %v3014
      %v3113 = vadd.f32 %v2723, %v3019
      %v3114 = vadd.f32 %v2724, %v3024
      %v3115 = vadd.f32 %v2725, %v3029
      %v3116 = vadd.f32 %v2726, %v3034
      %v3117 = vadd.f32 %v2727, %v3039
      %v3118 = vadd.f32 %v2728, %v3044
      %v3119 = vadd.f32 %v2729, %v3049
      %v3120 = vadd.f32 %v2730, %v3054
      %v3121 = vadd.f32 %v2731, %v3059
      %v3122 = vadd.f32 %v2732, %v3064
      %v3123 = vadd.f32 %v2733, %v3069
      %v3124 = vadd.f32 %v2734, %v3074
      %v3125 = vadd.f32 %v2735, %v3079
      %v3126 = vadd.f32 %v2736, %v3084
      %v3127 = vadd.f32 %v2737, %v3089
      %v3128 = vadd.f32 %v2738, %v3094
      %v3129 = vld [vmem:[%s2739 + $0x1] sm:$0xff]
      %v3130 = vld [vmem:[%s2739 + $0x9] sm:$0xff]
      %v3131 = vld [vmem:[%s2739 + $0x19] sm:$0xff]
      %v3132 = vld [vmem:[%s2739 + $0x21] sm:$0xff]
      %v3133 = vld [vmem:[%s2739 + $0x31] sm:$0xff]
      %v3134 = vld [vmem:[%s2739 + $0x39] sm:$0xff]
      %v3135 = vld [vmem:[%s2739 + $0x49] sm:$0xff]
      %v3136 = vld [vmem:[%s2739 + $0x51] sm:$0xff]
      %v3137 = vld [vmem:[%s2739 + $0x61] sm:$0xff]
      %v3138 = vld [vmem:[%s2739 + $0x69] sm:$0xff]
      %v3139 = vld [vmem:[%s2739 + $0x79] sm:$0xff]
      %v3140 = vld [vmem:[%s2739 + $0x81] sm:$0xff]
      %v3141 = vld [vmem:[%s2739 + $0x91] sm:$0xff]
      %v3142 = vld [vmem:[%s2739 + $0x99] sm:$0xff]
      %v3143 = vld [vmem:[%s2739 + $0xa9] sm:$0xff]
      %v3144 = vld [vmem:[%s2739 + $0xb1] sm:$0xff]
      %v3145 = vld [vmem:[%s2739 + $0xc1] sm:$0xff]
      %v3146 = vld [vmem:[%s2739 + $0xc9] sm:$0xff]
      %v3147 = vld [vmem:[%s2739 + $0xd9] sm:$0xff]
      %v3148 = vld [vmem:[%s2739 + $0xe1] sm:$0xff]
      %v3149 = vld [vmem:[%s2739 + $0xf1] sm:$0xff]
      %v3150 = vld [vmem:[%s2739 + $0xf9] sm:$0xff]
      %v3151 = vld [vmem:[%s2739 + $0x109] sm:$0xff]
      %v3152 = vld [vmem:[%s2739 + $0x111] sm:$0xff]
      %v3153 = vld [vmem:[%s2739 + $0x121] sm:$0xff]
      %v3154 = vld [vmem:[%s2739 + $0x129] sm:$0xff]
      %v3155 = vld [vmem:[%s2739 + $0x139] sm:$0xff]
      %v3156 = vld [vmem:[%s2739 + $0x141] sm:$0xff]
      %v3157 = vld [vmem:[%s2739 + $0x151] sm:$0xff]
      %v3158 = vld [vmem:[%s2739 + $0x159] sm:$0xff]
      %v3159 = vld [vmem:[%s2739 + $0x169] sm:$0xff]
      %v3160 = vld [vmem:[%s2739 + $0x171] sm:$0xff]
      %v3161 = vld [vmem:[%s1 + $0x1c] sm:$0xf]
      %v3163 = vsel %vm279, %v3129, 0
      %v3166 = vsel %vm279, %v3130, 0
      %v3169 = vsel %vm279, %v3131, 0
      %v3172 = vsel %vm279, %v3132, 0
      %v3175 = vsel %vm279, %v3133, 0
      %v3178 = vsel %vm279, %v3134, 0
      %v3181 = vsel %vm279, %v3135, 0
      %v3184 = vsel %vm279, %v3136, 0
      %v3187 = vsel %vm279, %v3137, 0
      %v3190 = vsel %vm279, %v3138, 0
      %v3193 = vsel %vm279, %v3139, 0
      %v3196 = vsel %vm279, %v3140, 0
      %v3199 = vsel %vm279, %v3141, 0
      %v3202 = vsel %vm279, %v3142, 0
      %v3205 = vsel %vm279, %v3143, 0
      %v3208 = vsel %vm279, %v3144, 0
      %v3211 = vsel %vm279, %v3145, 0
      %v3214 = vsel %vm279, %v3146, 0
      %v3217 = vsel %vm279, %v3147, 0
      %v3220 = vsel %vm279, %v3148, 0
      %v3223 = vsel %vm279, %v3149, 0
      %v3226 = vsel %vm279, %v3150, 0
      %v3229 = vsel %vm279, %v3151, 0
      %v3232 = vsel %vm279, %v3152, 0
      %v3235 = vsel %vm279, %v3153, 0
      %v3238 = vsel %vm279, %v3154, 0
      %v3241 = vsel %vm279, %v3155, 0
      %v3244 = vsel %vm279, %v3156, 0
      %v3247 = vsel %vm279, %v3157, 0
      %v3250 = vsel %vm279, %v3158, 0
      %v3253 = vsel %vm279, %v3159, 0
      %v3256 = vsel %vm279, %v3160, 0
      %v3259 = vsel %vm630, %v3161, 0
      %3261 = vmatprep.subr.mxu0 0.0
      %3262 = vmatpush1.msra.mxu0 %v3259
      %3263 = vmatprep.subr.mxu0 0.0
      %3264 = vmatpush1.msra.mxu0 0.0
      %3265 = vmatprep.subr.mxu0 0.0
      %3266 = vmatpush1.msra.mxu0 0.0
      %3267 = vmatprep.subr.mxu0 0.0
      %3268 = vmatpush1.msra.mxu0 0.0
      %3269 = vmatprep.subr.mxu0 0.0
      %3270 = vmatpush1.msra.mxu0 0.0
      %3271 = vmatprep.subr.mxu0 0.0
      %3272 = vmatpush1.msra.mxu0 0.0
      %3273 = vmatprep.subr.mxu0 0.0
      %3274 = vmatpush1.msra.mxu0 0.0
      %3275 = vmatprep.subr.mxu0 0.0
      %3276 = vmatpush1.msra.mxu0 0.0
      %3277 = vmatprep.subr.mxu0 0.0
      %3278 = vmatpush1.msra.mxu0 0.0
      %3279 = vmatprep.subr.mxu0 0.0
      %3280 = vmatpush1.msra.mxu0 0.0
      %3281 = vmatprep.subr.mxu0 0.0
      %3282 = vmatpush1.msra.mxu0 0.0
      %3283 = vmatprep.subr.mxu0 0.0
      %3284 = vmatpush1.msra.mxu0 0.0
      %3285 = vmatprep.subr.mxu0 0.0
      %3286 = vmatpush1.msra.mxu0 0.0
      %3287 = vmatprep.subr.mxu0 0.0
      %3288 = vmatpush1.msra.mxu0 0.0
      %3289 = vmatprep.subr.mxu0 0.0
      %3290 = vmatpush1.msra.mxu0 0.0
      %3291 = vmatprep.subr.mxu0 0.0
      %3292 = vmatpush1.msra.mxu0 0.0
      %3293 = vmatprep.subr.mxu0 0.0
      %3294 = vmatpush1.msra.mxu0 0.0
      %3295 = vmatprep.subr.mxu0 0.0
      %3296 = vmatpush1.msra.mxu0 0.0
      %3297 = vmatprep.subr.mxu0 0.0
      %3298 = vmatpush1.msra.mxu0 0.0
      %3299 = vmatprep.subr.mxu0 0.0
      %3300 = vmatpush1.msra.mxu0 0.0
      %3301 = vmatprep.subr.mxu0 0.0
      %3302 = vmatpush1.msra.mxu0 0.0
      %3303 = vmatprep.subr.mxu0 0.0
      %3304 = vmatpush1.msra.mxu0 0.0
      %3305 = vmatprep.subr.mxu0 0.0
      %3306 = vmatpush1.msra.mxu0 0.0
      %3307 = vmatprep.subr.mxu0 0.0
      %3308 = vmatpush1.msra.mxu0 0.0
      %3309 = vmatprep.subr.mxu0 0.0
      %3310 = vmatpush1.msra.mxu0 0.0
      %3311 = vmatprep.subr.mxu0 0.0
      %3312 = vmatpush1.msra.mxu0 0.0
      %3313 = vmatprep.subr.mxu0 0.0
      %3314 = vmatpush1.msra.mxu0 0.0
      %3315 = vmatprep.subr.mxu0 0.0
      %3316 = vmatpush1.msra.mxu0 0.0
      %3317 = vmatprep.subr.mxu0 0.0
      %3318 = vmatpush1.msra.mxu0 0.0
      %3319 = vmatprep.subr.mxu0 0.0
      %3320 = vmatpush1.msra.mxu0 0.0
      %3321 = vmatprep.subr.mxu0 0.0
      %3322 = vmatpush1.msra.mxu0 0.0
      %3323 = vmatprep.subr.mxu0 0.0
      %3324 = vmatpush1.msra.mxu0 0.0
      %3325 = vmatprep.mubr.f32.mxu0 0.0
      %3326 = vmatmul.mubr.f32.gmra.mrb[0].mxu0 %v3163
      %v3327 = vpop.f32.mrb[0].mxu0
      %v3328 = vadd.f32 0.0, %v3327
      %v3329 = vpop.f32.mrb[0].mxu0
      %3330 = vmatprep.mubr.f32.mxu0 0.0
      %3331 = vmatmul.mubr.f32.gmra.mrb[0].mxu0 %v3166
      %v3332 = vpop.f32.mrb[0].mxu0
      %v3333 = vadd.f32 0.0, %v3332
      %v3334 = vpop.f32.mrb[0].mxu0
      %3335 = vmatprep.mubr.f32.mxu0 0.0
      %3336 = vmatmul.mubr.f32.gmra.mrb[0].mxu0 %v3169
      %v3337 = vpop.f32.mrb[0].mxu0
      %v3338 = vadd.f32 0.0, %v3337
      %v3339 = vpop.f32.mrb[0].mxu0
      %3340 = vmatprep.mubr.f32.mxu0 0.0
      %3341 = vmatmul.mubr.f32.gmra.mrb[0].mxu0 %v3172
      %v3342 = vpop.f32.mrb[0].mxu0
      %v3343 = vadd.f32 0.0, %v3342
      %v3344 = vpop.f32.mrb[0].mxu0
      %3345 = vmatprep.mubr.f32.mxu0 0.0
      %3346 = vmatmul.mubr.f32.gmra.mrb[0].mxu0 %v3175
      %v3347 = vpop.f32.mrb[0].mxu0
      %v3348 = vadd.f32 0.0, %v3347
      %v3349 = vpop.f32.mrb[0].mxu0
      %3350 = vmatprep.mubr.f32.mxu0 0.0
      %3351 = vmatmul.mubr.f32.gmra.mrb[0].mxu0 %v3178
      %v3352 = vpop.f32.mrb[0].mxu0
      %v3353 = vadd.f32 0.0, %v3352
      %v3354 = vpop.f32.mrb[0].mxu0
      %3355 = vmatprep.mubr.f32.mxu0 0.0
      %3356 = vmatmul.mubr.f32.gmra.mrb[0].mxu0 %v3181
      %v3357 = vpop.f32.mrb[0].mxu0
      %v3358 = vadd.f32 0.0, %v3357
      %v3359 = vpop.f32.mrb[0].mxu0
      %3360 = vmatprep.mubr.f32.mxu0 0.0
      %3361 = vmatmul.mubr.f32.gmra.mrb[0].mxu0 %v3184
      %v3362 = vpop.f32.mrb[0].mxu0
      %v3363 = vadd.f32 0.0, %v3362
      %v3364 = vpop.f32.mrb[0].mxu0
      %3365 = vmatprep.mubr.f32.mxu0 0.0
      %3366 = vmatmul.mubr.f32.gmra.mrb[0].mxu0 %v3187
      %v3367 = vpop.f32.mrb[0].mxu0
      %v3368 = vadd.f32 0.0, %v3367
      %v3369 = vpop.f32.mrb[0].mxu0
      %3370 = vmatprep.mubr.f32.mxu0 0.0
      %3371 = vmatmul.mubr.f32.gmra.mrb[0].mxu0 %v3190
      %v3372 = vpop.f32.mrb[0].mxu0
      %v3373 = vadd.f32 0.0, %v3372
      %v3374 = vpop.f32.mrb[0].mxu0
      %3375 = vmatprep.mubr.f32.mxu0 0.0
      %3376 = vmatmul.mubr.f32.gmra.mrb[0].mxu0 %v3193
      %v3377 = vpop.f32.mrb[0].mxu0
      %v3378 = vadd.f32 0.0, %v3377
      %v3379 = vpop.f32.mrb[0].mxu0
      %3380 = vmatprep.mubr.f32.mxu0 0.0
      %3381 = vmatmul.mubr.f32.gmra.mrb[0].mxu0 %v3196
      %v3382 = vpop.f32.mrb[0].mxu0
      %v3383 = vadd.f32 0.0, %v3382
      %v3384 = vpop.f32.mrb[0].mxu0
      %3385 = vmatprep.mubr.f32.mxu0 0.0
      %3386 = vmatmul.mubr.f32.gmra.mrb[0].mxu0 %v3199
      %v3387 = vpop.f32.mrb[0].mxu0
      %v3388 = vadd.f32 0.0, %v3387
      %v3389 = vpop.f32.mrb[0].mxu0
      %3390 = vmatprep.mubr.f32.mxu0 0.0
      %3391 = vmatmul.mubr.f32.gmra.mrb[0].mxu0 %v3202
      %v3392 = vpop.f32.mrb[0].mxu0
      %v3393 = vadd.f32 0.0, %v3392
      %v3394 = vpop.f32.mrb[0].mxu0
      %3395 = vmatprep.mubr.f32.mxu0 0.0
      %3396 = vmatmul.mubr.f32.gmra.mrb[0].mxu0 %v3205
      %v3397 = vpop.f32.mrb[0].mxu0
      %v3398 = vadd.f32 0.0, %v3397
      %v3399 = vpop.f32.mrb[0].mxu0
      %3400 = vmatprep.mubr.f32.mxu0 0.0
      %3401 = vmatmul.mubr.f32.gmra.mrb[0].mxu0 %v3208
      %v3402 = vpop.f32.mrb[0].mxu0
      %v3403 = vadd.f32 0.0, %v3402
      %v3404 = vpop.f32.mrb[0].mxu0
      %3405 = vmatprep.mubr.f32.mxu0 0.0
      %3406 = vmatmul.mubr.f32.gmra.mrb[0].mxu0 %v3211
      %v3407 = vpop.f32.mrb[0].mxu0
      %v3408 = vadd.f32 0.0, %v3407
      %v3409 = vpop.f32.mrb[0].mxu0
      %3410 = vmatprep.mubr.f32.mxu0 0.0
      %3411 = vmatmul.mubr.f32.gmra.mrb[0].mxu0 %v3214
      %v3412 = vpop.f32.mrb[0].mxu0
      %v3413 = vadd.f32 0.0, %v3412
      %v3414 = vpop.f32.mrb[0].mxu0
      %3415 = vmatprep.mubr.f32.mxu0 0.0
      %3416 = vmatmul.mubr.f32.gmra.mrb[0].mxu0 %v3217
      %v3417 = vpop.f32.mrb[0].mxu0
      %v3418 = vadd.f32 0.0, %v3417
      %v3419 = vpop.f32.mrb[0].mxu0
      %3420 = vmatprep.mubr.f32.mxu0 0.0
      %3421 = vmatmul.mubr.f32.gmra.mrb[0].mxu0 %v3220
      %v3422 = vpop.f32.mrb[0].mxu0
      %v3423 = vadd.f32 0.0, %v3422
      %v3424 = vpop.f32.mrb[0].mxu0
      %3425 = vmatprep.mubr.f32.mxu0 0.0
      %3426 = vmatmul.mubr.f32.gmra.mrb[0].mxu0 %v3223
      %v3427 = vpop.f32.mrb[0].mxu0
      %v3428 = vadd.f32 0.0, %v3427
      %v3429 = vpop.f32.mrb[0].mxu0
      %3430 = vmatprep.mubr.f32.mxu0 0.0
      %3431 = vmatmul.mubr.f32.gmra.mrb[0].mxu0 %v3226
      %v3432 = vpop.f32.mrb[0].mxu0
      %v3433 = vadd.f32 0.0, %v3432
      %v3434 = vpop.f32.mrb[0].mxu0
      %3435 = vmatprep.mubr.f32.mxu0 0.0
      %3436 = vmatmul.mubr.f32.gmra.mrb[0].mxu0 %v3229
      %v3437 = vpop.f32.mrb[0].mxu0
      %v3438 = vadd.f32 0.0, %v3437
      %v3439 = vpop.f32.mrb[0].mxu0
      %3440 = vmatprep.mubr.f32.mxu0 0.0
      %3441 = vmatmul.mubr.f32.gmra.mrb[0].mxu0 %v3232
      %v3442 = vpop.f32.mrb[0].mxu0
      %v3443 = vadd.f32 0.0, %v3442
      %v3444 = vpop.f32.mrb[0].mxu0
      %3445 = vmatprep.mubr.f32.mxu0 0.0
      %3446 = vmatmul.mubr.f32.gmra.mrb[0].mxu0 %v3235
      %v3447 = vpop.f32.mrb[0].mxu0
      %v3448 = vadd.f32 0.0, %v3447
      %v3449 = vpop.f32.mrb[0].mxu0
      %3450 = vmatprep.mubr.f32.mxu0 0.0
      %3451 = vmatmul.mubr.f32.gmra.mrb[0].mxu0 %v3238
      %v3452 = vpop.f32.mrb[0].mxu0
      %v3453 = vadd.f32 0.0, %v3452
      %v3454 = vpop.f32.mrb[0].mxu0
      %3455 = vmatprep.mubr.f32.mxu0 0.0
      %3456 = vmatmul.mubr.f32.gmra.mrb[0].mxu0 %v3241
      %v3457 = vpop.f32.mrb[0].mxu0
      %v3458 = vadd.f32 0.0, %v3457
      %v3459 = vpop.f32.mrb[0].mxu0
      %3460 = vmatprep.mubr.f32.mxu0 0.0
      %3461 = vmatmul.mubr.f32.gmra.mrb[0].mxu0 %v3244
      %v3462 = vpop.f32.mrb[0].mxu0
      %v3463 = vadd.f32 0.0, %v3462
      %v3464 = vpop.f32.mrb[0].mxu0
      %3465 = vmatprep.mubr.f32.mxu0 0.0
      %3466 = vmatmul.mubr.f32.gmra.mrb[0].mxu0 %v3247
      %v3467 = vpop.f32.mrb[0].mxu0
      %v3468 = vadd.f32 0.0, %v3467
      %v3469 = vpop.f32.mrb[0].mxu0
      %3470 = vmatprep.mubr.f32.mxu0 0.0
      %3471 = vmatmul.mubr.f32.gmra.mrb[0].mxu0 %v3250
      %v3472 = vpop.f32.mrb[0].mxu0
      %v3473 = vadd.f32 0.0, %v3472
      %v3474 = vpop.f32.mrb[0].mxu0
      %3475 = vmatprep.mubr.f32.mxu0 0.0
      %3476 = vmatmul.mubr.f32.gmra.mrb[0].mxu0 %v3253
      %v3477 = vpop.f32.mrb[0].mxu0
      %v3478 = vadd.f32 0.0, %v3477
      %v3479 = vpop.f32.mrb[0].mxu0
      %3480 = vmatprep.mubr.f32.mxu0 0.0
      %3481 = vmatmul.mubr.f32.gmra.mrb[0].mxu0 %v3256
      %v3482 = vpop.f32.mrb[0].mxu0
      %v3483 = vadd.f32 0.0, %v3482
      %v3484 = vpop.f32.mrb[0].mxu0
      %3485 = vdwg.mxu0
      %v3486 = vadd.f32 %v3097, %v3328
      %v3487 = vadd.f32 %v3098, %v3333
      %v3488 = vadd.f32 %v3099, %v3338
      %v3489 = vadd.f32 %v3100, %v3343
      %v3490 = vadd.f32 %v3101, %v3348
      %v3491 = vadd.f32 %v3102, %v3353
      %v3492 = vadd.f32 %v3103, %v3358
      %v3493 = vadd.f32 %v3104, %v3363
      %v3494 = vadd.f32 %v3105, %v3368
      %v3495 = vadd.f32 %v3106, %v3373
      %v3496 = vadd.f32 %v3107, %v3378
      %v3497 = vadd.f32 %v3108, %v3383
      %v3498 = vadd.f32 %v3109, %v3388
      %v3499 = vadd.f32 %v3110, %v3393
      %v3500 = vadd.f32 %v3111, %v3398
      %v3501 = vadd.f32 %v3112, %v3403
      %v3502 = vadd.f32 %v3113, %v3408
      %v3503 = vadd.f32 %v3114, %v3413
      %v3504 = vadd.f32 %v3115, %v3418
      %v3505 = vadd.f32 %v3116, %v3423
      %v3506 = vadd.f32 %v3117, %v3428
      %v3507 = vadd.f32 %v3118, %v3433
      %v3508 = vadd.f32 %v3119, %v3438
      %v3509 = vadd.f32 %v3120, %v3443
      %v3510 = vadd.f32 %v3121, %v3448
      %v3511 = vadd.f32 %v3122, %v3453
      %v3512 = vadd.f32 %v3123, %v3458
      %v3513 = vadd.f32 %v3124, %v3463
      %v3514 = vadd.f32 %v3125, %v3468
      %v3515 = vadd.f32 %v3126, %v3473
      %v3516 = vadd.f32 %v3127, %v3478
      %v3517 = vadd.f32 %v3128, %v3483
      %v3518 = vld [vmem:[%s2739 + $0x2] sm:$0xff]
      %v3519 = vld [vmem:[%s2739 + $0xa] sm:$0xff]
      %v3520 = vld [vmem:[%s2739 + $0x1a] sm:$0xff]
      %v3521 = vld [vmem:[%s2739 + $0x22] sm:$0xff]
      %v3522 = vld [vmem:[%s2739 + $0x32] sm:$0xff]
      %v3523 = vld [vmem:[%s2739 + $0x3a] sm:$0xff]
      %v3524 = vld [vmem:[%s2739 + $0x4a] sm:$0xff]
      %v3525 = vld [vmem:[%s2739 + $0x52] sm:$0xff]
      %v3526 = vld [vmem:[%s2739 + $0x62] sm:$0xff]
      %v3527 = vld [vmem:[%s2739 + $0x6a] sm:$0xff]
      %v3528 = vld [vmem:[%s2739 + $0x7a] sm:$0xff]
      %v3529 = vld [vmem:[%s2739 + $0x82] sm:$0xff]
      %v3530 = vld [vmem:[%s2739 + $0x92] sm:$0xff]
      %v3531 = vld [vmem:[%s2739 + $0x9a] sm:$0xff]
      %v3532 = vld [vmem:[%s2739 + $0xaa] sm:$0xff]
      %v3533 = vld [vmem:[%s2739 + $0xb2] sm:$0xff]
      %v3534 = vld [vmem:[%s2739 + $0xc2] sm:$0xff]
      %v3535 = vld [vmem:[%s2739 + $0xca] sm:$0xff]
      %v3536 = vld [vmem:[%s2739 + $0xda] sm:$0xff]
      %v3537 = vld [vmem:[%s2739 + $0xe2] sm:$0xff]
      %v3538 = vld [vmem:[%s2739 + $0xf2] sm:$0xff]
      %v3539 = vld [vmem:[%s2739 + $0xfa] sm:$0xff]
      %v3540 = vld [vmem:[%s2739 + $0x10a] sm:$0xff]
      %v3541 = vld [vmem:[%s2739 + $0x112] sm:$0xff]
      %v3542 = vld [vmem:[%s2739 + $0x122] sm:$0xff]
      %v3543 = vld [vmem:[%s2739 + $0x12a] sm:$0xff]
      %v3544 = vld [vmem:[%s2739 + $0x13a] sm:$0xff]
      %v3545 = vld [vmem:[%s2739 + $0x142] sm:$0xff]
      %v3546 = vld [vmem:[%s2739 + $0x152] sm:$0xff]
      %v3547 = vld [vmem:[%s2739 + $0x15a] sm:$0xff]
      %v3548 = vld [vmem:[%s2739 + $0x16a] sm:$0xff]
      %v3549 = vld [vmem:[%s2739 + $0x172] sm:$0xff]
      %v3550 = vld [vmem:[%s1 + $0x20] sm:$0xf]
      %v3552 = vsel %vm279, %v3518, 0
      %v3555 = vsel %vm279, %v3519, 0
      %v3558 = vsel %vm279, %v3520, 0
      %v3561 = vsel %vm279, %v3521, 0
      %v3564 = vsel %vm279, %v3522, 0
      %v3567 = vsel %vm279, %v3523, 0
      %v3570 = vsel %vm279, %v3524, 0
      %v3573 = vsel %vm279, %v3525, 0
      %v3576 = vsel %vm279, %v3526, 0
      %v3579 = vsel %vm279, %v3527, 0
      %v3582 = vsel %vm279, %v3528, 0
      %v3585 = vsel %vm279, %v3529, 0
      %v3588 = vsel %vm279, %v3530, 0
      %v3591 = vsel %vm279, %v3531, 0
      %v3594 = vsel %vm279, %v3532, 0
      %v3597 = vsel %vm279, %v3533, 0
      %v3600 = vsel %vm279, %v3534, 0
      %v3603 = vsel %vm279, %v3535, 0
      %v3606 = vsel %vm279, %v3536, 0
      %v3609 = vsel %vm279, %v3537, 0
      %v3612 = vsel %vm279, %v3538, 0
      %v3615 = vsel %vm279, %v3539, 0
      %v3618 = vsel %vm279, %v3540, 0
      %v3621 = vsel %vm279, %v3541, 0
      %v3624 = vsel %vm279, %v3542, 0
      %v3627 = vsel %vm279, %v3543, 0
      %v3630 = vsel %vm279, %v3544, 0
      %v3633 = vsel %vm279, %v3545, 0
      %v3636 = vsel %vm279, %v3546, 0
      %v3639 = vsel %vm279, %v3547, 0
      %v3642 = vsel %vm279, %v3548, 0
      %v3645 = vsel %vm279, %v3549, 0
      %v3648 = vsel %vm630, %v3550, 0
      %3650 = vmatprep.subr.mxu0 0.0
      %3651 = vmatpush1.msra.mxu0 %v3648
      %3652 = vmatprep.subr.mxu0 0.0
      %3653 = vmatpush1.msra.mxu0 0.0
      %3654 = vmatprep.subr.mxu0 0.0
      %3655 = vmatpush1.msra.mxu0 0.0
      %3656 = vmatprep.subr.mxu0 0.0
      %3657 = vmatpush1.msra.mxu0 0.0
      %3658 = vmatprep.subr.mxu0 0.0
      %3659 = vmatpush1.msra.mxu0 0.0
      %3660 = vmatprep.subr.mxu0 0.0
      %3661 = vmatpush1.msra.mxu0 0.0
      %3662 = vmatprep.subr.mxu0 0.0
      %3663 = vmatpush1.msra.mxu0 0.0
      %3664 = vmatprep.subr.mxu0 0.0
      %3665 = vmatpush1.msra.mxu0 0.0
      %3666 = vmatprep.subr.mxu0 0.0
      %3667 = vmatpush1.msra.mxu0 0.0
      %3668 = vmatprep.subr.mxu0 0.0
      %3669 = vmatpush1.msra.mxu0 0.0
      %3670 = vmatprep.subr.mxu0 0.0
      %3671 = vmatpush1.msra.mxu0 0.0
      %3672 = vmatprep.subr.mxu0 0.0
      %3673 = vmatpush1.msra.mxu0 0.0
      %3674 = vmatprep.subr.mxu0 0.0
      %3675 = vmatpush1.msra.mxu0 0.0
      %3676 = vmatprep.subr.mxu0 0.0
      %3677 = vmatpush1.msra.mxu0 0.0
      %3678 = vmatprep.subr.mxu0 0.0
      %3679 = vmatpush1.msra.mxu0 0.0
      %3680 = vmatprep.subr.mxu0 0.0
      %3681 = vmatpush1.msra.mxu0 0.0
      %3682 = vmatprep.subr.mxu0 0.0
      %3683 = vmatpush1.msra.mxu0 0.0
      %3684 = vmatprep.subr.mxu0 0.0
      %3685 = vmatpush1.msra.mxu0 0.0
      %3686 = vmatprep.subr.mxu0 0.0
      %3687 = vmatpush1.msra.mxu0 0.0
      %3688 = vmatprep.subr.mxu0 0.0
      %3689 = vmatpush1.msra.mxu0 0.0
      %3690 = vmatprep.subr.mxu0 0.0
      %3691 = vmatpush1.msra.mxu0 0.0
      %3692 = vmatprep.subr.mxu0 0.0
      %3693 = vmatpush1.msra.mxu0 0.0
      %3694 = vmatprep.subr.mxu0 0.0
      %3695 = vmatpush1.msra.mxu0 0.0
      %3696 = vmatprep.subr.mxu0 0.0
      %3697 = vmatpush1.msra.mxu0 0.0
      %3698 = vmatprep.subr.mxu0 0.0
      %3699 = vmatpush1.msra.mxu0 0.0
      %3700 = vmatprep.subr.mxu0 0.0
      %3701 = vmatpush1.msra.mxu0 0.0
      %3702 = vmatprep.subr.mxu0 0.0
      %3703 = vmatpush1.msra.mxu0 0.0
      %3704 = vmatprep.subr.mxu0 0.0
      %3705 = vmatpush1.msra.mxu0 0.0
      %3706 = vmatprep.subr.mxu0 0.0
      %3707 = vmatpush1.msra.mxu0 0.0
      %3708 = vmatprep.subr.mxu0 0.0
      %3709 = vmatpush1.msra.mxu0 0.0
      %3710 = vmatprep.subr.mxu0 0.0
      %3711 = vmatpush1.msra.mxu0 0.0
      %3712 = vmatprep.subr.mxu0 0.0
      %3713 = vmatpush1.msra.mxu0 0.0
      %3714 = vmatprep.mubr.f32.mxu0 0.0
      %3715 = vmatmul.mubr.f32.gmra.mrb[0].mxu0 %v3552
      %v3716 = vpop.f32.mrb[0].mxu0
      %v3717 = vadd.f32 0.0, %v3716
      %v3718 = vpop.f32.mrb[0].mxu0
      %3719 = vmatprep.mubr.f32.mxu0 0.0
      %3720 = vmatmul.mubr.f32.gmra.mrb[0].mxu0 %v3555
      %v3721 = vpop.f32.mrb[0].mxu0
      %v3722 = vadd.f32 0.0, %v3721
      %v3723 = vpop.f32.mrb[0].mxu0
      %3724 = vmatprep.mubr.f32.mxu0 0.0
      %3725 = vmatmul.mubr.f32.gmra.mrb[0].mxu0 %v3558
      %v3726 = vpop.f32.mrb[0].mxu0
      %v3727 = vadd.f32 0.0, %v3726
      %v3728 = vpop.f32.mrb[0].mxu0
      %3729 = vmatprep.mubr.f32.mxu0 0.0
      %3730 = vmatmul.mubr.f32.gmra.mrb[0].mxu0 %v3561
      %v3731 = vpop.f32.mrb[0].mxu0
      %v3732 = vadd.f32 0.0, %v3731
      %v3733 = vpop.f32.mrb[0].mxu0
      %3734 = vmatprep.mubr.f32.mxu0 0.0
      %3735 = vmatmul.mubr.f32.gmra.mrb[0].mxu0 %v3564
      %v3736 = vpop.f32.mrb[0].mxu0
      %v3737 = vadd.f32 0.0, %v3736
      %v3738 = vpop.f32.mrb[0].mxu0
      %3739 = vmatprep.mubr.f32.mxu0 0.0
      %3740 = vmatmul.mubr.f32.gmra.mrb[0].mxu0 %v3567
      %v3741 = vpop.f32.mrb[0].mxu0
      %v3742 = vadd.f32 0.0, %v3741
      %v3743 = vpop.f32.mrb[0].mxu0
      %3744 = vmatprep.mubr.f32.mxu0 0.0
      %3745 = vmatmul.mubr.f32.gmra.mrb[0].mxu0 %v3570
      %v3746 = vpop.f32.mrb[0].mxu0
      %v3747 = vadd.f32 0.0, %v3746
      %v3748 = vpop.f32.mrb[0].mxu0
      %3749 = vmatprep.mubr.f32.mxu0 0.0
      %3750 = vmatmul.mubr.f32.gmra.mrb[0].mxu0 %v3573
      %v3751 = vpop.f32.mrb[0].mxu0
      %v3752 = vadd.f32 0.0, %v3751
      %v3753 = vpop.f32.mrb[0].mxu0
      %3754 = vmatprep.mubr.f32.mxu0 0.0
      %3755 = vmatmul.mubr.f32.gmra.mrb[0].mxu0 %v3576
      %v3756 = vpop.f32.mrb[0].mxu0
      %v3757 = vadd.f32 0.0, %v3756
      %v3758 = vpop.f32.mrb[0].mxu0
      %3759 = vmatprep.mubr.f32.mxu0 0.0
      %3760 = vmatmul.mubr.f32.gmra.mrb[0].mxu0 %v3579
      %v3761 = vpop.f32.mrb[0].mxu0
      %v3762 = vadd.f32 0.0, %v3761
      %v3763 = vpop.f32.mrb[0].mxu0
      %3764 = vmatprep.mubr.f32.mxu0 0.0
      %3765 = vmatmul.mubr.f32.gmra.mrb[0].mxu0 %v3582
      %v3766 = vpop.f32.mrb[0].mxu0
      %v3767 = vadd.f32 0.0, %v3766
      %v3768 = vpop.f32.mrb[0].mxu0
      %3769 = vmatprep.mubr.f32.mxu0 0.0
      %3770 = vmatmul.mubr.f32.gmra.mrb[0].mxu0 %v3585
      %v3771 = vpop.f32.mrb[0].mxu0
      %v3772 = vadd.f32 0.0, %v3771
      %v3773 = vpop.f32.mrb[0].mxu0
      %3774 = vmatprep.mubr.f32.mxu0 0.0
      %3775 = vmatmul.mubr.f32.gmra.mrb[0].mxu0 %v3588
      %v3776 = vpop.f32.mrb[0].mxu0
      %v3777 = vadd.f32 0.0, %v3776
      %v3778 = vpop.f32.mrb[0].mxu0
      %3779 = vmatprep.mubr.f32.mxu0 0.0
      %3780 = vmatmul.mubr.f32.gmra.mrb[0].mxu0 %v3591
      %v3781 = vpop.f32.mrb[0].mxu0
      %v3782 = vadd.f32 0.0, %v3781
      %v3783 = vpop.f32.mrb[0].mxu0
      %3784 = vmatprep.mubr.f32.mxu0 0.0
      %3785 = vmatmul.mubr.f32.gmra.mrb[0].mxu0 %v3594
      %v3786 = vpop.f32.mrb[0].mxu0
      %v3787 = vadd.f32 0.0, %v3786
      %v3788 = vpop.f32.mrb[0].mxu0
      %3789 = vmatprep.mubr.f32.mxu0 0.0
      %3790 = vmatmul.mubr.f32.gmra.mrb[0].mxu0 %v3597
      %v3791 = vpop.f32.mrb[0].mxu0
      %v3792 = vadd.f32 0.0, %v3791
      %v3793 = vpop.f32.mrb[0].mxu0
      %3794 = vmatprep.mubr.f32.mxu0 0.0
      %3795 = vmatmul.mubr.f32.gmra.mrb[0].mxu0 %v3600
      %v3796 = vpop.f32.mrb[0].mxu0
      %v3797 = vadd.f32 0.0, %v3796
      %v3798 = vpop.f32.mrb[0].mxu0
      %3799 = vmatprep.mubr.f32.mxu0 0.0
      %3800 = vmatmul.mubr.f32.gmra.mrb[0].mxu0 %v3603
      %v3801 = vpop.f32.mrb[0].mxu0
      %v3802 = vadd.f32 0.0, %v3801
      %v3803 = vpop.f32.mrb[0].mxu0
      %3804 = vmatprep.mubr.f32.mxu0 0.0
      %3805 = vmatmul.mubr.f32.gmra.mrb[0].mxu0 %v3606
      %v3806 = vpop.f32.mrb[0].mxu0
      %v3807 = vadd.f32 0.0, %v3806
      %v3808 = vpop.f32.mrb[0].mxu0
      %3809 = vmatprep.mubr.f32.mxu0 0.0
      %3810 = vmatmul.mubr.f32.gmra.mrb[0].mxu0 %v3609
      %v3811 = vpop.f32.mrb[0].mxu0
      %v3812 = vadd.f32 0.0, %v3811
      %v3813 = vpop.f32.mrb[0].mxu0
      %3814 = vmatprep.mubr.f32.mxu0 0.0
      %3815 = vmatmul.mubr.f32.gmra.mrb[0].mxu0 %v3612
      %v3816 = vpop.f32.mrb[0].mxu0
      %v3817 = vadd.f32 0.0, %v3816
      %v3818 = vpop.f32.mrb[0].mxu0
      %3819 = vmatprep.mubr.f32.mxu0 0.0
      %3820 = vmatmul.mubr.f32.gmra.mrb[0].mxu0 %v3615
      %v3821 = vpop.f32.mrb[0].mxu0
      %v3822 = vadd.f32 0.0, %v3821
      %v3823 = vpop.f32.mrb[0].mxu0
      %3824 = vmatprep.mubr.f32.mxu0 0.0
      %3825 = vmatmul.mubr.f32.gmra.mrb[0].mxu0 %v3618
      %v3826 = vpop.f32.mrb[0].mxu0
      %v3827 = vadd.f32 0.0, %v3826
      %v3828 = vpop.f32.mrb[0].mxu0
      %3829 = vmatprep.mubr.f32.mxu0 0.0
      %3830 = vmatmul.mubr.f32.gmra.mrb[0].mxu0 %v3621
      %v3831 = vpop.f32.mrb[0].mxu0
      %v3832 = vadd.f32 0.0, %v3831
      %v3833 = vpop.f32.mrb[0].mxu0
      %3834 = vmatprep.mubr.f32.mxu0 0.0
      %3835 = vmatmul.mubr.f32.gmra.mrb[0].mxu0 %v3624
      %v3836 = vpop.f32.mrb[0].mxu0
      %v3837 = vadd.f32 0.0, %v3836
      %v3838 = vpop.f32.mrb[0].mxu0
      %3839 = vmatprep.mubr.f32.mxu0 0.0
      %3840 = vmatmul.mubr.f32.gmra.mrb[0].mxu0 %v3627
      %v3841 = vpop.f32.mrb[0].mxu0
      %v3842 = vadd.f32 0.0, %v3841
      %v3843 = vpop.f32.mrb[0].mxu0
      %3844 = vmatprep.mubr.f32.mxu0 0.0
      %3845 = vmatmul.mubr.f32.gmra.mrb[0].mxu0 %v3630
      %v3846 = vpop.f32.mrb[0].mxu0
      %v3847 = vadd.f32 0.0, %v3846
      %v3848 = vpop.f32.mrb[0].mxu0
      %3849 = vmatprep.mubr.f32.mxu0 0.0
      %3850 = vmatmul.mubr.f32.gmra.mrb[0].mxu0 %v3633
      %v3851 = vpop.f32.mrb[0].mxu0
      %v3852 = vadd.f32 0.0, %v3851
      %v3853 = vpop.f32.mrb[0].mxu0
      %3854 = vmatprep.mubr.f32.mxu0 0.0
      %3855 = vmatmul.mubr.f32.gmra.mrb[0].mxu0 %v3636
      %v3856 = vpop.f32.mrb[0].mxu0
      %v3857 = vadd.f32 0.0, %v3856
      %v3858 = vpop.f32.mrb[0].mxu0
      %3859 = vmatprep.mubr.f32.mxu0 0.0
      %3860 = vmatmul.mubr.f32.gmra.mrb[0].mxu0 %v3639
      %v3861 = vpop.f32.mrb[0].mxu0
      %v3862 = vadd.f32 0.0, %v3861
      %v3863 = vpop.f32.mrb[0].mxu0
      %3864 = vmatprep.mubr.f32.mxu0 0.0
      %3865 = vmatmul.mubr.f32.gmra.mrb[0].mxu0 %v3642
      %v3866 = vpop.f32.mrb[0].mxu0
      %v3867 = vadd.f32 0.0, %v3866
      %v3868 = vpop.f32.mrb[0].mxu0
      %3869 = vmatprep.mubr.f32.mxu0 0.0
      %3870 = vmatmul.mubr.f32.gmra.mrb[0].mxu0 %v3645
      %v3871 = vpop.f32.mrb[0].mxu0
      %v3872 = vadd.f32 0.0, %v3871
      %v3873 = vpop.f32.mrb[0].mxu0
      %3874 = vdwg.mxu0
      %v3875 = vadd.f32 %v3486, %v3717
      %v3876 = vadd.f32 %v3487, %v3722
      %v3877 = vadd.f32 %v3488, %v3727
      %v3878 = vadd.f32 %v3489, %v3732
      %v3879 = vadd.f32 %v3490, %v3737
      %v3880 = vadd.f32 %v3491, %v3742
      %v3881 = vadd.f32 %v3492, %v3747
      %v3882 = vadd.f32 %v3493, %v3752
      %v3883 = vadd.f32 %v3494, %v3757
      %v3884 = vadd.f32 %v3495, %v3762
      %v3885 = vadd.f32 %v3496, %v3767
      %v3886 = vadd.f32 %v3497, %v3772
      %v3887 = vadd.f32 %v3498, %v3777
      %v3888 = vadd.f32 %v3499, %v3782
      %v3889 = vadd.f32 %v3500, %v3787
      %v3890 = vadd.f32 %v3501, %v3792
      %v3891 = vadd.f32 %v3502, %v3797
      %v3892 = vadd.f32 %v3503, %v3802
      %v3893 = vadd.f32 %v3504, %v3807
      %v3894 = vadd.f32 %v3505, %v3812
      %v3895 = vadd.f32 %v3506, %v3817
      %v3896 = vadd.f32 %v3507, %v3822
      %v3897 = vadd.f32 %v3508, %v3827
      %v3898 = vadd.f32 %v3509, %v3832
      %v3899 = vadd.f32 %v3510, %v3837
      %v3900 = vadd.f32 %v3511, %v3842
      %v3901 = vadd.f32 %v3512, %v3847
      %v3902 = vadd.f32 %v3513, %v3852
      %v3903 = vadd.f32 %v3514, %v3857
      %v3904 = vadd.f32 %v3515, %v3862
      %v3905 = vadd.f32 %v3516, %v3867
      %v3906 = vadd.f32 %v3517, %v3872
      %v3907 = vld [vmem:[%s2] sm:$0x1]
      %v3909 = vlaneseq
      %v3910 = vshrl.u32 %v3909, 7
      %v3911 = vsub.s32 0, %v3910
      %v3912 = vrot.slane %v3907, %v3911
      %v3914 = vadd.f32 %v3875, %v3912
      %v3915 = vadd.f32 %v3876, %v3912
      %v3916 = vadd.f32 %v3877, %v3912
      %v3917 = vadd.f32 %v3878, %v3912
      %v3918 = vadd.f32 %v3879, %v3912
      %v3919 = vadd.f32 %v3880, %v3912
      %v3920 = vadd.f32 %v3881, %v3912
      %v3921 = vadd.f32 %v3882, %v3912
      %v3922 = vadd.f32 %v3883, %v3912
      %v3923 = vadd.f32 %v3884, %v3912
      %v3924 = vadd.f32 %v3885, %v3912
      %v3925 = vadd.f32 %v3886, %v3912
      %v3926 = vadd.f32 %v3887, %v3912
      %v3927 = vadd.f32 %v3888, %v3912
      %v3928 = vadd.f32 %v3889, %v3912
      %v3929 = vadd.f32 %v3890, %v3912
      %v3930 = vadd.f32 %v3891, %v3912
      %v3931 = vadd.f32 %v3892, %v3912
      %v3932 = vadd.f32 %v3893, %v3912
      %v3933 = vadd.f32 %v3894, %v3912
      %v3934 = vadd.f32 %v3895, %v3912
      %v3935 = vadd.f32 %v3896, %v3912
      %v3936 = vadd.f32 %v3897, %v3912
      %v3937 = vadd.f32 %v3898, %v3912
      %v3938 = vadd.f32 %v3899, %v3912
      %v3939 = vadd.f32 %v3900, %v3912
      %v3940 = vadd.f32 %v3901, %v3912
      %v3941 = vadd.f32 %v3902, %v3912
      %v3942 = vadd.f32 %v3903, %v3912
      %v3943 = vadd.f32 %v3904, %v3912
      %v3944 = vadd.f32 %v3905, %v3912
      %v3945 = vadd.f32 %v3906, %v3912
      %v3946 = vmax.f32 %v3914, 0.0
      %v3947 = vmax.f32 %v3915, 0.0
      %v3948 = vmax.f32 %v3916, 0.0
      %v3949 = vmax.f32 %v3917, 0.0
      %v3950 = vmax.f32 %v3918, 0.0
      %v3951 = vmax.f32 %v3919, 0.0
      %v3952 = vmax.f32 %v3920, 0.0
      %v3953 = vmax.f32 %v3921, 0.0
      %v3954 = vmax.f32 %v3922, 0.0
      %v3955 = vmax.f32 %v3923, 0.0
      %v3956 = vmax.f32 %v3924, 0.0
      %v3957 = vmax.f32 %v3925, 0.0
      %v3958 = vmax.f32 %v3926, 0.0
      %v3959 = vmax.f32 %v3927, 0.0
      %v3960 = vmax.f32 %v3928, 0.0
      %v3961 = vmax.f32 %v3929, 0.0
      %v3962 = vmax.f32 %v3930, 0.0
      %v3963 = vmax.f32 %v3931, 0.0
      %v3964 = vmax.f32 %v3932, 0.0
      %v3965 = vmax.f32 %v3933, 0.0
      %v3966 = vmax.f32 %v3934, 0.0
      %v3967 = vmax.f32 %v3935, 0.0
      %v3968 = vmax.f32 %v3936, 0.0
      %v3969 = vmax.f32 %v3937, 0.0
      %v3970 = vmax.f32 %v3938, 0.0
      %v3971 = vmax.f32 %v3939, 0.0
      %v3972 = vmax.f32 %v3940, 0.0
      %v3973 = vmax.f32 %v3941, 0.0
      %v3974 = vmax.f32 %v3942, 0.0
      %v3975 = vmax.f32 %v3943, 0.0
      %v3976 = vmax.f32 %v3944, 0.0
      %v3977 = vmax.f32 %v3945, 0.0
      %s3978 = scalar_lea.vmem [#allocation3], 24
      %3979 = vst.msk [vmem:[%s3978 + $0x1] sm:$0xff] %vm325, %v3946
      %3980 = vst.msk [vmem:[%s3978 + $0x9] sm:$0xff] %vm325, %v3947
      %3981 = vst.msk [vmem:[%s3978 + $0x19] sm:$0xff] %vm325, %v3948
      %3982 = vst.msk [vmem:[%s3978 + $0x21] sm:$0xff] %vm325, %v3949
      %3983 = vst.msk [vmem:[%s3978 + $0x31] sm:$0xff] %vm325, %v3950
      %3984 = vst.msk [vmem:[%s3978 + $0x39] sm:$0xff] %vm325, %v3951
      %3985 = vst.msk [vmem:[%s3978 + $0x49] sm:$0xff] %vm325, %v3952
      %3986 = vst.msk [vmem:[%s3978 + $0x51] sm:$0xff] %vm325, %v3953
      %3987 = vst.msk [vmem:[%s3978 + $0x61] sm:$0xff] %vm325, %v3954
      %3988 = vst.msk [vmem:[%s3978 + $0x69] sm:$0xff] %vm325, %v3955
      %3989 = vst.msk [vmem:[%s3978 + $0x79] sm:$0xff] %vm325, %v3956
      %3990 = vst.msk [vmem:[%s3978 + $0x81] sm:$0xff] %vm325, %v3957
      %3991 = vst.msk [vmem:[%s3978 + $0x91] sm:$0xff] %vm325, %v3958
      %3992 = vst.msk [vmem:[%s3978 + $0x99] sm:$0xff] %vm325, %v3959
      %3993 = vst.msk [vmem:[%s3978 + $0xa9] sm:$0xff] %vm325, %v3960
      %3994 = vst.msk [vmem:[%s3978 + $0xb1] sm:$0xff] %vm325, %v3961
      %3995 = vst.msk [vmem:[%s3978 + $0xc1] sm:$0xff] %vm325, %v3962
      %3996 = vst.msk [vmem:[%s3978 + $0xc9] sm:$0xff] %vm325, %v3963
      %3997 = vst.msk [vmem:[%s3978 + $0xd9] sm:$0xff] %vm325, %v3964
      %3998 = vst.msk [vmem:[%s3978 + $0xe1] sm:$0xff] %vm325, %v3965
      %3999 = vst.msk [vmem:[%s3978 + $0xf1] sm:$0xff] %vm325, %v3966
      %4000 = vst.msk [vmem:[%s3978 + $0xf9] sm:$0xff] %vm325, %v3967
      %4001 = vst.msk [vmem:[%s3978 + $0x109] sm:$0xff] %vm325, %v3968
      %4002 = vst.msk [vmem:[%s3978 + $0x111] sm:$0xff] %vm325, %v3969
      %4003 = vst.msk [vmem:[%s3978 + $0x121] sm:$0xff] %vm325, %v3970
      %4004 = vst.msk [vmem:[%s3978 + $0x129] sm:$0xff] %vm325, %v3971
      %4005 = vst.msk [vmem:[%s3978 + $0x139] sm:$0xff] %vm325, %v3972
      %4006 = vst.msk [vmem:[%s3978 + $0x141] sm:$0xff] %vm325, %v3973
      %4007 = vst.msk [vmem:[%s3978 + $0x151] sm:$0xff] %vm325, %v3974
      %4008 = vst.msk [vmem:[%s3978 + $0x159] sm:$0xff] %vm325, %v3975
      %4009 = vst.msk [vmem:[%s3978 + $0x169] sm:$0xff] %vm325, %v3976
      %4010 = vst.msk [vmem:[%s3978 + $0x171] sm:$0xff] %vm325, %v3977
      %v4011 = vld [vmem:[#allocation3] sm:$0xff]
      %v4012 = vld [vmem:[#allocation3 + $0x8] sm:$0xff]
      %v4013 = vld [vmem:[#allocation3 + $0x18] sm:$0xff]
      %v4014 = vld [vmem:[#allocation3 + $0x20] sm:$0xff]
      %v4015 = vld [vmem:[#allocation3 + $0x30] sm:$0xff]
      %v4016 = vld [vmem:[#allocation3 + $0x38] sm:$0xff]
      %v4017 = vld [vmem:[#allocation3 + $0x48] sm:$0xff]
      %v4018 = vld [vmem:[#allocation3 + $0x50] sm:$0xff]
      %v4019 = vld [vmem:[#allocation3 + $0x60] sm:$0xff]
      %v4020 = vld [vmem:[#allocation3 + $0x68] sm:$0xff]
      %v4021 = vld [vmem:[#allocation3 + $0x78] sm:$0xff]
      %v4022 = vld [vmem:[#allocation3 + $0x80] sm:$0xff]
      %v4023 = vld [vmem:[#allocation3 + $0x90] sm:$0xff]
      %v4024 = vld [vmem:[#allocation3 + $0x98] sm:$0xff]
      %v4025 = vld [vmem:[#allocation3 + $0xa8] sm:$0xff]
      %v4026 = vld [vmem:[#allocation3 + $0xb0] sm:$0xff]
      %v4027 = vld [vmem:[#allocation3 + $0xc0] sm:$0xff]
      %v4028 = vld [vmem:[#allocation3 + $0xc8] sm:$0xff]
      %v4029 = vld [vmem:[#allocation3 + $0xd8] sm:$0xff]
      %v4030 = vld [vmem:[#allocation3 + $0xe0] sm:$0xff]
      %v4031 = vld [vmem:[#allocation3 + $0xf0] sm:$0xff]
      %v4032 = vld [vmem:[#allocation3 + $0xf8] sm:$0xff]
      %v4033 = vld [vmem:[#allocation3 + $0x108] sm:$0xff]
      %v4034 = vld [vmem:[#allocation3 + $0x110] sm:$0xff]
      %v4035 = vld [vmem:[#allocation3 + $0x120] sm:$0xff]
      %v4036 = vld [vmem:[#allocation3 + $0x128] sm:$0xff]
      %v4037 = vld [vmem:[#allocation3 + $0x138] sm:$0xff]
      %v4038 = vld [vmem:[#allocation3 + $0x140] sm:$0xff]
      %v4039 = vld [vmem:[#allocation3 + $0x150] sm:$0xff]
      %v4040 = vld [vmem:[#allocation3 + $0x158] sm:$0xff]
      %v4041 = vld [vmem:[#allocation3 + $0x168] sm:$0xff]
      %v4042 = vld [vmem:[#allocation3 + $0x170] sm:$0xff]
      %v4043 = vld [vmem:[%s3] sm:$0xff]
      %v4044 = vld [vmem:[#allocation3 + $0x1] sm:$0xff]
      %v4045 = vld [vmem:[#allocation3 + $0x9] sm:$0xff]
      %v4046 = vld [vmem:[#allocation3 + $0x19] sm:$0xff]
      %v4047 = vld [vmem:[#allocation3 + $0x21] sm:$0xff]
      %v4048 = vld [vmem:[#allocation3 + $0x31] sm:$0xff]
      %v4049 = vld [vmem:[#allocation3 + $0x39] sm:$0xff]
      %v4050 = vld [vmem:[#allocation3 + $0x49] sm:$0xff]
      %v4051 = vld [vmem:[#allocation3 + $0x51] sm:$0xff]
      %v4052 = vld [vmem:[#allocation3 + $0x61] sm:$0xff]
      %v4053 = vld [vmem:[#allocation3 + $0x69] sm:$0xff]
      %v4054 = vld [vmem:[#allocation3 + $0x79] sm:$0xff]
      %v4055 = vld [vmem:[#allocation3 + $0x81] sm:$0xff]
      %v4056 = vld [vmem:[#allocation3 + $0x91] sm:$0xff]
      %v4057 = vld [vmem:[#allocation3 + $0x99] sm:$0xff]
      %v4058 = vld [vmem:[#allocation3 + $0xa9] sm:$0xff]
      %v4059 = vld [vmem:[#allocation3 + $0xb1] sm:$0xff]
      %v4060 = vld [vmem:[#allocation3 + $0xc1] sm:$0xff]
      %v4061 = vld [vmem:[#allocation3 + $0xc9] sm:$0xff]
      %v4062 = vld [vmem:[#allocation3 + $0xd9] sm:$0xff]
      %v4063 = vld [vmem:[#allocation3 + $0xe1] sm:$0xff]
      %v4064 = vld [vmem:[#allocation3 + $0xf1] sm:$0xff]
      %v4065 = vld [vmem:[#allocation3 + $0xf9] sm:$0xff]
      %v4066 = vld [vmem:[#allocation3 + $0x109] sm:$0xff]
      %v4067 = vld [vmem:[#allocation3 + $0x111] sm:$0xff]
      %v4068 = vld [vmem:[#allocation3 + $0x121] sm:$0xff]
      %v4069 = vld [vmem:[#allocation3 + $0x129] sm:$0xff]
      %v4070 = vld [vmem:[#allocation3 + $0x139] sm:$0xff]
      %v4071 = vld [vmem:[#allocation3 + $0x141] sm:$0xff]
      %v4072 = vld [vmem:[#allocation3 + $0x151] sm:$0xff]
      %v4073 = vld [vmem:[#allocation3 + $0x159] sm:$0xff]
      %v4074 = vld [vmem:[#allocation3 + $0x169] sm:$0xff]
      %v4075 = vld [vmem:[#allocation3 + $0x171] sm:$0xff]
      %v4076 = vld [vmem:[%s3 + $0x8] sm:$0xff]
      %v4078 = vsel %vm325, %v4044, 0
      %v4081 = vsel %vm325, %v4045, 0
      %v4084 = vsel %vm325, %v4046, 0
      %v4087 = vsel %vm325, %v4047, 0
      %v4090 = vsel %vm325, %v4048, 0
      %v4093 = vsel %vm325, %v4049, 0
      %v4096 = vsel %vm325, %v4050, 0
      %v4099 = vsel %vm325, %v4051, 0
      %v4102 = vsel %vm325, %v4052, 0
      %v4105 = vsel %vm325, %v4053, 0
      %v4108 = vsel %vm325, %v4054, 0
      %v4111 = vsel %vm325, %v4055, 0
      %v4114 = vsel %vm325, %v4056, 0
      %v4117 = vsel %vm325, %v4057, 0
      %v4120 = vsel %vm325, %v4058, 0
      %v4123 = vsel %vm325, %v4059, 0
      %v4126 = vsel %vm325, %v4060, 0
      %v4129 = vsel %vm325, %v4061, 0
      %v4132 = vsel %vm325, %v4062, 0
      %v4135 = vsel %vm325, %v4063, 0
      %v4138 = vsel %vm325, %v4064, 0
      %v4141 = vsel %vm325, %v4065, 0
      %v4144 = vsel %vm325, %v4066, 0
      %v4147 = vsel %vm325, %v4067, 0
      %v4150 = vsel %vm325, %v4068, 0
      %v4153 = vsel %vm325, %v4069, 0
      %v4156 = vsel %vm325, %v4070, 0
      %v4159 = vsel %vm325, %v4071, 0
      %v4162 = vsel %vm325, %v4072, 0
      %v4165 = vsel %vm325, %v4073, 0
      %v4168 = vsel %vm325, %v4074, 0
      %v4171 = vsel %vm325, %v4075, 0
      %4173 = vmatprep.subr.mxu0 0.0
      %4174 = vmatpush1.msra.mxu0 %v4076
      %4175 = vmatprep.subr.mxu0 0.0
      %4176 = vmatpush1.msra.mxu0 0.0
      %4177 = vmatprep.subr.mxu0 0.0
      %4178 = vmatpush1.msra.mxu0 0.0
      %4179 = vmatprep.subr.mxu0 0.0
      %4180 = vmatpush1.msra.mxu0 0.0
      %4181 = vmatprep.subr.mxu0 0.0
      %4182 = vmatpush1.msra.mxu0 0.0
      %4183 = vmatprep.subr.mxu0 0.0
      %4184 = vmatpush1.msra.mxu0 0.0
      %4185 = vmatprep.subr.mxu0 0.0
      %4186 = vmatpush1.msra.mxu0 0.0
      %4187 = vmatprep.subr.mxu0 0.0
      %4188 = vmatpush1.msra.mxu0 0.0
      %4189 = vmatprep.subr.mxu0 0.0
      %4190 = vmatpush1.msra.mxu0 0.0
      %4191 = vmatprep.subr.mxu0 0.0
      %4192 = vmatpush1.msra.mxu0 0.0
      %4193 = vmatprep.subr.mxu0 0.0
      %4194 = vmatpush1.msra.mxu0 0.0
      %4195 = vmatprep.subr.mxu0 0.0
      %4196 = vmatpush1.msra.mxu0 0.0
      %4197 = vmatprep.subr.mxu0 0.0
      %4198 = vmatpush1.msra.mxu0 0.0
      %4199 = vmatprep.subr.mxu0 0.0
      %4200 = vmatpush1.msra.mxu0 0.0
      %4201 = vmatprep.subr.mxu0 0.0
      %4202 = vmatpush1.msra.mxu0 0.0
      %4203 = vmatprep.subr.mxu0 0.0
      %4204 = vmatpush1.msra.mxu0 0.0
      %4205 = vmatprep.subr.mxu0 0.0
      %4206 = vmatpush1.msra.mxu0 0.0
      %4207 = vmatprep.subr.mxu0 0.0
      %4208 = vmatpush1.msra.mxu0 0.0
      %4209 = vmatprep.subr.mxu0 0.0
      %4210 = vmatpush1.msra.mxu0 0.0
      %4211 = vmatprep.subr.mxu0 0.0
      %4212 = vmatpush1.msra.mxu0 0.0
      %4213 = vmatprep.subr.mxu0 0.0
      %4214 = vmatpush1.msra.mxu0 0.0
      %4215 = vmatprep.subr.mxu0 0.0
      %4216 = vmatpush1.msra.mxu0 0.0
      %4217 = vmatprep.subr.mxu0 0.0
      %4218 = vmatpush1.msra.mxu0 0.0
      %4219 = vmatprep.subr.mxu0 0.0
      %4220 = vmatpush1.msra.mxu0 0.0
      %4221 = vmatprep.subr.mxu0 0.0
      %4222 = vmatpush1.msra.mxu0 0.0
      %4223 = vmatprep.subr.mxu0 0.0
      %4224 = vmatpush1.msra.mxu0 0.0
      %4225 = vmatprep.subr.mxu0 0.0
      %4226 = vmatpush1.msra.mxu0 0.0
      %4227 = vmatprep.subr.mxu0 0.0
      %4228 = vmatpush1.msra.mxu0 0.0
      %4229 = vmatprep.subr.mxu0 0.0
      %4230 = vmatpush1.msra.mxu0 0.0
      %4231 = vmatprep.subr.mxu0 0.0
      %4232 = vmatpush1.msra.mxu0 0.0
      %4233 = vmatprep.subr.mxu0 0.0
      %4234 = vmatpush1.msra.mxu0 0.0
      %4235 = vmatprep.subr.mxu0 0.0
      %4236 = vmatpush1.msra.mxu0 0.0
      %4237 = vmatprep.mubr.f32.mxu0 0.0
      %4238 = vmatmul.mubr.f32.gmra.mrb[0].mxu0 %v4078
      %v4239 = vpop.f32.mrb[0].mxu0
      %v4240 = vadd.f32 0.0, %v4239
      %v4241 = vpop.f32.mrb[0].mxu0
      %4242 = vmatprep.mubr.f32.mxu0 0.0
      %4243 = vmatmul.mubr.f32.gmra.mrb[0].mxu0 %v4081
      %v4244 = vpop.f32.mrb[0].mxu0
      %v4245 = vadd.f32 0.0, %v4244
      %v4246 = vpop.f32.mrb[0].mxu0
      %4247 = vmatprep.mubr.f32.mxu0 0.0
      %4248 = vmatmul.mubr.f32.gmra.mrb[0].mxu0 %v4084
      %v4249 = vpop.f32.mrb[0].mxu0
      %v4250 = vadd.f32 0.0, %v4249
      %v4251 = vpop.f32.mrb[0].mxu0
      %4252 = vmatprep.mubr.f32.mxu0 0.0
      %4253 = vmatmul.mubr.f32.gmra.mrb[0].mxu0 %v4087
      %v4254 = vpop.f32.mrb[0].mxu0
      %v4255 = vadd.f32 0.0, %v4254
      %v4256 = vpop.f32.mrb[0].mxu0
      %4257 = vmatprep.mubr.f32.mxu0 0.0
      %4258 = vmatmul.mubr.f32.gmra.mrb[0].mxu0 %v4090
      %v4259 = vpop.f32.mrb[0].mxu0
      %v4260 = vadd.f32 0.0, %v4259
      %v4261 = vpop.f32.mrb[0].mxu0
      %4262 = vmatprep.mubr.f32.mxu0 0.0
      %4263 = vmatmul.mubr.f32.gmra.mrb[0].mxu0 %v4093
      %v4264 = vpop.f32.mrb[0].mxu0
      %v4265 = vadd.f32 0.0, %v4264
      %v4266 = vpop.f32.mrb[0].mxu0
      %4267 = vmatprep.mubr.f32.mxu0 0.0
      %4268 = vmatmul.mubr.f32.gmra.mrb[0].mxu0 %v4096
      %v4269 = vpop.f32.mrb[0].mxu0
      %v4270 = vadd.f32 0.0, %v4269
      %v4271 = vpop.f32.mrb[0].mxu0
      %4272 = vmatprep.mubr.f32.mxu0 0.0
      %4273 = vmatmul.mubr.f32.gmra.mrb[0].mxu0 %v4099
      %v4274 = vpop.f32.mrb[0].mxu0
      %v4275 = vadd.f32 0.0, %v4274
      %v4276 = vpop.f32.mrb[0].mxu0
      %4277 = vmatprep.mubr.f32.mxu0 0.0
      %4278 = vmatmul.mubr.f32.gmra.mrb[0].mxu0 %v4102
      %v4279 = vpop.f32.mrb[0].mxu0
      %v4280 = vadd.f32 0.0, %v4279
      %v4281 = vpop.f32.mrb[0].mxu0
      %4282 = vmatprep.mubr.f32.mxu0 0.0
      %4283 = vmatmul.mubr.f32.gmra.mrb[0].mxu0 %v4105
      %v4284 = vpop.f32.mrb[0].mxu0
      %v4285 = vadd.f32 0.0, %v4284
      %v4286 = vpop.f32.mrb[0].mxu0
      %4287 = vmatprep.mubr.f32.mxu0 0.0
      %4288 = vmatmul.mubr.f32.gmra.mrb[0].mxu0 %v4108
      %v4289 = vpop.f32.mrb[0].mxu0
      %v4290 = vadd.f32 0.0, %v4289
      %v4291 = vpop.f32.mrb[0].mxu0
      %4292 = vmatprep.mubr.f32.mxu0 0.0
      %4293 = vmatmul.mubr.f32.gmra.mrb[0].mxu0 %v4111
      %v4294 = vpop.f32.mrb[0].mxu0
      %v4295 = vadd.f32 0.0, %v4294
      %v4296 = vpop.f32.mrb[0].mxu0
      %4297 = vmatprep.mubr.f32.mxu0 0.0
      %4298 = vmatmul.mubr.f32.gmra.mrb[0].mxu0 %v4114
      %v4299 = vpop.f32.mrb[0].mxu0
      %v4300 = vadd.f32 0.0, %v4299
      %v4301 = vpop.f32.mrb[0].mxu0
      %4302 = vmatprep.mubr.f32.mxu0 0.0
      %4303 = vmatmul.mubr.f32.gmra.mrb[0].mxu0 %v4117
      %v4304 = vpop.f32.mrb[0].mxu0
      %v4305 = vadd.f32 0.0, %v4304
      %v4306 = vpop.f32.mrb[0].mxu0
      %4307 = vmatprep.mubr.f32.mxu0 0.0
      %4308 = vmatmul.mubr.f32.gmra.mrb[0].mxu0 %v4120
      %v4309 = vpop.f32.mrb[0].mxu0
      %v4310 = vadd.f32 0.0, %v4309
      %v4311 = vpop.f32.mrb[0].mxu0
      %4312 = vmatprep.mubr.f32.mxu0 0.0
      %4313 = vmatmul.mubr.f32.gmra.mrb[0].mxu0 %v4123
      %v4314 = vpop.f32.mrb[0].mxu0
      %v4315 = vadd.f32 0.0, %v4314
      %v4316 = vpop.f32.mrb[0].mxu0
      %4317 = vmatprep.mubr.f32.mxu0 0.0
      %4318 = vmatmul.mubr.f32.gmra.mrb[0].mxu0 %v4126
      %v4319 = vpop.f32.mrb[0].mxu0
      %v4320 = vadd.f32 0.0, %v4319
      %v4321 = vpop.f32.mrb[0].mxu0
      %4322 = vmatprep.mubr.f32.mxu0 0.0
      %4323 = vmatmul.mubr.f32.gmra.mrb[0].mxu0 %v4129
      %v4324 = vpop.f32.mrb[0].mxu0
      %v4325 = vadd.f32 0.0, %v4324
      %v4326 = vpop.f32.mrb[0].mxu0
      %4327 = vmatprep.mubr.f32.mxu0 0.0
      %4328 = vmatmul.mubr.f32.gmra.mrb[0].mxu0 %v4132
      %v4329 = vpop.f32.mrb[0].mxu0
      %v4330 = vadd.f32 0.0, %v4329
      %v4331 = vpop.f32.mrb[0].mxu0
      %4332 = vmatprep.mubr.f32.mxu0 0.0
      %4333 = vmatmul.mubr.f32.gmra.mrb[0].mxu0 %v4135
      %v4334 = vpop.f32.mrb[0].mxu0
      %v4335 = vadd.f32 0.0, %v4334
      %v4336 = vpop.f32.mrb[0].mxu0
      %4337 = vmatprep.mubr.f32.mxu0 0.0
      %4338 = vmatmul.mubr.f32.gmra.mrb[0].mxu0 %v4138
      %v4339 = vpop.f32.mrb[0].mxu0
      %v4340 = vadd.f32 0.0, %v4339
      %v4341 = vpop.f32.mrb[0].mxu0
      %4342 = vmatprep.mubr.f32.mxu0 0.0
      %4343 = vmatmul.mubr.f32.gmra.mrb[0].mxu0 %v4141
      %v4344 = vpop.f32.mrb[0].mxu0
      %v4345 = vadd.f32 0.0, %v4344
      %v4346 = vpop.f32.mrb[0].mxu0
      %4347 = vmatprep.mubr.f32.mxu0 0.0
      %4348 = vmatmul.mubr.f32.gmra.mrb[0].mxu0 %v4144
      %v4349 = vpop.f32.mrb[0].mxu0
      %v4350 = vadd.f32 0.0, %v4349
      %v4351 = vpop.f32.mrb[0].mxu0
      %4352 = vmatprep.mubr.f32.mxu0 0.0
      %4353 = vmatmul.mubr.f32.gmra.mrb[0].mxu0 %v4147
      %v4354 = vpop.f32.mrb[0].mxu0
      %v4355 = vadd.f32 0.0, %v4354
      %v4356 = vpop.f32.mrb[0].mxu0
      %4357 = vmatprep.mubr.f32.mxu0 0.0
      %4358 = vmatmul.mubr.f32.gmra.mrb[0].mxu0 %v4150
      %v4359 = vpop.f32.mrb[0].mxu0
      %v4360 = vadd.f32 0.0, %v4359
      %v4361 = vpop.f32.mrb[0].mxu0
      %4362 = vmatprep.mubr.f32.mxu0 0.0
      %4363 = vmatmul.mubr.f32.gmra.mrb[0].mxu0 %v4153
      %v4364 = vpop.f32.mrb[0].mxu0
      %v4365 = vadd.f32 0.0, %v4364
      %v4366 = vpop.f32.mrb[0].mxu0
      %4367 = vmatprep.mubr.f32.mxu0 0.0
      %4368 = vmatmul.mubr.f32.gmra.mrb[0].mxu0 %v4156
      %v4369 = vpop.f32.mrb[0].mxu0
      %v4370 = vadd.f32 0.0, %v4369
      %v4371 = vpop.f32.mrb[0].mxu0
      %4372 = vmatprep.mubr.f32.mxu0 0.0
      %4373 = vmatmul.mubr.f32.gmra.mrb[0].mxu0 %v4159
      %v4374 = vpop.f32.mrb[0].mxu0
      %v4375 = vadd.f32 0.0, %v4374
      %v4376 = vpop.f32.mrb[0].mxu0
      %4377 = vmatprep.mubr.f32.mxu0 0.0
      %4378 = vmatmul.mubr.f32.gmra.mrb[0].mxu0 %v4162
      %v4379 = vpop.f32.mrb[0].mxu0
      %v4380 = vadd.f32 0.0, %v4379
      %v4381 = vpop.f32.mrb[0].mxu0
      %4382 = vmatprep.mubr.f32.mxu0 0.0
      %4383 = vmatmul.mubr.f32.gmra.mrb[0].mxu0 %v4165
      %v4384 = vpop.f32.mrb[0].mxu0
      %v4385 = vadd.f32 0.0, %v4384
      %v4386 = vpop.f32.mrb[0].mxu0
      %4387 = vmatprep.mubr.f32.mxu0 0.0
      %4388 = vmatmul.mubr.f32.gmra.mrb[0].mxu0 %v4168
      %v4389 = vpop.f32.mrb[0].mxu0
      %v4390 = vadd.f32 0.0, %v4389
      %v4391 = vpop.f32.mrb[0].mxu0
      %4392 = vmatprep.mubr.f32.mxu0 0.0
      %4393 = vmatmul.mubr.f32.gmra.mrb[0].mxu0 %v4171
      %v4394 = vpop.f32.mrb[0].mxu0
      %v4395 = vadd.f32 0.0, %v4394
      %v4396 = vpop.f32.mrb[0].mxu0
      %4397 = vdwg.mxu0
      %v4399 = vsel %vm325, %v4011, 0
      %v4402 = vsel %vm325, %v4012, 0
      %v4405 = vsel %vm325, %v4013, 0
      %v4408 = vsel %vm325, %v4014, 0
      %v4411 = vsel %vm325, %v4015, 0
      %v4414 = vsel %vm325, %v4016, 0
      %v4417 = vsel %vm325, %v4017, 0
      %v4420 = vsel %vm325, %v4018, 0
      %v4423 = vsel %vm325, %v4019, 0
      %v4426 = vsel %vm325, %v4020, 0
      %v4429 = vsel %vm325, %v4021, 0
      %v4432 = vsel %vm325, %v4022, 0
      %v4435 = vsel %vm325, %v4023, 0
      %v4438 = vsel %vm325, %v4024, 0
      %v4441 = vsel %vm325, %v4025, 0
      %v4444 = vsel %vm325, %v4026, 0
      %v4447 = vsel %vm325, %v4027, 0
      %v4450 = vsel %vm325, %v4028, 0
      %v4453 = vsel %vm325, %v4029, 0
      %v4456 = vsel %vm325, %v4030, 0
      %v4459 = vsel %vm325, %v4031, 0
      %v4462 = vsel %vm325, %v4032, 0
      %v4465 = vsel %vm325, %v4033, 0
      %v4468 = vsel %vm325, %v4034, 0
      %v4471 = vsel %vm325, %v4035, 0
      %v4474 = vsel %vm325, %v4036, 0
      %v4477 = vsel %vm325, %v4037, 0
      %v4480 = vsel %vm325, %v4038, 0
      %v4483 = vsel %vm325, %v4039, 0
      %v4486 = vsel %vm325, %v4040, 0
      %v4489 = vsel %vm325, %v4041, 0
      %v4492 = vsel %vm325, %v4042, 0
      %4494 = vmatprep.subr.mxu0 0.0
      %4495 = vmatpush1.msra.mxu0 %v4043
      %4496 = vmatprep.subr.mxu0 0.0
      %4497 = vmatpush1.msra.mxu0 0.0
      %4498 = vmatprep.subr.mxu0 0.0
      %4499 = vmatpush1.msra.mxu0 0.0
      %4500 = vmatprep.subr.mxu0 0.0
      %4501 = vmatpush1.msra.mxu0 0.0
      %4502 = vmatprep.subr.mxu0 0.0
      %4503 = vmatpush1.msra.mxu0 0.0
      %4504 = vmatprep.subr.mxu0 0.0
      %4505 = vmatpush1.msra.mxu0 0.0
      %4506 = vmatprep.subr.mxu0 0.0
      %4507 = vmatpush1.msra.mxu0 0.0
      %4508 = vmatprep.subr.mxu0 0.0
      %4509 = vmatpush1.msra.mxu0 0.0
      %4510 = vmatprep.subr.mxu0 0.0
      %4511 = vmatpush1.msra.mxu0 0.0
      %4512 = vmatprep.subr.mxu0 0.0
      %4513 = vmatpush1.msra.mxu0 0.0
      %4514 = vmatprep.subr.mxu0 0.0
      %4515 = vmatpush1.msra.mxu0 0.0
      %4516 = vmatprep.subr.mxu0 0.0
      %4517 = vmatpush1.msra.mxu0 0.0
      %4518 = vmatprep.subr.mxu0 0.0
      %4519 = vmatpush1.msra.mxu0 0.0
      %4520 = vmatprep.subr.mxu0 0.0
      %4521 = vmatpush1.msra.mxu0 0.0
      %4522 = vmatprep.subr.mxu0 0.0
      %4523 = vmatpush1.msra.mxu0 0.0
      %4524 = vmatprep.subr.mxu0 0.0
      %4525 = vmatpush1.msra.mxu0 0.0
      %4526 = vmatprep.subr.mxu0 0.0
      %4527 = vmatpush1.msra.mxu0 0.0
      %4528 = vmatprep.subr.mxu0 0.0
      %4529 = vmatpush1.msra.mxu0 0.0
      %4530 = vmatprep.subr.mxu0 0.0
      %4531 = vmatpush1.msra.mxu0 0.0
      %4532 = vmatprep.subr.mxu0 0.0
      %4533 = vmatpush1.msra.mxu0 0.0
      %4534 = vmatprep.subr.mxu0 0.0
      %4535 = vmatpush1.msra.mxu0 0.0
      %4536 = vmatprep.subr.mxu0 0.0
      %4537 = vmatpush1.msra.mxu0 0.0
      %4538 = vmatprep.subr.mxu0 0.0
      %4539 = vmatpush1.msra.mxu0 0.0
      %4540 = vmatprep.subr.mxu0 0.0
      %4541 = vmatpush1.msra.mxu0 0.0
      %4542 = vmatprep.subr.mxu0 0.0
      %4543 = vmatpush1.msra.mxu0 0.0
      %4544 = vmatprep.subr.mxu0 0.0
      %4545 = vmatpush1.msra.mxu0 0.0
      %4546 = vmatprep.subr.mxu0 0.0
      %4547 = vmatpush1.msra.mxu0 0.0
      %4548 = vmatprep.subr.mxu0 0.0
      %4549 = vmatpush1.msra.mxu0 0.0
      %4550 = vmatprep.subr.mxu0 0.0
      %4551 = vmatpush1.msra.mxu0 0.0
      %4552 = vmatprep.subr.mxu0 0.0
      %4553 = vmatpush1.msra.mxu0 0.0
      %4554 = vmatprep.subr.mxu0 0.0
      %4555 = vmatpush1.msra.mxu0 0.0
      %4556 = vmatprep.subr.mxu0 0.0
      %4557 = vmatpush1.msra.mxu0 0.0
      %4558 = vmatprep.mubr.f32.mxu0 0.0
      %4559 = vmatmul.mubr.f32.gmra.mrb[0].mxu0 %v4399
      %v4560 = vpop.f32.mrb[0].mxu0
      %v4561 = vadd.f32 %v4240, %v4560
      %v4562 = vpop.f32.mrb[0].mxu0
      %4563 = vmatprep.mubr.f32.mxu0 0.0
      %4564 = vmatmul.mubr.f32.gmra.mrb[0].mxu0 %v4402
      %v4565 = vpop.f32.mrb[0].mxu0
      %v4566 = vadd.f32 %v4245, %v4565
      %v4567 = vpop.f32.mrb[0].mxu0
      %4568 = vmatprep.mubr.f32.mxu0 0.0
      %4569 = vmatmul.mubr.f32.gmra.mrb[0].mxu0 %v4405
      %v4570 = vpop.f32.mrb[0].mxu0
      %v4571 = vadd.f32 %v4250, %v4570
      %v4572 = vpop.f32.mrb[0].mxu0
      %4573 = vmatprep.mubr.f32.mxu0 0.0
      %4574 = vmatmul.mubr.f32.gmra.mrb[0].mxu0 %v4408
      %v4575 = vpop.f32.mrb[0].mxu0
      %v4576 = vadd.f32 %v4255, %v4575
      %v4577 = vpop.f32.mrb[0].mxu0
      %4578 = vmatprep.mubr.f32.mxu0 0.0
      %4579 = vmatmul.mubr.f32.gmra.mrb[0].mxu0 %v4411
      %v4580 = vpop.f32.mrb[0].mxu0
      %v4581 = vadd.f32 %v4260, %v4580
      %v4582 = vpop.f32.mrb[0].mxu0
      %4583 = vmatprep.mubr.f32.mxu0 0.0
      %4584 = vmatmul.mubr.f32.gmra.mrb[0].mxu0 %v4414
      %v4585 = vpop.f32.mrb[0].mxu0
      %v4586 = vadd.f32 %v4265, %v4585
      %v4587 = vpop.f32.mrb[0].mxu0
      %4588 = vmatprep.mubr.f32.mxu0 0.0
      %4589 = vmatmul.mubr.f32.gmra.mrb[0].mxu0 %v4417
      %v4590 = vpop.f32.mrb[0].mxu0
      %v4591 = vadd.f32 %v4270, %v4590
      %v4592 = vpop.f32.mrb[0].mxu0
      %4593 = vmatprep.mubr.f32.mxu0 0.0
      %4594 = vmatmul.mubr.f32.gmra.mrb[0].mxu0 %v4420
      %v4595 = vpop.f32.mrb[0].mxu0
      %v4596 = vadd.f32 %v4275, %v4595
      %v4597 = vpop.f32.mrb[0].mxu0
      %4598 = vmatprep.mubr.f32.mxu0 0.0
      %4599 = vmatmul.mubr.f32.gmra.mrb[0].mxu0 %v4423
      %v4600 = vpop.f32.mrb[0].mxu0
      %v4601 = vadd.f32 %v4280, %v4600
      %v4602 = vpop.f32.mrb[0].mxu0
      %4603 = vmatprep.mubr.f32.mxu0 0.0
      %4604 = vmatmul.mubr.f32.gmra.mrb[0].mxu0 %v4426
      %v4605 = vpop.f32.mrb[0].mxu0
      %v4606 = vadd.f32 %v4285, %v4605
      %v4607 = vpop.f32.mrb[0].mxu0
      %4608 = vmatprep.mubr.f32.mxu0 0.0
      %4609 = vmatmul.mubr.f32.gmra.mrb[0].mxu0 %v4429
      %v4610 = vpop.f32.mrb[0].mxu0
      %v4611 = vadd.f32 %v4290, %v4610
      %v4612 = vpop.f32.mrb[0].mxu0
      %4613 = vmatprep.mubr.f32.mxu0 0.0
      %4614 = vmatmul.mubr.f32.gmra.mrb[0].mxu0 %v4432
      %v4615 = vpop.f32.mrb[0].mxu0
      %v4616 = vadd.f32 %v4295, %v4615
      %v4617 = vpop.f32.mrb[0].mxu0
      %4618 = vmatprep.mubr.f32.mxu0 0.0
      %4619 = vmatmul.mubr.f32.gmra.mrb[0].mxu0 %v4435
      %v4620 = vpop.f32.mrb[0].mxu0
      %v4621 = vadd.f32 %v4300, %v4620
      %v4622 = vpop.f32.mrb[0].mxu0
      %4623 = vmatprep.mubr.f32.mxu0 0.0
      %4624 = vmatmul.mubr.f32.gmra.mrb[0].mxu0 %v4438
      %v4625 = vpop.f32.mrb[0].mxu0
      %v4626 = vadd.f32 %v4305, %v4625
      %v4627 = vpop.f32.mrb[0].mxu0
      %4628 = vmatprep.mubr.f32.mxu0 0.0
      %4629 = vmatmul.mubr.f32.gmra.mrb[0].mxu0 %v4441
      %v4630 = vpop.f32.mrb[0].mxu0
      %v4631 = vadd.f32 %v4310, %v4630
      %v4632 = vpop.f32.mrb[0].mxu0
      %4633 = vmatprep.mubr.f32.mxu0 0.0
      %4634 = vmatmul.mubr.f32.gmra.mrb[0].mxu0 %v4444
      %v4635 = vpop.f32.mrb[0].mxu0
      %v4636 = vadd.f32 %v4315, %v4635
      %v4637 = vpop.f32.mrb[0].mxu0
      %4638 = vmatprep.mubr.f32.mxu0 0.0
      %4639 = vmatmul.mubr.f32.gmra.mrb[0].mxu0 %v4447
      %v4640 = vpop.f32.mrb[0].mxu0
      %v4641 = vadd.f32 %v4320, %v4640
      %v4642 = vpop.f32.mrb[0].mxu0
      %4643 = vmatprep.mubr.f32.mxu0 0.0
      %4644 = vmatmul.mubr.f32.gmra.mrb[0].mxu0 %v4450
      %v4645 = vpop.f32.mrb[0].mxu0
      %v4646 = vadd.f32 %v4325, %v4645
      %v4647 = vpop.f32.mrb[0].mxu0
      %4648 = vmatprep.mubr.f32.mxu0 0.0
      %4649 = vmatmul.mubr.f32.gmra.mrb[0].mxu0 %v4453
      %v4650 = vpop.f32.mrb[0].mxu0
      %v4651 = vadd.f32 %v4330, %v4650
      %v4652 = vpop.f32.mrb[0].mxu0
      %4653 = vmatprep.mubr.f32.mxu0 0.0
      %4654 = vmatmul.mubr.f32.gmra.mrb[0].mxu0 %v4456
      %v4655 = vpop.f32.mrb[0].mxu0
      %v4656 = vadd.f32 %v4335, %v4655
      %v4657 = vpop.f32.mrb[0].mxu0
      %4658 = vmatprep.mubr.f32.mxu0 0.0
      %4659 = vmatmul.mubr.f32.gmra.mrb[0].mxu0 %v4459
      %v4660 = vpop.f32.mrb[0].mxu0
      %v4661 = vadd.f32 %v4340, %v4660
      %v4662 = vpop.f32.mrb[0].mxu0
      %4663 = vmatprep.mubr.f32.mxu0 0.0
      %4664 = vmatmul.mubr.f32.gmra.mrb[0].mxu0 %v4462
      %v4665 = vpop.f32.mrb[0].mxu0
      %v4666 = vadd.f32 %v4345, %v4665
      %v4667 = vpop.f32.mrb[0].mxu0
      %4668 = vmatprep.mubr.f32.mxu0 0.0
      %4669 = vmatmul.mubr.f32.gmra.mrb[0].mxu0 %v4465
      %v4670 = vpop.f32.mrb[0].mxu0
      %v4671 = vadd.f32 %v4350, %v4670
      %v4672 = vpop.f32.mrb[0].mxu0
      %4673 = vmatprep.mubr.f32.mxu0 0.0
      %4674 = vmatmul.mubr.f32.gmra.mrb[0].mxu0 %v4468
      %v4675 = vpop.f32.mrb[0].mxu0
      %v4676 = vadd.f32 %v4355, %v4675
      %v4677 = vpop.f32.mrb[0].mxu0
      %4678 = vmatprep.mubr.f32.mxu0 0.0
      %4679 = vmatmul.mubr.f32.gmra.mrb[0].mxu0 %v4471
      %v4680 = vpop.f32.mrb[0].mxu0
      %v4681 = vadd.f32 %v4360, %v4680
      %v4682 = vpop.f32.mrb[0].mxu0
      %4683 = vmatprep.mubr.f32.mxu0 0.0
      %4684 = vmatmul.mubr.f32.gmra.mrb[0].mxu0 %v4474
      %v4685 = vpop.f32.mrb[0].mxu0
      %v4686 = vadd.f32 %v4365, %v4685
      %v4687 = vpop.f32.mrb[0].mxu0
      %4688 = vmatprep.mubr.f32.mxu0 0.0
      %4689 = vmatmul.mubr.f32.gmra.mrb[0].mxu0 %v4477
      %v4690 = vpop.f32.mrb[0].mxu0
      %v4691 = vadd.f32 %v4370, %v4690
      %v4692 = vpop.f32.mrb[0].mxu0
      %4693 = vmatprep.mubr.f32.mxu0 0.0
      %4694 = vmatmul.mubr.f32.gmra.mrb[0].mxu0 %v4480
      %v4695 = vpop.f32.mrb[0].mxu0
      %v4696 = vadd.f32 %v4375, %v4695
      %v4697 = vpop.f32.mrb[0].mxu0
      %4698 = vmatprep.mubr.f32.mxu0 0.0
      %4699 = vmatmul.mubr.f32.gmra.mrb[0].mxu0 %v4483
      %v4700 = vpop.f32.mrb[0].mxu0
      %v4701 = vadd.f32 %v4380, %v4700
      %v4702 = vpop.f32.mrb[0].mxu0
      %4703 = vmatprep.mubr.f32.mxu0 0.0
      %4704 = vmatmul.mubr.f32.gmra.mrb[0].mxu0 %v4486
      %v4705 = vpop.f32.mrb[0].mxu0
      %v4706 = vadd.f32 %v4385, %v4705
      %v4707 = vpop.f32.mrb[0].mxu0
      %4708 = vmatprep.mubr.f32.mxu0 0.0
      %4709 = vmatmul.mubr.f32.gmra.mrb[0].mxu0 %v4489
      %v4710 = vpop.f32.mrb[0].mxu0
      %v4711 = vadd.f32 %v4390, %v4710
      %v4712 = vpop.f32.mrb[0].mxu0
      %4713 = vmatprep.mubr.f32.mxu0 0.0
      %4714 = vmatmul.mubr.f32.gmra.mrb[0].mxu0 %v4492
      %v4715 = vpop.f32.mrb[0].mxu0
      %v4716 = vadd.f32 %v4395, %v4715
      %v4717 = vpop.f32.mrb[0].mxu0
      %4718 = vdwg.mxu0
      %v4719 = vld [vmem:[#allocation3 + $0x2] sm:$0xff]
      %v4720 = vld [vmem:[#allocation3 + $0xa] sm:$0xff]
      %v4721 = vld [vmem:[#allocation3 + $0x1a] sm:$0xff]
      %v4722 = vld [vmem:[#allocation3 + $0x22] sm:$0xff]
      %v4723 = vld [vmem:[#allocation3 + $0x32] sm:$0xff]
      %v4724 = vld [vmem:[#allocation3 + $0x3a] sm:$0xff]
      %v4725 = vld [vmem:[#allocation3 + $0x4a] sm:$0xff]
      %v4726 = vld [vmem:[#allocation3 + $0x52] sm:$0xff]
      %v4727 = vld [vmem:[#allocation3 + $0x62] sm:$0xff]
      %v4728 = vld [vmem:[#allocation3 + $0x6a] sm:$0xff]
      %v4729 = vld [vmem:[#allocation3 + $0x7a] sm:$0xff]
      %v4730 = vld [vmem:[#allocation3 + $0x82] sm:$0xff]
      %v4731 = vld [vmem:[#allocation3 + $0x92] sm:$0xff]
      %v4732 = vld [vmem:[#allocation3 + $0x9a] sm:$0xff]
      %v4733 = vld [vmem:[#allocation3 + $0xaa] sm:$0xff]
      %v4734 = vld [vmem:[#allocation3 + $0xb2] sm:$0xff]
      %v4735 = vld [vmem:[#allocation3 + $0xc2] sm:$0xff]
      %v4736 = vld [vmem:[#allocation3 + $0xca] sm:$0xff]
      %v4737 = vld [vmem:[#allocation3 + $0xda] sm:$0xff]
      %v4738 = vld [vmem:[#allocation3 + $0xe2] sm:$0xff]
      %v4739 = vld [vmem:[#allocation3 + $0xf2] sm:$0xff]
      %v4740 = vld [vmem:[#allocation3 + $0xfa] sm:$0xff]
      %v4741 = vld [vmem:[#allocation3 + $0x10a] sm:$0xff]
      %v4742 = vld [vmem:[#allocation3 + $0x112] sm:$0xff]
      %v4743 = vld [vmem:[#allocation3 + $0x122] sm:$0xff]
      %v4744 = vld [vmem:[#allocation3 + $0x12a] sm:$0xff]
      %v4745 = vld [vmem:[#allocation3 + $0x13a] sm:$0xff]
      %v4746 = vld [vmem:[#allocation3 + $0x142] sm:$0xff]
      %v4747 = vld [vmem:[#allocation3 + $0x152] sm:$0xff]
      %v4748 = vld [vmem:[#allocation3 + $0x15a] sm:$0xff]
      %v4749 = vld [vmem:[#allocation3 + $0x16a] sm:$0xff]
      %v4750 = vld [vmem:[#allocation3 + $0x172] sm:$0xff]
      %v4751 = vld [vmem:[%s3 + $0x10] sm:$0xff]
      %v4753 = vsel %vm325, %v4719, 0
      %v4756 = vsel %vm325, %v4720, 0
      %v4759 = vsel %vm325, %v4721, 0
      %v4762 = vsel %vm325, %v4722, 0
      %v4765 = vsel %vm325, %v4723, 0
      %v4768 = vsel %vm325, %v4724, 0
      %v4771 = vsel %vm325, %v4725, 0
      %v4774 = vsel %vm325, %v4726, 0
      %v4777 = vsel %vm325, %v4727, 0
      %v4780 = vsel %vm325, %v4728, 0
      %v4783 = vsel %vm325, %v4729, 0
      %v4786 = vsel %vm325, %v4730, 0
      %v4789 = vsel %vm325, %v4731, 0
      %v4792 = vsel %vm325, %v4732, 0
      %v4795 = vsel %vm325, %v4733, 0
      %v4798 = vsel %vm325, %v4734, 0
      %v4801 = vsel %vm325, %v4735, 0
      %v4804 = vsel %vm325, %v4736, 0
      %v4807 = vsel %vm325, %v4737, 0
      %v4810 = vsel %vm325, %v4738, 0
      %v4813 = vsel %vm325, %v4739, 0
      %v4816 = vsel %vm325, %v4740, 0
      %v4819 = vsel %vm325, %v4741, 0
      %v4822 = vsel %vm325, %v4742, 0
      %v4825 = vsel %vm325, %v4743, 0
      %v4828 = vsel %vm325, %v4744, 0
      %v4831 = vsel %vm325, %v4745, 0
      %v4834 = vsel %vm325, %v4746, 0
      %v4837 = vsel %vm325, %v4747, 0
      %v4840 = vsel %vm325, %v4748, 0
      %v4843 = vsel %vm325, %v4749, 0
      %v4846 = vsel %vm325, %v4750, 0
      %4848 = vmatprep.subr.mxu0 0.0
      %4849 = vmatpush1.msra.mxu0 %v4751
      %4850 = vmatprep.subr.mxu0 0.0
      %4851 = vmatpush1.msra.mxu0 0.0
      %4852 = vmatprep.subr.mxu0 0.0
      %4853 = vmatpush1.msra.mxu0 0.0
      %4854 = vmatprep.subr.mxu0 0.0
      %4855 = vmatpush1.msra.mxu0 0.0
      %4856 = vmatprep.subr.mxu0 0.0
      %4857 = vmatpush1.msra.mxu0 0.0
      %4858 = vmatprep.subr.mxu0 0.0
      %4859 = vmatpush1.msra.mxu0 0.0
      %4860 = vmatprep.subr.mxu0 0.0
      %4861 = vmatpush1.msra.mxu0 0.0
      %4862 = vmatprep.subr.mxu0 0.0
      %4863 = vmatpush1.msra.mxu0 0.0
      %4864 = vmatprep.subr.mxu0 0.0
      %4865 = vmatpush1.msra.mxu0 0.0
      %4866 = vmatprep.subr.mxu0 0.0
      %4867 = vmatpush1.msra.mxu0 0.0
      %4868 = vmatprep.subr.mxu0 0.0
      %4869 = vmatpush1.msra.mxu0 0.0
      %4870 = vmatprep.subr.mxu0 0.0
      %4871 = vmatpush1.msra.mxu0 0.0
      %4872 = vmatprep.subr.mxu0 0.0
      %4873 = vmatpush1.msra.mxu0 0.0
      %4874 = vmatprep.subr.mxu0 0.0
      %4875 = vmatpush1.msra.mxu0 0.0
      %4876 = vmatprep.subr.mxu0 0.0
      %4877 = vmatpush1.msra.mxu0 0.0
      %4878 = vmatprep.subr.mxu0 0.0
      %4879 = vmatpush1.msra.mxu0 0.0
      %4880 = vmatprep.subr.mxu0 0.0
      %4881 = vmatpush1.msra.mxu0 0.0
      %4882 = vmatprep.subr.mxu0 0.0
      %4883 = vmatpush1.msra.mxu0 0.0
      %4884 = vmatprep.subr.mxu0 0.0
      %4885 = vmatpush1.msra.mxu0 0.0
      %4886 = vmatprep.subr.mxu0 0.0
      %4887 = vmatpush1.msra.mxu0 0.0
      %4888 = vmatprep.subr.mxu0 0.0
      %4889 = vmatpush1.msra.mxu0 0.0
      %4890 = vmatprep.subr.mxu0 0.0
      %4891 = vmatpush1.msra.mxu0 0.0
      %4892 = vmatprep.subr.mxu0 0.0
      %4893 = vmatpush1.msra.mxu0 0.0
      %4894 = vmatprep.subr.mxu0 0.0
      %4895 = vmatpush1.msra.mxu0 0.0
      %4896 = vmatprep.subr.mxu0 0.0
      %4897 = vmatpush1.msra.mxu0 0.0
      %4898 = vmatprep.subr.mxu0 0.0
      %4899 = vmatpush1.msra.mxu0 0.0
      %4900 = vmatprep.subr.mxu0 0.0
      %4901 = vmatpush1.msra.mxu0 0.0
      %4902 = vmatprep.subr.mxu0 0.0
      %4903 = vmatpush1.msra.mxu0 0.0
      %4904 = vmatprep.subr.mxu0 0.0
      %4905 = vmatpush1.msra.mxu0 0.0
      %4906 = vmatprep.subr.mxu0 0.0
      %4907 = vmatpush1.msra.mxu0 0.0
      %4908 = vmatprep.subr.mxu0 0.0
      %4909 = vmatpush1.msra.mxu0 0.0
      %4910 = vmatprep.subr.mxu0 0.0
      %4911 = vmatpush1.msra.mxu0 0.0
      %4912 = vmatprep.mubr.f32.mxu0 0.0
      %4913 = vmatmul.mubr.f32.gmra.mrb[0].mxu0 %v4753
      %v4914 = vpop.f32.mrb[0].mxu0
      %v4915 = vadd.f32 0.0, %v4914
      %v4916 = vpop.f32.mrb[0].mxu0
      %4917 = vmatprep.mubr.f32.mxu0 0.0
      %4918 = vmatmul.mubr.f32.gmra.mrb[0].mxu0 %v4756
      %v4919 = vpop.f32.mrb[0].mxu0
      %v4920 = vadd.f32 0.0, %v4919
      %v4921 = vpop.f32.mrb[0].mxu0
      %4922 = vmatprep.mubr.f32.mxu0 0.0
      %4923 = vmatmul.mubr.f32.gmra.mrb[0].mxu0 %v4759
      %v4924 = vpop.f32.mrb[0].mxu0
      %v4925 = vadd.f32 0.0, %v4924
      %v4926 = vpop.f32.mrb[0].mxu0
      %4927 = vmatprep.mubr.f32.mxu0 0.0
      %4928 = vmatmul.mubr.f32.gmra.mrb[0].mxu0 %v4762
      %v4929 = vpop.f32.mrb[0].mxu0
      %v4930 = vadd.f32 0.0, %v4929
      %v4931 = vpop.f32.mrb[0].mxu0
      %4932 = vmatprep.mubr.f32.mxu0 0.0
      %4933 = vmatmul.mubr.f32.gmra.mrb[0].mxu0 %v4765
      %v4934 = vpop.f32.mrb[0].mxu0
      %v4935 = vadd.f32 0.0, %v4934
      %v4936 = vpop.f32.mrb[0].mxu0
      %4937 = vmatprep.mubr.f32.mxu0 0.0
      %4938 = vmatmul.mubr.f32.gmra.mrb[0].mxu0 %v4768
      %v4939 = vpop.f32.mrb[0].mxu0
      %v4940 = vadd.f32 0.0, %v4939
      %v4941 = vpop.f32.mrb[0].mxu0
      %4942 = vmatprep.mubr.f32.mxu0 0.0
      %4943 = vmatmul.mubr.f32.gmra.mrb[0].mxu0 %v4771
      %v4944 = vpop.f32.mrb[0].mxu0
      %v4945 = vadd.f32 0.0, %v4944
      %v4946 = vpop.f32.mrb[0].mxu0
      %4947 = vmatprep.mubr.f32.mxu0 0.0
      %4948 = vmatmul.mubr.f32.gmra.mrb[0].mxu0 %v4774
      %v4949 = vpop.f32.mrb[0].mxu0
      %v4950 = vadd.f32 0.0, %v4949
      %v4951 = vpop.f32.mrb[0].mxu0
      %4952 = vmatprep.mubr.f32.mxu0 0.0
      %4953 = vmatmul.mubr.f32.gmra.mrb[0].mxu0 %v4777
      %v4954 = vpop.f32.mrb[0].mxu0
      %v4955 = vadd.f32 0.0, %v4954
      %v4956 = vpop.f32.mrb[0].mxu0
      %4957 = vmatprep.mubr.f32.mxu0 0.0
      %4958 = vmatmul.mubr.f32.gmra.mrb[0].mxu0 %v4780
      %v4959 = vpop.f32.mrb[0].mxu0
      %v4960 = vadd.f32 0.0, %v4959
      %v4961 = vpop.f32.mrb[0].mxu0
      %4962 = vmatprep.mubr.f32.mxu0 0.0
      %4963 = vmatmul.mubr.f32.gmra.mrb[0].mxu0 %v4783
      %v4964 = vpop.f32.mrb[0].mxu0
      %v4965 = vadd.f32 0.0, %v4964
      %v4966 = vpop.f32.mrb[0].mxu0
      %4967 = vmatprep.mubr.f32.mxu0 0.0
      %4968 = vmatmul.mubr.f32.gmra.mrb[0].mxu0 %v4786
      %v4969 = vpop.f32.mrb[0].mxu0
      %v4970 = vadd.f32 0.0, %v4969
      %v4971 = vpop.f32.mrb[0].mxu0
      %4972 = vmatprep.mubr.f32.mxu0 0.0
      %4973 = vmatmul.mubr.f32.gmra.mrb[0].mxu0 %v4789
      %v4974 = vpop.f32.mrb[0].mxu0
      %v4975 = vadd.f32 0.0, %v4974
      %v4976 = vpop.f32.mrb[0].mxu0
      %4977 = vmatprep.mubr.f32.mxu0 0.0
      %4978 = vmatmul.mubr.f32.gmra.mrb[0].mxu0 %v4792
      %v4979 = vpop.f32.mrb[0].mxu0
      %v4980 = vadd.f32 0.0, %v4979
      %v4981 = vpop.f32.mrb[0].mxu0
      %4982 = vmatprep.mubr.f32.mxu0 0.0
      %4983 = vmatmul.mubr.f32.gmra.mrb[0].mxu0 %v4795
      %v4984 = vpop.f32.mrb[0].mxu0
      %v4985 = vadd.f32 0.0, %v4984
      %v4986 = vpop.f32.mrb[0].mxu0
      %4987 = vmatprep.mubr.f32.mxu0 0.0
      %4988 = vmatmul.mubr.f32.gmra.mrb[0].mxu0 %v4798
      %v4989 = vpop.f32.mrb[0].mxu0
      %v4990 = vadd.f32 0.0, %v4989
      %v4991 = vpop.f32.mrb[0].mxu0
      %4992 = vmatprep.mubr.f32.mxu0 0.0
      %4993 = vmatmul.mubr.f32.gmra.mrb[0].mxu0 %v4801
      %v4994 = vpop.f32.mrb[0].mxu0
      %v4995 = vadd.f32 0.0, %v4994
      %v4996 = vpop.f32.mrb[0].mxu0
      %4997 = vmatprep.mubr.f32.mxu0 0.0
      %4998 = vmatmul.mubr.f32.gmra.mrb[0].mxu0 %v4804
      %v4999 = vpop.f32.mrb[0].mxu0
      %v5000 = vadd.f32 0.0, %v4999
      %v5001 = vpop.f32.mrb[0].mxu0
      %5002 = vmatprep.mubr.f32.mxu0 0.0
      %5003 = vmatmul.mubr.f32.gmra.mrb[0].mxu0 %v4807
      %v5004 = vpop.f32.mrb[0].mxu0
      %v5005 = vadd.f32 0.0, %v5004
      %v5006 = vpop.f32.mrb[0].mxu0
      %5007 = vmatprep.mubr.f32.mxu0 0.0
      %5008 = vmatmul.mubr.f32.gmra.mrb[0].mxu0 %v4810
      %v5009 = vpop.f32.mrb[0].mxu0
      %v5010 = vadd.f32 0.0, %v5009
      %v5011 = vpop.f32.mrb[0].mxu0
      %5012 = vmatprep.mubr.f32.mxu0 0.0
      %5013 = vmatmul.mubr.f32.gmra.mrb[0].mxu0 %v4813
      %v5014 = vpop.f32.mrb[0].mxu0
      %v5015 = vadd.f32 0.0, %v5014
      %v5016 = vpop.f32.mrb[0].mxu0
      %5017 = vmatprep.mubr.f32.mxu0 0.0
      %5018 = vmatmul.mubr.f32.gmra.mrb[0].mxu0 %v4816
      %v5019 = vpop.f32.mrb[0].mxu0
      %v5020 = vadd.f32 0.0, %v5019
      %v5021 = vpop.f32.mrb[0].mxu0
      %5022 = vmatprep.mubr.f32.mxu0 0.0
      %5023 = vmatmul.mubr.f32.gmra.mrb[0].mxu0 %v4819
      %v5024 = vpop.f32.mrb[0].mxu0
      %v5025 = vadd.f32 0.0, %v5024
      %v5026 = vpop.f32.mrb[0].mxu0
      %5027 = vmatprep.mubr.f32.mxu0 0.0
      %5028 = vmatmul.mubr.f32.gmra.mrb[0].mxu0 %v4822
      %v5029 = vpop.f32.mrb[0].mxu0
      %v5030 = vadd.f32 0.0, %v5029
      %v5031 = vpop.f32.mrb[0].mxu0
      %5032 = vmatprep.mubr.f32.mxu0 0.0
      %5033 = vmatmul.mubr.f32.gmra.mrb[0].mxu0 %v4825
      %v5034 = vpop.f32.mrb[0].mxu0
      %v5035 = vadd.f32 0.0, %v5034
      %v5036 = vpop.f32.mrb[0].mxu0
      %5037 = vmatprep.mubr.f32.mxu0 0.0
      %5038 = vmatmul.mubr.f32.gmra.mrb[0].mxu0 %v4828
      %v5039 = vpop.f32.mrb[0].mxu0
      %v5040 = vadd.f32 0.0, %v5039
      %v5041 = vpop.f32.mrb[0].mxu0
      %5042 = vmatprep.mubr.f32.mxu0 0.0
      %5043 = vmatmul.mubr.f32.gmra.mrb[0].mxu0 %v4831
      %v5044 = vpop.f32.mrb[0].mxu0
      %v5045 = vadd.f32 0.0, %v5044
      %v5046 = vpop.f32.mrb[0].mxu0
      %5047 = vmatprep.mubr.f32.mxu0 0.0
      %5048 = vmatmul.mubr.f32.gmra.mrb[0].mxu0 %v4834
      %v5049 = vpop.f32.mrb[0].mxu0
      %v5050 = vadd.f32 0.0, %v5049
      %v5051 = vpop.f32.mrb[0].mxu0
      %5052 = vmatprep.mubr.f32.mxu0 0.0
      %5053 = vmatmul.mubr.f32.gmra.mrb[0].mxu0 %v4837
      %v5054 = vpop.f32.mrb[0].mxu0
      %v5055 = vadd.f32 0.0, %v5054
      %v5056 = vpop.f32.mrb[0].mxu0
      %5057 = vmatprep.mubr.f32.mxu0 0.0
      %5058 = vmatmul.mubr.f32.gmra.mrb[0].mxu0 %v4840
      %v5059 = vpop.f32.mrb[0].mxu0
      %v5060 = vadd.f32 0.0, %v5059
      %v5061 = vpop.f32.mrb[0].mxu0
      %5062 = vmatprep.mubr.f32.mxu0 0.0
      %5063 = vmatmul.mubr.f32.gmra.mrb[0].mxu0 %v4843
      %v5064 = vpop.f32.mrb[0].mxu0
      %v5065 = vadd.f32 0.0, %v5064
      %v5066 = vpop.f32.mrb[0].mxu0
      %5067 = vmatprep.mubr.f32.mxu0 0.0
      %5068 = vmatmul.mubr.f32.gmra.mrb[0].mxu0 %v4846
      %v5069 = vpop.f32.mrb[0].mxu0
      %v5070 = vadd.f32 0.0, %v5069
      %v5071 = vpop.f32.mrb[0].mxu0
      %5072 = vdwg.mxu0
      %v5073 = vadd.f32 %v4561, %v4915
      %v5074 = vadd.f32 %v4566, %v4920
      %v5075 = vadd.f32 %v4571, %v4925
      %v5076 = vadd.f32 %v4576, %v4930
      %v5077 = vadd.f32 %v4581, %v4935
      %v5078 = vadd.f32 %v4586, %v4940
      %v5079 = vadd.f32 %v4591, %v4945
      %v5080 = vadd.f32 %v4596, %v4950
      %v5081 = vadd.f32 %v4601, %v4955
      %v5082 = vadd.f32 %v4606, %v4960
      %v5083 = vadd.f32 %v4611, %v4965
      %v5084 = vadd.f32 %v4616, %v4970
      %v5085 = vadd.f32 %v4621, %v4975
      %v5086 = vadd.f32 %v4626, %v4980
      %v5087 = vadd.f32 %v4631, %v4985
      %v5088 = vadd.f32 %v4636, %v4990
      %v5089 = vadd.f32 %v4641, %v4995
      %v5090 = vadd.f32 %v4646, %v5000
      %v5091 = vadd.f32 %v4651, %v5005
      %v5092 = vadd.f32 %v4656, %v5010
      %v5093 = vadd.f32 %v4661, %v5015
      %v5094 = vadd.f32 %v4666, %v5020
      %v5095 = vadd.f32 %v4671, %v5025
      %v5096 = vadd.f32 %v4676, %v5030
      %v5097 = vadd.f32 %v4681, %v5035
      %v5098 = vadd.f32 %v4686, %v5040
      %v5099 = vadd.f32 %v4691, %v5045
      %v5100 = vadd.f32 %v4696, %v5050
      %v5101 = vadd.f32 %v4701, %v5055
      %v5102 = vadd.f32 %v4706, %v5060
      %v5103 = vadd.f32 %v4711, %v5065
      %v5104 = vadd.f32 %v4716, %v5070
      %v5105 = vld [vmem:[%s3978] sm:$0xff]
      %v5106 = vld [vmem:[%s3978 + $0x8] sm:$0xff]
      %v5107 = vld [vmem:[%s3978 + $0x18] sm:$0xff]
      %v5108 = vld [vmem:[%s3978 + $0x20] sm:$0xff]
      %v5109 = vld [vmem:[%s3978 + $0x30] sm:$0xff]
      %v5110 = vld [vmem:[%s3978 + $0x38] sm:$0xff]
      %v5111 = vld [vmem:[%s3978 + $0x48] sm:$0xff]
      %v5112 = vld [vmem:[%s3978 + $0x50] sm:$0xff]
      %v5113 = vld [vmem:[%s3978 + $0x60] sm:$0xff]
      %v5114 = vld [vmem:[%s3978 + $0x68] sm:$0xff]
      %v5115 = vld [vmem:[%s3978 + $0x78] sm:$0xff]
      %v5116 = vld [vmem:[%s3978 + $0x80] sm:$0xff]
      %v5117 = vld [vmem:[%s3978 + $0x90] sm:$0xff]
      %v5118 = vld [vmem:[%s3978 + $0x98] sm:$0xff]
      %v5119 = vld [vmem:[%s3978 + $0xa8] sm:$0xff]
      %v5120 = vld [vmem:[%s3978 + $0xb0] sm:$0xff]
      %v5121 = vld [vmem:[%s3978 + $0xc0] sm:$0xff]
      %v5122 = vld [vmem:[%s3978 + $0xc8] sm:$0xff]
      %v5123 = vld [vmem:[%s3978 + $0xd8] sm:$0xff]
      %v5124 = vld [vmem:[%s3978 + $0xe0] sm:$0xff]
      %v5125 = vld [vmem:[%s3978 + $0xf0] sm:$0xff]
      %v5126 = vld [vmem:[%s3978 + $0xf8] sm:$0xff]
      %v5127 = vld [vmem:[%s3978 + $0x108] sm:$0xff]
      %v5128 = vld [vmem:[%s3978 + $0x110] sm:$0xff]
      %v5129 = vld [vmem:[%s3978 + $0x120] sm:$0xff]
      %v5130 = vld [vmem:[%s3978 + $0x128] sm:$0xff]
      %v5131 = vld [vmem:[%s3978 + $0x138] sm:$0xff]
      %v5132 = vld [vmem:[%s3978 + $0x140] sm:$0xff]
      %v5133 = vld [vmem:[%s3978 + $0x150] sm:$0xff]
      %v5134 = vld [vmem:[%s3978 + $0x158] sm:$0xff]
      %v5135 = vld [vmem:[%s3978 + $0x168] sm:$0xff]
      %v5136 = vld [vmem:[%s3978 + $0x170] sm:$0xff]
      %v5137 = vld [vmem:[%s3 + $0x18] sm:$0xff]
      %v5139 = vsel %vm325, %v5105, 0
      %v5142 = vsel %vm325, %v5106, 0
      %v5145 = vsel %vm325, %v5107, 0
      %v5148 = vsel %vm325, %v5108, 0
      %v5151 = vsel %vm325, %v5109, 0
      %v5154 = vsel %vm325, %v5110, 0
      %v5157 = vsel %vm325, %v5111, 0
      %v5160 = vsel %vm325, %v5112, 0
      %v5163 = vsel %vm325, %v5113, 0
      %v5166 = vsel %vm325, %v5114, 0
      %v5169 = vsel %vm325, %v5115, 0
      %v5172 = vsel %vm325, %v5116, 0
      %v5175 = vsel %vm325, %v5117, 0
      %v5178 = vsel %vm325, %v5118, 0
      %v5181 = vsel %vm325, %v5119, 0
      %v5184 = vsel %vm325, %v5120, 0
      %v5187 = vsel %vm325, %v5121, 0
      %v5190 = vsel %vm325, %v5122, 0
      %v5193 = vsel %vm325, %v5123, 0
      %v5196 = vsel %vm325, %v5124, 0
      %v5199 = vsel %vm325, %v5125, 0
      %v5202 = vsel %vm325, %v5126, 0
      %v5205 = vsel %vm325, %v5127, 0
      %v5208 = vsel %vm325, %v5128, 0
      %v5211 = vsel %vm325, %v5129, 0
      %v5214 = vsel %vm325, %v5130, 0
      %v5217 = vsel %vm325, %v5131, 0
      %v5220 = vsel %vm325, %v5132, 0
      %v5223 = vsel %vm325, %v5133, 0
      %v5226 = vsel %vm325, %v5134, 0
      %v5229 = vsel %vm325, %v5135, 0
      %v5232 = vsel %vm325, %v5136, 0
      %5234 = vmatprep.subr.mxu0 0.0
      %5235 = vmatpush1.msra.mxu0 %v5137
      %5236 = vmatprep.subr.mxu0 0.0
      %5237 = vmatpush1.msra.mxu0 0.0
      %5238 = vmatprep.subr.mxu0 0.0
      %5239 = vmatpush1.msra.mxu0 0.0
      %5240 = vmatprep.subr.mxu0 0.0
      %5241 = vmatpush1.msra.mxu0 0.0
      %5242 = vmatprep.subr.mxu0 0.0
      %5243 = vmatpush1.msra.mxu0 0.0
      %5244 = vmatprep.subr.mxu0 0.0
      %5245 = vmatpush1.msra.mxu0 0.0
      %5246 = vmatprep.subr.mxu0 0.0
      %5247 = vmatpush1.msra.mxu0 0.0
      %5248 = vmatprep.subr.mxu0 0.0
      %5249 = vmatpush1.msra.mxu0 0.0
      %5250 = vmatprep.subr.mxu0 0.0
      %5251 = vmatpush1.msra.mxu0 0.0
      %5252 = vmatprep.subr.mxu0 0.0
      %5253 = vmatpush1.msra.mxu0 0.0
      %5254 = vmatprep.subr.mxu0 0.0
      %5255 = vmatpush1.msra.mxu0 0.0
      %5256 = vmatprep.subr.mxu0 0.0
      %5257 = vmatpush1.msra.mxu0 0.0
      %5258 = vmatprep.subr.mxu0 0.0
      %5259 = vmatpush1.msra.mxu0 0.0
      %5260 = vmatprep.subr.mxu0 0.0
      %5261 = vmatpush1.msra.mxu0 0.0
      %5262 = vmatprep.subr.mxu0 0.0
      %5263 = vmatpush1.msra.mxu0 0.0
      %5264 = vmatprep.subr.mxu0 0.0
      %5265 = vmatpush1.msra.mxu0 0.0
      %5266 = vmatprep.subr.mxu0 0.0
      %5267 = vmatpush1.msra.mxu0 0.0
      %5268 = vmatprep.subr.mxu0 0.0
      %5269 = vmatpush1.msra.mxu0 0.0
      %5270 = vmatprep.subr.mxu0 0.0
      %5271 = vmatpush1.msra.mxu0 0.0
      %5272 = vmatprep.subr.mxu0 0.0
      %5273 = vmatpush1.msra.mxu0 0.0
      %5274 = vmatprep.subr.mxu0 0.0
      %5275 = vmatpush1.msra.mxu0 0.0
      %5276 = vmatprep.subr.mxu0 0.0
      %5277 = vmatpush1.msra.mxu0 0.0
      %5278 = vmatprep.subr.mxu0 0.0
      %5279 = vmatpush1.msra.mxu0 0.0
      %5280 = vmatprep.subr.mxu0 0.0
      %5281 = vmatpush1.msra.mxu0 0.0
      %5282 = vmatprep.subr.mxu0 0.0
      %5283 = vmatpush1.msra.mxu0 0.0
      %5284 = vmatprep.subr.mxu0 0.0
      %5285 = vmatpush1.msra.mxu0 0.0
      %5286 = vmatprep.subr.mxu0 0.0
      %5287 = vmatpush1.msra.mxu0 0.0
      %5288 = vmatprep.subr.mxu0 0.0
      %5289 = vmatpush1.msra.mxu0 0.0
      %5290 = vmatprep.subr.mxu0 0.0
      %5291 = vmatpush1.msra.mxu0 0.0
      %5292 = vmatprep.subr.mxu0 0.0
      %5293 = vmatpush1.msra.mxu0 0.0
      %5294 = vmatprep.subr.mxu0 0.0
      %5295 = vmatpush1.msra.mxu0 0.0
      %5296 = vmatprep.subr.mxu0 0.0
      %5297 = vmatpush1.msra.mxu0 0.0
      %5298 = vmatprep.mubr.f32.mxu0 0.0
      %5299 = vmatmul.mubr.f32.gmra.mrb[0].mxu0 %v5139
      %v5300 = vpop.f32.mrb[0].mxu0
      %v5301 = vadd.f32 0.0, %v5300
      %v5302 = vpop.f32.mrb[0].mxu0
      %5303 = vmatprep.mubr.f32.mxu0 0.0
      %5304 = vmatmul.mubr.f32.gmra.mrb[0].mxu0 %v5142
      %v5305 = vpop.f32.mrb[0].mxu0
      %v5306 = vadd.f32 0.0, %v5305
      %v5307 = vpop.f32.mrb[0].mxu0
      %5308 = vmatprep.mubr.f32.mxu0 0.0
      %5309 = vmatmul.mubr.f32.gmra.mrb[0].mxu0 %v5145
      %v5310 = vpop.f32.mrb[0].mxu0
      %v5311 = vadd.f32 0.0, %v5310
      %v5312 = vpop.f32.mrb[0].mxu0
      %5313 = vmatprep.mubr.f32.mxu0 0.0
      %5314 = vmatmul.mubr.f32.gmra.mrb[0].mxu0 %v5148
      %v5315 = vpop.f32.mrb[0].mxu0
      %v5316 = vadd.f32 0.0, %v5315
      %v5317 = vpop.f32.mrb[0].mxu0
      %5318 = vmatprep.mubr.f32.mxu0 0.0
      %5319 = vmatmul.mubr.f32.gmra.mrb[0].mxu0 %v5151
      %v5320 = vpop.f32.mrb[0].mxu0
      %v5321 = vadd.f32 0.0, %v5320
      %v5322 = vpop.f32.mrb[0].mxu0
      %5323 = vmatprep.mubr.f32.mxu0 0.0
      %5324 = vmatmul.mubr.f32.gmra.mrb[0].mxu0 %v5154
      %v5325 = vpop.f32.mrb[0].mxu0
      %v5326 = vadd.f32 0.0, %v5325
      %v5327 = vpop.f32.mrb[0].mxu0
      %5328 = vmatprep.mubr.f32.mxu0 0.0
      %5329 = vmatmul.mubr.f32.gmra.mrb[0].mxu0 %v5157
      %v5330 = vpop.f32.mrb[0].mxu0
      %v5331 = vadd.f32 0.0, %v5330
      %v5332 = vpop.f32.mrb[0].mxu0
      %5333 = vmatprep.mubr.f32.mxu0 0.0
      %5334 = vmatmul.mubr.f32.gmra.mrb[0].mxu0 %v5160
      %v5335 = vpop.f32.mrb[0].mxu0
      %v5336 = vadd.f32 0.0, %v5335
      %v5337 = vpop.f32.mrb[0].mxu0
      %5338 = vmatprep.mubr.f32.mxu0 0.0
      %5339 = vmatmul.mubr.f32.gmra.mrb[0].mxu0 %v5163
      %v5340 = vpop.f32.mrb[0].mxu0
      %v5341 = vadd.f32 0.0, %v5340
      %v5342 = vpop.f32.mrb[0].mxu0
      %5343 = vmatprep.mubr.f32.mxu0 0.0
      %5344 = vmatmul.mubr.f32.gmra.mrb[0].mxu0 %v5166
      %v5345 = vpop.f32.mrb[0].mxu0
      %v5346 = vadd.f32 0.0, %v5345
      %v5347 = vpop.f32.mrb[0].mxu0
      %5348 = vmatprep.mubr.f32.mxu0 0.0
      %5349 = vmatmul.mubr.f32.gmra.mrb[0].mxu0 %v5169
      %v5350 = vpop.f32.mrb[0].mxu0
      %v5351 = vadd.f32 0.0, %v5350
      %v5352 = vpop.f32.mrb[0].mxu0
      %5353 = vmatprep.mubr.f32.mxu0 0.0
      %5354 = vmatmul.mubr.f32.gmra.mrb[0].mxu0 %v5172
      %v5355 = vpop.f32.mrb[0].mxu0
      %v5356 = vadd.f32 0.0, %v5355
      %v5357 = vpop.f32.mrb[0].mxu0
      %5358 = vmatprep.mubr.f32.mxu0 0.0
      %5359 = vmatmul.mubr.f32.gmra.mrb[0].mxu0 %v5175
      %v5360 = vpop.f32.mrb[0].mxu0
      %v5361 = vadd.f32 0.0, %v5360
      %v5362 = vpop.f32.mrb[0].mxu0
      %5363 = vmatprep.mubr.f32.mxu0 0.0
      %5364 = vmatmul.mubr.f32.gmra.mrb[0].mxu0 %v5178
      %v5365 = vpop.f32.mrb[0].mxu0
      %v5366 = vadd.f32 0.0, %v5365
      %v5367 = vpop.f32.mrb[0].mxu0
      %5368 = vmatprep.mubr.f32.mxu0 0.0
      %5369 = vmatmul.mubr.f32.gmra.mrb[0].mxu0 %v5181
      %v5370 = vpop.f32.mrb[0].mxu0
      %v5371 = vadd.f32 0.0, %v5370
      %v5372 = vpop.f32.mrb[0].mxu0
      %5373 = vmatprep.mubr.f32.mxu0 0.0
      %5374 = vmatmul.mubr.f32.gmra.mrb[0].mxu0 %v5184
      %v5375 = vpop.f32.mrb[0].mxu0
      %v5376 = vadd.f32 0.0, %v5375
      %v5377 = vpop.f32.mrb[0].mxu0
      %5378 = vmatprep.mubr.f32.mxu0 0.0
      %5379 = vmatmul.mubr.f32.gmra.mrb[0].mxu0 %v5187
      %v5380 = vpop.f32.mrb[0].mxu0
      %v5381 = vadd.f32 0.0, %v5380
      %v5382 = vpop.f32.mrb[0].mxu0
      %5383 = vmatprep.mubr.f32.mxu0 0.0
      %5384 = vmatmul.mubr.f32.gmra.mrb[0].mxu0 %v5190
      %v5385 = vpop.f32.mrb[0].mxu0
      %v5386 = vadd.f32 0.0, %v5385
      %v5387 = vpop.f32.mrb[0].mxu0
      %5388 = vmatprep.mubr.f32.mxu0 0.0
      %5389 = vmatmul.mubr.f32.gmra.mrb[0].mxu0 %v5193
      %v5390 = vpop.f32.mrb[0].mxu0
      %v5391 = vadd.f32 0.0, %v5390
      %v5392 = vpop.f32.mrb[0].mxu0
      %5393 = vmatprep.mubr.f32.mxu0 0.0
      %5394 = vmatmul.mubr.f32.gmra.mrb[0].mxu0 %v5196
      %v5395 = vpop.f32.mrb[0].mxu0
      %v5396 = vadd.f32 0.0, %v5395
      %v5397 = vpop.f32.mrb[0].mxu0
      %5398 = vmatprep.mubr.f32.mxu0 0.0
      %5399 = vmatmul.mubr.f32.gmra.mrb[0].mxu0 %v5199
      %v5400 = vpop.f32.mrb[0].mxu0
      %v5401 = vadd.f32 0.0, %v5400
      %v5402 = vpop.f32.mrb[0].mxu0
      %5403 = vmatprep.mubr.f32.mxu0 0.0
      %5404 = vmatmul.mubr.f32.gmra.mrb[0].mxu0 %v5202
      %v5405 = vpop.f32.mrb[0].mxu0
      %v5406 = vadd.f32 0.0, %v5405
      %v5407 = vpop.f32.mrb[0].mxu0
      %5408 = vmatprep.mubr.f32.mxu0 0.0
      %5409 = vmatmul.mubr.f32.gmra.mrb[0].mxu0 %v5205
      %v5410 = vpop.f32.mrb[0].mxu0
      %v5411 = vadd.f32 0.0, %v5410
      %v5412 = vpop.f32.mrb[0].mxu0
      %5413 = vmatprep.mubr.f32.mxu0 0.0
      %5414 = vmatmul.mubr.f32.gmra.mrb[0].mxu0 %v5208
      %v5415 = vpop.f32.mrb[0].mxu0
      %v5416 = vadd.f32 0.0, %v5415
      %v5417 = vpop.f32.mrb[0].mxu0
      %5418 = vmatprep.mubr.f32.mxu0 0.0
      %5419 = vmatmul.mubr.f32.gmra.mrb[0].mxu0 %v5211
      %v5420 = vpop.f32.mrb[0].mxu0
      %v5421 = vadd.f32 0.0, %v5420
      %v5422 = vpop.f32.mrb[0].mxu0
      %5423 = vmatprep.mubr.f32.mxu0 0.0
      %5424 = vmatmul.mubr.f32.gmra.mrb[0].mxu0 %v5214
      %v5425 = vpop.f32.mrb[0].mxu0
      %v5426 = vadd.f32 0.0, %v5425
      %v5427 = vpop.f32.mrb[0].mxu0
      %5428 = vmatprep.mubr.f32.mxu0 0.0
      %5429 = vmatmul.mubr.f32.gmra.mrb[0].mxu0 %v5217
      %v5430 = vpop.f32.mrb[0].mxu0
      %v5431 = vadd.f32 0.0, %v5430
      %v5432 = vpop.f32.mrb[0].mxu0
      %5433 = vmatprep.mubr.f32.mxu0 0.0
      %5434 = vmatmul.mubr.f32.gmra.mrb[0].mxu0 %v5220
      %v5435 = vpop.f32.mrb[0].mxu0
      %v5436 = vadd.f32 0.0, %v5435
      %v5437 = vpop.f32.mrb[0].mxu0
      %5438 = vmatprep.mubr.f32.mxu0 0.0
      %5439 = vmatmul.mubr.f32.gmra.mrb[0].mxu0 %v5223
      %v5440 = vpop.f32.mrb[0].mxu0
      %v5441 = vadd.f32 0.0, %v5440
      %v5442 = vpop.f32.mrb[0].mxu0
      %5443 = vmatprep.mubr.f32.mxu0 0.0
      %5444 = vmatmul.mubr.f32.gmra.mrb[0].mxu0 %v5226
      %v5445 = vpop.f32.mrb[0].mxu0
      %v5446 = vadd.f32 0.0, %v5445
      %v5447 = vpop.f32.mrb[0].mxu0
      %5448 = vmatprep.mubr.f32.mxu0 0.0
      %5449 = vmatmul.mubr.f32.gmra.mrb[0].mxu0 %v5229
      %v5450 = vpop.f32.mrb[0].mxu0
      %v5451 = vadd.f32 0.0, %v5450
      %v5452 = vpop.f32.mrb[0].mxu0
      %5453 = vmatprep.mubr.f32.mxu0 0.0
      %5454 = vmatmul.mubr.f32.gmra.mrb[0].mxu0 %v5232
      %v5455 = vpop.f32.mrb[0].mxu0
      %v5456 = vadd.f32 0.0, %v5455
      %v5457 = vpop.f32.mrb[0].mxu0
      %5458 = vdwg.mxu0
      %v5459 = vadd.f32 %v5073, %v5301
      %v5460 = vadd.f32 %v5074, %v5306
      %v5461 = vadd.f32 %v5075, %v5311
      %v5462 = vadd.f32 %v5076, %v5316
      %v5463 = vadd.f32 %v5077, %v5321
      %v5464 = vadd.f32 %v5078, %v5326
      %v5465 = vadd.f32 %v5079, %v5331
      %v5466 = vadd.f32 %v5080, %v5336
      %v5467 = vadd.f32 %v5081, %v5341
      %v5468 = vadd.f32 %v5082, %v5346
      %v5469 = vadd.f32 %v5083, %v5351
      %v5470 = vadd.f32 %v5084, %v5356
      %v5471 = vadd.f32 %v5085, %v5361
      %v5472 = vadd.f32 %v5086, %v5366
      %v5473 = vadd.f32 %v5087, %v5371
      %v5474 = vadd.f32 %v5088, %v5376
      %v5475 = vadd.f32 %v5089, %v5381
      %v5476 = vadd.f32 %v5090, %v5386
      %v5477 = vadd.f32 %v5091, %v5391
      %v5478 = vadd.f32 %v5092, %v5396
      %v5479 = vadd.f32 %v5093, %v5401
      %v5480 = vadd.f32 %v5094, %v5406
      %v5481 = vadd.f32 %v5095, %v5411
      %v5482 = vadd.f32 %v5096, %v5416
      %v5483 = vadd.f32 %v5097, %v5421
      %v5484 = vadd.f32 %v5098, %v5426
      %v5485 = vadd.f32 %v5099, %v5431
      %v5486 = vadd.f32 %v5100, %v5436
      %v5487 = vadd.f32 %v5101, %v5441
      %v5488 = vadd.f32 %v5102, %v5446
      %v5489 = vadd.f32 %v5103, %v5451
      %v5490 = vadd.f32 %v5104, %v5456
      %v5491 = vld [vmem:[%s3978 + $0x1] sm:$0xff]
      %v5492 = vld [vmem:[%s3978 + $0x9] sm:$0xff]
      %v5493 = vld [vmem:[%s3978 + $0x19] sm:$0xff]
      %v5494 = vld [vmem:[%s3978 + $0x21] sm:$0xff]
      %v5495 = vld [vmem:[%s3978 + $0x31] sm:$0xff]
      %v5496 = vld [vmem:[%s3978 + $0x39] sm:$0xff]
      %v5497 = vld [vmem:[%s3978 + $0x49] sm:$0xff]
      %v5498 = vld [vmem:[%s3978 + $0x51] sm:$0xff]
      %v5499 = vld [vmem:[%s3978 + $0x61] sm:$0xff]
      %v5500 = vld [vmem:[%s3978 + $0x69] sm:$0xff]
      %v5501 = vld [vmem:[%s3978 + $0x79] sm:$0xff]
      %v5502 = vld [vmem:[%s3978 + $0x81] sm:$0xff]
      %v5503 = vld [vmem:[%s3978 + $0x91] sm:$0xff]
      %v5504 = vld [vmem:[%s3978 + $0x99] sm:$0xff]
      %v5505 = vld [vmem:[%s3978 + $0xa9] sm:$0xff]
      %v5506 = vld [vmem:[%s3978 + $0xb1] sm:$0xff]
      %v5507 = vld [vmem:[%s3978 + $0xc1] sm:$0xff]
      %v5508 = vld [vmem:[%s3978 + $0xc9] sm:$0xff]
      %v5509 = vld [vmem:[%s3978 + $0xd9] sm:$0xff]
      %v5510 = vld [vmem:[%s3978 + $0xe1] sm:$0xff]
      %v5511 = vld [vmem:[%s3978 + $0xf1] sm:$0xff]
      %v5512 = vld [vmem:[%s3978 + $0xf9] sm:$0xff]
      %v5513 = vld [vmem:[%s3978 + $0x109] sm:$0xff]
      %v5514 = vld [vmem:[%s3978 + $0x111] sm:$0xff]
      %v5515 = vld [vmem:[%s3978 + $0x121] sm:$0xff]
      %v5516 = vld [vmem:[%s3978 + $0x129] sm:$0xff]
      %v5517 = vld [vmem:[%s3978 + $0x139] sm:$0xff]
      %v5518 = vld [vmem:[%s3978 + $0x141] sm:$0xff]
      %v5519 = vld [vmem:[%s3978 + $0x151] sm:$0xff]
      %v5520 = vld [vmem:[%s3978 + $0x159] sm:$0xff]
      %v5521 = vld [vmem:[%s3978 + $0x169] sm:$0xff]
      %v5522 = vld [vmem:[%s3978 + $0x171] sm:$0xff]
      %v5523 = vld [vmem:[%s3 + $0x20] sm:$0xff]
      %v5525 = vsel %vm325, %v5491, 0
      %v5528 = vsel %vm325, %v5492, 0
      %v5531 = vsel %vm325, %v5493, 0
      %v5534 = vsel %vm325, %v5494, 0
      %v5537 = vsel %vm325, %v5495, 0
      %v5540 = vsel %vm325, %v5496, 0
      %v5543 = vsel %vm325, %v5497, 0
      %v5546 = vsel %vm325, %v5498, 0
      %v5549 = vsel %vm325, %v5499, 0
      %v5552 = vsel %vm325, %v5500, 0
      %v5555 = vsel %vm325, %v5501, 0
      %v5558 = vsel %vm325, %v5502, 0
      %v5561 = vsel %vm325, %v5503, 0
      %v5564 = vsel %vm325, %v5504, 0
      %v5567 = vsel %vm325, %v5505, 0
      %v5570 = vsel %vm325, %v5506, 0
      %v5573 = vsel %vm325, %v5507, 0
      %v5576 = vsel %vm325, %v5508, 0
      %v5579 = vsel %vm325, %v5509, 0
      %v5582 = vsel %vm325, %v5510, 0
      %v5585 = vsel %vm325, %v5511, 0
      %v5588 = vsel %vm325, %v5512, 0
      %v5591 = vsel %vm325, %v5513, 0
      %v5594 = vsel %vm325, %v5514, 0
      %v5597 = vsel %vm325, %v5515, 0
      %v5600 = vsel %vm325, %v5516, 0
      %v5603 = vsel %vm325, %v5517, 0
      %v5606 = vsel %vm325, %v5518, 0
      %v5609 = vsel %vm325, %v5519, 0
      %v5612 = vsel %vm325, %v5520, 0
      %v5615 = vsel %vm325, %v5521, 0
      %v5618 = vsel %vm325, %v5522, 0
      %5620 = vmatprep.subr.mxu0 0.0
      %5621 = vmatpush1.msra.mxu0 %v5523
      %5622 = vmatprep.subr.mxu0 0.0
      %5623 = vmatpush1.msra.mxu0 0.0
      %5624 = vmatprep.subr.mxu0 0.0
      %5625 = vmatpush1.msra.mxu0 0.0
      %5626 = vmatprep.subr.mxu0 0.0
      %5627 = vmatpush1.msra.mxu0 0.0
      %5628 = vmatprep.subr.mxu0 0.0
      %5629 = vmatpush1.msra.mxu0 0.0
      %5630 = vmatprep.subr.mxu0 0.0
      %5631 = vmatpush1.msra.mxu0 0.0
      %5632 = vmatprep.subr.mxu0 0.0
      %5633 = vmatpush1.msra.mxu0 0.0
      %5634 = vmatprep.subr.mxu0 0.0
      %5635 = vmatpush1.msra.mxu0 0.0
      %5636 = vmatprep.subr.mxu0 0.0
      %5637 = vmatpush1.msra.mxu0 0.0
      %5638 = vmatprep.subr.mxu0 0.0
      %5639 = vmatpush1.msra.mxu0 0.0
      %5640 = vmatprep.subr.mxu0 0.0
      %5641 = vmatpush1.msra.mxu0 0.0
      %5642 = vmatprep.subr.mxu0 0.0
      %5643 = vmatpush1.msra.mxu0 0.0
      %5644 = vmatprep.subr.mxu0 0.0
      %5645 = vmatpush1.msra.mxu0 0.0
      %5646 = vmatprep.subr.mxu0 0.0
      %5647 = vmatpush1.msra.mxu0 0.0
      %5648 = vmatprep.subr.mxu0 0.0
      %5649 = vmatpush1.msra.mxu0 0.0
      %5650 = vmatprep.subr.mxu0 0.0
      %5651 = vmatpush1.msra.mxu0 0.0
      %5652 = vmatprep.subr.mxu0 0.0
      %5653 = vmatpush1.msra.mxu0 0.0
      %5654 = vmatprep.subr.mxu0 0.0
      %5655 = vmatpush1.msra.mxu0 0.0
      %5656 = vmatprep.subr.mxu0 0.0
      %5657 = vmatpush1.msra.mxu0 0.0
      %5658 = vmatprep.subr.mxu0 0.0
      %5659 = vmatpush1.msra.mxu0 0.0
      %5660 = vmatprep.subr.mxu0 0.0
      %5661 = vmatpush1.msra.mxu0 0.0
      %5662 = vmatprep.subr.mxu0 0.0
      %5663 = vmatpush1.msra.mxu0 0.0
      %5664 = vmatprep.subr.mxu0 0.0
      %5665 = vmatpush1.msra.mxu0 0.0
      %5666 = vmatprep.subr.mxu0 0.0
      %5667 = vmatpush1.msra.mxu0 0.0
      %5668 = vmatprep.subr.mxu0 0.0
      %5669 = vmatpush1.msra.mxu0 0.0
      %5670 = vmatprep.subr.mxu0 0.0
      %5671 = vmatpush1.msra.mxu0 0.0
      %5672 = vmatprep.subr.mxu0 0.0
      %5673 = vmatpush1.msra.mxu0 0.0
      %5674 = vmatprep.subr.mxu0 0.0
      %5675 = vmatpush1.msra.mxu0 0.0
      %5676 = vmatprep.subr.mxu0 0.0
      %5677 = vmatpush1.msra.mxu0 0.0
      %5678 = vmatprep.subr.mxu0 0.0
      %5679 = vmatpush1.msra.mxu0 0.0
      %5680 = vmatprep.subr.mxu0 0.0
      %5681 = vmatpush1.msra.mxu0 0.0
      %5682 = vmatprep.subr.mxu0 0.0
      %5683 = vmatpush1.msra.mxu0 0.0
      %5684 = vmatprep.mubr.f32.mxu0 0.0
      %5685 = vmatmul.mubr.f32.gmra.mrb[0].mxu0 %v5525
      %v5686 = vpop.f32.mrb[0].mxu0
      %v5687 = vadd.f32 0.0, %v5686
      %v5688 = vpop.f32.mrb[0].mxu0
      %5689 = vmatprep.mubr.f32.mxu0 0.0
      %5690 = vmatmul.mubr.f32.gmra.mrb[0].mxu0 %v5528
      %v5691 = vpop.f32.mrb[0].mxu0
      %v5692 = vadd.f32 0.0, %v5691
      %v5693 = vpop.f32.mrb[0].mxu0
      %5694 = vmatprep.mubr.f32.mxu0 0.0
      %5695 = vmatmul.mubr.f32.gmra.mrb[0].mxu0 %v5531
      %v5696 = vpop.f32.mrb[0].mxu0
      %v5697 = vadd.f32 0.0, %v5696
      %v5698 = vpop.f32.mrb[0].mxu0
      %5699 = vmatprep.mubr.f32.mxu0 0.0
      %5700 = vmatmul.mubr.f32.gmra.mrb[0].mxu0 %v5534
      %v5701 = vpop.f32.mrb[0].mxu0
      %v5702 = vadd.f32 0.0, %v5701
      %v5703 = vpop.f32.mrb[0].mxu0
      %5704 = vmatprep.mubr.f32.mxu0 0.0
      %5705 = vmatmul.mubr.f32.gmra.mrb[0].mxu0 %v5537
      %v5706 = vpop.f32.mrb[0].mxu0
      %v5707 = vadd.f32 0.0, %v5706
      %v5708 = vpop.f32.mrb[0].mxu0
      %5709 = vmatprep.mubr.f32.mxu0 0.0
      %5710 = vmatmul.mubr.f32.gmra.mrb[0].mxu0 %v5540
      %v5711 = vpop.f32.mrb[0].mxu0
      %v5712 = vadd.f32 0.0, %v5711
      %v5713 = vpop.f32.mrb[0].mxu0
      %5714 = vmatprep.mubr.f32.mxu0 0.0
      %5715 = vmatmul.mubr.f32.gmra.mrb[0].mxu0 %v5543
      %v5716 = vpop.f32.mrb[0].mxu0
      %v5717 = vadd.f32 0.0, %v5716
      %v5718 = vpop.f32.mrb[0].mxu0
      %5719 = vmatprep.mubr.f32.mxu0 0.0
      %5720 = vmatmul.mubr.f32.gmra.mrb[0].mxu0 %v5546
      %v5721 = vpop.f32.mrb[0].mxu0
      %v5722 = vadd.f32 0.0, %v5721
      %v5723 = vpop.f32.mrb[0].mxu0
      %5724 = vmatprep.mubr.f32.mxu0 0.0
      %5725 = vmatmul.mubr.f32.gmra.mrb[0].mxu0 %v5549
      %v5726 = vpop.f32.mrb[0].mxu0
      %v5727 = vadd.f32 0.0, %v5726
      %v5728 = vpop.f32.mrb[0].mxu0
      %5729 = vmatprep.mubr.f32.mxu0 0.0
      %5730 = vmatmul.mubr.f32.gmra.mrb[0].mxu0 %v5552
      %v5731 = vpop.f32.mrb[0].mxu0
      %v5732 = vadd.f32 0.0, %v5731
      %v5733 = vpop.f32.mrb[0].mxu0
      %5734 = vmatprep.mubr.f32.mxu0 0.0
      %5735 = vmatmul.mubr.f32.gmra.mrb[0].mxu0 %v5555
      %v5736 = vpop.f32.mrb[0].mxu0
      %v5737 = vadd.f32 0.0, %v5736
      %v5738 = vpop.f32.mrb[0].mxu0
      %5739 = vmatprep.mubr.f32.mxu0 0.0
      %5740 = vmatmul.mubr.f32.gmra.mrb[0].mxu0 %v5558
      %v5741 = vpop.f32.mrb[0].mxu0
      %v5742 = vadd.f32 0.0, %v5741
      %v5743 = vpop.f32.mrb[0].mxu0
      %5744 = vmatprep.mubr.f32.mxu0 0.0
      %5745 = vmatmul.mubr.f32.gmra.mrb[0].mxu0 %v5561
      %v5746 = vpop.f32.mrb[0].mxu0
      %v5747 = vadd.f32 0.0, %v5746
      %v5748 = vpop.f32.mrb[0].mxu0
      %5749 = vmatprep.mubr.f32.mxu0 0.0
      %5750 = vmatmul.mubr.f32.gmra.mrb[0].mxu0 %v5564
      %v5751 = vpop.f32.mrb[0].mxu0
      %v5752 = vadd.f32 0.0, %v5751
      %v5753 = vpop.f32.mrb[0].mxu0
      %5754 = vmatprep.mubr.f32.mxu0 0.0
      %5755 = vmatmul.mubr.f32.gmra.mrb[0].mxu0 %v5567
      %v5756 = vpop.f32.mrb[0].mxu0
      %v5757 = vadd.f32 0.0, %v5756
      %v5758 = vpop.f32.mrb[0].mxu0
      %5759 = vmatprep.mubr.f32.mxu0 0.0
      %5760 = vmatmul.mubr.f32.gmra.mrb[0].mxu0 %v5570
      %v5761 = vpop.f32.mrb[0].mxu0
      %v5762 = vadd.f32 0.0, %v5761
      %v5763 = vpop.f32.mrb[0].mxu0
      %5764 = vmatprep.mubr.f32.mxu0 0.0
      %5765 = vmatmul.mubr.f32.gmra.mrb[0].mxu0 %v5573
      %v5766 = vpop.f32.mrb[0].mxu0
      %v5767 = vadd.f32 0.0, %v5766
      %v5768 = vpop.f32.mrb[0].mxu0
      %5769 = vmatprep.mubr.f32.mxu0 0.0
      %5770 = vmatmul.mubr.f32.gmra.mrb[0].mxu0 %v5576
      %v5771 = vpop.f32.mrb[0].mxu0
      %v5772 = vadd.f32 0.0, %v5771
      %v5773 = vpop.f32.mrb[0].mxu0
      %5774 = vmatprep.mubr.f32.mxu0 0.0
      %5775 = vmatmul.mubr.f32.gmra.mrb[0].mxu0 %v5579
      %v5776 = vpop.f32.mrb[0].mxu0
      %v5777 = vadd.f32 0.0, %v5776
      %v5778 = vpop.f32.mrb[0].mxu0
      %5779 = vmatprep.mubr.f32.mxu0 0.0
      %5780 = vmatmul.mubr.f32.gmra.mrb[0].mxu0 %v5582
      %v5781 = vpop.f32.mrb[0].mxu0
      %v5782 = vadd.f32 0.0, %v5781
      %v5783 = vpop.f32.mrb[0].mxu0
      %5784 = vmatprep.mubr.f32.mxu0 0.0
      %5785 = vmatmul.mubr.f32.gmra.mrb[0].mxu0 %v5585
      %v5786 = vpop.f32.mrb[0].mxu0
      %v5787 = vadd.f32 0.0, %v5786
      %v5788 = vpop.f32.mrb[0].mxu0
      %5789 = vmatprep.mubr.f32.mxu0 0.0
      %5790 = vmatmul.mubr.f32.gmra.mrb[0].mxu0 %v5588
      %v5791 = vpop.f32.mrb[0].mxu0
      %v5792 = vadd.f32 0.0, %v5791
      %v5793 = vpop.f32.mrb[0].mxu0
      %5794 = vmatprep.mubr.f32.mxu0 0.0
      %5795 = vmatmul.mubr.f32.gmra.mrb[0].mxu0 %v5591
      %v5796 = vpop.f32.mrb[0].mxu0
      %v5797 = vadd.f32 0.0, %v5796
      %v5798 = vpop.f32.mrb[0].mxu0
      %5799 = vmatprep.mubr.f32.mxu0 0.0
      %5800 = vmatmul.mubr.f32.gmra.mrb[0].mxu0 %v5594
      %v5801 = vpop.f32.mrb[0].mxu0
      %v5802 = vadd.f32 0.0, %v5801
      %v5803 = vpop.f32.mrb[0].mxu0
      %5804 = vmatprep.mubr.f32.mxu0 0.0
      %5805 = vmatmul.mubr.f32.gmra.mrb[0].mxu0 %v5597
      %v5806 = vpop.f32.mrb[0].mxu0
      %v5807 = vadd.f32 0.0, %v5806
      %v5808 = vpop.f32.mrb[0].mxu0
      %5809 = vmatprep.mubr.f32.mxu0 0.0
      %5810 = vmatmul.mubr.f32.gmra.mrb[0].mxu0 %v5600
      %v5811 = vpop.f32.mrb[0].mxu0
      %v5812 = vadd.f32 0.0, %v5811
      %v5813 = vpop.f32.mrb[0].mxu0
      %5814 = vmatprep.mubr.f32.mxu0 0.0
      %5815 = vmatmul.mubr.f32.gmra.mrb[0].mxu0 %v5603
      %v5816 = vpop.f32.mrb[0].mxu0
      %v5817 = vadd.f32 0.0, %v5816
      %v5818 = vpop.f32.mrb[0].mxu0
      %5819 = vmatprep.mubr.f32.mxu0 0.0
      %5820 = vmatmul.mubr.f32.gmra.mrb[0].mxu0 %v5606
      %v5821 = vpop.f32.mrb[0].mxu0
      %v5822 = vadd.f32 0.0, %v5821
      %v5823 = vpop.f32.mrb[0].mxu0
      %5824 = vmatprep.mubr.f32.mxu0 0.0
      %5825 = vmatmul.mubr.f32.gmra.mrb[0].mxu0 %v5609
      %v5826 = vpop.f32.mrb[0].mxu0
      %v5827 = vadd.f32 0.0, %v5826
      %v5828 = vpop.f32.mrb[0].mxu0
      %5829 = vmatprep.mubr.f32.mxu0 0.0
      %5830 = vmatmul.mubr.f32.gmra.mrb[0].mxu0 %v5612
      %v5831 = vpop.f32.mrb[0].mxu0
      %v5832 = vadd.f32 0.0, %v5831
      %v5833 = vpop.f32.mrb[0].mxu0
      %5834 = vmatprep.mubr.f32.mxu0 0.0
      %5835 = vmatmul.mubr.f32.gmra.mrb[0].mxu0 %v5615
      %v5836 = vpop.f32.mrb[0].mxu0
      %v5837 = vadd.f32 0.0, %v5836
      %v5838 = vpop.f32.mrb[0].mxu0
      %5839 = vmatprep.mubr.f32.mxu0 0.0
      %5840 = vmatmul.mubr.f32.gmra.mrb[0].mxu0 %v5618
      %v5841 = vpop.f32.mrb[0].mxu0
      %v5842 = vadd.f32 0.0, %v5841
      %v5843 = vpop.f32.mrb[0].mxu0
      %5844 = vdwg.mxu0
      %v5845 = vadd.f32 %v5459, %v5687
      %v5846 = vadd.f32 %v5460, %v5692
      %v5847 = vadd.f32 %v5461, %v5697
      %v5848 = vadd.f32 %v5462, %v5702
      %v5849 = vadd.f32 %v5463, %v5707
      %v5850 = vadd.f32 %v5464, %v5712
      %v5851 = vadd.f32 %v5465, %v5717
      %v5852 = vadd.f32 %v5466, %v5722
      %v5853 = vadd.f32 %v5467, %v5727
      %v5854 = vadd.f32 %v5468, %v5732
      %v5855 = vadd.f32 %v5469, %v5737
      %v5856 = vadd.f32 %v5470, %v5742
      %v5857 = vadd.f32 %v5471, %v5747
      %v5858 = vadd.f32 %v5472, %v5752
      %v5859 = vadd.f32 %v5473, %v5757
      %v5860 = vadd.f32 %v5474, %v5762
      %v5861 = vadd.f32 %v5475, %v5767
      %v5862 = vadd.f32 %v5476, %v5772
      %v5863 = vadd.f32 %v5477, %v5777
      %v5864 = vadd.f32 %v5478, %v5782
      %v5865 = vadd.f32 %v5479, %v5787
      %v5866 = vadd.f32 %v5480, %v5792
      %v5867 = vadd.f32 %v5481, %v5797
      %v5868 = vadd.f32 %v5482, %v5802
      %v5869 = vadd.f32 %v5483, %v5807
      %v5870 = vadd.f32 %v5484, %v5812
      %v5871 = vadd.f32 %v5485, %v5817
      %v5872 = vadd.f32 %v5486, %v5822
      %v5873 = vadd.f32 %v5487, %v5827
      %v5874 = vadd.f32 %v5488, %v5832
      %v5875 = vadd.f32 %v5489, %v5837
      %v5876 = vadd.f32 %v5490, %v5842
      %v5877 = vld [vmem:[%s3978 + $0x2] sm:$0xff]
      %v5878 = vld [vmem:[%s3978 + $0xa] sm:$0xff]
      %v5879 = vld [vmem:[%s3978 + $0x1a] sm:$0xff]
      %v5880 = vld [vmem:[%s3978 + $0x22] sm:$0xff]
      %v5881 = vld [vmem:[%s3978 + $0x32] sm:$0xff]
      %v5882 = vld [vmem:[%s3978 + $0x3a] sm:$0xff]
      %v5883 = vld [vmem:[%s3978 + $0x4a] sm:$0xff]
      %v5884 = vld [vmem:[%s3978 + $0x52] sm:$0xff]
      %v5885 = vld [vmem:[%s3978 + $0x62] sm:$0xff]
      %v5886 = vld [vmem:[%s3978 + $0x6a] sm:$0xff]
      %v5887 = vld [vmem:[%s3978 + $0x7a] sm:$0xff]
      %v5888 = vld [vmem:[%s3978 + $0x82] sm:$0xff]
      %v5889 = vld [vmem:[%s3978 + $0x92] sm:$0xff]
      %v5890 = vld [vmem:[%s3978 + $0x9a] sm:$0xff]
      %v5891 = vld [vmem:[%s3978 + $0xaa] sm:$0xff]
      %v5892 = vld [vmem:[%s3978 + $0xb2] sm:$0xff]
      %v5893 = vld [vmem:[%s3978 + $0xc2] sm:$0xff]
      %v5894 = vld [vmem:[%s3978 + $0xca] sm:$0xff]
      %v5895 = vld [vmem:[%s3978 + $0xda] sm:$0xff]
      %v5896 = vld [vmem:[%s3978 + $0xe2] sm:$0xff]
      %v5897 = vld [vmem:[%s3978 + $0xf2] sm:$0xff]
      %v5898 = vld [vmem:[%s3978 + $0xfa] sm:$0xff]
      %v5899 = vld [vmem:[%s3978 + $0x10a] sm:$0xff]
      %v5900 = vld [vmem:[%s3978 + $0x112] sm:$0xff]
      %v5901 = vld [vmem:[%s3978 + $0x122] sm:$0xff]
      %v5902 = vld [vmem:[%s3978 + $0x12a] sm:$0xff]
      %v5903 = vld [vmem:[%s3978 + $0x13a] sm:$0xff]
      %v5904 = vld [vmem:[%s3978 + $0x142] sm:$0xff]
      %v5905 = vld [vmem:[%s3978 + $0x152] sm:$0xff]
      %v5906 = vld [vmem:[%s3978 + $0x15a] sm:$0xff]
      %v5907 = vld [vmem:[%s3978 + $0x16a] sm:$0xff]
      %v5908 = vld [vmem:[%s3978 + $0x172] sm:$0xff]
      %v5909 = vld [vmem:[%s3 + $0x28] sm:$0xff]
      %v5911 = vsel %vm325, %v5877, 0
      %v5914 = vsel %vm325, %v5878, 0
      %v5917 = vsel %vm325, %v5879, 0
      %v5920 = vsel %vm325, %v5880, 0
      %v5923 = vsel %vm325, %v5881, 0
      %v5926 = vsel %vm325, %v5882, 0
      %v5929 = vsel %vm325, %v5883, 0
      %v5932 = vsel %vm325, %v5884, 0
      %v5935 = vsel %vm325, %v5885, 0
      %v5938 = vsel %vm325, %v5886, 0
      %v5941 = vsel %vm325, %v5887, 0
      %v5944 = vsel %vm325, %v5888, 0
      %v5947 = vsel %vm325, %v5889, 0
      %v5950 = vsel %vm325, %v5890, 0
      %v5953 = vsel %vm325, %v5891, 0
      %v5956 = vsel %vm325, %v5892, 0
      %v5959 = vsel %vm325, %v5893, 0
      %v5962 = vsel %vm325, %v5894, 0
      %v5965 = vsel %vm325, %v5895, 0
      %v5968 = vsel %vm325, %v5896, 0
      %v5971 = vsel %vm325, %v5897, 0
      %v5974 = vsel %vm325, %v5898, 0
      %v5977 = vsel %vm325, %v5899, 0
      %v5980 = vsel %vm325, %v5900, 0
      %v5983 = vsel %vm325, %v5901, 0
      %v5986 = vsel %vm325, %v5902, 0
      %v5989 = vsel %vm325, %v5903, 0
      %v5992 = vsel %vm325, %v5904, 0
      %v5995 = vsel %vm325, %v5905, 0
      %v5998 = vsel %vm325, %v5906, 0
      %v6001 = vsel %vm325, %v5907, 0
      %v6004 = vsel %vm325, %v5908, 0
      %6006 = vmatprep.subr.mxu0 0.0
      %6007 = vmatpush1.msra.mxu0 %v5909
      %6008 = vmatprep.subr.mxu0 0.0
      %6009 = vmatpush1.msra.mxu0 0.0
      %6010 = vmatprep.subr.mxu0 0.0
      %6011 = vmatpush1.msra.mxu0 0.0
      %6012 = vmatprep.subr.mxu0 0.0
      %6013 = vmatpush1.msra.mxu0 0.0
      %6014 = vmatprep.subr.mxu0 0.0
      %6015 = vmatpush1.msra.mxu0 0.0
      %6016 = vmatprep.subr.mxu0 0.0
      %6017 = vmatpush1.msra.mxu0 0.0
      %6018 = vmatprep.subr.mxu0 0.0
      %6019 = vmatpush1.msra.mxu0 0.0
      %6020 = vmatprep.subr.mxu0 0.0
      %6021 = vmatpush1.msra.mxu0 0.0
      %6022 = vmatprep.subr.mxu0 0.0
      %6023 = vmatpush1.msra.mxu0 0.0
      %6024 = vmatprep.subr.mxu0 0.0
      %6025 = vmatpush1.msra.mxu0 0.0
      %6026 = vmatprep.subr.mxu0 0.0
      %6027 = vmatpush1.msra.mxu0 0.0
      %6028 = vmatprep.subr.mxu0 0.0
      %6029 = vmatpush1.msra.mxu0 0.0
      %6030 = vmatprep.subr.mxu0 0.0
      %6031 = vmatpush1.msra.mxu0 0.0
      %6032 = vmatprep.subr.mxu0 0.0
      %6033 = vmatpush1.msra.mxu0 0.0
      %6034 = vmatprep.subr.mxu0 0.0
      %6035 = vmatpush1.msra.mxu0 0.0
      %6036 = vmatprep.subr.mxu0 0.0
      %6037 = vmatpush1.msra.mxu0 0.0
      %6038 = vmatprep.subr.mxu0 0.0
      %6039 = vmatpush1.msra.mxu0 0.0
      %6040 = vmatprep.subr.mxu0 0.0
      %6041 = vmatpush1.msra.mxu0 0.0
      %6042 = vmatprep.subr.mxu0 0.0
      %6043 = vmatpush1.msra.mxu0 0.0
      %6044 = vmatprep.subr.mxu0 0.0
      %6045 = vmatpush1.msra.mxu0 0.0
      %6046 = vmatprep.subr.mxu0 0.0
      %6047 = vmatpush1.msra.mxu0 0.0
      %6048 = vmatprep.subr.mxu0 0.0
      %6049 = vmatpush1.msra.mxu0 0.0
      %6050 = vmatprep.subr.mxu0 0.0
      %6051 = vmatpush1.msra.mxu0 0.0
      %6052 = vmatprep.subr.mxu0 0.0
      %6053 = vmatpush1.msra.mxu0 0.0
      %6054 = vmatprep.subr.mxu0 0.0
      %6055 = vmatpush1.msra.mxu0 0.0
      %6056 = vmatprep.subr.mxu0 0.0
      %6057 = vmatpush1.msra.mxu0 0.0
      %6058 = vmatprep.subr.mxu0 0.0
      %6059 = vmatpush1.msra.mxu0 0.0
      %6060 = vmatprep.subr.mxu0 0.0
      %6061 = vmatpush1.msra.mxu0 0.0
      %6062 = vmatprep.subr.mxu0 0.0
      %6063 = vmatpush1.msra.mxu0 0.0
      %6064 = vmatprep.subr.mxu0 0.0
      %6065 = vmatpush1.msra.mxu0 0.0
      %6066 = vmatprep.subr.mxu0 0.0
      %6067 = vmatpush1.msra.mxu0 0.0
      %6068 = vmatprep.subr.mxu0 0.0
      %6069 = vmatpush1.msra.mxu0 0.0
      %6070 = vmatprep.mubr.f32.mxu0 0.0
      %6071 = vmatmul.mubr.f32.gmra.mrb[0].mxu0 %v5911
      %v6072 = vpop.f32.mrb[0].mxu0
      %v6073 = vadd.f32 0.0, %v6072
      %v6074 = vpop.f32.mrb[0].mxu0
      %6075 = vmatprep.mubr.f32.mxu0 0.0
      %6076 = vmatmul.mubr.f32.gmra.mrb[0].mxu0 %v5914
      %v6077 = vpop.f32.mrb[0].mxu0
      %v6078 = vadd.f32 0.0, %v6077
      %v6079 = vpop.f32.mrb[0].mxu0
      %6080 = vmatprep.mubr.f32.mxu0 0.0
      %6081 = vmatmul.mubr.f32.gmra.mrb[0].mxu0 %v5917
      %v6082 = vpop.f32.mrb[0].mxu0
      %v6083 = vadd.f32 0.0, %v6082
      %v6084 = vpop.f32.mrb[0].mxu0
      %6085 = vmatprep.mubr.f32.mxu0 0.0
      %6086 = vmatmul.mubr.f32.gmra.mrb[0].mxu0 %v5920
      %v6087 = vpop.f32.mrb[0].mxu0
      %v6088 = vadd.f32 0.0, %v6087
      %v6089 = vpop.f32.mrb[0].mxu0
      %6090 = vmatprep.mubr.f32.mxu0 0.0
      %6091 = vmatmul.mubr.f32.gmra.mrb[0].mxu0 %v5923
      %v6092 = vpop.f32.mrb[0].mxu0
      %v6093 = vadd.f32 0.0, %v6092
      %v6094 = vpop.f32.mrb[0].mxu0
      %6095 = vmatprep.mubr.f32.mxu0 0.0
      %6096 = vmatmul.mubr.f32.gmra.mrb[0].mxu0 %v5926
      %v6097 = vpop.f32.mrb[0].mxu0
      %v6098 = vadd.f32 0.0, %v6097
      %v6099 = vpop.f32.mrb[0].mxu0
      %6100 = vmatprep.mubr.f32.mxu0 0.0
      %6101 = vmatmul.mubr.f32.gmra.mrb[0].mxu0 %v5929
      %v6102 = vpop.f32.mrb[0].mxu0
      %v6103 = vadd.f32 0.0, %v6102
      %v6104 = vpop.f32.mrb[0].mxu0
      %6105 = vmatprep.mubr.f32.mxu0 0.0
      %6106 = vmatmul.mubr.f32.gmra.mrb[0].mxu0 %v5932
      %v6107 = vpop.f32.mrb[0].mxu0
      %v6108 = vadd.f32 0.0, %v6107
      %v6109 = vpop.f32.mrb[0].mxu0
      %6110 = vmatprep.mubr.f32.mxu0 0.0
      %6111 = vmatmul.mubr.f32.gmra.mrb[0].mxu0 %v5935
      %v6112 = vpop.f32.mrb[0].mxu0
      %v6113 = vadd.f32 0.0, %v6112
      %v6114 = vpop.f32.mrb[0].mxu0
      %6115 = vmatprep.mubr.f32.mxu0 0.0
      %6116 = vmatmul.mubr.f32.gmra.mrb[0].mxu0 %v5938
      %v6117 = vpop.f32.mrb[0].mxu0
      %v6118 = vadd.f32 0.0, %v6117
      %v6119 = vpop.f32.mrb[0].mxu0
      %6120 = vmatprep.mubr.f32.mxu0 0.0
      %6121 = vmatmul.mubr.f32.gmra.mrb[0].mxu0 %v5941
      %v6122 = vpop.f32.mrb[0].mxu0
      %v6123 = vadd.f32 0.0, %v6122
      %v6124 = vpop.f32.mrb[0].mxu0
      %6125 = vmatprep.mubr.f32.mxu0 0.0
      %6126 = vmatmul.mubr.f32.gmra.mrb[0].mxu0 %v5944
      %v6127 = vpop.f32.mrb[0].mxu0
      %v6128 = vadd.f32 0.0, %v6127
      %v6129 = vpop.f32.mrb[0].mxu0
      %6130 = vmatprep.mubr.f32.mxu0 0.0
      %6131 = vmatmul.mubr.f32.gmra.mrb[0].mxu0 %v5947
      %v6132 = vpop.f32.mrb[0].mxu0
      %v6133 = vadd.f32 0.0, %v6132
      %v6134 = vpop.f32.mrb[0].mxu0
      %6135 = vmatprep.mubr.f32.mxu0 0.0
      %6136 = vmatmul.mubr.f32.gmra.mrb[0].mxu0 %v5950
      %v6137 = vpop.f32.mrb[0].mxu0
      %v6138 = vadd.f32 0.0, %v6137
      %v6139 = vpop.f32.mrb[0].mxu0
      %6140 = vmatprep.mubr.f32.mxu0 0.0
      %6141 = vmatmul.mubr.f32.gmra.mrb[0].mxu0 %v5953
      %v6142 = vpop.f32.mrb[0].mxu0
      %v6143 = vadd.f32 0.0, %v6142
      %v6144 = vpop.f32.mrb[0].mxu0
      %6145 = vmatprep.mubr.f32.mxu0 0.0
      %6146 = vmatmul.mubr.f32.gmra.mrb[0].mxu0 %v5956
      %v6147 = vpop.f32.mrb[0].mxu0
      %v6148 = vadd.f32 0.0, %v6147
      %v6149 = vpop.f32.mrb[0].mxu0
      %6150 = vmatprep.mubr.f32.mxu0 0.0
      %6151 = vmatmul.mubr.f32.gmra.mrb[0].mxu0 %v5959
      %v6152 = vpop.f32.mrb[0].mxu0
      %v6153 = vadd.f32 0.0, %v6152
      %v6154 = vpop.f32.mrb[0].mxu0
      %6155 = vmatprep.mubr.f32.mxu0 0.0
      %6156 = vmatmul.mubr.f32.gmra.mrb[0].mxu0 %v5962
      %v6157 = vpop.f32.mrb[0].mxu0
      %v6158 = vadd.f32 0.0, %v6157
      %v6159 = vpop.f32.mrb[0].mxu0
      %6160 = vmatprep.mubr.f32.mxu0 0.0
      %6161 = vmatmul.mubr.f32.gmra.mrb[0].mxu0 %v5965
      %v6162 = vpop.f32.mrb[0].mxu0
      %v6163 = vadd.f32 0.0, %v6162
      %v6164 = vpop.f32.mrb[0].mxu0
      %6165 = vmatprep.mubr.f32.mxu0 0.0
      %6166 = vmatmul.mubr.f32.gmra.mrb[0].mxu0 %v5968
      %v6167 = vpop.f32.mrb[0].mxu0
      %v6168 = vadd.f32 0.0, %v6167
      %v6169 = vpop.f32.mrb[0].mxu0
      %6170 = vmatprep.mubr.f32.mxu0 0.0
      %6171 = vmatmul.mubr.f32.gmra.mrb[0].mxu0 %v5971
      %v6172 = vpop.f32.mrb[0].mxu0
      %v6173 = vadd.f32 0.0, %v6172
      %v6174 = vpop.f32.mrb[0].mxu0
      %6175 = vmatprep.mubr.f32.mxu0 0.0
      %6176 = vmatmul.mubr.f32.gmra.mrb[0].mxu0 %v5974
      %v6177 = vpop.f32.mrb[0].mxu0
      %v6178 = vadd.f32 0.0, %v6177
      %v6179 = vpop.f32.mrb[0].mxu0
      %6180 = vmatprep.mubr.f32.mxu0 0.0
      %6181 = vmatmul.mubr.f32.gmra.mrb[0].mxu0 %v5977
      %v6182 = vpop.f32.mrb[0].mxu0
      %v6183 = vadd.f32 0.0, %v6182
      %v6184 = vpop.f32.mrb[0].mxu0
      %6185 = vmatprep.mubr.f32.mxu0 0.0
      %6186 = vmatmul.mubr.f32.gmra.mrb[0].mxu0 %v5980
      %v6187 = vpop.f32.mrb[0].mxu0
      %v6188 = vadd.f32 0.0, %v6187
      %v6189 = vpop.f32.mrb[0].mxu0
      %6190 = vmatprep.mubr.f32.mxu0 0.0
      %6191 = vmatmul.mubr.f32.gmra.mrb[0].mxu0 %v5983
      %v6192 = vpop.f32.mrb[0].mxu0
      %v6193 = vadd.f32 0.0, %v6192
      %v6194 = vpop.f32.mrb[0].mxu0
      %6195 = vmatprep.mubr.f32.mxu0 0.0
      %6196 = vmatmul.mubr.f32.gmra.mrb[0].mxu0 %v5986
      %v6197 = vpop.f32.mrb[0].mxu0
      %v6198 = vadd.f32 0.0, %v6197
      %v6199 = vpop.f32.mrb[0].mxu0
      %6200 = vmatprep.mubr.f32.mxu0 0.0
      %6201 = vmatmul.mubr.f32.gmra.mrb[0].mxu0 %v5989
      %v6202 = vpop.f32.mrb[0].mxu0
      %v6203 = vadd.f32 0.0, %v6202
      %v6204 = vpop.f32.mrb[0].mxu0
      %6205 = vmatprep.mubr.f32.mxu0 0.0
      %6206 = vmatmul.mubr.f32.gmra.mrb[0].mxu0 %v5992
      %v6207 = vpop.f32.mrb[0].mxu0
      %v6208 = vadd.f32 0.0, %v6207
      %v6209 = vpop.f32.mrb[0].mxu0
      %6210 = vmatprep.mubr.f32.mxu0 0.0
      %6211 = vmatmul.mubr.f32.gmra.mrb[0].mxu0 %v5995
      %v6212 = vpop.f32.mrb[0].mxu0
      %v6213 = vadd.f32 0.0, %v6212
      %v6214 = vpop.f32.mrb[0].mxu0
      %6215 = vmatprep.mubr.f32.mxu0 0.0
      %6216 = vmatmul.mubr.f32.gmra.mrb[0].mxu0 %v5998
      %v6217 = vpop.f32.mrb[0].mxu0
      %v6218 = vadd.f32 0.0, %v6217
      %v6219 = vpop.f32.mrb[0].mxu0
      %6220 = vmatprep.mubr.f32.mxu0 0.0
      %6221 = vmatmul.mubr.f32.gmra.mrb[0].mxu0 %v6001
      %v6222 = vpop.f32.mrb[0].mxu0
      %v6223 = vadd.f32 0.0, %v6222
      %v6224 = vpop.f32.mrb[0].mxu0
      %6225 = vmatprep.mubr.f32.mxu0 0.0
      %6226 = vmatmul.mubr.f32.gmra.mrb[0].mxu0 %v6004
      %v6227 = vpop.f32.mrb[0].mxu0
      %v6228 = vadd.f32 0.0, %v6227
      %v6229 = vpop.f32.mrb[0].mxu0
      %6230 = vdwg.mxu0
      %v6231 = vadd.f32 %v5845, %v6073
      %v6232 = vadd.f32 %v5846, %v6078
      %v6233 = vadd.f32 %v5847, %v6083
      %v6234 = vadd.f32 %v5848, %v6088
      %v6235 = vadd.f32 %v5849, %v6093
      %v6236 = vadd.f32 %v5850, %v6098
      %v6237 = vadd.f32 %v5851, %v6103
      %v6238 = vadd.f32 %v5852, %v6108
      %v6239 = vadd.f32 %v5853, %v6113
      %v6240 = vadd.f32 %v5854, %v6118
      %v6241 = vadd.f32 %v5855, %v6123
      %v6242 = vadd.f32 %v5856, %v6128
      %v6243 = vadd.f32 %v5857, %v6133
      %v6244 = vadd.f32 %v5858, %v6138
      %v6245 = vadd.f32 %v5859, %v6143
      %v6246 = vadd.f32 %v5860, %v6148
      %v6247 = vadd.f32 %v5861, %v6153
      %v6248 = vadd.f32 %v5862, %v6158
      %v6249 = vadd.f32 %v5863, %v6163
      %v6250 = vadd.f32 %v5864, %v6168
      %v6251 = vadd.f32 %v5865, %v6173
      %v6252 = vadd.f32 %v5866, %v6178
      %v6253 = vadd.f32 %v5867, %v6183
      %v6254 = vadd.f32 %v5868, %v6188
      %v6255 = vadd.f32 %v5869, %v6193
      %v6256 = vadd.f32 %v5870, %v6198
      %v6257 = vadd.f32 %v5871, %v6203
      %v6258 = vadd.f32 %v5872, %v6208
      %v6259 = vadd.f32 %v5873, %v6213
      %v6260 = vadd.f32 %v5874, %v6218
      %v6261 = vadd.f32 %v5875, %v6223
      %v6262 = vadd.f32 %v5876, %v6228
      %s6263 = scalar_lea.vmem [#allocation3], 48
      %v6264 = vld [vmem:[%s6263] sm:$0xff]
      %v6265 = vld [vmem:[%s6263 + $0x8] sm:$0xff]
      %v6266 = vld [vmem:[%s6263 + $0x18] sm:$0xff]
      %v6267 = vld [vmem:[%s6263 + $0x20] sm:$0xff]
      %v6268 = vld [vmem:[%s6263 + $0x30] sm:$0xff]
      %v6269 = vld [vmem:[%s6263 + $0x38] sm:$0xff]
      %v6270 = vld [vmem:[%s6263 + $0x48] sm:$0xff]
      %v6271 = vld [vmem:[%s6263 + $0x50] sm:$0xff]
      %v6272 = vld [vmem:[%s6263 + $0x60] sm:$0xff]
      %v6273 = vld [vmem:[%s6263 + $0x68] sm:$0xff]
      %v6274 = vld [vmem:[%s6263 + $0x78] sm:$0xff]
      %v6275 = vld [vmem:[%s6263 + $0x80] sm:$0xff]
      %v6276 = vld [vmem:[%s6263 + $0x90] sm:$0xff]
      %v6277 = vld [vmem:[%s6263 + $0x98] sm:$0xff]
      %v6278 = vld [vmem:[%s6263 + $0xa8] sm:$0xff]
      %v6279 = vld [vmem:[%s6263 + $0xb0] sm:$0xff]
      %v6280 = vld [vmem:[%s6263 + $0xc0] sm:$0xff]
      %v6281 = vld [vmem:[%s6263 + $0xc8] sm:$0xff]
      %v6282 = vld [vmem:[%s6263 + $0xd8] sm:$0xff]
      %v6283 = vld [vmem:[%s6263 + $0xe0] sm:$0xff]
      %v6284 = vld [vmem:[%s6263 + $0xf0] sm:$0xff]
      %v6285 = vld [vmem:[%s6263 + $0xf8] sm:$0xff]
      %v6286 = vld [vmem:[%s6263 + $0x108] sm:$0xff]
      %v6287 = vld [vmem:[%s6263 + $0x110] sm:$0xff]
      %v6288 = vld [vmem:[%s6263 + $0x120] sm:$0xff]
      %v6289 = vld [vmem:[%s6263 + $0x128] sm:$0xff]
      %v6290 = vld [vmem:[%s6263 + $0x138] sm:$0xff]
      %v6291 = vld [vmem:[%s6263 + $0x140] sm:$0xff]
      %v6292 = vld [vmem:[%s6263 + $0x150] sm:$0xff]
      %v6293 = vld [vmem:[%s6263 + $0x158] sm:$0xff]
      %v6294 = vld [vmem:[%s6263 + $0x168] sm:$0xff]
      %v6295 = vld [vmem:[%s6263 + $0x170] sm:$0xff]
      %v6296 = vld [vmem:[%s3 + $0x30] sm:$0xff]
      %v6298 = vsel %vm325, %v6264, 0
      %v6301 = vsel %vm325, %v6265, 0
      %v6304 = vsel %vm325, %v6266, 0
      %v6307 = vsel %vm325, %v6267, 0
      %v6310 = vsel %vm325, %v6268, 0
      %v6313 = vsel %vm325, %v6269, 0
      %v6316 = vsel %vm325, %v6270, 0
      %v6319 = vsel %vm325, %v6271, 0
      %v6322 = vsel %vm325, %v6272, 0
      %v6325 = vsel %vm325, %v6273, 0
      %v6328 = vsel %vm325, %v6274, 0
      %v6331 = vsel %vm325, %v6275, 0
      %v6334 = vsel %vm325, %v6276, 0
      %v6337 = vsel %vm325, %v6277, 0
      %v6340 = vsel %vm325, %v6278, 0
      %v6343 = vsel %vm325, %v6279, 0
      %v6346 = vsel %vm325, %v6280, 0
      %v6349 = vsel %vm325, %v6281, 0
      %v6352 = vsel %vm325, %v6282, 0
      %v6355 = vsel %vm325, %v6283, 0
      %v6358 = vsel %vm325, %v6284, 0
      %v6361 = vsel %vm325, %v6285, 0
      %v6364 = vsel %vm325, %v6286, 0
      %v6367 = vsel %vm325, %v6287, 0
      %v6370 = vsel %vm325, %v6288, 0
      %v6373 = vsel %vm325, %v6289, 0
      %v6376 = vsel %vm325, %v6290, 0
      %v6379 = vsel %vm325, %v6291, 0
      %v6382 = vsel %vm325, %v6292, 0
      %v6385 = vsel %vm325, %v6293, 0
      %v6388 = vsel %vm325, %v6294, 0
      %v6391 = vsel %vm325, %v6295, 0
      %6393 = vmatprep.subr.mxu0 0.0
      %6394 = vmatpush1.msra.mxu0 %v6296
      %6395 = vmatprep.subr.mxu0 0.0
      %6396 = vmatpush1.msra.mxu0 0.0
      %6397 = vmatprep.subr.mxu0 0.0
      %6398 = vmatpush1.msra.mxu0 0.0
      %6399 = vmatprep.subr.mxu0 0.0
      %6400 = vmatpush1.msra.mxu0 0.0
      %6401 = vmatprep.subr.mxu0 0.0
      %6402 = vmatpush1.msra.mxu0 0.0
      %6403 = vmatprep.subr.mxu0 0.0
      %6404 = vmatpush1.msra.mxu0 0.0
      %6405 = vmatprep.subr.mxu0 0.0
      %6406 = vmatpush1.msra.mxu0 0.0
      %6407 = vmatprep.subr.mxu0 0.0
      %6408 = vmatpush1.msra.mxu0 0.0
      %6409 = vmatprep.subr.mxu0 0.0
      %6410 = vmatpush1.msra.mxu0 0.0
      %6411 = vmatprep.subr.mxu0 0.0
      %6412 = vmatpush1.msra.mxu0 0.0
      %6413 = vmatprep.subr.mxu0 0.0
      %6414 = vmatpush1.msra.mxu0 0.0
      %6415 = vmatprep.subr.mxu0 0.0
      %6416 = vmatpush1.msra.mxu0 0.0
      %6417 = vmatprep.subr.mxu0 0.0
      %6418 = vmatpush1.msra.mxu0 0.0
      %6419 = vmatprep.subr.mxu0 0.0
      %6420 = vmatpush1.msra.mxu0 0.0
      %6421 = vmatprep.subr.mxu0 0.0
      %6422 = vmatpush1.msra.mxu0 0.0
      %6423 = vmatprep.subr.mxu0 0.0
      %6424 = vmatpush1.msra.mxu0 0.0
      %6425 = vmatprep.subr.mxu0 0.0
      %6426 = vmatpush1.msra.mxu0 0.0
      %6427 = vmatprep.subr.mxu0 0.0
      %6428 = vmatpush1.msra.mxu0 0.0
      %6429 = vmatprep.subr.mxu0 0.0
      %6430 = vmatpush1.msra.mxu0 0.0
      %6431 = vmatprep.subr.mxu0 0.0
      %6432 = vmatpush1.msra.mxu0 0.0
      %6433 = vmatprep.subr.mxu0 0.0
      %6434 = vmatpush1.msra.mxu0 0.0
      %6435 = vmatprep.subr.mxu0 0.0
      %6436 = vmatpush1.msra.mxu0 0.0
      %6437 = vmatprep.subr.mxu0 0.0
      %6438 = vmatpush1.msra.mxu0 0.0
      %6439 = vmatprep.subr.mxu0 0.0
      %6440 = vmatpush1.msra.mxu0 0.0
      %6441 = vmatprep.subr.mxu0 0.0
      %6442 = vmatpush1.msra.mxu0 0.0
      %6443 = vmatprep.subr.mxu0 0.0
      %6444 = vmatpush1.msra.mxu0 0.0
      %6445 = vmatprep.subr.mxu0 0.0
      %6446 = vmatpush1.msra.mxu0 0.0
      %6447 = vmatprep.subr.mxu0 0.0
      %6448 = vmatpush1.msra.mxu0 0.0
      %6449 = vmatprep.subr.mxu0 0.0
      %6450 = vmatpush1.msra.mxu0 0.0
      %6451 = vmatprep.subr.mxu0 0.0
      %6452 = vmatpush1.msra.mxu0 0.0
      %6453 = vmatprep.subr.mxu0 0.0
      %6454 = vmatpush1.msra.mxu0 0.0
      %6455 = vmatprep.subr.mxu0 0.0
      %6456 = vmatpush1.msra.mxu0 0.0
      %6457 = vmatprep.mubr.f32.mxu0 0.0
      %6458 = vmatmul.mubr.f32.gmra.mrb[0].mxu0 %v6298
      %v6459 = vpop.f32.mrb[0].mxu0
      %v6460 = vadd.f32 0.0, %v6459
      %v6461 = vpop.f32.mrb[0].mxu0
      %6462 = vmatprep.mubr.f32.mxu0 0.0
      %6463 = vmatmul.mubr.f32.gmra.mrb[0].mxu0 %v6301
      %v6464 = vpop.f32.mrb[0].mxu0
      %v6465 = vadd.f32 0.0, %v6464
      %v6466 = vpop.f32.mrb[0].mxu0
      %6467 = vmatprep.mubr.f32.mxu0 0.0
      %6468 = vmatmul.mubr.f32.gmra.mrb[0].mxu0 %v6304
      %v6469 = vpop.f32.mrb[0].mxu0
      %v6470 = vadd.f32 0.0, %v6469
      %v6471 = vpop.f32.mrb[0].mxu0
      %6472 = vmatprep.mubr.f32.mxu0 0.0
      %6473 = vmatmul.mubr.f32.gmra.mrb[0].mxu0 %v6307
      %v6474 = vpop.f32.mrb[0].mxu0
      %v6475 = vadd.f32 0.0, %v6474
      %v6476 = vpop.f32.mrb[0].mxu0
      %6477 = vmatprep.mubr.f32.mxu0 0.0
      %6478 = vmatmul.mubr.f32.gmra.mrb[0].mxu0 %v6310
      %v6479 = vpop.f32.mrb[0].mxu0
      %v6480 = vadd.f32 0.0, %v6479
      %v6481 = vpop.f32.mrb[0].mxu0
      %6482 = vmatprep.mubr.f32.mxu0 0.0
      %6483 = vmatmul.mubr.f32.gmra.mrb[0].mxu0 %v6313
      %v6484 = vpop.f32.mrb[0].mxu0
      %v6485 = vadd.f32 0.0, %v6484
      %v6486 = vpop.f32.mrb[0].mxu0
      %6487 = vmatprep.mubr.f32.mxu0 0.0
      %6488 = vmatmul.mubr.f32.gmra.mrb[0].mxu0 %v6316
      %v6489 = vpop.f32.mrb[0].mxu0
      %v6490 = vadd.f32 0.0, %v6489
      %v6491 = vpop.f32.mrb[0].mxu0
      %6492 = vmatprep.mubr.f32.mxu0 0.0
      %6493 = vmatmul.mubr.f32.gmra.mrb[0].mxu0 %v6319
      %v6494 = vpop.f32.mrb[0].mxu0
      %v6495 = vadd.f32 0.0, %v6494
      %v6496 = vpop.f32.mrb[0].mxu0
      %6497 = vmatprep.mubr.f32.mxu0 0.0
      %6498 = vmatmul.mubr.f32.gmra.mrb[0].mxu0 %v6322
      %v6499 = vpop.f32.mrb[0].mxu0
      %v6500 = vadd.f32 0.0, %v6499
      %v6501 = vpop.f32.mrb[0].mxu0
      %6502 = vmatprep.mubr.f32.mxu0 0.0
      %6503 = vmatmul.mubr.f32.gmra.mrb[0].mxu0 %v6325
      %v6504 = vpop.f32.mrb[0].mxu0
      %v6505 = vadd.f32 0.0, %v6504
      %v6506 = vpop.f32.mrb[0].mxu0
      %6507 = vmatprep.mubr.f32.mxu0 0.0
      %6508 = vmatmul.mubr.f32.gmra.mrb[0].mxu0 %v6328
      %v6509 = vpop.f32.mrb[0].mxu0
      %v6510 = vadd.f32 0.0, %v6509
      %v6511 = vpop.f32.mrb[0].mxu0
      %6512 = vmatprep.mubr.f32.mxu0 0.0
      %6513 = vmatmul.mubr.f32.gmra.mrb[0].mxu0 %v6331
      %v6514 = vpop.f32.mrb[0].mxu0
      %v6515 = vadd.f32 0.0, %v6514
      %v6516 = vpop.f32.mrb[0].mxu0
      %6517 = vmatprep.mubr.f32.mxu0 0.0
      %6518 = vmatmul.mubr.f32.gmra.mrb[0].mxu0 %v6334
      %v6519 = vpop.f32.mrb[0].mxu0
      %v6520 = vadd.f32 0.0, %v6519
      %v6521 = vpop.f32.mrb[0].mxu0
      %6522 = vmatprep.mubr.f32.mxu0 0.0
      %6523 = vmatmul.mubr.f32.gmra.mrb[0].mxu0 %v6337
      %v6524 = vpop.f32.mrb[0].mxu0
      %v6525 = vadd.f32 0.0, %v6524
      %v6526 = vpop.f32.mrb[0].mxu0
      %6527 = vmatprep.mubr.f32.mxu0 0.0
      %6528 = vmatmul.mubr.f32.gmra.mrb[0].mxu0 %v6340
      %v6529 = vpop.f32.mrb[0].mxu0
      %v6530 = vadd.f32 0.0, %v6529
      %v6531 = vpop.f32.mrb[0].mxu0
      %6532 = vmatprep.mubr.f32.mxu0 0.0
      %6533 = vmatmul.mubr.f32.gmra.mrb[0].mxu0 %v6343
      %v6534 = vpop.f32.mrb[0].mxu0
      %v6535 = vadd.f32 0.0, %v6534
      %v6536 = vpop.f32.mrb[0].mxu0
      %6537 = vmatprep.mubr.f32.mxu0 0.0
      %6538 = vmatmul.mubr.f32.gmra.mrb[0].mxu0 %v6346
      %v6539 = vpop.f32.mrb[0].mxu0
      %v6540 = vadd.f32 0.0, %v6539
      %v6541 = vpop.f32.mrb[0].mxu0
      %6542 = vmatprep.mubr.f32.mxu0 0.0
      %6543 = vmatmul.mubr.f32.gmra.mrb[0].mxu0 %v6349
      %v6544 = vpop.f32.mrb[0].mxu0
      %v6545 = vadd.f32 0.0, %v6544
      %v6546 = vpop.f32.mrb[0].mxu0
      %6547 = vmatprep.mubr.f32.mxu0 0.0
      %6548 = vmatmul.mubr.f32.gmra.mrb[0].mxu0 %v6352
      %v6549 = vpop.f32.mrb[0].mxu0
      %v6550 = vadd.f32 0.0, %v6549
      %v6551 = vpop.f32.mrb[0].mxu0
      %6552 = vmatprep.mubr.f32.mxu0 0.0
      %6553 = vmatmul.mubr.f32.gmra.mrb[0].mxu0 %v6355
      %v6554 = vpop.f32.mrb[0].mxu0
      %v6555 = vadd.f32 0.0, %v6554
      %v6556 = vpop.f32.mrb[0].mxu0
      %6557 = vmatprep.mubr.f32.mxu0 0.0
      %6558 = vmatmul.mubr.f32.gmra.mrb[0].mxu0 %v6358
      %v6559 = vpop.f32.mrb[0].mxu0
      %v6560 = vadd.f32 0.0, %v6559
      %v6561 = vpop.f32.mrb[0].mxu0
      %6562 = vmatprep.mubr.f32.mxu0 0.0
      %6563 = vmatmul.mubr.f32.gmra.mrb[0].mxu0 %v6361
      %v6564 = vpop.f32.mrb[0].mxu0
      %v6565 = vadd.f32 0.0, %v6564
      %v6566 = vpop.f32.mrb[0].mxu0
      %6567 = vmatprep.mubr.f32.mxu0 0.0
      %6568 = vmatmul.mubr.f32.gmra.mrb[0].mxu0 %v6364
      %v6569 = vpop.f32.mrb[0].mxu0
      %v6570 = vadd.f32 0.0, %v6569
      %v6571 = vpop.f32.mrb[0].mxu0
      %6572 = vmatprep.mubr.f32.mxu0 0.0
      %6573 = vmatmul.mubr.f32.gmra.mrb[0].mxu0 %v6367
      %v6574 = vpop.f32.mrb[0].mxu0
      %v6575 = vadd.f32 0.0, %v6574
      %v6576 = vpop.f32.mrb[0].mxu0
      %6577 = vmatprep.mubr.f32.mxu0 0.0
      %6578 = vmatmul.mubr.f32.gmra.mrb[0].mxu0 %v6370
      %v6579 = vpop.f32.mrb[0].mxu0
      %v6580 = vadd.f32 0.0, %v6579
      %v6581 = vpop.f32.mrb[0].mxu0
      %6582 = vmatprep.mubr.f32.mxu0 0.0
      %6583 = vmatmul.mubr.f32.gmra.mrb[0].mxu0 %v6373
      %v6584 = vpop.f32.mrb[0].mxu0
      %v6585 = vadd.f32 0.0, %v6584
      %v6586 = vpop.f32.mrb[0].mxu0
      %6587 = vmatprep.mubr.f32.mxu0 0.0
      %6588 = vmatmul.mubr.f32.gmra.mrb[0].mxu0 %v6376
      %v6589 = vpop.f32.mrb[0].mxu0
      %v6590 = vadd.f32 0.0, %v6589
      %v6591 = vpop.f32.mrb[0].mxu0
      %6592 = vmatprep.mubr.f32.mxu0 0.0
      %6593 = vmatmul.mubr.f32.gmra.mrb[0].mxu0 %v6379
      %v6594 = vpop.f32.mrb[0].mxu0
      %v6595 = vadd.f32 0.0, %v6594
      %v6596 = vpop.f32.mrb[0].mxu0
      %6597 = vmatprep.mubr.f32.mxu0 0.0
      %6598 = vmatmul.mubr.f32.gmra.mrb[0].mxu0 %v6382
      %v6599 = vpop.f32.mrb[0].mxu0
      %v6600 = vadd.f32 0.0, %v6599
      %v6601 = vpop.f32.mrb[0].mxu0
      %6602 = vmatprep.mubr.f32.mxu0 0.0
      %6603 = vmatmul.mubr.f32.gmra.mrb[0].mxu0 %v6385
      %v6604 = vpop.f32.mrb[0].mxu0
      %v6605 = vadd.f32 0.0, %v6604
      %v6606 = vpop.f32.mrb[0].mxu0
      %6607 = vmatprep.mubr.f32.mxu0 0.0
      %6608 = vmatmul.mubr.f32.gmra.mrb[0].mxu0 %v6388
      %v6609 = vpop.f32.mrb[0].mxu0
      %v6610 = vadd.f32 0.0, %v6609
      %v6611 = vpop.f32.mrb[0].mxu0
      %6612 = vmatprep.mubr.f32.mxu0 0.0
      %6613 = vmatmul.mubr.f32.gmra.mrb[0].mxu0 %v6391
      %v6614 = vpop.f32.mrb[0].mxu0
      %v6615 = vadd.f32 0.0, %v6614
      %v6616 = vpop.f32.mrb[0].mxu0
      %6617 = vdwg.mxu0
      %v6618 = vadd.f32 %v6231, %v6460
      %v6619 = vadd.f32 %v6232, %v6465
      %v6620 = vadd.f32 %v6233, %v6470
      %v6621 = vadd.f32 %v6234, %v6475
      %v6622 = vadd.f32 %v6235, %v6480
      %v6623 = vadd.f32 %v6236, %v6485
      %v6624 = vadd.f32 %v6237, %v6490
      %v6625 = vadd.f32 %v6238, %v6495
      %v6626 = vadd.f32 %v6239, %v6500
      %v6627 = vadd.f32 %v6240, %v6505
      %v6628 = vadd.f32 %v6241, %v6510
      %v6629 = vadd.f32 %v6242, %v6515
      %v6630 = vadd.f32 %v6243, %v6520
      %v6631 = vadd.f32 %v6244, %v6525
      %v6632 = vadd.f32 %v6245, %v6530
      %v6633 = vadd.f32 %v6246, %v6535
      %v6634 = vadd.f32 %v6247, %v6540
      %v6635 = vadd.f32 %v6248, %v6545
      %v6636 = vadd.f32 %v6249, %v6550
      %v6637 = vadd.f32 %v6250, %v6555
      %v6638 = vadd.f32 %v6251, %v6560
      %v6639 = vadd.f32 %v6252, %v6565
      %v6640 = vadd.f32 %v6253, %v6570
      %v6641 = vadd.f32 %v6254, %v6575
      %v6642 = vadd.f32 %v6255, %v6580
      %v6643 = vadd.f32 %v6256, %v6585
      %v6644 = vadd.f32 %v6257, %v6590
      %v6645 = vadd.f32 %v6258, %v6595
      %v6646 = vadd.f32 %v6259, %v6600
      %v6647 = vadd.f32 %v6260, %v6605
      %v6648 = vadd.f32 %v6261, %v6610
      %v6649 = vadd.f32 %v6262, %v6615
      %v6650 = vld [vmem:[%s6263 + $0x1] sm:$0xff]
      %v6651 = vld [vmem:[%s6263 + $0x9] sm:$0xff]
      %v6652 = vld [vmem:[%s6263 + $0x19] sm:$0xff]
      %v6653 = vld [vmem:[%s6263 + $0x21] sm:$0xff]
      %v6654 = vld [vmem:[%s6263 + $0x31] sm:$0xff]
      %v6655 = vld [vmem:[%s6263 + $0x39] sm:$0xff]
      %v6656 = vld [vmem:[%s6263 + $0x49] sm:$0xff]
      %v6657 = vld [vmem:[%s6263 + $0x51] sm:$0xff]
      %v6658 = vld [vmem:[%s6263 + $0x61] sm:$0xff]
      %v6659 = vld [vmem:[%s6263 + $0x69] sm:$0xff]
      %v6660 = vld [vmem:[%s6263 + $0x79] sm:$0xff]
      %v6661 = vld [vmem:[%s6263 + $0x81] sm:$0xff]
      %v6662 = vld [vmem:[%s6263 + $0x91] sm:$0xff]
      %v6663 = vld [vmem:[%s6263 + $0x99] sm:$0xff]
      %v6664 = vld [vmem:[%s6263 + $0xa9] sm:$0xff]
      %v6665 = vld [vmem:[%s6263 + $0xb1] sm:$0xff]
      %v6666 = vld [vmem:[%s6263 + $0xc1] sm:$0xff]
      %v6667 = vld [vmem:[%s6263 + $0xc9] sm:$0xff]
      %v6668 = vld [vmem:[%s6263 + $0xd9] sm:$0xff]
      %v6669 = vld [vmem:[%s6263 + $0xe1] sm:$0xff]
      %v6670 = vld [vmem:[%s6263 + $0xf1] sm:$0xff]
      %v6671 = vld [vmem:[%s6263 + $0xf9] sm:$0xff]
      %v6672 = vld [vmem:[%s6263 + $0x109] sm:$0xff]
      %v6673 = vld [vmem:[%s6263 + $0x111] sm:$0xff]
      %v6674 = vld [vmem:[%s6263 + $0x121] sm:$0xff]
      %v6675 = vld [vmem:[%s6263 + $0x129] sm:$0xff]
      %v6676 = vld [vmem:[%s6263 + $0x139] sm:$0xff]
      %v6677 = vld [vmem:[%s6263 + $0x141] sm:$0xff]
      %v6678 = vld [vmem:[%s6263 + $0x151] sm:$0xff]
      %v6679 = vld [vmem:[%s6263 + $0x159] sm:$0xff]
      %v6680 = vld [vmem:[%s6263 + $0x169] sm:$0xff]
      %v6681 = vld [vmem:[%s6263 + $0x171] sm:$0xff]
      %v6682 = vld [vmem:[%s3 + $0x38] sm:$0xff]
      %v6684 = vsel %vm325, %v6650, 0
      %v6687 = vsel %vm325, %v6651, 0
      %v6690 = vsel %vm325, %v6652, 0
      %v6693 = vsel %vm325, %v6653, 0
      %v6696 = vsel %vm325, %v6654, 0
      %v6699 = vsel %vm325, %v6655, 0
      %v6702 = vsel %vm325, %v6656, 0
      %v6705 = vsel %vm325, %v6657, 0
      %v6708 = vsel %vm325, %v6658, 0
      %v6711 = vsel %vm325, %v6659, 0
      %v6714 = vsel %vm325, %v6660, 0
      %v6717 = vsel %vm325, %v6661, 0
      %v6720 = vsel %vm325, %v6662, 0
      %v6723 = vsel %vm325, %v6663, 0
      %v6726 = vsel %vm325, %v6664, 0
      %v6729 = vsel %vm325, %v6665, 0
      %v6732 = vsel %vm325, %v6666, 0
      %v6735 = vsel %vm325, %v6667, 0
      %v6738 = vsel %vm325, %v6668, 0
      %v6741 = vsel %vm325, %v6669, 0
      %v6744 = vsel %vm325, %v6670, 0
      %v6747 = vsel %vm325, %v6671, 0
      %v6750 = vsel %vm325, %v6672, 0
      %v6753 = vsel %vm325, %v6673, 0
      %v6756 = vsel %vm325, %v6674, 0
      %v6759 = vsel %vm325, %v6675, 0
      %v6762 = vsel %vm325, %v6676, 0
      %v6765 = vsel %vm325, %v6677, 0
      %v6768 = vsel %vm325, %v6678, 0
      %v6771 = vsel %vm325, %v6679, 0
      %v6774 = vsel %vm325, %v6680, 0
      %v6777 = vsel %vm325, %v6681, 0
      %6779 = vmatprep.subr.mxu0 0.0
      %6780 = vmatpush1.msra.mxu0 %v6682
      %6781 = vmatprep.subr.mxu0 0.0
      %6782 = vmatpush1.msra.mxu0 0.0
      %6783 = vmatprep.subr.mxu0 0.0
      %6784 = vmatpush1.msra.mxu0 0.0
      %6785 = vmatprep.subr.mxu0 0.0
      %6786 = vmatpush1.msra.mxu0 0.0
      %6787 = vmatprep.subr.mxu0 0.0
      %6788 = vmatpush1.msra.mxu0 0.0
      %6789 = vmatprep.subr.mxu0 0.0
      %6790 = vmatpush1.msra.mxu0 0.0
      %6791 = vmatprep.subr.mxu0 0.0
      %6792 = vmatpush1.msra.mxu0 0.0
      %6793 = vmatprep.subr.mxu0 0.0
      %6794 = vmatpush1.msra.mxu0 0.0
      %6795 = vmatprep.subr.mxu0 0.0
      %6796 = vmatpush1.msra.mxu0 0.0
      %6797 = vmatprep.subr.mxu0 0.0
      %6798 = vmatpush1.msra.mxu0 0.0
      %6799 = vmatprep.subr.mxu0 0.0
      %6800 = vmatpush1.msra.mxu0 0.0
      %6801 = vmatprep.subr.mxu0 0.0
      %6802 = vmatpush1.msra.mxu0 0.0
      %6803 = vmatprep.subr.mxu0 0.0
      %6804 = vmatpush1.msra.mxu0 0.0
      %6805 = vmatprep.subr.mxu0 0.0
      %6806 = vmatpush1.msra.mxu0 0.0
      %6807 = vmatprep.subr.mxu0 0.0
      %6808 = vmatpush1.msra.mxu0 0.0
      %6809 = vmatprep.subr.mxu0 0.0
      %6810 = vmatpush1.msra.mxu0 0.0
      %6811 = vmatprep.subr.mxu0 0.0
      %6812 = vmatpush1.msra.mxu0 0.0
      %6813 = vmatprep.subr.mxu0 0.0
      %6814 = vmatpush1.msra.mxu0 0.0
      %6815 = vmatprep.subr.mxu0 0.0
      %6816 = vmatpush1.msra.mxu0 0.0
      %6817 = vmatprep.subr.mxu0 0.0
      %6818 = vmatpush1.msra.mxu0 0.0
      %6819 = vmatprep.subr.mxu0 0.0
      %6820 = vmatpush1.msra.mxu0 0.0
      %6821 = vmatprep.subr.mxu0 0.0
      %6822 = vmatpush1.msra.mxu0 0.0
      %6823 = vmatprep.subr.mxu0 0.0
      %6824 = vmatpush1.msra.mxu0 0.0
      %6825 = vmatprep.subr.mxu0 0.0
      %6826 = vmatpush1.msra.mxu0 0.0
      %6827 = vmatprep.subr.mxu0 0.0
      %6828 = vmatpush1.msra.mxu0 0.0
      %6829 = vmatprep.subr.mxu0 0.0
      %6830 = vmatpush1.msra.mxu0 0.0
      %6831 = vmatprep.subr.mxu0 0.0
      %6832 = vmatpush1.msra.mxu0 0.0
      %6833 = vmatprep.subr.mxu0 0.0
      %6834 = vmatpush1.msra.mxu0 0.0
      %6835 = vmatprep.subr.mxu0 0.0
      %6836 = vmatpush1.msra.mxu0 0.0
      %6837 = vmatprep.subr.mxu0 0.0
      %6838 = vmatpush1.msra.mxu0 0.0
      %6839 = vmatprep.subr.mxu0 0.0
      %6840 = vmatpush1.msra.mxu0 0.0
      %6841 = vmatprep.subr.mxu0 0.0
      %6842 = vmatpush1.msra.mxu0 0.0
      %6843 = vmatprep.mubr.f32.mxu0 0.0
      %6844 = vmatmul.mubr.f32.gmra.mrb[0].mxu0 %v6684
      %v6845 = vpop.f32.mrb[0].mxu0
      %v6846 = vadd.f32 0.0, %v6845
      %v6847 = vpop.f32.mrb[0].mxu0
      %6848 = vmatprep.mubr.f32.mxu0 0.0
      %6849 = vmatmul.mubr.f32.gmra.mrb[0].mxu0 %v6687
      %v6850 = vpop.f32.mrb[0].mxu0
      %v6851 = vadd.f32 0.0, %v6850
      %v6852 = vpop.f32.mrb[0].mxu0
      %6853 = vmatprep.mubr.f32.mxu0 0.0
      %6854 = vmatmul.mubr.f32.gmra.mrb[0].mxu0 %v6690
      %v6855 = vpop.f32.mrb[0].mxu0
      %v6856 = vadd.f32 0.0, %v6855
      %v6857 = vpop.f32.mrb[0].mxu0
      %6858 = vmatprep.mubr.f32.mxu0 0.0
      %6859 = vmatmul.mubr.f32.gmra.mrb[0].mxu0 %v6693
      %v6860 = vpop.f32.mrb[0].mxu0
      %v6861 = vadd.f32 0.0, %v6860
      %v6862 = vpop.f32.mrb[0].mxu0
      %6863 = vmatprep.mubr.f32.mxu0 0.0
      %6864 = vmatmul.mubr.f32.gmra.mrb[0].mxu0 %v6696
      %v6865 = vpop.f32.mrb[0].mxu0
      %v6866 = vadd.f32 0.0, %v6865
      %v6867 = vpop.f32.mrb[0].mxu0
      %6868 = vmatprep.mubr.f32.mxu0 0.0
      %6869 = vmatmul.mubr.f32.gmra.mrb[0].mxu0 %v6699
      %v6870 = vpop.f32.mrb[0].mxu0
      %v6871 = vadd.f32 0.0, %v6870
      %v6872 = vpop.f32.mrb[0].mxu0
      %6873 = vmatprep.mubr.f32.mxu0 0.0
      %6874 = vmatmul.mubr.f32.gmra.mrb[0].mxu0 %v6702
      %v6875 = vpop.f32.mrb[0].mxu0
      %v6876 = vadd.f32 0.0, %v6875
      %v6877 = vpop.f32.mrb[0].mxu0
      %6878 = vmatprep.mubr.f32.mxu0 0.0
      %6879 = vmatmul.mubr.f32.gmra.mrb[0].mxu0 %v6705
      %v6880 = vpop.f32.mrb[0].mxu0
      %v6881 = vadd.f32 0.0, %v6880
      %v6882 = vpop.f32.mrb[0].mxu0
      %6883 = vmatprep.mubr.f32.mxu0 0.0
      %6884 = vmatmul.mubr.f32.gmra.mrb[0].mxu0 %v6708
      %v6885 = vpop.f32.mrb[0].mxu0
      %v6886 = vadd.f32 0.0, %v6885
      %v6887 = vpop.f32.mrb[0].mxu0
      %6888 = vmatprep.mubr.f32.mxu0 0.0
      %6889 = vmatmul.mubr.f32.gmra.mrb[0].mxu0 %v6711
      %v6890 = vpop.f32.mrb[0].mxu0
      %v6891 = vadd.f32 0.0, %v6890
      %v6892 = vpop.f32.mrb[0].mxu0
      %6893 = vmatprep.mubr.f32.mxu0 0.0
      %6894 = vmatmul.mubr.f32.gmra.mrb[0].mxu0 %v6714
      %v6895 = vpop.f32.mrb[0].mxu0
      %v6896 = vadd.f32 0.0, %v6895
      %v6897 = vpop.f32.mrb[0].mxu0
      %6898 = vmatprep.mubr.f32.mxu0 0.0
      %6899 = vmatmul.mubr.f32.gmra.mrb[0].mxu0 %v6717
      %v6900 = vpop.f32.mrb[0].mxu0
      %v6901 = vadd.f32 0.0, %v6900
      %v6902 = vpop.f32.mrb[0].mxu0
      %6903 = vmatprep.mubr.f32.mxu0 0.0
      %6904 = vmatmul.mubr.f32.gmra.mrb[0].mxu0 %v6720
      %v6905 = vpop.f32.mrb[0].mxu0
      %v6906 = vadd.f32 0.0, %v6905
      %v6907 = vpop.f32.mrb[0].mxu0
      %6908 = vmatprep.mubr.f32.mxu0 0.0
      %6909 = vmatmul.mubr.f32.gmra.mrb[0].mxu0 %v6723
      %v6910 = vpop.f32.mrb[0].mxu0
      %v6911 = vadd.f32 0.0, %v6910
      %v6912 = vpop.f32.mrb[0].mxu0
      %6913 = vmatprep.mubr.f32.mxu0 0.0
      %6914 = vmatmul.mubr.f32.gmra.mrb[0].mxu0 %v6726
      %v6915 = vpop.f32.mrb[0].mxu0
      %v6916 = vadd.f32 0.0, %v6915
      %v6917 = vpop.f32.mrb[0].mxu0
      %6918 = vmatprep.mubr.f32.mxu0 0.0
      %6919 = vmatmul.mubr.f32.gmra.mrb[0].mxu0 %v6729
      %v6920 = vpop.f32.mrb[0].mxu0
      %v6921 = vadd.f32 0.0, %v6920
      %v6922 = vpop.f32.mrb[0].mxu0
      %6923 = vmatprep.mubr.f32.mxu0 0.0
      %6924 = vmatmul.mubr.f32.gmra.mrb[0].mxu0 %v6732
      %v6925 = vpop.f32.mrb[0].mxu0
      %v6926 = vadd.f32 0.0, %v6925
      %v6927 = vpop.f32.mrb[0].mxu0
      %6928 = vmatprep.mubr.f32.mxu0 0.0
      %6929 = vmatmul.mubr.f32.gmra.mrb[0].mxu0 %v6735
      %v6930 = vpop.f32.mrb[0].mxu0
      %v6931 = vadd.f32 0.0, %v6930
      %v6932 = vpop.f32.mrb[0].mxu0
      %6933 = vmatprep.mubr.f32.mxu0 0.0
      %6934 = vmatmul.mubr.f32.gmra.mrb[0].mxu0 %v6738
      %v6935 = vpop.f32.mrb[0].mxu0
      %v6936 = vadd.f32 0.0, %v6935
      %v6937 = vpop.f32.mrb[0].mxu0
      %6938 = vmatprep.mubr.f32.mxu0 0.0
      %6939 = vmatmul.mubr.f32.gmra.mrb[0].mxu0 %v6741
      %v6940 = vpop.f32.mrb[0].mxu0
      %v6941 = vadd.f32 0.0, %v6940
      %v6942 = vpop.f32.mrb[0].mxu0
      %6943 = vmatprep.mubr.f32.mxu0 0.0
      %6944 = vmatmul.mubr.f32.gmra.mrb[0].mxu0 %v6744
      %v6945 = vpop.f32.mrb[0].mxu0
      %v6946 = vadd.f32 0.0, %v6945
      %v6947 = vpop.f32.mrb[0].mxu0
      %6948 = vmatprep.mubr.f32.mxu0 0.0
      %6949 = vmatmul.mubr.f32.gmra.mrb[0].mxu0 %v6747
      %v6950 = vpop.f32.mrb[0].mxu0
      %v6951 = vadd.f32 0.0, %v6950
      %v6952 = vpop.f32.mrb[0].mxu0
      %6953 = vmatprep.mubr.f32.mxu0 0.0
      %6954 = vmatmul.mubr.f32.gmra.mrb[0].mxu0 %v6750
      %v6955 = vpop.f32.mrb[0].mxu0
      %v6956 = vadd.f32 0.0, %v6955
      %v6957 = vpop.f32.mrb[0].mxu0
      %6958 = vmatprep.mubr.f32.mxu0 0.0
      %6959 = vmatmul.mubr.f32.gmra.mrb[0].mxu0 %v6753
      %v6960 = vpop.f32.mrb[0].mxu0
      %v6961 = vadd.f32 0.0, %v6960
      %v6962 = vpop.f32.mrb[0].mxu0
      %6963 = vmatprep.mubr.f32.mxu0 0.0
      %6964 = vmatmul.mubr.f32.gmra.mrb[0].mxu0 %v6756
      %v6965 = vpop.f32.mrb[0].mxu0
      %v6966 = vadd.f32 0.0, %v6965
      %v6967 = vpop.f32.mrb[0].mxu0
      %6968 = vmatprep.mubr.f32.mxu0 0.0
      %6969 = vmatmul.mubr.f32.gmra.mrb[0].mxu0 %v6759
      %v6970 = vpop.f32.mrb[0].mxu0
      %v6971 = vadd.f32 0.0, %v6970
      %v6972 = vpop.f32.mrb[0].mxu0
      %6973 = vmatprep.mubr.f32.mxu0 0.0
      %6974 = vmatmul.mubr.f32.gmra.mrb[0].mxu0 %v6762
      %v6975 = vpop.f32.mrb[0].mxu0
      %v6976 = vadd.f32 0.0, %v6975
      %v6977 = vpop.f32.mrb[0].mxu0
      %6978 = vmatprep.mubr.f32.mxu0 0.0
      %6979 = vmatmul.mubr.f32.gmra.mrb[0].mxu0 %v6765
      %v6980 = vpop.f32.mrb[0].mxu0
      %v6981 = vadd.f32 0.0, %v6980
      %v6982 = vpop.f32.mrb[0].mxu0
      %6983 = vmatprep.mubr.f32.mxu0 0.0
      %6984 = vmatmul.mubr.f32.gmra.mrb[0].mxu0 %v6768
      %v6985 = vpop.f32.mrb[0].mxu0
      %v6986 = vadd.f32 0.0, %v6985
      %v6987 = vpop.f32.mrb[0].mxu0
      %6988 = vmatprep.mubr.f32.mxu0 0.0
      %6989 = vmatmul.mubr.f32.gmra.mrb[0].mxu0 %v6771
      %v6990 = vpop.f32.mrb[0].mxu0
      %v6991 = vadd.f32 0.0, %v6990
      %v6992 = vpop.f32.mrb[0].mxu0
      %6993 = vmatprep.mubr.f32.mxu0 0.0
      %6994 = vmatmul.mubr.f32.gmra.mrb[0].mxu0 %v6774
      %v6995 = vpop.f32.mrb[0].mxu0
      %v6996 = vadd.f32 0.0, %v6995
      %v6997 = vpop.f32.mrb[0].mxu0
      %6998 = vmatprep.mubr.f32.mxu0 0.0
      %6999 = vmatmul.mubr.f32.gmra.mrb[0].mxu0 %v6777
      %v7000 = vpop.f32.mrb[0].mxu0
      %v7001 = vadd.f32 0.0, %v7000
      %v7002 = vpop.f32.mrb[0].mxu0
      %7003 = vdwg.mxu0
      %v7004 = vadd.f32 %v6618, %v6846
      %v7005 = vadd.f32 %v6619, %v6851
      %v7006 = vadd.f32 %v6620, %v6856
      %v7007 = vadd.f32 %v6621, %v6861
      %v7008 = vadd.f32 %v6622, %v6866
      %v7009 = vadd.f32 %v6623, %v6871
      %v7010 = vadd.f32 %v6624, %v6876
      %v7011 = vadd.f32 %v6625, %v6881
      %v7012 = vadd.f32 %v6626, %v6886
      %v7013 = vadd.f32 %v6627, %v6891
      %v7014 = vadd.f32 %v6628, %v6896
      %v7015 = vadd.f32 %v6629, %v6901
      %v7016 = vadd.f32 %v6630, %v6906
      %v7017 = vadd.f32 %v6631, %v6911
      %v7018 = vadd.f32 %v6632, %v6916
      %v7019 = vadd.f32 %v6633, %v6921
      %v7020 = vadd.f32 %v6634, %v6926
      %v7021 = vadd.f32 %v6635, %v6931
      %v7022 = vadd.f32 %v6636, %v6936
      %v7023 = vadd.f32 %v6637, %v6941
      %v7024 = vadd.f32 %v6638, %v6946
      %v7025 = vadd.f32 %v6639, %v6951
      %v7026 = vadd.f32 %v6640, %v6956
      %v7027 = vadd.f32 %v6641, %v6961
      %v7028 = vadd.f32 %v6642, %v6966
      %v7029 = vadd.f32 %v6643, %v6971
      %v7030 = vadd.f32 %v6644, %v6976
      %v7031 = vadd.f32 %v6645, %v6981
      %v7032 = vadd.f32 %v6646, %v6986
      %v7033 = vadd.f32 %v6647, %v6991
      %v7034 = vadd.f32 %v6648, %v6996
      %v7035 = vadd.f32 %v6649, %v7001
      %v7036 = vld [vmem:[%s6263 + $0x2] sm:$0xff]
      %v7037 = vld [vmem:[%s6263 + $0xa] sm:$0xff]
      %v7038 = vld [vmem:[%s6263 + $0x1a] sm:$0xff]
      %v7039 = vld [vmem:[%s6263 + $0x22] sm:$0xff]
      %v7040 = vld [vmem:[%s6263 + $0x32] sm:$0xff]
      %v7041 = vld [vmem:[%s6263 + $0x3a] sm:$0xff]
      %v7042 = vld [vmem:[%s6263 + $0x4a] sm:$0xff]
      %v7043 = vld [vmem:[%s6263 + $0x52] sm:$0xff]
      %v7044 = vld [vmem:[%s6263 + $0x62] sm:$0xff]
      %v7045 = vld [vmem:[%s6263 + $0x6a] sm:$0xff]
      %v7046 = vld [vmem:[%s6263 + $0x7a] sm:$0xff]
      %v7047 = vld [vmem:[%s6263 + $0x82] sm:$0xff]
      %v7048 = vld [vmem:[%s6263 + $0x92] sm:$0xff]
      %v7049 = vld [vmem:[%s6263 + $0x9a] sm:$0xff]
      %v7050 = vld [vmem:[%s6263 + $0xaa] sm:$0xff]
      %v7051 = vld [vmem:[%s6263 + $0xb2] sm:$0xff]
      %v7052 = vld [vmem:[%s6263 + $0xc2] sm:$0xff]
      %v7053 = vld [vmem:[%s6263 + $0xca] sm:$0xff]
      %v7054 = vld [vmem:[%s6263 + $0xda] sm:$0xff]
      %v7055 = vld [vmem:[%s6263 + $0xe2] sm:$0xff]
      %v7056 = vld [vmem:[%s6263 + $0xf2] sm:$0xff]
      %v7057 = vld [vmem:[%s6263 + $0xfa] sm:$0xff]
      %v7058 = vld [vmem:[%s6263 + $0x10a] sm:$0xff]
      %v7059 = vld [vmem:[%s6263 + $0x112] sm:$0xff]
      %v7060 = vld [vmem:[%s6263 + $0x122] sm:$0xff]
      %v7061 = vld [vmem:[%s6263 + $0x12a] sm:$0xff]
      %v7062 = vld [vmem:[%s6263 + $0x13a] sm:$0xff]
      %v7063 = vld [vmem:[%s6263 + $0x142] sm:$0xff]
      %v7064 = vld [vmem:[%s6263 + $0x152] sm:$0xff]
      %v7065 = vld [vmem:[%s6263 + $0x15a] sm:$0xff]
      %v7066 = vld [vmem:[%s6263 + $0x16a] sm:$0xff]
      %v7067 = vld [vmem:[%s6263 + $0x172] sm:$0xff]
      %v7068 = vld [vmem:[%s3 + $0x40] sm:$0xff]
      %v7070 = vsel %vm325, %v7036, 0
      %v7073 = vsel %vm325, %v7037, 0
      %v7076 = vsel %vm325, %v7038, 0
      %v7079 = vsel %vm325, %v7039, 0
      %v7082 = vsel %vm325, %v7040, 0
      %v7085 = vsel %vm325, %v7041, 0
      %v7088 = vsel %vm325, %v7042, 0
      %v7091 = vsel %vm325, %v7043, 0
      %v7094 = vsel %vm325, %v7044, 0
      %v7097 = vsel %vm325, %v7045, 0
      %v7100 = vsel %vm325, %v7046, 0
      %v7103 = vsel %vm325, %v7047, 0
      %v7106 = vsel %vm325, %v7048, 0
      %v7109 = vsel %vm325, %v7049, 0
      %v7112 = vsel %vm325, %v7050, 0
      %v7115 = vsel %vm325, %v7051, 0
      %v7118 = vsel %vm325, %v7052, 0
      %v7121 = vsel %vm325, %v7053, 0
      %v7124 = vsel %vm325, %v7054, 0
      %v7127 = vsel %vm325, %v7055, 0
      %v7130 = vsel %vm325, %v7056, 0
      %v7133 = vsel %vm325, %v7057, 0
      %v7136 = vsel %vm325, %v7058, 0
      %v7139 = vsel %vm325, %v7059, 0
      %v7142 = vsel %vm325, %v7060, 0
      %v7145 = vsel %vm325, %v7061, 0
      %v7148 = vsel %vm325, %v7062, 0
      %v7151 = vsel %vm325, %v7063, 0
      %v7154 = vsel %vm325, %v7064, 0
      %v7157 = vsel %vm325, %v7065, 0
      %v7160 = vsel %vm325, %v7066, 0
      %v7163 = vsel %vm325, %v7067, 0
      %7165 = vmatprep.subr.mxu0 0.0
      %7166 = vmatpush1.msra.mxu0 %v7068
      %7167 = vmatprep.subr.mxu0 0.0
      %7168 = vmatpush1.msra.mxu0 0.0
      %7169 = vmatprep.subr.mxu0 0.0
      %7170 = vmatpush1.msra.mxu0 0.0
      %7171 = vmatprep.subr.mxu0 0.0
      %7172 = vmatpush1.msra.mxu0 0.0
      %7173 = vmatprep.subr.mxu0 0.0
      %7174 = vmatpush1.msra.mxu0 0.0
      %7175 = vmatprep.subr.mxu0 0.0
      %7176 = vmatpush1.msra.mxu0 0.0
      %7177 = vmatprep.subr.mxu0 0.0
      %7178 = vmatpush1.msra.mxu0 0.0
      %7179 = vmatprep.subr.mxu0 0.0
      %7180 = vmatpush1.msra.mxu0 0.0
      %7181 = vmatprep.subr.mxu0 0.0
      %7182 = vmatpush1.msra.mxu0 0.0
      %7183 = vmatprep.subr.mxu0 0.0
      %7184 = vmatpush1.msra.mxu0 0.0
      %7185 = vmatprep.subr.mxu0 0.0
      %7186 = vmatpush1.msra.mxu0 0.0
      %7187 = vmatprep.subr.mxu0 0.0
      %7188 = vmatpush1.msra.mxu0 0.0
      %7189 = vmatprep.subr.mxu0 0.0
      %7190 = vmatpush1.msra.mxu0 0.0
      %7191 = vmatprep.subr.mxu0 0.0
      %7192 = vmatpush1.msra.mxu0 0.0
      %7193 = vmatprep.subr.mxu0 0.0
      %7194 = vmatpush1.msra.mxu0 0.0
      %7195 = vmatprep.subr.mxu0 0.0
      %7196 = vmatpush1.msra.mxu0 0.0
      %7197 = vmatprep.subr.mxu0 0.0
      %7198 = vmatpush1.msra.mxu0 0.0
      %7199 = vmatprep.subr.mxu0 0.0
      %7200 = vmatpush1.msra.mxu0 0.0
      %7201 = vmatprep.subr.mxu0 0.0
      %7202 = vmatpush1.msra.mxu0 0.0
      %7203 = vmatprep.subr.mxu0 0.0
      %7204 = vmatpush1.msra.mxu0 0.0
      %7205 = vmatprep.subr.mxu0 0.0
      %7206 = vmatpush1.msra.mxu0 0.0
      %7207 = vmatprep.subr.mxu0 0.0
      %7208 = vmatpush1.msra.mxu0 0.0
      %7209 = vmatprep.subr.mxu0 0.0
      %7210 = vmatpush1.msra.mxu0 0.0
      %7211 = vmatprep.subr.mxu0 0.0
      %7212 = vmatpush1.msra.mxu0 0.0
      %7213 = vmatprep.subr.mxu0 0.0
      %7214 = vmatpush1.msra.mxu0 0.0
      %7215 = vmatprep.subr.mxu0 0.0
      %7216 = vmatpush1.msra.mxu0 0.0
      %7217 = vmatprep.subr.mxu0 0.0
      %7218 = vmatpush1.msra.mxu0 0.0
      %7219 = vmatprep.subr.mxu0 0.0
      %7220 = vmatpush1.msra.mxu0 0.0
      %7221 = vmatprep.subr.mxu0 0.0
      %7222 = vmatpush1.msra.mxu0 0.0
      %7223 = vmatprep.subr.mxu0 0.0
      %7224 = vmatpush1.msra.mxu0 0.0
      %7225 = vmatprep.subr.mxu0 0.0
      %7226 = vmatpush1.msra.mxu0 0.0
      %7227 = vmatprep.subr.mxu0 0.0
      %7228 = vmatpush1.msra.mxu0 0.0
      %7229 = vmatprep.mubr.f32.mxu0 0.0
      %7230 = vmatmul.mubr.f32.gmra.mrb[0].mxu0 %v7070
      %v7231 = vpop.f32.mrb[0].mxu0
      %v7232 = vadd.f32 0.0, %v7231
      %v7233 = vpop.f32.mrb[0].mxu0
      %7234 = vmatprep.mubr.f32.mxu0 0.0
      %7235 = vmatmul.mubr.f32.gmra.mrb[0].mxu0 %v7073
      %v7236 = vpop.f32.mrb[0].mxu0
      %v7237 = vadd.f32 0.0, %v7236
      %v7238 = vpop.f32.mrb[0].mxu0
      %7239 = vmatprep.mubr.f32.mxu0 0.0
      %7240 = vmatmul.mubr.f32.gmra.mrb[0].mxu0 %v7076
      %v7241 = vpop.f32.mrb[0].mxu0
      %v7242 = vadd.f32 0.0, %v7241
      %v7243 = vpop.f32.mrb[0].mxu0
      %7244 = vmatprep.mubr.f32.mxu0 0.0
      %7245 = vmatmul.mubr.f32.gmra.mrb[0].mxu0 %v7079
      %v7246 = vpop.f32.mrb[0].mxu0
      %v7247 = vadd.f32 0.0, %v7246
      %v7248 = vpop.f32.mrb[0].mxu0
      %7249 = vmatprep.mubr.f32.mxu0 0.0
      %7250 = vmatmul.mubr.f32.gmra.mrb[0].mxu0 %v7082
      %v7251 = vpop.f32.mrb[0].mxu0
      %v7252 = vadd.f32 0.0, %v7251
      %v7253 = vpop.f32.mrb[0].mxu0
      %7254 = vmatprep.mubr.f32.mxu0 0.0
      %7255 = vmatmul.mubr.f32.gmra.mrb[0].mxu0 %v7085
      %v7256 = vpop.f32.mrb[0].mxu0
      %v7257 = vadd.f32 0.0, %v7256
      %v7258 = vpop.f32.mrb[0].mxu0
      %7259 = vmatprep.mubr.f32.mxu0 0.0
      %7260 = vmatmul.mubr.f32.gmra.mrb[0].mxu0 %v7088
      %v7261 = vpop.f32.mrb[0].mxu0
      %v7262 = vadd.f32 0.0, %v7261
      %v7263 = vpop.f32.mrb[0].mxu0
      %7264 = vmatprep.mubr.f32.mxu0 0.0
      %7265 = vmatmul.mubr.f32.gmra.mrb[0].mxu0 %v7091
      %v7266 = vpop.f32.mrb[0].mxu0
      %v7267 = vadd.f32 0.0, %v7266
      %v7268 = vpop.f32.mrb[0].mxu0
      %7269 = vmatprep.mubr.f32.mxu0 0.0
      %7270 = vmatmul.mubr.f32.gmra.mrb[0].mxu0 %v7094
      %v7271 = vpop.f32.mrb[0].mxu0
      %v7272 = vadd.f32 0.0, %v7271
      %v7273 = vpop.f32.mrb[0].mxu0
      %7274 = vmatprep.mubr.f32.mxu0 0.0
      %7275 = vmatmul.mubr.f32.gmra.mrb[0].mxu0 %v7097
      %v7276 = vpop.f32.mrb[0].mxu0
      %v7277 = vadd.f32 0.0, %v7276
      %v7278 = vpop.f32.mrb[0].mxu0
      %7279 = vmatprep.mubr.f32.mxu0 0.0
      %7280 = vmatmul.mubr.f32.gmra.mrb[0].mxu0 %v7100
      %v7281 = vpop.f32.mrb[0].mxu0
      %v7282 = vadd.f32 0.0, %v7281
      %v7283 = vpop.f32.mrb[0].mxu0
      %7284 = vmatprep.mubr.f32.mxu0 0.0
      %7285 = vmatmul.mubr.f32.gmra.mrb[0].mxu0 %v7103
      %v7286 = vpop.f32.mrb[0].mxu0
      %v7287 = vadd.f32 0.0, %v7286
      %v7288 = vpop.f32.mrb[0].mxu0
      %7289 = vmatprep.mubr.f32.mxu0 0.0
      %7290 = vmatmul.mubr.f32.gmra.mrb[0].mxu0 %v7106
      %v7291 = vpop.f32.mrb[0].mxu0
      %v7292 = vadd.f32 0.0, %v7291
      %v7293 = vpop.f32.mrb[0].mxu0
      %7294 = vmatprep.mubr.f32.mxu0 0.0
      %7295 = vmatmul.mubr.f32.gmra.mrb[0].mxu0 %v7109
      %v7296 = vpop.f32.mrb[0].mxu0
      %v7297 = vadd.f32 0.0, %v7296
      %v7298 = vpop.f32.mrb[0].mxu0
      %7299 = vmatprep.mubr.f32.mxu0 0.0
      %7300 = vmatmul.mubr.f32.gmra.mrb[0].mxu0 %v7112
      %v7301 = vpop.f32.mrb[0].mxu0
      %v7302 = vadd.f32 0.0, %v7301
      %v7303 = vpop.f32.mrb[0].mxu0
      %7304 = vmatprep.mubr.f32.mxu0 0.0
      %7305 = vmatmul.mubr.f32.gmra.mrb[0].mxu0 %v7115
      %v7306 = vpop.f32.mrb[0].mxu0
      %v7307 = vadd.f32 0.0, %v7306
      %v7308 = vpop.f32.mrb[0].mxu0
      %7309 = vmatprep.mubr.f32.mxu0 0.0
      %7310 = vmatmul.mubr.f32.gmra.mrb[0].mxu0 %v7118
      %v7311 = vpop.f32.mrb[0].mxu0
      %v7312 = vadd.f32 0.0, %v7311
      %v7313 = vpop.f32.mrb[0].mxu0
      %7314 = vmatprep.mubr.f32.mxu0 0.0
      %7315 = vmatmul.mubr.f32.gmra.mrb[0].mxu0 %v7121
      %v7316 = vpop.f32.mrb[0].mxu0
      %v7317 = vadd.f32 0.0, %v7316
      %v7318 = vpop.f32.mrb[0].mxu0
      %7319 = vmatprep.mubr.f32.mxu0 0.0
      %7320 = vmatmul.mubr.f32.gmra.mrb[0].mxu0 %v7124
      %v7321 = vpop.f32.mrb[0].mxu0
      %v7322 = vadd.f32 0.0, %v7321
      %v7323 = vpop.f32.mrb[0].mxu0
      %7324 = vmatprep.mubr.f32.mxu0 0.0
      %7325 = vmatmul.mubr.f32.gmra.mrb[0].mxu0 %v7127
      %v7326 = vpop.f32.mrb[0].mxu0
      %v7327 = vadd.f32 0.0, %v7326
      %v7328 = vpop.f32.mrb[0].mxu0
      %7329 = vmatprep.mubr.f32.mxu0 0.0
      %7330 = vmatmul.mubr.f32.gmra.mrb[0].mxu0 %v7130
      %v7331 = vpop.f32.mrb[0].mxu0
      %v7332 = vadd.f32 0.0, %v7331
      %v7333 = vpop.f32.mrb[0].mxu0
      %7334 = vmatprep.mubr.f32.mxu0 0.0
      %7335 = vmatmul.mubr.f32.gmra.mrb[0].mxu0 %v7133
      %v7336 = vpop.f32.mrb[0].mxu0
      %v7337 = vadd.f32 0.0, %v7336
      %v7338 = vpop.f32.mrb[0].mxu0
      %7339 = vmatprep.mubr.f32.mxu0 0.0
      %7340 = vmatmul.mubr.f32.gmra.mrb[0].mxu0 %v7136
      %v7341 = vpop.f32.mrb[0].mxu0
      %v7342 = vadd.f32 0.0, %v7341
      %v7343 = vpop.f32.mrb[0].mxu0
      %7344 = vmatprep.mubr.f32.mxu0 0.0
      %7345 = vmatmul.mubr.f32.gmra.mrb[0].mxu0 %v7139
      %v7346 = vpop.f32.mrb[0].mxu0
      %v7347 = vadd.f32 0.0, %v7346
      %v7348 = vpop.f32.mrb[0].mxu0
      %7349 = vmatprep.mubr.f32.mxu0 0.0
      %7350 = vmatmul.mubr.f32.gmra.mrb[0].mxu0 %v7142
      %v7351 = vpop.f32.mrb[0].mxu0
      %v7352 = vadd.f32 0.0, %v7351
      %v7353 = vpop.f32.mrb[0].mxu0
      %7354 = vmatprep.mubr.f32.mxu0 0.0
      %7355 = vmatmul.mubr.f32.gmra.mrb[0].mxu0 %v7145
      %v7356 = vpop.f32.mrb[0].mxu0
      %v7357 = vadd.f32 0.0, %v7356
      %v7358 = vpop.f32.mrb[0].mxu0
      %7359 = vmatprep.mubr.f32.mxu0 0.0
      %7360 = vmatmul.mubr.f32.gmra.mrb[0].mxu0 %v7148
      %v7361 = vpop.f32.mrb[0].mxu0
      %v7362 = vadd.f32 0.0, %v7361
      %v7363 = vpop.f32.mrb[0].mxu0
      %7364 = vmatprep.mubr.f32.mxu0 0.0
      %7365 = vmatmul.mubr.f32.gmra.mrb[0].mxu0 %v7151
      %v7366 = vpop.f32.mrb[0].mxu0
      %v7367 = vadd.f32 0.0, %v7366
      %v7368 = vpop.f32.mrb[0].mxu0
      %7369 = vmatprep.mubr.f32.mxu0 0.0
      %7370 = vmatmul.mubr.f32.gmra.mrb[0].mxu0 %v7154
      %v7371 = vpop.f32.mrb[0].mxu0
      %v7372 = vadd.f32 0.0, %v7371
      %v7373 = vpop.f32.mrb[0].mxu0
      %7374 = vmatprep.mubr.f32.mxu0 0.0
      %7375 = vmatmul.mubr.f32.gmra.mrb[0].mxu0 %v7157
      %v7376 = vpop.f32.mrb[0].mxu0
      %v7377 = vadd.f32 0.0, %v7376
      %v7378 = vpop.f32.mrb[0].mxu0
      %7379 = vmatprep.mubr.f32.mxu0 0.0
      %7380 = vmatmul.mubr.f32.gmra.mrb[0].mxu0 %v7160
      %v7381 = vpop.f32.mrb[0].mxu0
      %v7382 = vadd.f32 0.0, %v7381
      %v7383 = vpop.f32.mrb[0].mxu0
      %7384 = vmatprep.mubr.f32.mxu0 0.0
      %7385 = vmatmul.mubr.f32.gmra.mrb[0].mxu0 %v7163
      %v7386 = vpop.f32.mrb[0].mxu0
      %v7387 = vadd.f32 0.0, %v7386
      %v7388 = vpop.f32.mrb[0].mxu0
      %7389 = vdwg.mxu0
      %v7390 = vadd.f32 %v7004, %v7232
      %v7391 = vadd.f32 %v7005, %v7237
      %v7392 = vadd.f32 %v7006, %v7242
      %v7393 = vadd.f32 %v7007, %v7247
      %v7394 = vadd.f32 %v7008, %v7252
      %v7395 = vadd.f32 %v7009, %v7257
      %v7396 = vadd.f32 %v7010, %v7262
      %v7397 = vadd.f32 %v7011, %v7267
      %v7398 = vadd.f32 %v7012, %v7272
      %v7399 = vadd.f32 %v7013, %v7277
      %v7400 = vadd.f32 %v7014, %v7282
      %v7401 = vadd.f32 %v7015, %v7287
      %v7402 = vadd.f32 %v7016, %v7292
      %v7403 = vadd.f32 %v7017, %v7297
      %v7404 = vadd.f32 %v7018, %v7302
      %v7405 = vadd.f32 %v7019, %v7307
      %v7406 = vadd.f32 %v7020, %v7312
      %v7407 = vadd.f32 %v7021, %v7317
      %v7408 = vadd.f32 %v7022, %v7322
      %v7409 = vadd.f32 %v7023, %v7327
      %v7410 = vadd.f32 %v7024, %v7332
      %v7411 = vadd.f32 %v7025, %v7337
      %v7412 = vadd.f32 %v7026, %v7342
      %v7413 = vadd.f32 %v7027, %v7347
      %v7414 = vadd.f32 %v7028, %v7352
      %v7415 = vadd.f32 %v7029, %v7357
      %v7416 = vadd.f32 %v7030, %v7362
      %v7417 = vadd.f32 %v7031, %v7367
      %v7418 = vadd.f32 %v7032, %v7372
      %v7419 = vadd.f32 %v7033, %v7377
      %v7420 = vadd.f32 %v7034, %v7382
      %v7421 = vadd.f32 %v7035, %v7387
      %v7422 = vld [vmem:[%s4] sm:$0x1]
      %v7424 = vlaneseq
      %v7425 = vshrl.u32 %v7424, 7
      %v7426 = vsub.s32 0, %v7425
      %v7427 = vrot.slane %v7422, %v7426
      %v7429 = vadd.f32 %v7390, %v7427
      %v7430 = vadd.f32 %v7391, %v7427
      %v7431 = vadd.f32 %v7392, %v7427
      %v7432 = vadd.f32 %v7393, %v7427
      %v7433 = vadd.f32 %v7394, %v7427
      %v7434 = vadd.f32 %v7395, %v7427
      %v7435 = vadd.f32 %v7396, %v7427
      %v7436 = vadd.f32 %v7397, %v7427
      %v7437 = vadd.f32 %v7398, %v7427
      %v7438 = vadd.f32 %v7399, %v7427
      %v7439 = vadd.f32 %v7400, %v7427
      %v7440 = vadd.f32 %v7401, %v7427
      %v7441 = vadd.f32 %v7402, %v7427
      %v7442 = vadd.f32 %v7403, %v7427
      %v7443 = vadd.f32 %v7404, %v7427
      %v7444 = vadd.f32 %v7405, %v7427
      %v7445 = vadd.f32 %v7406, %v7427
      %v7446 = vadd.f32 %v7407, %v7427
      %v7447 = vadd.f32 %v7408, %v7427
      %v7448 = vadd.f32 %v7409, %v7427
      %v7449 = vadd.f32 %v7410, %v7427
      %v7450 = vadd.f32 %v7411, %v7427
      %v7451 = vadd.f32 %v7412, %v7427
      %v7452 = vadd.f32 %v7413, %v7427
      %v7453 = vadd.f32 %v7414, %v7427
      %v7454 = vadd.f32 %v7415, %v7427
      %v7455 = vadd.f32 %v7416, %v7427
      %v7456 = vadd.f32 %v7417, %v7427
      %v7457 = vadd.f32 %v7418, %v7427
      %v7458 = vadd.f32 %v7419, %v7427
      %v7459 = vadd.f32 %v7420, %v7427
      %v7460 = vadd.f32 %v7421, %v7427
      %v7461 = vld [vmem:[%s5] sm:$0xf]
      %v7462 = vld [vmem:[%s6] sm:$0x1]
      %v7464 = vlaneseq
      %v7465 = vshrl.u32 %v7464, 7
      %v7466 = vsub.s32 0, %v7465
      %v7467 = vrot.slane %v7462, %v7466
      %v7470 = vsel %vm279, %v371, 0
      %v7473 = vsel %vm279, %v372, 0
      %v7476 = vsel %vm279, %v373, 0
      %v7479 = vsel %vm279, %v374, 0
      %v7482 = vsel %vm279, %v375, 0
      %v7485 = vsel %vm279, %v376, 0
      %v7488 = vsel %vm279, %v377, 0
      %v7491 = vsel %vm279, %v378, 0
      %v7494 = vsel %vm279, %v379, 0
      %v7497 = vsel %vm279, %v380, 0
      %v7500 = vsel %vm279, %v381, 0
      %v7503 = vsel %vm279, %v382, 0
      %v7506 = vsel %vm279, %v383, 0
      %v7509 = vsel %vm279, %v384, 0
      %v7512 = vsel %vm279, %v385, 0
      %v7515 = vsel %vm279, %v386, 0
      %v7518 = vsel %vm279, %v387, 0
      %v7521 = vsel %vm279, %v388, 0
      %v7524 = vsel %vm279, %v389, 0
      %v7527 = vsel %vm279, %v390, 0
      %v7530 = vsel %vm279, %v391, 0
      %v7533 = vsel %vm279, %v392, 0
      %v7536 = vsel %vm279, %v393, 0
      %v7539 = vsel %vm279, %v394, 0
      %v7542 = vsel %vm279, %v395, 0
      %v7545 = vsel %vm279, %v396, 0
      %v7548 = vsel %vm279, %v397, 0
      %v7551 = vsel %vm279, %v398, 0
      %v7554 = vsel %vm279, %v399, 0
      %v7557 = vsel %vm279, %v400, 0
      %v7560 = vsel %vm279, %v401, 0
      %v7563 = vsel %vm279, %v402, 0
      %v7566 = vsel %vm630, %v7461, 0
      %7568 = vmatprep.subr.mxu0 0.0
      %7569 = vmatpush1.msra.mxu0 %v7566
      %7570 = vmatprep.subr.mxu0 0.0
      %7571 = vmatpush1.msra.mxu0 0.0
      %7572 = vmatprep.subr.mxu0 0.0
      %7573 = vmatpush1.msra.mxu0 0.0
      %7574 = vmatprep.subr.mxu0 0.0
      %7575 = vmatpush1.msra.mxu0 0.0
      %7576 = vmatprep.subr.mxu0 0.0
      %7577 = vmatpush1.msra.mxu0 0.0
      %7578 = vmatprep.subr.mxu0 0.0
      %7579 = vmatpush1.msra.mxu0 0.0
      %7580 = vmatprep.subr.mxu0 0.0
      %7581 = vmatpush1.msra.mxu0 0.0
      %7582 = vmatprep.subr.mxu0 0.0
      %7583 = vmatpush1.msra.mxu0 0.0
      %7584 = vmatprep.subr.mxu0 0.0
      %7585 = vmatpush1.msra.mxu0 0.0
      %7586 = vmatprep.subr.mxu0 0.0
      %7587 = vmatpush1.msra.mxu0 0.0
      %7588 = vmatprep.subr.mxu0 0.0
      %7589 = vmatpush1.msra.mxu0 0.0
      %7590 = vmatprep.subr.mxu0 0.0
      %7591 = vmatpush1.msra.mxu0 0.0
      %7592 = vmatprep.subr.mxu0 0.0
      %7593 = vmatpush1.msra.mxu0 0.0
      %7594 = vmatprep.subr.mxu0 0.0
      %7595 = vmatpush1.msra.mxu0 0.0
      %7596 = vmatprep.subr.mxu0 0.0
      %7597 = vmatpush1.msra.mxu0 0.0
      %7598 = vmatprep.subr.mxu0 0.0
      %7599 = vmatpush1.msra.mxu0 0.0
      %7600 = vmatprep.subr.mxu0 0.0
      %7601 = vmatpush1.msra.mxu0 0.0
      %7602 = vmatprep.subr.mxu0 0.0
      %7603 = vmatpush1.msra.mxu0 0.0
      %7604 = vmatprep.subr.mxu0 0.0
      %7605 = vmatpush1.msra.mxu0 0.0
      %7606 = vmatprep.subr.mxu0 0.0
      %7607 = vmatpush1.msra.mxu0 0.0
      %7608 = vmatprep.subr.mxu0 0.0
      %7609 = vmatpush1.msra.mxu0 0.0
      %7610 = vmatprep.subr.mxu0 0.0
      %7611 = vmatpush1.msra.mxu0 0.0
      %7612 = vmatprep.subr.mxu0 0.0
      %7613 = vmatpush1.msra.mxu0 0.0
      %7614 = vmatprep.subr.mxu0 0.0
      %7615 = vmatpush1.msra.mxu0 0.0
      %7616 = vmatprep.subr.mxu0 0.0
      %7617 = vmatpush1.msra.mxu0 0.0
      %7618 = vmatprep.subr.mxu0 0.0
      %7619 = vmatpush1.msra.mxu0 0.0
      %7620 = vmatprep.subr.mxu0 0.0
      %7621 = vmatpush1.msra.mxu0 0.0
      %7622 = vmatprep.subr.mxu0 0.0
      %7623 = vmatpush1.msra.mxu0 0.0
      %7624 = vmatprep.subr.mxu0 0.0
      %7625 = vmatpush1.msra.mxu0 0.0
      %7626 = vmatprep.subr.mxu0 0.0
      %7627 = vmatpush1.msra.mxu0 0.0
      %7628 = vmatprep.subr.mxu0 0.0
      %7629 = vmatpush1.msra.mxu0 0.0
      %7630 = vmatprep.subr.mxu0 0.0
      %7631 = vmatpush1.msra.mxu0 0.0
      %7632 = vmatprep.mubr.f32.mxu0 0.0
      %7633 = vmatmul.mubr.f32.gmra.mrb[0].mxu0 %v7470
      %v7634 = vpop.f32.mrb[0].mxu0
      %v7635 = vadd.f32 %v7467, %v7634
      %v7636 = vpop.f32.mrb[0].mxu0
      %7637 = vmatprep.mubr.f32.mxu0 0.0
      %7638 = vmatmul.mubr.f32.gmra.mrb[0].mxu0 %v7473
      %v7639 = vpop.f32.mrb[0].mxu0
      %v7640 = vadd.f32 %v7467, %v7639
      %v7641 = vpop.f32.mrb[0].mxu0
      %7642 = vmatprep.mubr.f32.mxu0 0.0
      %7643 = vmatmul.mubr.f32.gmra.mrb[0].mxu0 %v7476
      %v7644 = vpop.f32.mrb[0].mxu0
      %v7645 = vadd.f32 %v7467, %v7644
      %v7646 = vpop.f32.mrb[0].mxu0
      %7647 = vmatprep.mubr.f32.mxu0 0.0
      %7648 = vmatmul.mubr.f32.gmra.mrb[0].mxu0 %v7479
      %v7649 = vpop.f32.mrb[0].mxu0
      %v7650 = vadd.f32 %v7467, %v7649
      %v7651 = vpop.f32.mrb[0].mxu0
      %7652 = vmatprep.mubr.f32.mxu0 0.0
      %7653 = vmatmul.mubr.f32.gmra.mrb[0].mxu0 %v7482
      %v7654 = vpop.f32.mrb[0].mxu0
      %v7655 = vadd.f32 %v7467, %v7654
      %v7656 = vpop.f32.mrb[0].mxu0
      %7657 = vmatprep.mubr.f32.mxu0 0.0
      %7658 = vmatmul.mubr.f32.gmra.mrb[0].mxu0 %v7485
      %v7659 = vpop.f32.mrb[0].mxu0
      %v7660 = vadd.f32 %v7467, %v7659
      %v7661 = vpop.f32.mrb[0].mxu0
      %7662 = vmatprep.mubr.f32.mxu0 0.0
      %7663 = vmatmul.mubr.f32.gmra.mrb[0].mxu0 %v7488
      %v7664 = vpop.f32.mrb[0].mxu0
      %v7665 = vadd.f32 %v7467, %v7664
      %v7666 = vpop.f32.mrb[0].mxu0
      %7667 = vmatprep.mubr.f32.mxu0 0.0
      %7668 = vmatmul.mubr.f32.gmra.mrb[0].mxu0 %v7491
      %v7669 = vpop.f32.mrb[0].mxu0
      %v7670 = vadd.f32 %v7467, %v7669
      %v7671 = vpop.f32.mrb[0].mxu0
      %7672 = vmatprep.mubr.f32.mxu0 0.0
      %7673 = vmatmul.mubr.f32.gmra.mrb[0].mxu0 %v7494
      %v7674 = vpop.f32.mrb[0].mxu0
      %v7675 = vadd.f32 %v7467, %v7674
      %v7676 = vpop.f32.mrb[0].mxu0
      %7677 = vmatprep.mubr.f32.mxu0 0.0
      %7678 = vmatmul.mubr.f32.gmra.mrb[0].mxu0 %v7497
      %v7679 = vpop.f32.mrb[0].mxu0
      %v7680 = vadd.f32 %v7467, %v7679
      %v7681 = vpop.f32.mrb[0].mxu0
      %7682 = vmatprep.mubr.f32.mxu0 0.0
      %7683 = vmatmul.mubr.f32.gmra.mrb[0].mxu0 %v7500
      %v7684 = vpop.f32.mrb[0].mxu0
      %v7685 = vadd.f32 %v7467, %v7684
      %v7686 = vpop.f32.mrb[0].mxu0
      %7687 = vmatprep.mubr.f32.mxu0 0.0
      %7688 = vmatmul.mubr.f32.gmra.mrb[0].mxu0 %v7503
      %v7689 = vpop.f32.mrb[0].mxu0
      %v7690 = vadd.f32 %v7467, %v7689
      %v7691 = vpop.f32.mrb[0].mxu0
      %7692 = vmatprep.mubr.f32.mxu0 0.0
      %7693 = vmatmul.mubr.f32.gmra.mrb[0].mxu0 %v7506
      %v7694 = vpop.f32.mrb[0].mxu0
      %v7695 = vadd.f32 %v7467, %v7694
      %v7696 = vpop.f32.mrb[0].mxu0
      %7697 = vmatprep.mubr.f32.mxu0 0.0
      %7698 = vmatmul.mubr.f32.gmra.mrb[0].mxu0 %v7509
      %v7699 = vpop.f32.mrb[0].mxu0
      %v7700 = vadd.f32 %v7467, %v7699
      %v7701 = vpop.f32.mrb[0].mxu0
      %7702 = vmatprep.mubr.f32.mxu0 0.0
      %7703 = vmatmul.mubr.f32.gmra.mrb[0].mxu0 %v7512
      %v7704 = vpop.f32.mrb[0].mxu0
      %v7705 = vadd.f32 %v7467, %v7704
      %v7706 = vpop.f32.mrb[0].mxu0
      %7707 = vmatprep.mubr.f32.mxu0 0.0
      %7708 = vmatmul.mubr.f32.gmra.mrb[0].mxu0 %v7515
      %v7709 = vpop.f32.mrb[0].mxu0
      %v7710 = vadd.f32 %v7467, %v7709
      %v7711 = vpop.f32.mrb[0].mxu0
      %7712 = vmatprep.mubr.f32.mxu0 0.0
      %7713 = vmatmul.mubr.f32.gmra.mrb[0].mxu0 %v7518
      %v7714 = vpop.f32.mrb[0].mxu0
      %v7715 = vadd.f32 %v7467, %v7714
      %v7716 = vpop.f32.mrb[0].mxu0
      %7717 = vmatprep.mubr.f32.mxu0 0.0
      %7718 = vmatmul.mubr.f32.gmra.mrb[0].mxu0 %v7521
      %v7719 = vpop.f32.mrb[0].mxu0
      %v7720 = vadd.f32 %v7467, %v7719
      %v7721 = vpop.f32.mrb[0].mxu0
      %7722 = vmatprep.mubr.f32.mxu0 0.0
      %7723 = vmatmul.mubr.f32.gmra.mrb[0].mxu0 %v7524
      %v7724 = vpop.f32.mrb[0].mxu0
      %v7725 = vadd.f32 %v7467, %v7724
      %v7726 = vpop.f32.mrb[0].mxu0
      %7727 = vmatprep.mubr.f32.mxu0 0.0
      %7728 = vmatmul.mubr.f32.gmra.mrb[0].mxu0 %v7527
      %v7729 = vpop.f32.mrb[0].mxu0
      %v7730 = vadd.f32 %v7467, %v7729
      %v7731 = vpop.f32.mrb[0].mxu0
      %7732 = vmatprep.mubr.f32.mxu0 0.0
      %7733 = vmatmul.mubr.f32.gmra.mrb[0].mxu0 %v7530
      %v7734 = vpop.f32.mrb[0].mxu0
      %v7735 = vadd.f32 %v7467, %v7734
      %v7736 = vpop.f32.mrb[0].mxu0
      %7737 = vmatprep.mubr.f32.mxu0 0.0
      %7738 = vmatmul.mubr.f32.gmra.mrb[0].mxu0 %v7533
      %v7739 = vpop.f32.mrb[0].mxu0
      %v7740 = vadd.f32 %v7467, %v7739
      %v7741 = vpop.f32.mrb[0].mxu0
      %7742 = vmatprep.mubr.f32.mxu0 0.0
      %7743 = vmatmul.mubr.f32.gmra.mrb[0].mxu0 %v7536
      %v7744 = vpop.f32.mrb[0].mxu0
      %v7745 = vadd.f32 %v7467, %v7744
      %v7746 = vpop.f32.mrb[0].mxu0
      %7747 = vmatprep.mubr.f32.mxu0 0.0
      %7748 = vmatmul.mubr.f32.gmra.mrb[0].mxu0 %v7539
      %v7749 = vpop.f32.mrb[0].mxu0
      %v7750 = vadd.f32 %v7467, %v7749
      %v7751 = vpop.f32.mrb[0].mxu0
      %7752 = vmatprep.mubr.f32.mxu0 0.0
      %7753 = vmatmul.mubr.f32.gmra.mrb[0].mxu0 %v7542
      %v7754 = vpop.f32.mrb[0].mxu0
      %v7755 = vadd.f32 %v7467, %v7754
      %v7756 = vpop.f32.mrb[0].mxu0
      %7757 = vmatprep.mubr.f32.mxu0 0.0
      %7758 = vmatmul.mubr.f32.gmra.mrb[0].mxu0 %v7545
      %v7759 = vpop.f32.mrb[0].mxu0
      %v7760 = vadd.f32 %v7467, %v7759
      %v7761 = vpop.f32.mrb[0].mxu0
      %7762 = vmatprep.mubr.f32.mxu0 0.0
      %7763 = vmatmul.mubr.f32.gmra.mrb[0].mxu0 %v7548
      %v7764 = vpop.f32.mrb[0].mxu0
      %v7765 = vadd.f32 %v7467, %v7764
      %v7766 = vpop.f32.mrb[0].mxu0
      %7767 = vmatprep.mubr.f32.mxu0 0.0
      %7768 = vmatmul.mubr.f32.gmra.mrb[0].mxu0 %v7551
      %v7769 = vpop.f32.mrb[0].mxu0
      %v7770 = vadd.f32 %v7467, %v7769
      %v7771 = vpop.f32.mrb[0].mxu0
      %7772 = vmatprep.mubr.f32.mxu0 0.0
      %7773 = vmatmul.mubr.f32.gmra.mrb[0].mxu0 %v7554
      %v7774 = vpop.f32.mrb[0].mxu0
      %v7775 = vadd.f32 %v7467, %v7774
      %v7776 = vpop.f32.mrb[0].mxu0
      %7777 = vmatprep.mubr.f32.mxu0 0.0
      %7778 = vmatmul.mubr.f32.gmra.mrb[0].mxu0 %v7557
      %v7779 = vpop.f32.mrb[0].mxu0
      %v7780 = vadd.f32 %v7467, %v7779
      %v7781 = vpop.f32.mrb[0].mxu0
      %7782 = vmatprep.mubr.f32.mxu0 0.0
      %7783 = vmatmul.mubr.f32.gmra.mrb[0].mxu0 %v7560
      %v7784 = vpop.f32.mrb[0].mxu0
      %v7785 = vadd.f32 %v7467, %v7784
      %v7786 = vpop.f32.mrb[0].mxu0
      %7787 = vmatprep.mubr.f32.mxu0 0.0
      %7788 = vmatmul.mubr.f32.gmra.mrb[0].mxu0 %v7563
      %v7789 = vpop.f32.mrb[0].mxu0
      %v7790 = vadd.f32 %v7467, %v7789
      %v7791 = vpop.f32.mrb[0].mxu0
      %7792 = vdwg.mxu0
      %v7793 = vadd.f32 %v7635, %v7429
      %v7794 = vadd.f32 %v7640, %v7430
      %v7795 = vadd.f32 %v7645, %v7431
      %v7796 = vadd.f32 %v7650, %v7432
      %v7797 = vadd.f32 %v7655, %v7433
      %v7798 = vadd.f32 %v7660, %v7434
      %v7799 = vadd.f32 %v7665, %v7435
      %v7800 = vadd.f32 %v7670, %v7436
      %v7801 = vadd.f32 %v7675, %v7437
      %v7802 = vadd.f32 %v7680, %v7438
      %v7803 = vadd.f32 %v7685, %v7439
      %v7804 = vadd.f32 %v7690, %v7440
      %v7805 = vadd.f32 %v7695, %v7441
      %v7806 = vadd.f32 %v7700, %v7442
      %v7807 = vadd.f32 %v7705, %v7443
      %v7808 = vadd.f32 %v7710, %v7444
      %v7809 = vadd.f32 %v7715, %v7445
      %v7810 = vadd.f32 %v7720, %v7446
      %v7811 = vadd.f32 %v7725, %v7447
      %v7812 = vadd.f32 %v7730, %v7448
      %v7813 = vadd.f32 %v7735, %v7449
      %v7814 = vadd.f32 %v7740, %v7450
      %v7815 = vadd.f32 %v7745, %v7451
      %v7816 = vadd.f32 %v7750, %v7452
      %v7817 = vadd.f32 %v7755, %v7453
      %v7818 = vadd.f32 %v7760, %v7454
      %v7819 = vadd.f32 %v7765, %v7455
      %v7820 = vadd.f32 %v7770, %v7456
      %v7821 = vadd.f32 %v7775, %v7457
      %v7822 = vadd.f32 %v7780, %v7458
      %v7823 = vadd.f32 %v7785, %v7459
      %v7824 = vadd.f32 %v7790, %v7460
      %7825 = vst.msk [vmem:[%s278] sm:$0xff] %vm325, %v7793
      %7826 = vst.msk [vmem:[%s278 + $0x8] sm:$0xff] %vm325, %v7794
      %7827 = vst.msk [vmem:[%s278 + $0x10] sm:$0xff] %vm325, %v7795
      %7828 = vst.msk [vmem:[%s278 + $0x18] sm:$0xff] %vm325, %v7796
      %7829 = vst.msk [vmem:[%s278 + $0x20] sm:$0xff] %vm325, %v7797
      %7830 = vst.msk [vmem:[%s278 + $0x28] sm:$0xff] %vm325, %v7798
      %7831 = vst.msk [vmem:[%s278 + $0x30] sm:$0xff] %vm325, %v7799
      %7832 = vst.msk [vmem:[%s278 + $0x38] sm:$0xff] %vm325, %v7800
      %7833 = vst.msk [vmem:[%s278 + $0x40] sm:$0xff] %vm325, %v7801
      %7834 = vst.msk [vmem:[%s278 + $0x48] sm:$0xff] %vm325, %v7802
      %7835 = vst.msk [vmem:[%s278 + $0x50] sm:$0xff] %vm325, %v7803
      %7836 = vst.msk [vmem:[%s278 + $0x58] sm:$0xff] %vm325, %v7804
      %7837 = vst.msk [vmem:[%s278 + $0x60] sm:$0xff] %vm325, %v7805
      %7838 = vst.msk [vmem:[%s278 + $0x68] sm:$0xff] %vm325, %v7806
      %7839 = vst.msk [vmem:[%s278 + $0x70] sm:$0xff] %vm325, %v7807
      %7840 = vst.msk [vmem:[%s278 + $0x78] sm:$0xff] %vm325, %v7808
      %7841 = vst.msk [vmem:[%s278 + $0x80] sm:$0xff] %vm325, %v7809
      %7842 = vst.msk [vmem:[%s278 + $0x88] sm:$0xff] %vm325, %v7810
      %7843 = vst.msk [vmem:[%s278 + $0x90] sm:$0xff] %vm325, %v7811
      %7844 = vst.msk [vmem:[%s278 + $0x98] sm:$0xff] %vm325, %v7812
      %7845 = vst.msk [vmem:[%s278 + $0xa0] sm:$0xff] %vm325, %v7813
      %7846 = vst.msk [vmem:[%s278 + $0xa8] sm:$0xff] %vm325, %v7814
      %7847 = vst.msk [vmem:[%s278 + $0xb0] sm:$0xff] %vm325, %v7815
      %7848 = vst.msk [vmem:[%s278 + $0xb8] sm:$0xff] %vm325, %v7816
      %7849 = vst.msk [vmem:[%s278 + $0xc0] sm:$0xff] %vm325, %v7817
      %7850 = vst.msk [vmem:[%s278 + $0xc8] sm:$0xff] %vm325, %v7818
      %7851 = vst.msk [vmem:[%s278 + $0xd0] sm:$0xff] %vm325, %v7819
      %7852 = vst.msk [vmem:[%s278 + $0xd8] sm:$0xff] %vm325, %v7820
      %7853 = vst.msk [vmem:[%s278 + $0xe0] sm:$0xff] %vm325, %v7821
      %7854 = vst.msk [vmem:[%s278 + $0xe8] sm:$0xff] %vm325, %v7822
      %7855 = vst.msk [vmem:[%s278 + $0xf0] sm:$0xff] %vm325, %v7823
      %7856 = vst.msk [vmem:[%s278 + $0xf8] sm:$0xff] %vm325, %v7824
      %p7857 = scmp.lt.s32.totalorder %s18, 1
      %s7858 = scalar_select %p7857, %s18, 1
      %s7859 = smul.addr %s7858, 32
      %s7860 = smul.addr %s7859, 8
      %s7861 = scalar_lea.vmem %s7, %s7860
      // Predicated region
      $region49: #{tpu_custom_call.1} parent=47 // pred_check
        %p7862 = pneg %p188
      $region50: #{tpu_custom_call.1} parent=47 // pred_check_branch
        %7864 = sbr.rel (%p7862) target = $region52
      $region51: #{tpu_custom_call.1} parent=47 // pred_region
        _
      $region52: #{tpu_custom_call.1} parent=47 // pred_fallthru
        _
    $region48: #{tpu_custom_call.1} parent=5 // pred_fallthru
      _
    %p7865 = scmp.le.s32.totalorder 2, %s13
    // Predicated region
    $region53: #{tpu_custom_call.1} parent=5 // pred_check
      %p7866 = pneg %p7865
    $region54: #{tpu_custom_call.1} parent=5 // pred_check_branch
      %7868 = sbr.rel (%p7866) target = $region56
    $region55: #{tpu_custom_call.1} parent=5 // pred_region
      %s7869 = ssub.s32 %s13, 2
      // Predicated region
      $region57: #{tpu_custom_call.1} parent=55 // pred_check
        %p7870 = pneg %p194
      $region58: #{tpu_custom_call.1} parent=55 // pred_check_branch
        %7872 = sbr.rel (%p7870) target = $region60
      $region59: #{tpu_custom_call.1} parent=55 // pred_region
        %p7873 = scmp.lt.s32.totalorder %s19, 1
        %s7874 = scalar_select %p7873, %s19, 1
        %s7875 = smul.addr %s7874, 32
        %s7876 = smul.addr %s7875, 8
        %s7877 = scalar_lea.vmem %s7, %s7876
      $region60: #{tpu_custom_call.1} parent=55 // pred_fallthru
        _
    $region56: #{tpu_custom_call.1} parent=5 // pred_fallthru
      _
  $region6: #{tpu_custom_call.1} parent=0 // loop_footer
    %s17 = sadd.s32 1, %s13
  $region7: #{tpu_custom_call.1} parent=0 // loop_footer_branch
    %12 = sbr.rel target = $region3
  $region8: #{tpu_custom_call.1} parent=0 // loop_exit
    _

</llo_original>
